<compile_context>
chip_gen: v7x
topology: tpu7x:2x2x1
jax: 0.10.0
libtpu: 0.0.40
codegen_flags: <defaults>
</compile_context>

<pallas_src>
from functools import partial
from math import sqrt

import jax
import jax.numpy as jnp
import numpy as np
from jax import lax
from jax.experimental import pallas as pl
from jax.experimental.pallas import tpu as pltpu  # imported per template; no TPU-specific scratch/DMA needed


# ----------------------------------------------------------------------------
# Fused Pallas kernel
# ----------------------------------------------------------------------------
def _fused_kernel(xw_ref, imm_ref, m1_ref, b1_ref, m2_ref, b2_ref,
                  m3_ref, b3_ref, wl1c_ref, wl1i_ref, bl1_ref,
                  wh_ref, bh_ref, out_ref, *, N, Hq, H1, H2, H3, na):
    """Entire CNNActorCritic forward; all operands/activations VMEM-resident."""

    def mm(a, b):
        return jnp.dot(a, b, preferred_element_type=jnp.float32)

    xw = xw_ref[...]                       # (4*Hq*N, W_in*nc), rows (h%4, h//4, n)
    n_rows = ((H1 + 1) // 2, H1 // 2)      # conv1 output rows per parity

    # ---- conv1 (8x8, stride 2) + ReLU: batched over (t, n) -----------------
    # a1[par][t*N + n, ow*32 + co] = relu(conv1(x))[n, co, oh=2*t+par, ow]
    a1 = []
    for par in range(2):
        nrows = n_rows[par]
        acc = None
        for kh in range(8):
            h0 = 2 * par + kh                          # input row at t == 0
            r, q0 = h0 % 4, h0 // 4
            start = r * (Hq * N) + q0 * N
            lhs = xw[start:start + nrows * N, :]       # rows h = 4*t + h0, all n
            term = mm(lhs, m1_ref[kh])                 # (nrows*N, H1*32)
            acc = term if acc is None else acc + term
        a1.append(jnp.maximum(acc + b1_ref[...], 0.0))

    # ---- conv2 (4x4, stride 2) + ReLU --------------------------------------
    # a2[oh2*N + n, ow2*64 + co] = relu(conv2)[n, co, oh2, ow2]
    acc = None
    for kh in range(4):
        q0 = kh // 2
        lhs = a1[kh % 2][q0 * N:(q0 + H2) * N, :]      # rows oh = 2*oh2 + kh, all n
        term = mm(lhs, m2_ref[kh])                     # (H2*N, H2*64)
        acc = term if acc is None else acc + term
    a2 = jnp.maximum(acc + b2_ref[...], 0.0)

    # ---- conv3 (3x3, stride 1) + ReLU --------------------------------------
    # a3[oh3*N + n, ow3*32 + co] = relu(conv3)[n, co, oh3, ow3]
    acc = None
    for kh in range(3):
        lhs = a2[kh * N:(kh + H3) * N, :]              # rows oh2 = oh3 + kh, all n
        term = mm(lhs, m3_ref[kh])                     # (H3*N, H3*32)
        acc = term if acc is None else acc + term
    a3 = jnp.maximum(acc + b3_ref[...], 0.0)

    # ---- linear1 + ReLU (batched over n) -----------------------------------
    acc = mm(imm_ref[...], wl1i_ref[...])              # (N, 64) immediate features
    for oh in range(H3):
        acc = acc + mm(a3[oh * N:(oh + 1) * N, :], wl1c_ref[oh])
    h = jnp.maximum(acc + bl1_ref[...], 0.0)           # (N, 64)

    # ---- fused policy-softmax / critic heads, single lane-dense store ------
    head = mm(h, wh_ref[...]) + bh_ref[...]            # (N, 128) lane-padded
    col = lax.broadcasted_iota(jnp.int32, head.shape, 1)
    logits = jnp.where(col < na, head, -1e30)          # mask critic / pad lanes
    mx = jnp.max(logits, axis=-1, keepdims=True)
    e = jnp.exp(logits - mx)
    denom = jnp.sum(e, axis=-1, keepdims=True)
    probs = e * pl.reciprocal(denom, approx=True)
    out_ref[...] = probs + jnp.where(col == na, head, 0.0)


def _full_spec(shape):
    zeros = (0,) * len(shape)
    return pl.BlockSpec(shape, lambda: zeros)


# ----------------------------------------------------------------------------
# Wrapper
# ----------------------------------------------------------------------------
def make_forward(H_in, nc, na, batch):
    H1 = (H_in - 8) // 2 + 1
    H2 = (H1 - 4) // 2 + 1
    H3 = (H2 - 3) // 1 + 1
    assert H3 > 0 and H_in % 4 == 0
    Hq = H_in // 4
    C1, C2, C3 = 32, 64, 32
    N = batch

    # static-geometry sanity checks for in-kernel slicing
    n_even, n_odd = (H1 + 1) // 2, H1 // 2
    for par, nrows in ((0, n_even), (1, n_odd)):
        for kh in range(8):
            assert (2 * par + kh) // 4 + nrows <= Hq
    assert 1 + H2 <= n_odd and 1 + H2 <= n_even
    assert 2 + H3 <= H2

    shapes = dict(
        xw=(4 * Hq * N, H_in * nc),
        imm=(N, 25),
        m1=(8, H_in * nc, H1 * C1),
        b1=(1, H1 * C1),
        m2=(4, H1 * C1, H2 * C2),
        b2=(1, H2 * C2),
        m3=(3, H2 * C2, H3 * C3),
        b3=(1, H3 * C3),
        wl1c=(H3, H3 * C3, 64),
        wl1i=(25, 64),
        bl1=(1, 64),
        wh=(64, 128),
        bh=(1, 128),
    )
    order = ("xw", "imm", "m1", "b1", "m2", "b2", "m3", "b3",
             "wl1c", "wl1i", "bl1", "wh", "bh")

    kernel = partial(_fused_kernel, N=N, Hq=Hq, H1=H1, H2=H2, H3=H3, na=na)
    call = pl.pallas_call(
        kernel,
        out_shape=jax.ShapeDtypeStruct((N, 128), jnp.float32),
        in_specs=[_full_spec(shapes[k]) for k in order],
        out_specs=_full_spec((N, 128)),
    )

    def forward(pp, x):
        Nb, C, H, W = x.shape
        mid = H // 2
        imm = x[:, 0, mid - 2:mid + 3, mid - 2:mid + 3].reshape(Nb, 25)
        # regroup input rows as (h % 4, h // 4, n); columns are (w, c)
        t = jnp.transpose(x, (2, 0, 3, 1))            # (H, N, W, C)
        t = t.reshape(H // 4, 4, Nb, W, C)            # [q, r, n, w, c]
        t = jnp.transpose(t, (1, 0, 2, 3, 4))         # (4, Hq, N, W, C)
        xw = t.reshape(4 * (H // 4) * Nb, W * C)
        out = call(xw, imm, pp["m1"], pp["b1"], pp["m2"], pp["b2"],
                   pp["m3"], pp["b3"], pp["wl1c"], pp["wl1i"], pp["bl1"],
                   pp["wh"], pp["bh"])
        return out[:, :na], out[:, na]

    return forward


# ----------------------------------------------------------------------------
# Parameters (canonical torch-style layouts) + one-time kernel-layout prep
# ----------------------------------------------------------------------------
def init_params(key, H_in, nc, na):
    H1 = (H_in - 8) // 2 + 1
    H2 = (H1 - 4) // 2 + 1
    H3 = (H2 - 3) // 1 + 1
    assert H3 > 0
    feat = 32 * H3 * H3 + 5 * 5

    def uni(k, shape, fan_in):
        bound = 1.0 / sqrt(fan_in)
        return jax.random.uniform(k, shape, jnp.float32, -bound, bound)

    ks = jax.random.split(key, 12)
    params = {
        "w1": uni(ks[0], (32, nc, 8, 8), nc * 64), "b1": uni(ks[1], (32,), nc * 64),
        "w2": uni(ks[2], (64, 32, 4, 4), 32 * 16), "b2": uni(ks[3], (64,), 32 * 16),
        "w3": uni(ks[4], (32, 64, 3, 3), 64 * 9), "b3": uni(ks[5], (32,), 64 * 9),
        "wl1": uni(ks[6], (feat, 64), feat), "bl1": uni(ks[7], (64,), feat),
        "wp": uni(ks[8], (64, na), 64), "bp": uni(ks[9], (na,), 64),
        "wc": uni(ks[10], (64, 1), 64), "bc": uni(ks[11], (1,), 64),
    }
    return params, (H1, H2, H3)


def prepare_params(params, H_in, nc, na):
    """Build the block-Toeplitz matmul weights consumed by the fused kernel."""
    H1 = (H_in - 8) // 2 + 1
    H2 = (H1 - 4) // 2 + 1
    H3 = (H2 - 3) // 1 + 1
    C1, C2, C3 = 32, 64, 32
    W_in = H_in

    g = lambda k: np.asarray(params[k], np.float32)
    w1, b1, w2, b2, w3, b3 = g("w1"), g("b1"), g("w2"), g("b2"), g("w3"), g("b3")
    wl1, bl1, wp, bp, wc, bc = g("wl1"), g("bl1"), g("wp"), g("bp"), g("wc"), g("bc")

    m1 = np.zeros((8, W_in * nc, H1 * C1), np.float32)
    for kh in range(8):
        for kw in range(8):
            for ow in range(H1):
                w_abs = 2 * ow + kw
                m1[kh, w_abs * nc:(w_abs + 1) * nc, ow * C1:(ow + 1) * C1] = w1[:, :, kh, kw].T

    m2 = np.zeros((4, H1 * C1, H2 * C2), np.float32)
    for kh in range(4):
        for kw in range(4):
            for ow in range(H2):
                w_abs = 2 * ow + kw
                m2[kh, w_abs * C1:(w_abs + 1) * C1, ow * C2:(ow + 1) * C2] = w2[:, :, kh, kw].T

    m3 = np.zeros((3, H2 * C2, H3 * C3), np.float32)
    for kh in range(3):
        for kw in range(3):
            for ow in range(H3):
                w_abs = ow + kw
                m3[kh, w_abs * C2:(w_abs + 1) * C2, ow * C3:(ow + 1) * C3] = w3[:, :, kh, kw].T

    # linear1 rows permuted so the (ow, co) conv3 lanes hit the torch
    # NCHW-flatten ordering (co*H3*H3 + oh*H3 + ow) without a transpose.
    wl1c = np.zeros((H3, H3 * C3, 64), np.float32)
    for oh in range(H3):
        for ow in range(H3):
            wl1c[oh, ow * C3:(ow + 1) * C3, :] = wl1[np.arange(C3) * H3 * H3 + oh * H3 + ow, :]
    wl1i = wl1[C3 * H3 * H3:, :]                      # immediate-feature rows

    # merged, lane-padded policy + critic head
    wh = np.zeros((64, 128), np.float32)
    wh[:, :na] = wp
    wh[:, na] = wc[:, 0]
    bh = np.zeros((1, 128), np.float32)
    bh[0, :na] = bp
    bh[0, na] = bc[0]

    pp = dict(
        m1=m1, b1=np.tile(b1, H1)[None, :],
        m2=m2, b2=np.tile(b2, H2)[None, :],
        m3=m3, b3=np.tile(b3, H3)[None, :],
        wl1c=wl1c, wl1i=wl1i, bl1=bl1[None, :],
        wh=wh, bh=bh,
    )
    return {k: jnp.asarray(v) for k, v in pp.items()}


# ----------------------------------------------------------------------------
# Pure-JAX reference (mirrors the PyTorch module) for self-check
# ----------------------------------------------------------------------------
def ref_forward(params, x_nchw):
    N, C, H, W = x_nchw.shape
    mid = H // 2
    immediate = x_nchw[:, 0, mid - 2:mid + 3, mid - 2:mid + 3].reshape(N, 25)

    def conv(x, w, b, s):
        y = lax.conv_general_dilated(
            x, w, window_strides=(s, s), padding="VALID",
            dimension_numbers=("NCHW", "OIHW", "NCHW"))
        return jnp.maximum(y + b[None, :, None, None], 0.0)

    x = conv(x_nchw, params["w1"], params["b1"], 2)
    x = conv(x, params["w2"], params["b2"], 2)
    x = conv(x, params["w3"], params["b3"], 1)
    x = x.reshape(N, -1)
    feat = jnp.concatenate([x, immediate], axis=1)
    h = jnp.maximum(feat @ params["wl1"] + params["bl1"], 0.0)
    pa = jax.nn.softmax(h @ params["wp"] + params["bp"], axis=-1)
    v = (h @ params["wc"] + params["bc"]).reshape(-1)
    return pa, v


# ----------------------------------------------------------------------------
if __name__ == "__main__":
    # Small shapes consistent with the module: H_in=32, nc=2, na=4, batch=2.
    H_IN, NC, NA, BATCH = 32, 2, 4, 2

    key = jax.random.PRNGKey(0)
    pkey, xkey = jax.random.split(key)
    params, _ = init_params(pkey, H_IN, NC, NA)
    prepped = prepare_params(params, H_IN, NC, NA)
    forward = make_forward(H_IN, NC, NA, BATCH)

    x = jax.random.normal(xkey, (BATCH, NC, H_IN, H_IN), jnp.float32)

    pa, v = jax.jit(forward)(prepped, x)
    pa = jax.block_until_ready(pa)
    v = jax.block_until_ready(v)

    pa_ref, v_ref = jax.jit(ref_forward)(params, x)
    np.testing.assert_allclose(np.asarray(pa), np.asarray(pa_ref), rtol=5e-3, atol=5e-3)
    np.testing.assert_allclose(np.asarray(v), np.asarray(v_ref), rtol=2e-3, atol=2e-3)
    assert pa.shape == (BATCH, NA) and v.shape == (BATCH,)
    np.testing.assert_allclose(np.asarray(pa).sum(axis=1), np.ones(BATCH),
                               rtol=5e-3, atol=5e-3)

    print("KERNEL_OK")
</pallas_src>

<mosaic_0001>
module attributes {stable_mosaic.version = 11 : i64} {
  func.func @_fused_kernel(%arg0: memref<64x64xf32, #tpu.memory_space<vmem>>, %arg1: memref<2x25xf32, #tpu.memory_space<vmem>>, %arg2: memref<8x64x416xf32, #tpu.memory_space<vmem>>, %arg3: memref<1x416xf32, #tpu.memory_space<vmem>>, %arg4: memref<4x416x320xf32, #tpu.memory_space<vmem>>, %arg5: memref<1x320xf32, #tpu.memory_space<vmem>>, %arg6: memref<3x320x96xf32, #tpu.memory_space<vmem>>, %arg7: memref<1x96xf32, #tpu.memory_space<vmem>>, %arg8: memref<3x96x64xf32, #tpu.memory_space<vmem>>, %arg9: memref<25x64xf32, #tpu.memory_space<vmem>>, %arg10: memref<1x64xf32, #tpu.memory_space<vmem>>, %arg11: memref<64x128xf32, #tpu.memory_space<vmem>>, %arg12: memref<1x128xf32, #tpu.memory_space<vmem>>, %arg13: memref<2x128xf32, #tpu.memory_space<vmem>>) attributes {dimension_semantics = [], scalar_prefetch = 0 : i64, scratch_operands = 0 : i64, tpu.core_type = #tpu.core_type<tc>} {
    %c0 = arith.constant 0 : index
    %c0_0 = arith.constant 0 : index
    %0 = vector.load %arg0[%c0, %c0_0] : memref<64x64xf32, #tpu.memory_space<vmem>>, vector<64x64xf32>
    %1 = vector.extract_strided_slice %0 {offsets = [0, 0], sizes = [14, 64], strides = [1, 1]} : vector<64x64xf32> to vector<14x64xf32>
    %c0_1 = arith.constant 0 : index
    %c0_2 = arith.constant 0 : index
    %c0_3 = arith.constant 0 : index
    %2 = vector.load %arg2[%c0_1, %c0_2, %c0_3] : memref<8x64x416xf32, #tpu.memory_space<vmem>>, vector<1x64x416xf32>
    %3 = vector.shape_cast %2 : vector<1x64x416xf32> to vector<64x416xf32>
    %cst = arith.constant dense<0.000000e+00> : vector<14x416xf32>
    %4 = tpu.matmul %1, %3, %cst {dimension_numbers = #tpu.dot_dimension_numbers<[1], [0], [0], [1], [0, 0, 1, 1], [], []>} : vector<14x64xf32>, vector<64x416xf32>, vector<14x416xf32> -> vector<14x416xf32>
    %5 = vector.extract_strided_slice %0 {offsets = [16, 0], sizes = [14, 64], strides = [1, 1]} : vector<64x64xf32> to vector<14x64xf32>
    %c1 = arith.constant 1 : index
    %c0_4 = arith.constant 0 : index
    %c0_5 = arith.constant 0 : index
    %6 = vector.load %arg2[%c1, %c0_4, %c0_5] : memref<8x64x416xf32, #tpu.memory_space<vmem>>, vector<1x64x416xf32>
    %7 = vector.shape_cast %6 : vector<1x64x416xf32> to vector<64x416xf32>
    %cst_6 = arith.constant dense<0.000000e+00> : vector<14x416xf32>
    %8 = tpu.matmul %5, %7, %cst_6 {dimension_numbers = #tpu.dot_dimension_numbers<[1], [0], [0], [1], [0, 0, 1, 1], [], []>} : vector<14x64xf32>, vector<64x416xf32>, vector<14x416xf32> -> vector<14x416xf32>
    %9 = arith.addf %4, %8 : vector<14x416xf32>
    %10 = vector.extract_strided_slice %0 {offsets = [32, 0], sizes = [14, 64], strides = [1, 1]} : vector<64x64xf32> to vector<14x64xf32>
    %c2 = arith.constant 2 : index
    %c0_7 = arith.constant 0 : index
    %c0_8 = arith.constant 0 : index
    %11 = vector.load %arg2[%c2, %c0_7, %c0_8] : memref<8x64x416xf32, #tpu.memory_space<vmem>>, vector<1x64x416xf32>
    %12 = vector.shape_cast %11 : vector<1x64x416xf32> to vector<64x416xf32>
    %cst_9 = arith.constant dense<0.000000e+00> : vector<14x416xf32>
    %13 = tpu.matmul %10, %12, %cst_9 {dimension_numbers = #tpu.dot_dimension_numbers<[1], [0], [0], [1], [0, 0, 1, 1], [], []>} : vector<14x64xf32>, vector<64x416xf32>, vector<14x416xf32> -> vector<14x416xf32>
    %14 = arith.addf %9, %13 : vector<14x416xf32>
    %15 = vector.extract_strided_slice %0 {offsets = [48, 0], sizes = [14, 64], strides = [1, 1]} : vector<64x64xf32> to vector<14x64xf32>
    %c3 = arith.constant 3 : index
    %c0_10 = arith.constant 0 : index
    %c0_11 = arith.constant 0 : index
    %16 = vector.load %arg2[%c3, %c0_10, %c0_11] : memref<8x64x416xf32, #tpu.memory_space<vmem>>, vector<1x64x416xf32>
    %17 = vector.shape_cast %16 : vector<1x64x416xf32> to vector<64x416xf32>
    %cst_12 = arith.constant dense<0.000000e+00> : vector<14x416xf32>
    %18 = tpu.matmul %15, %17, %cst_12 {dimension_numbers = #tpu.dot_dimension_numbers<[1], [0], [0], [1], [0, 0, 1, 1], [], []>} : vector<14x64xf32>, vector<64x416xf32>, vector<14x416xf32> -> vector<14x416xf32>
    %19 = arith.addf %14, %18 : vector<14x416xf32>
    %20 = vector.extract_strided_slice %0 {offsets = [2, 0], sizes = [14, 64], strides = [1, 1]} : vector<64x64xf32> to vector<14x64xf32>
    %c4 = arith.constant 4 : index
    %c0_13 = arith.constant 0 : index
    %c0_14 = arith.constant 0 : index
    %21 = vector.load %arg2[%c4, %c0_13, %c0_14] : memref<8x64x416xf32, #tpu.memory_space<vmem>>, vector<1x64x416xf32>
    %22 = vector.shape_cast %21 : vector<1x64x416xf32> to vector<64x416xf32>
    %cst_15 = arith.constant dense<0.000000e+00> : vector<14x416xf32>
    %23 = tpu.matmul %20, %22, %cst_15 {dimension_numbers = #tpu.dot_dimension_numbers<[1], [0], [0], [1], [0, 0, 1, 1], [], []>} : vector<14x64xf32>, vector<64x416xf32>, vector<14x416xf32> -> vector<14x416xf32>
    %24 = arith.addf %19, %23 : vector<14x416xf32>
    %25 = vector.extract_strided_slice %0 {offsets = [18, 0], sizes = [14, 64], strides = [1, 1]} : vector<64x64xf32> to vector<14x64xf32>
    %c5 = arith.constant 5 : index
    %c0_16 = arith.constant 0 : index
    %c0_17 = arith.constant 0 : index
    %26 = vector.load %arg2[%c5, %c0_16, %c0_17] : memref<8x64x416xf32, #tpu.memory_space<vmem>>, vector<1x64x416xf32>
    %27 = vector.shape_cast %26 : vector<1x64x416xf32> to vector<64x416xf32>
    %cst_18 = arith.constant dense<0.000000e+00> : vector<14x416xf32>
    %28 = tpu.matmul %25, %27, %cst_18 {dimension_numbers = #tpu.dot_dimension_numbers<[1], [0], [0], [1], [0, 0, 1, 1], [], []>} : vector<14x64xf32>, vector<64x416xf32>, vector<14x416xf32> -> vector<14x416xf32>
    %29 = arith.addf %24, %28 : vector<14x416xf32>
    %30 = vector.extract_strided_slice %0 {offsets = [34, 0], sizes = [14, 64], strides = [1, 1]} : vector<64x64xf32> to vector<14x64xf32>
    %c6 = arith.constant 6 : index
    %c0_19 = arith.constant 0 : index
    %c0_20 = arith.constant 0 : index
    %31 = vector.load %arg2[%c6, %c0_19, %c0_20] : memref<8x64x416xf32, #tpu.memory_space<vmem>>, vector<1x64x416xf32>
    %32 = vector.shape_cast %31 : vector<1x64x416xf32> to vector<64x416xf32>
    %cst_21 = arith.constant dense<0.000000e+00> : vector<14x416xf32>
    %33 = tpu.matmul %30, %32, %cst_21 {dimension_numbers = #tpu.dot_dimension_numbers<[1], [0], [0], [1], [0, 0, 1, 1], [], []>} : vector<14x64xf32>, vector<64x416xf32>, vector<14x416xf32> -> vector<14x416xf32>
    %34 = arith.addf %29, %33 : vector<14x416xf32>
    %35 = vector.extract_strided_slice %0 {offsets = [50, 0], sizes = [14, 64], strides = [1, 1]} : vector<64x64xf32> to vector<14x64xf32>
    %c7 = arith.constant 7 : index
    %c0_22 = arith.constant 0 : index
    %c0_23 = arith.constant 0 : index
    %36 = vector.load %arg2[%c7, %c0_22, %c0_23] : memref<8x64x416xf32, #tpu.memory_space<vmem>>, vector<1x64x416xf32>
    %37 = vector.shape_cast %36 : vector<1x64x416xf32> to vector<64x416xf32>
    %cst_24 = arith.constant dense<0.000000e+00> : vector<14x416xf32>
    %38 = tpu.matmul %35, %37, %cst_24 {dimension_numbers = #tpu.dot_dimension_numbers<[1], [0], [0], [1], [0, 0, 1, 1], [], []>} : vector<14x64xf32>, vector<64x416xf32>, vector<14x416xf32> -> vector<14x416xf32>
    %39 = arith.addf %34, %38 : vector<14x416xf32>
    %c0_25 = arith.constant 0 : index
    %c0_26 = arith.constant 0 : index
    %40 = vector.load %arg3[%c0_25, %c0_26] : memref<1x416xf32, #tpu.memory_space<vmem>>, vector<1x416xf32>
    %41 = vector.broadcast %40 : vector<1x416xf32> to vector<14x416xf32>
    %42 = arith.addf %39, %41 : vector<14x416xf32>
    %cst_27 = arith.constant 0.000000e+00 : f32
    %43 = vector.broadcast %cst_27 : f32 to vector<14x416xf32>
    %44 = arith.maximumf %42, %43 : vector<14x416xf32>
    %45 = vector.extract_strided_slice %0 {offsets = [32, 0], sizes = [12, 64], strides = [1, 1]} : vector<64x64xf32> to vector<12x64xf32>
    %c0_28 = arith.constant 0 : index
    %c0_29 = arith.constant 0 : index
    %c0_30 = arith.constant 0 : index
    %46 = vector.load %arg2[%c0_28, %c0_29, %c0_30] : memref<8x64x416xf32, #tpu.memory_space<vmem>>, vector<1x64x416xf32>
    %47 = vector.shape_cast %46 : vector<1x64x416xf32> to vector<64x416xf32>
    %cst_31 = arith.constant dense<0.000000e+00> : vector<12x416xf32>
    %48 = tpu.matmul %45, %47, %cst_31 {dimension_numbers = #tpu.dot_dimension_numbers<[1], [0], [0], [1], [0, 0, 1, 1], [], []>} : vector<12x64xf32>, vector<64x416xf32>, vector<12x416xf32> -> vector<12x416xf32>
    %49 = vector.extract_strided_slice %0 {offsets = [48, 0], sizes = [12, 64], strides = [1, 1]} : vector<64x64xf32> to vector<12x64xf32>
    %c1_32 = arith.constant 1 : index
    %c0_33 = arith.constant 0 : index
    %c0_34 = arith.constant 0 : index
    %50 = vector.load %arg2[%c1_32, %c0_33, %c0_34] : memref<8x64x416xf32, #tpu.memory_space<vmem>>, vector<1x64x416xf32>
    %51 = vector.shape_cast %50 : vector<1x64x416xf32> to vector<64x416xf32>
    %cst_35 = arith.constant dense<0.000000e+00> : vector<12x416xf32>
    %52 = tpu.matmul %49, %51, %cst_35 {dimension_numbers = #tpu.dot_dimension_numbers<[1], [0], [0], [1], [0, 0, 1, 1], [], []>} : vector<12x64xf32>, vector<64x416xf32>, vector<12x416xf32> -> vector<12x416xf32>
    %53 = arith.addf %48, %52 : vector<12x416xf32>
    %54 = vector.extract_strided_slice %0 {offsets = [2, 0], sizes = [12, 64], strides = [1, 1]} : vector<64x64xf32> to vector<12x64xf32>
    %c2_36 = arith.constant 2 : index
    %c0_37 = arith.constant 0 : index
    %c0_38 = arith.constant 0 : index
    %55 = vector.load %arg2[%c2_36, %c0_37, %c0_38] : memref<8x64x416xf32, #tpu.memory_space<vmem>>, vector<1x64x416xf32>
    %56 = vector.shape_cast %55 : vector<1x64x416xf32> to vector<64x416xf32>
    %cst_39 = arith.constant dense<0.000000e+00> : vector<12x416xf32>
    %57 = tpu.matmul %54, %56, %cst_39 {dimension_numbers = #tpu.dot_dimension_numbers<[1], [0], [0], [1], [0, 0, 1, 1], [], []>} : vector<12x64xf32>, vector<64x416xf32>, vector<12x416xf32> -> vector<12x416xf32>
    %58 = arith.addf %53, %57 : vector<12x416xf32>
    %59 = vector.extract_strided_slice %0 {offsets = [18, 0], sizes = [12, 64], strides = [1, 1]} : vector<64x64xf32> to vector<12x64xf32>
    %c3_40 = arith.constant 3 : index
    %c0_41 = arith.constant 0 : index
    %c0_42 = arith.constant 0 : index
    %60 = vector.load %arg2[%c3_40, %c0_41, %c0_42] : memref<8x64x416xf32, #tpu.memory_space<vmem>>, vector<1x64x416xf32>
    %61 = vector.shape_cast %60 : vector<1x64x416xf32> to vector<64x416xf32>
    %cst_43 = arith.constant dense<0.000000e+00> : vector<12x416xf32>
    %62 = tpu.matmul %59, %61, %cst_43 {dimension_numbers = #tpu.dot_dimension_numbers<[1], [0], [0], [1], [0, 0, 1, 1], [], []>} : vector<12x64xf32>, vector<64x416xf32>, vector<12x416xf32> -> vector<12x416xf32>
    %63 = arith.addf %58, %62 : vector<12x416xf32>
    %64 = vector.extract_strided_slice %0 {offsets = [34, 0], sizes = [12, 64], strides = [1, 1]} : vector<64x64xf32> to vector<12x64xf32>
    %c4_44 = arith.constant 4 : index
    %c0_45 = arith.constant 0 : index
    %c0_46 = arith.constant 0 : index
    %65 = vector.load %arg2[%c4_44, %c0_45, %c0_46] : memref<8x64x416xf32, #tpu.memory_space<vmem>>, vector<1x64x416xf32>
    %66 = vector.shape_cast %65 : vector<1x64x416xf32> to vector<64x416xf32>
    %cst_47 = arith.constant dense<0.000000e+00> : vector<12x416xf32>
    %67 = tpu.matmul %64, %66, %cst_47 {dimension_numbers = #tpu.dot_dimension_numbers<[1], [0], [0], [1], [0, 0, 1, 1], [], []>} : vector<12x64xf32>, vector<64x416xf32>, vector<12x416xf32> -> vector<12x416xf32>
    %68 = arith.addf %63, %67 : vector<12x416xf32>
    %69 = vector.extract_strided_slice %0 {offsets = [50, 0], sizes = [12, 64], strides = [1, 1]} : vector<64x64xf32> to vector<12x64xf32>
    %c5_48 = arith.constant 5 : index
    %c0_49 = arith.constant 0 : index
    %c0_50 = arith.constant 0 : index
    %70 = vector.load %arg2[%c5_48, %c0_49, %c0_50] : memref<8x64x416xf32, #tpu.memory_space<vmem>>, vector<1x64x416xf32>
    %71 = vector.shape_cast %70 : vector<1x64x416xf32> to vector<64x416xf32>
    %cst_51 = arith.constant dense<0.000000e+00> : vector<12x416xf32>
    %72 = tpu.matmul %69, %71, %cst_51 {dimension_numbers = #tpu.dot_dimension_numbers<[1], [0], [0], [1], [0, 0, 1, 1], [], []>} : vector<12x64xf32>, vector<64x416xf32>, vector<12x416xf32> -> vector<12x416xf32>
    %73 = arith.addf %68, %72 : vector<12x416xf32>
    %74 = vector.extract_strided_slice %0 {offsets = [4, 0], sizes = [12, 64], strides = [1, 1]} : vector<64x64xf32> to vector<12x64xf32>
    %c6_52 = arith.constant 6 : index
    %c0_53 = arith.constant 0 : index
    %c0_54 = arith.constant 0 : index
    %75 = vector.load %arg2[%c6_52, %c0_53, %c0_54] : memref<8x64x416xf32, #tpu.memory_space<vmem>>, vector<1x64x416xf32>
    %76 = vector.shape_cast %75 : vector<1x64x416xf32> to vector<64x416xf32>
    %cst_55 = arith.constant dense<0.000000e+00> : vector<12x416xf32>
    %77 = tpu.matmul %74, %76, %cst_55 {dimension_numbers = #tpu.dot_dimension_numbers<[1], [0], [0], [1], [0, 0, 1, 1], [], []>} : vector<12x64xf32>, vector<64x416xf32>, vector<12x416xf32> -> vector<12x416xf32>
    %78 = arith.addf %73, %77 : vector<12x416xf32>
    %79 = vector.extract_strided_slice %0 {offsets = [20, 0], sizes = [12, 64], strides = [1, 1]} : vector<64x64xf32> to vector<12x64xf32>
    %c7_56 = arith.constant 7 : index
    %c0_57 = arith.constant 0 : index
    %c0_58 = arith.constant 0 : index
    %80 = vector.load %arg2[%c7_56, %c0_57, %c0_58] : memref<8x64x416xf32, #tpu.memory_space<vmem>>, vector<1x64x416xf32>
    %81 = vector.shape_cast %80 : vector<1x64x416xf32> to vector<64x416xf32>
    %cst_59 = arith.constant dense<0.000000e+00> : vector<12x416xf32>
    %82 = tpu.matmul %79, %81, %cst_59 {dimension_numbers = #tpu.dot_dimension_numbers<[1], [0], [0], [1], [0, 0, 1, 1], [], []>} : vector<12x64xf32>, vector<64x416xf32>, vector<12x416xf32> -> vector<12x416xf32>
    %83 = arith.addf %78, %82 : vector<12x416xf32>
    %c0_60 = arith.constant 0 : index
    %c0_61 = arith.constant 0 : index
    %84 = vector.load %arg3[%c0_60, %c0_61] : memref<1x416xf32, #tpu.memory_space<vmem>>, vector<1x416xf32>
    %85 = vector.broadcast %84 : vector<1x416xf32> to vector<12x416xf32>
    %86 = arith.addf %83, %85 : vector<12x416xf32>
    %cst_62 = arith.constant 0.000000e+00 : f32
    %87 = vector.broadcast %cst_62 : f32 to vector<12x416xf32>
    %88 = arith.maximumf %86, %87 : vector<12x416xf32>
    %89 = vector.extract_strided_slice %44 {offsets = [0, 0], sizes = [10, 416], strides = [1, 1]} : vector<14x416xf32> to vector<10x416xf32>
    %c0_63 = arith.constant 0 : index
    %c0_64 = arith.constant 0 : index
    %c0_65 = arith.constant 0 : index
    %90 = vector.load %arg4[%c0_63, %c0_64, %c0_65] : memref<4x416x320xf32, #tpu.memory_space<vmem>>, vector<1x416x320xf32>
    %91 = vector.shape_cast %90 : vector<1x416x320xf32> to vector<416x320xf32>
    %cst_66 = arith.constant dense<0.000000e+00> : vector<10x320xf32>
    %92 = tpu.matmul %89, %91, %cst_66 {dimension_numbers = #tpu.dot_dimension_numbers<[1], [0], [0], [1], [0, 0, 1, 1], [], []>} : vector<10x416xf32>, vector<416x320xf32>, vector<10x320xf32> -> vector<10x320xf32>
    %93 = vector.extract_strided_slice %88 {offsets = [0, 0], sizes = [10, 416], strides = [1, 1]} : vector<12x416xf32> to vector<10x416xf32>
    %c1_67 = arith.constant 1 : index
    %c0_68 = arith.constant 0 : index
    %c0_69 = arith.constant 0 : index
    %94 = vector.load %arg4[%c1_67, %c0_68, %c0_69] : memref<4x416x320xf32, #tpu.memory_space<vmem>>, vector<1x416x320xf32>
    %95 = vector.shape_cast %94 : vector<1x416x320xf32> to vector<416x320xf32>
    %cst_70 = arith.constant dense<0.000000e+00> : vector<10x320xf32>
    %96 = tpu.matmul %93, %95, %cst_70 {dimension_numbers = #tpu.dot_dimension_numbers<[1], [0], [0], [1], [0, 0, 1, 1], [], []>} : vector<10x416xf32>, vector<416x320xf32>, vector<10x320xf32> -> vector<10x320xf32>
    %97 = arith.addf %92, %96 : vector<10x320xf32>
    %98 = vector.extract_strided_slice %44 {offsets = [2, 0], sizes = [10, 416], strides = [1, 1]} : vector<14x416xf32> to vector<10x416xf32>
    %c2_71 = arith.constant 2 : index
    %c0_72 = arith.constant 0 : index
    %c0_73 = arith.constant 0 : index
    %99 = vector.load %arg4[%c2_71, %c0_72, %c0_73] : memref<4x416x320xf32, #tpu.memory_space<vmem>>, vector<1x416x320xf32>
    %100 = vector.shape_cast %99 : vector<1x416x320xf32> to vector<416x320xf32>
    %cst_74 = arith.constant dense<0.000000e+00> : vector<10x320xf32>
    %101 = tpu.matmul %98, %100, %cst_74 {dimension_numbers = #tpu.dot_dimension_numbers<[1], [0], [0], [1], [0, 0, 1, 1], [], []>} : vector<10x416xf32>, vector<416x320xf32>, vector<10x320xf32> -> vector<10x320xf32>
    %102 = arith.addf %97, %101 : vector<10x320xf32>
    %103 = vector.extract_strided_slice %88 {offsets = [2, 0], sizes = [10, 416], strides = [1, 1]} : vector<12x416xf32> to vector<10x416xf32>
    %c3_75 = arith.constant 3 : index
    %c0_76 = arith.constant 0 : index
    %c0_77 = arith.constant 0 : index
    %104 = vector.load %arg4[%c3_75, %c0_76, %c0_77] : memref<4x416x320xf32, #tpu.memory_space<vmem>>, vector<1x416x320xf32>
    %105 = vector.shape_cast %104 : vector<1x416x320xf32> to vector<416x320xf32>
    %cst_78 = arith.constant dense<0.000000e+00> : vector<10x320xf32>
    %106 = tpu.matmul %103, %105, %cst_78 {dimension_numbers = #tpu.dot_dimension_numbers<[1], [0], [0], [1], [0, 0, 1, 1], [], []>} : vector<10x416xf32>, vector<416x320xf32>, vector<10x320xf32> -> vector<10x320xf32>
    %107 = arith.addf %102, %106 : vector<10x320xf32>
    %c0_79 = arith.constant 0 : index
    %c0_80 = arith.constant 0 : index
    %108 = vector.load %arg5[%c0_79, %c0_80] : memref<1x320xf32, #tpu.memory_space<vmem>>, vector<1x320xf32>
    %109 = vector.broadcast %108 : vector<1x320xf32> to vector<10x320xf32>
    %110 = arith.addf %107, %109 : vector<10x320xf32>
    %cst_81 = arith.constant 0.000000e+00 : f32
    %111 = vector.broadcast %cst_81 : f32 to vector<10x320xf32>
    %112 = arith.maximumf %110, %111 : vector<10x320xf32>
    %113 = vector.extract_strided_slice %112 {offsets = [0, 0], sizes = [6, 320], strides = [1, 1]} : vector<10x320xf32> to vector<6x320xf32>
    %c0_82 = arith.constant 0 : index
    %c0_83 = arith.constant 0 : index
    %c0_84 = arith.constant 0 : index
    %114 = vector.load %arg6[%c0_82, %c0_83, %c0_84] : memref<3x320x96xf32, #tpu.memory_space<vmem>>, vector<1x320x96xf32>
    %115 = vector.shape_cast %114 : vector<1x320x96xf32> to vector<320x96xf32>
    %cst_85 = arith.constant dense<0.000000e+00> : vector<6x96xf32>
    %116 = tpu.matmul %113, %115, %cst_85 {dimension_numbers = #tpu.dot_dimension_numbers<[1], [0], [0], [1], [0, 0, 1, 1], [], []>} : vector<6x320xf32>, vector<320x96xf32>, vector<6x96xf32> -> vector<6x96xf32>
    %117 = vector.extract_strided_slice %112 {offsets = [2, 0], sizes = [6, 320], strides = [1, 1]} : vector<10x320xf32> to vector<6x320xf32>
    %c1_86 = arith.constant 1 : index
    %c0_87 = arith.constant 0 : index
    %c0_88 = arith.constant 0 : index
    %118 = vector.load %arg6[%c1_86, %c0_87, %c0_88] : memref<3x320x96xf32, #tpu.memory_space<vmem>>, vector<1x320x96xf32>
    %119 = vector.shape_cast %118 : vector<1x320x96xf32> to vector<320x96xf32>
    %cst_89 = arith.constant dense<0.000000e+00> : vector<6x96xf32>
    %120 = tpu.matmul %117, %119, %cst_89 {dimension_numbers = #tpu.dot_dimension_numbers<[1], [0], [0], [1], [0, 0, 1, 1], [], []>} : vector<6x320xf32>, vector<320x96xf32>, vector<6x96xf32> -> vector<6x96xf32>
    %121 = arith.addf %116, %120 : vector<6x96xf32>
    %122 = vector.extract_strided_slice %112 {offsets = [4, 0], sizes = [6, 320], strides = [1, 1]} : vector<10x320xf32> to vector<6x320xf32>
    %c2_90 = arith.constant 2 : index
    %c0_91 = arith.constant 0 : index
    %c0_92 = arith.constant 0 : index
    %123 = vector.load %arg6[%c2_90, %c0_91, %c0_92] : memref<3x320x96xf32, #tpu.memory_space<vmem>>, vector<1x320x96xf32>
    %124 = vector.shape_cast %123 : vector<1x320x96xf32> to vector<320x96xf32>
    %cst_93 = arith.constant dense<0.000000e+00> : vector<6x96xf32>
    %125 = tpu.matmul %122, %124, %cst_93 {dimension_numbers = #tpu.dot_dimension_numbers<[1], [0], [0], [1], [0, 0, 1, 1], [], []>} : vector<6x320xf32>, vector<320x96xf32>, vector<6x96xf32> -> vector<6x96xf32>
    %126 = arith.addf %121, %125 : vector<6x96xf32>
    %c0_94 = arith.constant 0 : index
    %c0_95 = arith.constant 0 : index
    %127 = vector.load %arg7[%c0_94, %c0_95] : memref<1x96xf32, #tpu.memory_space<vmem>>, vector<1x96xf32>
    %128 = vector.broadcast %127 : vector<1x96xf32> to vector<6x96xf32>
    %129 = arith.addf %126, %128 : vector<6x96xf32>
    %cst_96 = arith.constant 0.000000e+00 : f32
    %130 = vector.broadcast %cst_96 : f32 to vector<6x96xf32>
    %131 = arith.maximumf %129, %130 : vector<6x96xf32>
    %c0_97 = arith.constant 0 : index
    %c0_98 = arith.constant 0 : index
    %132 = vector.load %arg1[%c0_97, %c0_98] : memref<2x25xf32, #tpu.memory_space<vmem>>, vector<2x25xf32>
    %c0_99 = arith.constant 0 : index
    %c0_100 = arith.constant 0 : index
    %133 = vector.load %arg9[%c0_99, %c0_100] : memref<25x64xf32, #tpu.memory_space<vmem>>, vector<25x64xf32>
    %cst_101 = arith.constant dense<0.000000e+00> : vector<2x64xf32>
    %134 = tpu.matmul %132, %133, %cst_101 {dimension_numbers = #tpu.dot_dimension_numbers<[1], [0], [0], [1], [0, 0, 1, 1], [], []>} : vector<2x25xf32>, vector<25x64xf32>, vector<2x64xf32> -> vector<2x64xf32>
    %135 = vector.extract_strided_slice %131 {offsets = [0, 0], sizes = [2, 96], strides = [1, 1]} : vector<6x96xf32> to vector<2x96xf32>
    %c0_102 = arith.constant 0 : index
    %c0_103 = arith.constant 0 : index
    %c0_104 = arith.constant 0 : index
    %136 = vector.load %arg8[%c0_102, %c0_103, %c0_104] : memref<3x96x64xf32, #tpu.memory_space<vmem>>, vector<1x96x64xf32>
    %137 = vector.shape_cast %136 : vector<1x96x64xf32> to vector<96x64xf32>
    %cst_105 = arith.constant dense<0.000000e+00> : vector<2x64xf32>
    %138 = tpu.matmul %135, %137, %cst_105 {dimension_numbers = #tpu.dot_dimension_numbers<[1], [0], [0], [1], [0, 0, 1, 1], [], []>} : vector<2x96xf32>, vector<96x64xf32>, vector<2x64xf32> -> vector<2x64xf32>
    %139 = arith.addf %134, %138 : vector<2x64xf32>
    %140 = vector.extract_strided_slice %131 {offsets = [2, 0], sizes = [2, 96], strides = [1, 1]} : vector<6x96xf32> to vector<2x96xf32>
    %c1_106 = arith.constant 1 : index
    %c0_107 = arith.constant 0 : index
    %c0_108 = arith.constant 0 : index
    %141 = vector.load %arg8[%c1_106, %c0_107, %c0_108] : memref<3x96x64xf32, #tpu.memory_space<vmem>>, vector<1x96x64xf32>
    %142 = vector.shape_cast %141 : vector<1x96x64xf32> to vector<96x64xf32>
    %cst_109 = arith.constant dense<0.000000e+00> : vector<2x64xf32>
    %143 = tpu.matmul %140, %142, %cst_109 {dimension_numbers = #tpu.dot_dimension_numbers<[1], [0], [0], [1], [0, 0, 1, 1], [], []>} : vector<2x96xf32>, vector<96x64xf32>, vector<2x64xf32> -> vector<2x64xf32>
    %144 = arith.addf %139, %143 : vector<2x64xf32>
    %145 = vector.extract_strided_slice %131 {offsets = [4, 0], sizes = [2, 96], strides = [1, 1]} : vector<6x96xf32> to vector<2x96xf32>
    %c2_110 = arith.constant 2 : index
    %c0_111 = arith.constant 0 : index
    %c0_112 = arith.constant 0 : index
    %146 = vector.load %arg8[%c2_110, %c0_111, %c0_112] : memref<3x96x64xf32, #tpu.memory_space<vmem>>, vector<1x96x64xf32>
    %147 = vector.shape_cast %146 : vector<1x96x64xf32> to vector<96x64xf32>
    %cst_113 = arith.constant dense<0.000000e+00> : vector<2x64xf32>
    %148 = tpu.matmul %145, %147, %cst_113 {dimension_numbers = #tpu.dot_dimension_numbers<[1], [0], [0], [1], [0, 0, 1, 1], [], []>} : vector<2x96xf32>, vector<96x64xf32>, vector<2x64xf32> -> vector<2x64xf32>
    %149 = arith.addf %144, %148 : vector<2x64xf32>
    %c0_114 = arith.constant 0 : index
    %c0_115 = arith.constant 0 : index
    %150 = vector.load %arg10[%c0_114, %c0_115] : memref<1x64xf32, #tpu.memory_space<vmem>>, vector<1x64xf32>
    %151 = vector.broadcast %150 : vector<1x64xf32> to vector<2x64xf32>
    %152 = arith.addf %149, %151 : vector<2x64xf32>
    %cst_116 = arith.constant 0.000000e+00 : f32
    %153 = vector.broadcast %cst_116 : f32 to vector<2x64xf32>
    %154 = arith.maximumf %152, %153 : vector<2x64xf32>
    %c0_117 = arith.constant 0 : index
    %c0_118 = arith.constant 0 : index
    %155 = vector.load %arg11[%c0_117, %c0_118] : memref<64x128xf32, #tpu.memory_space<vmem>>, vector<64x128xf32>
    %cst_119 = arith.constant dense<0.000000e+00> : vector<2x128xf32>
    %156 = tpu.matmul %154, %155, %cst_119 {dimension_numbers = #tpu.dot_dimension_numbers<[1], [0], [0], [1], [0, 0, 1, 1], [], []>} : vector<2x64xf32>, vector<64x128xf32>, vector<2x128xf32> -> vector<2x128xf32>
    %c0_120 = arith.constant 0 : index
    %c0_121 = arith.constant 0 : index
    %157 = vector.load %arg12[%c0_120, %c0_121] : memref<1x128xf32, #tpu.memory_space<vmem>>, vector<1x128xf32>
    %158 = vector.broadcast %157 : vector<1x128xf32> to vector<2x128xf32>
    %159 = arith.addf %156, %158 : vector<2x128xf32>
    %160 = tpu.iota {dimensions = array<i32: 1>} : vector<2x128xi32>
    %c4_i32 = arith.constant 4 : i32
    %161 = vector.broadcast %c4_i32 : i32 to vector<2x128xi32>
    %162 = arith.cmpi slt, %160, %161 : vector<2x128xi32>
    %cst_122 = arith.constant -1.000000e+30 : f32
    %163 = vector.broadcast %cst_122 : f32 to vector<2x128xf32>
    %164 = arith.select %162, %159, %163 : vector<2x128xi1>, vector<2x128xf32>
    %cst_123 = arith.constant dense<0xFF800000> : vector<2xf32>
    %165 = vector.multi_reduction <maximumf>, %164, %cst_123 [1] : vector<2x128xf32> to vector<2xf32>
    %166 = vector.shape_cast %165 : vector<2xf32> to vector<2x1xf32>
    %167 = vector.broadcast %166 : vector<2x1xf32> to vector<2x128xf32>
    %168 = arith.subf %164, %167 : vector<2x128xf32>
    %169 = math.exp %168 : vector<2x128xf32>
    %cst_124 = arith.constant dense<0.000000e+00> : vector<2xf32>
    %170 = vector.multi_reduction <add>, %169, %cst_124 [1] : vector<2x128xf32> to vector<2xf32>
    %171 = vector.shape_cast %170 : vector<2xf32> to vector<2x1xf32>
    %172 = tpu.reciprocal %171 {approx = true} : vector<2x1xf32> -> vector<2x1xf32>
    %173 = vector.broadcast %172 : vector<2x1xf32> to vector<2x128xf32>
    %174 = arith.mulf %169, %173 : vector<2x128xf32>
    %c4_i32_125 = arith.constant 4 : i32
    %175 = vector.broadcast %c4_i32_125 : i32 to vector<2x128xi32>
    %176 = arith.cmpi eq, %160, %175 : vector<2x128xi32>
    %cst_126 = arith.constant 0.000000e+00 : f32
    %177 = vector.broadcast %cst_126 : f32 to vector<2x128xf32>
    %178 = arith.select %176, %159, %177 : vector<2x128xi1>, vector<2x128xf32>
    %179 = arith.addf %174, %178 : vector<2x128xf32>
    %c0_127 = arith.constant 0 : index
    %c0_128 = arith.constant 0 : index
    %180 = vector.load %arg13[%c0_127, %c0_128] : memref<2x128xf32, #tpu.memory_space<vmem>>, vector<2x128xf32>
    tpu.vector_store %arg13[%c0_127, %c0_128], %179 {strides = array<i32>} : memref<2x128xf32, #tpu.memory_space<vmem>>, vector<2x128xf32>,
    return
  }
}

</mosaic_0001>

<llo_original>
// kernel: squeeze.2
$region0: #{squeeze.2}
  %s0 = inlined_call_operand.vmem [shape: f32[2,1,5,5], index: 0, kind: input, shape index: {}]
  %s1 = inlined_call_operand.vmem [shape: f32[2,25], index: 1, kind: output, shape index: {}]
  $region1: #{squeeze.2} parent=0
    #allocation0 [shape = 'u8[4096]{0}', space=vmem, size = 0x1000, scoped, tag = 'scoped mem for output reshape']
    %s2 = smov 3
    %v3 = vld [vmem:[%s0] ss:$8 sm:%s2]
    %vm4 = vcmask 39936
    %5 = vst.msk [vmem:[#allocation0] sm:$0x3] %vm4, %v3
    %s6 = scalar_lea.vmem %s0, 4
    %s7 = smov 3
    %v8 = vld [vmem:[%s6] ss:$8 sm:%s7]
    %9 = vrot.lane.b32.xlu0 %v8, 20
    %v10 = vpop.permute.xlu0 %9
    %vm11 = vcmask 203936
    %12 = vst.msk [vmem:[#allocation0] sm:$0x3] %vm11, %v10
    %s13 = scalar_lea.vmem %s0, 3
    %s14 = smov 3
    %v15 = vld [vmem:[%s13] ss:$8 sm:%s14]
    %16 = vrot.lane.b32.xlu0 %v15, 15
    %v17 = vpop.permute.xlu0 %16
    %vm18 = vcmask 162936
    %19 = vst.msk [vmem:[#allocation0] sm:$0x3] %vm18, %v17
    %s20 = scalar_lea.vmem %s0, 2
    %s21 = smov 3
    %v22 = vld [vmem:[%s20] ss:$8 sm:%s21]
    %23 = vrot.lane.b32.xlu0 %v22, 10
    %v24 = vpop.permute.xlu0 %23
    %vm25 = vcmask 121936
    %26 = vst.msk [vmem:[#allocation0] sm:$0x3] %vm25, %v24
    %s27 = scalar_lea.vmem %s0, 1
    %s28 = smov 3
    %v29 = vld [vmem:[%s27] ss:$8 sm:%s28]
    %30 = vrot.lane.b32.xlu0 %v29, 5
    %v31 = vpop.permute.xlu0 %30
    %vm32 = vcmask 80936
    %33 = vst.msk [vmem:[#allocation0] sm:$0x3] %vm32, %v31
    %s35 = sshllo.u32 0, 2
    %v37 = vld [vmem:[#allocation0] sm:%s35]
    %s38 = sshllo.u32 0, 2
    %39 = vst [vmem:[%s1] sm:%s38] %v37

// kernel: forward.1
$region0: #{forward.1}
  #allocation0 [shape = 'u32[]', space=smem, size = 0x4, offset = 0x4, fixed_abs, tag = 'smem constant byte address 0x4 - core index']
  #allocation1 [shape = 'u32[144,128]{1,0:T(1,128)}', space=vmem, size = 0x12000, scoped, tag = 'internal scratch']
  %s0 = inlined_call_operand.vmem [shape: f32[64,64], index: 0, kind: input, shape index: {}]
  %s1 = inlined_call_operand.vmem [shape: f32[2,25], index: 1, kind: input, shape index: {}]
  %s2 = inlined_call_operand.hbm [shape: f32[8,64,416], index: 2, kind: input, shape index: {}]
  %s3 = inlined_call_operand.vmem [shape: f32[1,416], index: 3, kind: input, shape index: {}]
  %s4 = inlined_call_operand.vmem [shape: f32[4,416,320], index: 4, kind: input, shape index: {}]
  %s5 = inlined_call_operand.vmem [shape: f32[1,320], index: 5, kind: input, shape index: {}]
  %s6 = inlined_call_operand.vmem [shape: f32[3,320,96], index: 6, kind: input, shape index: {}]
  %s7 = inlined_call_operand.vmem [shape: f32[1,96], index: 7, kind: input, shape index: {}]
  %s8 = inlined_call_operand.vmem [shape: f32[3,96,64], index: 8, kind: input, shape index: {}]
  %s9 = inlined_call_operand.vmem [shape: f32[25,64], index: 9, kind: input, shape index: {}]
  %s10 = inlined_call_operand.vmem [shape: f32[1,64], index: 10, kind: input, shape index: {}]
  %s11 = inlined_call_operand.vmem [shape: f32[64,128], index: 11, kind: input, shape index: {}]
  %s12 = inlined_call_operand.vmem [shape: f32[1,128], index: 12, kind: input, shape index: {}]
  %s13 = inlined_call_operand.vmem [shape: f32[2,128], index: 13, kind: output, shape index: {}]
  %s14 = sld [smem:[#allocation0]]
  $region66: #{forward.1} parent=0
    _
  %s16 = ssub.s32 1, %s14
  %s17 = scalar_select 0, %s16, %s14
  $region1: #{forward.1} parent=0
    #allocation2 [shape = 'u8[1048576]{0}', space=vmem, size = 0x100000, scoped, tag = 'input window, operand 2, single buffered']
    #allocation3 [shape = 's32[1]{0}', space=sflag, size = 0x4, scoped, tag = 'scoped memory for forward.1']
    %18 = vsyncpa [#allocation3], 0
    // Predicated region
    $region2: #{forward.1} parent=1 // pred_check
      _
    $region3: #{forward.1} parent=1 // pred_check_branch
      %20 = sbr.rel (0) target = $region5
    $region4: #{forward.1} parent=1 // pred_region
      _
    $region5: #{forward.1} parent=1 // pred_fallthru
      _
    // Predicated region
    $region6: #{forward.1} parent=1 // pred_check
      _
    $region7: #{forward.1} parent=1 // pred_check_branch
      %22 = sbr.rel (0) target = $region9
    $region8: #{forward.1} parent=1 // pred_region
      _
    $region9: #{forward.1} parent=1 // pred_fallthru
      _
    // Predicated region
    $region10: #{forward.1} parent=1 // pred_check
      _
    $region11: #{forward.1} parent=1 // pred_check_branch
      %24 = sbr.rel (0) target = $region13
    $region12: #{forward.1} parent=1 // pred_region
      %s26 = ssub.s32 32768, 32768
      %27 = vsyncadd [#allocation3], %s26
      %s28 = sshll.u32 [#allocation2], 4
      %s29 = int_to_ptr.vmem [resolvable:$true] %s28
      %34 = dma.hbm_to_vmem [thread:$0]  %s2, 32768, %s29, [#allocation3], 512, 512, 32
    $region13: #{forward.1} parent=1 // pred_fallthru
      _
    // Predicated region
    $region14: #{forward.1} parent=1 // pred_check
      _
    $region15: #{forward.1} parent=1 // pred_check_branch
      %36 = sbr.rel (0) target = $region17
    $region16: #{forward.1} parent=1 // pred_region
      _
    $region17: #{forward.1} parent=1 // pred_fallthru
      _
    // Predicated region
    $region18: #{forward.1} parent=1 // pred_check
      _
    $region19: #{forward.1} parent=1 // pred_check_branch
      %38 = sbr.rel (0) target = $region21
    $region20: #{forward.1} parent=1 // pred_region
      _
    $region21: #{forward.1} parent=1 // pred_fallthru
      _
    // Predicated region
    $region22: #{forward.1} parent=1 // pred_check
      _
    $region23: #{forward.1} parent=1 // pred_check_branch
      %40 = sbr.rel (0) target = $region25
    $region24: #{forward.1} parent=1 // pred_region
      _
    $region25: #{forward.1} parent=1 // pred_fallthru
      _
    // Predicated region
    $region26: #{forward.1} parent=1 // pred_check
      _
    $region27: #{forward.1} parent=1 // pred_check_branch
      %42 = sbr.rel (0) target = $region29
    $region28: #{forward.1} parent=1 // pred_region
      _
    $region29: #{forward.1} parent=1 // pred_fallthru
      _
    // Predicated region
    $region30: #{forward.1} parent=1 // pred_check
      _
    $region31: #{forward.1} parent=1 // pred_check_branch
      %44 = sbr.rel (0) target = $region33
    $region32: #{forward.1} parent=1 // pred_region
      _
    $region33: #{forward.1} parent=1 // pred_fallthru
      _
    // Predicated region
    $region34: #{forward.1} parent=1 // pred_check
      _
    $region35: #{forward.1} parent=1 // pred_check_branch
      %46 = sbr.rel (0) target = $region37
    $region36: #{forward.1} parent=1 // pred_region
      _
    $region37: #{forward.1} parent=1 // pred_fallthru
      _
    // Predicated region
    $region38: #{forward.1} parent=1 // pred_check
      _
    $region39: #{forward.1} parent=1 // pred_check_branch
      %48 = sbr.rel (0) target = $region41
    $region40: #{forward.1} parent=1 // pred_region
      _
    $region41: #{forward.1} parent=1 // pred_fallthru
      _
    // Predicated region
    $region42: #{forward.1} parent=1 // pred_check
      _
    $region43: #{forward.1} parent=1 // pred_check_branch
      %50 = sbr.rel (0) target = $region45
    $region44: #{forward.1} parent=1 // pred_region
      _
    $region45: #{forward.1} parent=1 // pred_fallthru
      _
    // Predicated region
    $region46: #{forward.1} parent=1 // pred_check
      _
    $region47: #{forward.1} parent=1 // pred_check_branch
      %52 = sbr.rel (0) target = $region49
    $region48: #{forward.1} parent=1 // pred_region
      _
    $region49: #{forward.1} parent=1 // pred_fallthru
      _
    // Predicated region
    $region50: #{forward.1} parent=1 // pred_check
      _
    $region51: #{forward.1} parent=1 // pred_check_branch
      %54 = sbr.rel (0) target = $region53
    $region52: #{forward.1} parent=1 // pred_region
      _
    $region53: #{forward.1} parent=1 // pred_fallthru
      _
    // Predicated region
    $region54: #{forward.1} parent=1 // pred_check
      _
    $region55: #{forward.1} parent=1 // pred_check_branch
      %56 = sbr.rel (0) target = $region57
    $region56: #{forward.1} parent=1 // pred_region
      %57 = dma.done [#allocation3], 32768
    $region57: #{forward.1} parent=1 // pred_fallthru
      _
    %v58 = vld [vmem:[%s0] sm:$0xff]
    %v59 = vld [vmem:[%s0 + $0x8] sm:$0xff]
    %v60 = vld [vmem:[%s0 + $0x10] sm:$0xff]
    %v61 = vld [vmem:[%s0 + $0x18] sm:$0xff]
    %v62 = vld [vmem:[%s0 + $0x20] sm:$0xff]
    %v63 = vld [vmem:[%s0 + $0x28] sm:$0xff]
    %v64 = vld [vmem:[%s0 + $0x30] sm:$0xff]
    %v65 = vld [vmem:[%s0 + $0x38] sm:$0xff]
    %v66 = vld [vmem:[#allocation2] sm:$0xff]
    %v67 = vld [vmem:[#allocation2 + $0x8] sm:$0xff]
    %v68 = vld [vmem:[#allocation2 + $0x10] sm:$0xff]
    %v69 = vld [vmem:[#allocation2 + $0x18] sm:$0xff]
    %v70 = vld [vmem:[#allocation2 + $0x20] sm:$0xff]
    %v71 = vld [vmem:[#allocation2 + $0x28] sm:$0xff]
    %v72 = vld [vmem:[#allocation2 + $0x30] sm:$0xff]
    %v73 = vld [vmem:[#allocation2 + $0x38] sm:$0xff]
    %v74 = vld [vmem:[#allocation2 + $0x40] sm:$0xff]
    %v75 = vld [vmem:[#allocation2 + $0x48] sm:$0xff]
    %v76 = vld [vmem:[#allocation2 + $0x50] sm:$0xff]
    %v77 = vld [vmem:[#allocation2 + $0x58] sm:$0xff]
    %v78 = vld [vmem:[#allocation2 + $0x60] sm:$0xff]
    %v79 = vld [vmem:[#allocation2 + $0x68] sm:$0xff]
    %v80 = vld [vmem:[#allocation2 + $0x70] sm:$0xff]
    %v81 = vld [vmem:[#allocation2 + $0x78] sm:$0xff]
    %v82 = vld [vmem:[#allocation2 + $0x80] sm:$0xff]
    %v83 = vld [vmem:[#allocation2 + $0x88] sm:$0xff]
    %v84 = vld [vmem:[#allocation2 + $0x90] sm:$0xff]
    %v85 = vld [vmem:[#allocation2 + $0x98] sm:$0xff]
    %v86 = vld [vmem:[#allocation2 + $0xa0] sm:$0xff]
    %v87 = vld [vmem:[#allocation2 + $0xa8] sm:$0xff]
    %v88 = vld [vmem:[#allocation2 + $0xb0] sm:$0xff]
    %v89 = vld [vmem:[#allocation2 + $0xb8] sm:$0xff]
    %v90 = vld [vmem:[#allocation2 + $0xc0] sm:$0xff]
    %v91 = vld [vmem:[#allocation2 + $0xc8] sm:$0xff]
    %v92 = vld [vmem:[#allocation2 + $0xd0] sm:$0xff]
    %v93 = vld [vmem:[#allocation2 + $0xd8] sm:$0xff]
    %v94 = vld [vmem:[#allocation2 + $0xe0] sm:$0xff]
    %v95 = vld [vmem:[#allocation2 + $0xe8] sm:$0xff]
    %v96 = vld [vmem:[#allocation2 + $0xf0] sm:$0xff]
    %v97 = vld [vmem:[#allocation2 + $0xf8] sm:$0xff]
    %s98 = scalar_lea.vmem [#allocation2], 256
    %v99 = vld [vmem:[%s98] sm:$0xff]
    %v100 = vld [vmem:[%s98 + $0x8] sm:$0xff]
    %v101 = vld [vmem:[%s98 + $0x10] sm:$0xff]
    %v102 = vld [vmem:[%s98 + $0x18] sm:$0xff]
    %v103 = vld [vmem:[%s98 + $0x20] sm:$0xff]
    %v104 = vld [vmem:[%s98 + $0x28] sm:$0xff]
    %v105 = vld [vmem:[%s98 + $0x30] sm:$0xff]
    %v106 = vld [vmem:[%s98 + $0x38] sm:$0xff]
    %v107 = vld [vmem:[%s98 + $0x40] sm:$0xff]
    %v108 = vld [vmem:[%s98 + $0x48] sm:$0xff]
    %v109 = vld [vmem:[%s98 + $0x50] sm:$0xff]
    %v110 = vld [vmem:[%s98 + $0x58] sm:$0xff]
    %v111 = vld [vmem:[%s98 + $0x60] sm:$0xff]
    %v112 = vld [vmem:[%s98 + $0x68] sm:$0xff]
    %v113 = vld [vmem:[%s98 + $0x70] sm:$0xff]
    %v114 = vld [vmem:[%s98 + $0x78] sm:$0xff]
    %v115 = vld [vmem:[%s98 + $0x80] sm:$0xff]
    %v116 = vld [vmem:[%s98 + $0x88] sm:$0xff]
    %v117 = vld [vmem:[%s98 + $0x90] sm:$0xff]
    %v118 = vld [vmem:[%s98 + $0x98] sm:$0xff]
    %v119 = vld [vmem:[%s98 + $0xa0] sm:$0xff]
    %v120 = vld [vmem:[%s98 + $0xa8] sm:$0xff]
    %v121 = vld [vmem:[%s98 + $0xb0] sm:$0xff]
    %v122 = vld [vmem:[%s98 + $0xb8] sm:$0xff]
    %v123 = vld [vmem:[%s98 + $0xc0] sm:$0xff]
    %v124 = vld [vmem:[%s98 + $0xc8] sm:$0xff]
    %v125 = vld [vmem:[%s98 + $0xd0] sm:$0xff]
    %v126 = vld [vmem:[%s98 + $0xd8] sm:$0xff]
    %v127 = vld [vmem:[%s98 + $0xe0] sm:$0xff]
    %v128 = vld [vmem:[%s98 + $0xe8] sm:$0xff]
    %v129 = vld [vmem:[%s98 + $0xf0] sm:$0xff]
    %v130 = vld [vmem:[%s98 + $0xf8] sm:$0xff]
    %vm131 = vcmask 523264
    %v133 = vsel %vm131, %v60, 0
    %v136 = vsel %vm131, %v61, 0
    %138 = vmatprep.subr.mxu0 %v100
    %139 = vmatpush1.msra.mxu0 %v99
    %140 = vmatprep.subr.mxu0 %v104
    %141 = vmatpush1.msra.mxu0 %v103
    %142 = vmatprep.subr.mxu0 %v108
    %143 = vmatpush1.msra.mxu0 %v107
    %144 = vmatprep.subr.mxu0 %v112
    %145 = vmatpush1.msra.mxu0 %v111
    %146 = vmatprep.subr.mxu0 %v116
    %147 = vmatpush1.msra.mxu0 %v115
    %148 = vmatprep.subr.mxu0 %v120
    %149 = vmatpush1.msra.mxu0 %v119
    %150 = vmatprep.subr.mxu0 %v124
    %151 = vmatpush1.msra.mxu0 %v123
    %152 = vmatprep.subr.mxu0 %v128
    %153 = vmatpush1.msra.mxu0 %v127
    %154 = vmatprep.subr.mxu0 0.0
    %155 = vmatpush1.msra.mxu0 0.0
    %156 = vmatprep.subr.mxu0 0.0
    %157 = vmatpush1.msra.mxu0 0.0
    %158 = vmatprep.subr.mxu0 0.0
    %159 = vmatpush1.msra.mxu0 0.0
    %160 = vmatprep.subr.mxu0 0.0
    %161 = vmatpush1.msra.mxu0 0.0
    %162 = vmatprep.subr.mxu0 0.0
    %163 = vmatpush1.msra.mxu0 0.0
    %164 = vmatprep.subr.mxu0 0.0
    %165 = vmatpush1.msra.mxu0 0.0
    %166 = vmatprep.subr.mxu0 0.0
    %167 = vmatpush1.msra.mxu0 0.0
    %168 = vmatprep.subr.mxu0 0.0
    %169 = vmatpush1.msra.mxu0 0.0
    %170 = vmatprep.subr.mxu0 0.0
    %171 = vmatpush1.msra.mxu0 0.0
    %172 = vmatprep.subr.mxu0 0.0
    %173 = vmatpush1.msra.mxu0 0.0
    %174 = vmatprep.subr.mxu0 0.0
    %175 = vmatpush1.msra.mxu0 0.0
    %176 = vmatprep.subr.mxu0 0.0
    %177 = vmatpush1.msra.mxu0 0.0
    %178 = vmatprep.subr.mxu0 0.0
    %179 = vmatpush1.msra.mxu0 0.0
    %180 = vmatprep.subr.mxu0 0.0
    %181 = vmatpush1.msra.mxu0 0.0
    %182 = vmatprep.subr.mxu0 0.0
    %183 = vmatpush1.msra.mxu0 0.0
    %184 = vmatprep.subr.mxu0 0.0
    %185 = vmatpush1.msra.mxu0 0.0
    %186 = vmatprep.subr.mxu0 0.0
    %187 = vmatpush1.msra.mxu0 0.0
    %188 = vmatprep.subr.mxu0 0.0
    %189 = vmatpush1.msra.mxu0 0.0
    %190 = vmatprep.subr.mxu0 0.0
    %191 = vmatpush1.msra.mxu0 0.0
    %192 = vmatprep.subr.mxu0 0.0
    %193 = vmatpush1.msra.mxu0 0.0
    %194 = vmatprep.subr.mxu0 0.0
    %195 = vmatpush1.msra.mxu0 0.0
    %196 = vmatprep.subr.mxu0 0.0
    %197 = vmatpush1.msra.mxu0 0.0
    %198 = vmatprep.subr.mxu0 0.0
    %199 = vmatpush1.msra.mxu0 0.0
    %200 = vmatprep.subr.mxu0 0.0
    %201 = vmatpush1.msra.mxu0 0.0
    %202 = vmatprep.mubr.f32.mxu0 0.0
    %203 = vmatmul.mubr.f32.gmra.mrb[0].mxu0 %v133
    %v204 = vpop.f32.mrb[0].mxu0
    %v205 = vadd.f32 0.0, %v204
    %v206 = vpop.f32.mrb[0].mxu0
    %v207 = vadd.f32 0.0, %v206
    %208 = vmatprep.mubr.f32.mxu0 0.0
    %209 = vmatmul.mubr.f32.gmra.mrb[0].mxu0 %v136
    %v210 = vpop.f32.mrb[0].mxu0
    %v211 = vadd.f32 0.0, %v210
    %v212 = vpop.f32.mrb[0].mxu0
    %v213 = vadd.f32 0.0, %v212
    %214 = vdwg.mxu0
    %215 = vmatprep.subr.mxu0 %v102
    %216 = vmatpush1.msra.mxu0 %v101
    %217 = vmatprep.subr.mxu0 %v106
    %218 = vmatpush1.msra.mxu0 %v105
    %219 = vmatprep.subr.mxu0 %v110
    %220 = vmatpush1.msra.mxu0 %v109
    %221 = vmatprep.subr.mxu0 %v114
    %222 = vmatpush1.msra.mxu0 %v113
    %223 = vmatprep.subr.mxu0 %v118
    %224 = vmatpush1.msra.mxu0 %v117
    %225 = vmatprep.subr.mxu0 %v122
    %226 = vmatpush1.msra.mxu0 %v121
    %227 = vmatprep.subr.mxu0 %v126
    %228 = vmatpush1.msra.mxu0 %v125
    %229 = vmatprep.subr.mxu0 %v130
    %230 = vmatpush1.msra.mxu0 %v129
    %231 = vmatprep.subr.mxu0 0.0
    %232 = vmatpush1.msra.mxu0 0.0
    %233 = vmatprep.subr.mxu0 0.0
    %234 = vmatpush1.msra.mxu0 0.0
    %235 = vmatprep.subr.mxu0 0.0
    %236 = vmatpush1.msra.mxu0 0.0
    %237 = vmatprep.subr.mxu0 0.0
    %238 = vmatpush1.msra.mxu0 0.0
    %239 = vmatprep.subr.mxu0 0.0
    %240 = vmatpush1.msra.mxu0 0.0
    %241 = vmatprep.subr.mxu0 0.0
    %242 = vmatpush1.msra.mxu0 0.0
    %243 = vmatprep.subr.mxu0 0.0
    %244 = vmatpush1.msra.mxu0 0.0
    %245 = vmatprep.subr.mxu0 0.0
    %246 = vmatpush1.msra.mxu0 0.0
    %247 = vmatprep.subr.mxu0 0.0
    %248 = vmatpush1.msra.mxu0 0.0
    %249 = vmatprep.subr.mxu0 0.0
    %250 = vmatpush1.msra.mxu0 0.0
    %251 = vmatprep.subr.mxu0 0.0
    %252 = vmatpush1.msra.mxu0 0.0
    %253 = vmatprep.subr.mxu0 0.0
    %254 = vmatpush1.msra.mxu0 0.0
    %255 = vmatprep.subr.mxu0 0.0
    %256 = vmatpush1.msra.mxu0 0.0
    %257 = vmatprep.subr.mxu0 0.0
    %258 = vmatpush1.msra.mxu0 0.0
    %259 = vmatprep.subr.mxu0 0.0
    %260 = vmatpush1.msra.mxu0 0.0
    %261 = vmatprep.subr.mxu0 0.0
    %262 = vmatpush1.msra.mxu0 0.0
    %263 = vmatprep.subr.mxu0 0.0
    %264 = vmatpush1.msra.mxu0 0.0
    %265 = vmatprep.subr.mxu0 0.0
    %266 = vmatpush1.msra.mxu0 0.0
    %267 = vmatprep.subr.mxu0 0.0
    %268 = vmatpush1.msra.mxu0 0.0
    %269 = vmatprep.subr.mxu0 0.0
    %270 = vmatpush1.msra.mxu0 0.0
    %271 = vmatprep.subr.mxu0 0.0
    %272 = vmatpush1.msra.mxu0 0.0
    %273 = vmatprep.subr.mxu0 0.0
    %274 = vmatpush1.msra.mxu0 0.0
    %275 = vmatprep.subr.mxu0 0.0
    %276 = vmatpush1.msra.mxu0 0.0
    %277 = vmatprep.subr.mxu0 0.0
    %278 = vmatpush1.msra.mxu0 0.0
    %279 = vmatprep.mubr.f32.mxu0 0.0
    %280 = vmatmul.mubr.f32.gmra.mrb[0].mxu0 %v133
    %v281 = vpop.f32.mrb[0].mxu0
    %v282 = vadd.f32 0.0, %v281
    %v283 = vpop.f32.mrb[0].mxu0
    %v284 = vadd.f32 0.0, %v283
    %285 = vmatprep.mubr.f32.mxu0 0.0
    %286 = vmatmul.mubr.f32.gmra.mrb[0].mxu0 %v136
    %v287 = vpop.f32.mrb[0].mxu0
    %v288 = vadd.f32 0.0, %v287
    %v289 = vpop.f32.mrb[0].mxu0
    %v290 = vadd.f32 0.0, %v289
    %291 = vdwg.mxu0
    %v293 = vsel %vm131, %v58, 0
    %v296 = vsel %vm131, %v59, 0
    %298 = vmatprep.subr.mxu0 %v67
    %299 = vmatpush1.msra.mxu0 %v66
    %300 = vmatprep.subr.mxu0 %v71
    %301 = vmatpush1.msra.mxu0 %v70
    %302 = vmatprep.subr.mxu0 %v75
    %303 = vmatpush1.msra.mxu0 %v74
    %304 = vmatprep.subr.mxu0 %v79
    %305 = vmatpush1.msra.mxu0 %v78
    %306 = vmatprep.subr.mxu0 %v83
    %307 = vmatpush1.msra.mxu0 %v82
    %308 = vmatprep.subr.mxu0 %v87
    %309 = vmatpush1.msra.mxu0 %v86
    %310 = vmatprep.subr.mxu0 %v91
    %311 = vmatpush1.msra.mxu0 %v90
    %312 = vmatprep.subr.mxu0 %v95
    %313 = vmatpush1.msra.mxu0 %v94
    %314 = vmatprep.subr.mxu0 0.0
    %315 = vmatpush1.msra.mxu0 0.0
    %316 = vmatprep.subr.mxu0 0.0
    %317 = vmatpush1.msra.mxu0 0.0
    %318 = vmatprep.subr.mxu0 0.0
    %319 = vmatpush1.msra.mxu0 0.0
    %320 = vmatprep.subr.mxu0 0.0
    %321 = vmatpush1.msra.mxu0 0.0
    %322 = vmatprep.subr.mxu0 0.0
    %323 = vmatpush1.msra.mxu0 0.0
    %324 = vmatprep.subr.mxu0 0.0
    %325 = vmatpush1.msra.mxu0 0.0
    %326 = vmatprep.subr.mxu0 0.0
    %327 = vmatpush1.msra.mxu0 0.0
    %328 = vmatprep.subr.mxu0 0.0
    %329 = vmatpush1.msra.mxu0 0.0
    %330 = vmatprep.subr.mxu0 0.0
    %331 = vmatpush1.msra.mxu0 0.0
    %332 = vmatprep.subr.mxu0 0.0
    %333 = vmatpush1.msra.mxu0 0.0
    %334 = vmatprep.subr.mxu0 0.0
    %335 = vmatpush1.msra.mxu0 0.0
    %336 = vmatprep.subr.mxu0 0.0
    %337 = vmatpush1.msra.mxu0 0.0
    %338 = vmatprep.subr.mxu0 0.0
    %339 = vmatpush1.msra.mxu0 0.0
    %340 = vmatprep.subr.mxu0 0.0
    %341 = vmatpush1.msra.mxu0 0.0
    %342 = vmatprep.subr.mxu0 0.0
    %343 = vmatpush1.msra.mxu0 0.0
    %344 = vmatprep.subr.mxu0 0.0
    %345 = vmatpush1.msra.mxu0 0.0
    %346 = vmatprep.subr.mxu0 0.0
    %347 = vmatpush1.msra.mxu0 0.0
    %348 = vmatprep.subr.mxu0 0.0
    %349 = vmatpush1.msra.mxu0 0.0
    %350 = vmatprep.subr.mxu0 0.0
    %351 = vmatpush1.msra.mxu0 0.0
    %352 = vmatprep.subr.mxu0 0.0
    %353 = vmatpush1.msra.mxu0 0.0
    %354 = vmatprep.subr.mxu0 0.0
    %355 = vmatpush1.msra.mxu0 0.0
    %356 = vmatprep.subr.mxu0 0.0
    %357 = vmatpush1.msra.mxu0 0.0
    %358 = vmatprep.subr.mxu0 0.0
    %359 = vmatpush1.msra.mxu0 0.0
    %360 = vmatprep.subr.mxu0 0.0
    %361 = vmatpush1.msra.mxu0 0.0
    %362 = vmatprep.mubr.f32.mxu0 0.0
    %363 = vmatmul.mubr.f32.gmra.mrb[0].mxu0 %v293
    %v364 = vpop.f32.mrb[0].mxu0
    %v365 = vadd.f32 %v205, %v364
    %v366 = vpop.f32.mrb[0].mxu0
    %v367 = vadd.f32 %v207, %v366
    %368 = vmatprep.mubr.f32.mxu0 0.0
    %369 = vmatmul.mubr.f32.gmra.mrb[0].mxu0 %v296
    %v370 = vpop.f32.mrb[0].mxu0
    %v371 = vadd.f32 %v211, %v370
    %v372 = vpop.f32.mrb[0].mxu0
    %v373 = vadd.f32 %v213, %v372
    %374 = vdwg.mxu0
    %375 = vmatprep.subr.mxu0 %v69
    %376 = vmatpush1.msra.mxu0 %v68
    %377 = vmatprep.subr.mxu0 %v73
    %378 = vmatpush1.msra.mxu0 %v72
    %379 = vmatprep.subr.mxu0 %v77
    %380 = vmatpush1.msra.mxu0 %v76
    %381 = vmatprep.subr.mxu0 %v81
    %382 = vmatpush1.msra.mxu0 %v80
    %383 = vmatprep.subr.mxu0 %v85
    %384 = vmatpush1.msra.mxu0 %v84
    %385 = vmatprep.subr.mxu0 %v89
    %386 = vmatpush1.msra.mxu0 %v88
    %387 = vmatprep.subr.mxu0 %v93
    %388 = vmatpush1.msra.mxu0 %v92
    %389 = vmatprep.subr.mxu0 %v97
    %390 = vmatpush1.msra.mxu0 %v96
    %391 = vmatprep.subr.mxu0 0.0
    %392 = vmatpush1.msra.mxu0 0.0
    %393 = vmatprep.subr.mxu0 0.0
    %394 = vmatpush1.msra.mxu0 0.0
    %395 = vmatprep.subr.mxu0 0.0
    %396 = vmatpush1.msra.mxu0 0.0
    %397 = vmatprep.subr.mxu0 0.0
    %398 = vmatpush1.msra.mxu0 0.0
    %399 = vmatprep.subr.mxu0 0.0
    %400 = vmatpush1.msra.mxu0 0.0
    %401 = vmatprep.subr.mxu0 0.0
    %402 = vmatpush1.msra.mxu0 0.0
    %403 = vmatprep.subr.mxu0 0.0
    %404 = vmatpush1.msra.mxu0 0.0
    %405 = vmatprep.subr.mxu0 0.0
    %406 = vmatpush1.msra.mxu0 0.0
    %407 = vmatprep.subr.mxu0 0.0
    %408 = vmatpush1.msra.mxu0 0.0
    %409 = vmatprep.subr.mxu0 0.0
    %410 = vmatpush1.msra.mxu0 0.0
    %411 = vmatprep.subr.mxu0 0.0
    %412 = vmatpush1.msra.mxu0 0.0
    %413 = vmatprep.subr.mxu0 0.0
    %414 = vmatpush1.msra.mxu0 0.0
    %415 = vmatprep.subr.mxu0 0.0
    %416 = vmatpush1.msra.mxu0 0.0
    %417 = vmatprep.subr.mxu0 0.0
    %418 = vmatpush1.msra.mxu0 0.0
    %419 = vmatprep.subr.mxu0 0.0
    %420 = vmatpush1.msra.mxu0 0.0
    %421 = vmatprep.subr.mxu0 0.0
    %422 = vmatpush1.msra.mxu0 0.0
    %423 = vmatprep.subr.mxu0 0.0
    %424 = vmatpush1.msra.mxu0 0.0
    %425 = vmatprep.subr.mxu0 0.0
    %426 = vmatpush1.msra.mxu0 0.0
    %427 = vmatprep.subr.mxu0 0.0
    %428 = vmatpush1.msra.mxu0 0.0
    %429 = vmatprep.subr.mxu0 0.0
    %430 = vmatpush1.msra.mxu0 0.0
    %431 = vmatprep.subr.mxu0 0.0
    %432 = vmatpush1.msra.mxu0 0.0
    %433 = vmatprep.subr.mxu0 0.0
    %434 = vmatpush1.msra.mxu0 0.0
    %435 = vmatprep.subr.mxu0 0.0
    %436 = vmatpush1.msra.mxu0 0.0
    %437 = vmatprep.subr.mxu0 0.0
    %438 = vmatpush1.msra.mxu0 0.0
    %439 = vmatprep.mubr.f32.mxu0 0.0
    %440 = vmatmul.mubr.f32.gmra.mrb[0].mxu0 %v293
    %v441 = vpop.f32.mrb[0].mxu0
    %v442 = vadd.f32 %v282, %v441
    %v443 = vpop.f32.mrb[0].mxu0
    %v444 = vadd.f32 %v284, %v443
    %445 = vmatprep.mubr.f32.mxu0 0.0
    %446 = vmatmul.mubr.f32.gmra.mrb[0].mxu0 %v296
    %v447 = vpop.f32.mrb[0].mxu0
    %v448 = vadd.f32 %v288, %v447
    %v449 = vpop.f32.mrb[0].mxu0
    %v450 = vadd.f32 %v290, %v449
    %451 = vdwg.mxu0
    %s452 = scalar_lea.vmem [#allocation2], 512
    %v453 = vld [vmem:[%s452] sm:$0xff]
    %v454 = vld [vmem:[%s452 + $0x8] sm:$0xff]
    %v455 = vld [vmem:[%s452 + $0x10] sm:$0xff]
    %v456 = vld [vmem:[%s452 + $0x18] sm:$0xff]
    %v457 = vld [vmem:[%s452 + $0x20] sm:$0xff]
    %v458 = vld [vmem:[%s452 + $0x28] sm:$0xff]
    %v459 = vld [vmem:[%s452 + $0x30] sm:$0xff]
    %v460 = vld [vmem:[%s452 + $0x38] sm:$0xff]
    %v461 = vld [vmem:[%s452 + $0x40] sm:$0xff]
    %v462 = vld [vmem:[%s452 + $0x48] sm:$0xff]
    %v463 = vld [vmem:[%s452 + $0x50] sm:$0xff]
    %v464 = vld [vmem:[%s452 + $0x58] sm:$0xff]
    %v465 = vld [vmem:[%s452 + $0x60] sm:$0xff]
    %v466 = vld [vmem:[%s452 + $0x68] sm:$0xff]
    %v467 = vld [vmem:[%s452 + $0x70] sm:$0xff]
    %v468 = vld [vmem:[%s452 + $0x78] sm:$0xff]
    %v469 = vld [vmem:[%s452 + $0x80] sm:$0xff]
    %v470 = vld [vmem:[%s452 + $0x88] sm:$0xff]
    %v471 = vld [vmem:[%s452 + $0x90] sm:$0xff]
    %v472 = vld [vmem:[%s452 + $0x98] sm:$0xff]
    %v473 = vld [vmem:[%s452 + $0xa0] sm:$0xff]
    %v474 = vld [vmem:[%s452 + $0xa8] sm:$0xff]
    %v475 = vld [vmem:[%s452 + $0xb0] sm:$0xff]
    %v476 = vld [vmem:[%s452 + $0xb8] sm:$0xff]
    %v477 = vld [vmem:[%s452 + $0xc0] sm:$0xff]
    %v478 = vld [vmem:[%s452 + $0xc8] sm:$0xff]
    %v479 = vld [vmem:[%s452 + $0xd0] sm:$0xff]
    %v480 = vld [vmem:[%s452 + $0xd8] sm:$0xff]
    %v481 = vld [vmem:[%s452 + $0xe0] sm:$0xff]
    %v482 = vld [vmem:[%s452 + $0xe8] sm:$0xff]
    %v483 = vld [vmem:[%s452 + $0xf0] sm:$0xff]
    %v484 = vld [vmem:[%s452 + $0xf8] sm:$0xff]
    %v486 = vsel %vm131, %v62, 0
    %v489 = vsel %vm131, %v63, 0
    %491 = vmatprep.subr.mxu0 %v454
    %492 = vmatpush1.msra.mxu0 %v453
    %493 = vmatprep.subr.mxu0 %v458
    %494 = vmatpush1.msra.mxu0 %v457
    %495 = vmatprep.subr.mxu0 %v462
    %496 = vmatpush1.msra.mxu0 %v461
    %497 = vmatprep.subr.mxu0 %v466
    %498 = vmatpush1.msra.mxu0 %v465
    %499 = vmatprep.subr.mxu0 %v470
    %500 = vmatpush1.msra.mxu0 %v469
    %501 = vmatprep.subr.mxu0 %v474
    %502 = vmatpush1.msra.mxu0 %v473
    %503 = vmatprep.subr.mxu0 %v478
    %504 = vmatpush1.msra.mxu0 %v477
    %505 = vmatprep.subr.mxu0 %v482
    %506 = vmatpush1.msra.mxu0 %v481
    %507 = vmatprep.subr.mxu0 0.0
    %508 = vmatpush1.msra.mxu0 0.0
    %509 = vmatprep.subr.mxu0 0.0
    %510 = vmatpush1.msra.mxu0 0.0
    %511 = vmatprep.subr.mxu0 0.0
    %512 = vmatpush1.msra.mxu0 0.0
    %513 = vmatprep.subr.mxu0 0.0
    %514 = vmatpush1.msra.mxu0 0.0
    %515 = vmatprep.subr.mxu0 0.0
    %516 = vmatpush1.msra.mxu0 0.0
    %517 = vmatprep.subr.mxu0 0.0
    %518 = vmatpush1.msra.mxu0 0.0
    %519 = vmatprep.subr.mxu0 0.0
    %520 = vmatpush1.msra.mxu0 0.0
    %521 = vmatprep.subr.mxu0 0.0
    %522 = vmatpush1.msra.mxu0 0.0
    %523 = vmatprep.subr.mxu0 0.0
    %524 = vmatpush1.msra.mxu0 0.0
    %525 = vmatprep.subr.mxu0 0.0
    %526 = vmatpush1.msra.mxu0 0.0
    %527 = vmatprep.subr.mxu0 0.0
    %528 = vmatpush1.msra.mxu0 0.0
    %529 = vmatprep.subr.mxu0 0.0
    %530 = vmatpush1.msra.mxu0 0.0
    %531 = vmatprep.subr.mxu0 0.0
    %532 = vmatpush1.msra.mxu0 0.0
    %533 = vmatprep.subr.mxu0 0.0
    %534 = vmatpush1.msra.mxu0 0.0
    %535 = vmatprep.subr.mxu0 0.0
    %536 = vmatpush1.msra.mxu0 0.0
    %537 = vmatprep.subr.mxu0 0.0
    %538 = vmatpush1.msra.mxu0 0.0
    %539 = vmatprep.subr.mxu0 0.0
    %540 = vmatpush1.msra.mxu0 0.0
    %541 = vmatprep.subr.mxu0 0.0
    %542 = vmatpush1.msra.mxu0 0.0
    %543 = vmatprep.subr.mxu0 0.0
    %544 = vmatpush1.msra.mxu0 0.0
    %545 = vmatprep.subr.mxu0 0.0
    %546 = vmatpush1.msra.mxu0 0.0
    %547 = vmatprep.subr.mxu0 0.0
    %548 = vmatpush1.msra.mxu0 0.0
    %549 = vmatprep.subr.mxu0 0.0
    %550 = vmatpush1.msra.mxu0 0.0
    %551 = vmatprep.subr.mxu0 0.0
    %552 = vmatpush1.msra.mxu0 0.0
    %553 = vmatprep.subr.mxu0 0.0
    %554 = vmatpush1.msra.mxu0 0.0
    %555 = vmatprep.mubr.f32.mxu0 0.0
    %556 = vmatmul.mubr.f32.gmra.mrb[0].mxu0 %v486
    %v557 = vpop.f32.mrb[0].mxu0
    %v558 = vadd.f32 0.0, %v557
    %v559 = vpop.f32.mrb[0].mxu0
    %v560 = vadd.f32 0.0, %v559
    %561 = vmatprep.mubr.f32.mxu0 0.0
    %562 = vmatmul.mubr.f32.gmra.mrb[0].mxu0 %v489
    %v563 = vpop.f32.mrb[0].mxu0
    %v564 = vadd.f32 0.0, %v563
    %v565 = vpop.f32.mrb[0].mxu0
    %v566 = vadd.f32 0.0, %v565
    %567 = vdwg.mxu0
    %568 = vmatprep.subr.mxu0 %v456
    %569 = vmatpush1.msra.mxu0 %v455
    %570 = vmatprep.subr.mxu0 %v460
    %571 = vmatpush1.msra.mxu0 %v459
    %572 = vmatprep.subr.mxu0 %v464
    %573 = vmatpush1.msra.mxu0 %v463
    %574 = vmatprep.subr.mxu0 %v468
    %575 = vmatpush1.msra.mxu0 %v467
    %576 = vmatprep.subr.mxu0 %v472
    %577 = vmatpush1.msra.mxu0 %v471
    %578 = vmatprep.subr.mxu0 %v476
    %579 = vmatpush1.msra.mxu0 %v475
    %580 = vmatprep.subr.mxu0 %v480
    %581 = vmatpush1.msra.mxu0 %v479
    %582 = vmatprep.subr.mxu0 %v484
    %583 = vmatpush1.msra.mxu0 %v483
    %584 = vmatprep.subr.mxu0 0.0
    %585 = vmatpush1.msra.mxu0 0.0
    %586 = vmatprep.subr.mxu0 0.0
    %587 = vmatpush1.msra.mxu0 0.0
    %588 = vmatprep.subr.mxu0 0.0
    %589 = vmatpush1.msra.mxu0 0.0
    %590 = vmatprep.subr.mxu0 0.0
    %591 = vmatpush1.msra.mxu0 0.0
    %592 = vmatprep.subr.mxu0 0.0
    %593 = vmatpush1.msra.mxu0 0.0
    %594 = vmatprep.subr.mxu0 0.0
    %595 = vmatpush1.msra.mxu0 0.0
    %596 = vmatprep.subr.mxu0 0.0
    %597 = vmatpush1.msra.mxu0 0.0
    %598 = vmatprep.subr.mxu0 0.0
    %599 = vmatpush1.msra.mxu0 0.0
    %600 = vmatprep.subr.mxu0 0.0
    %601 = vmatpush1.msra.mxu0 0.0
    %602 = vmatprep.subr.mxu0 0.0
    %603 = vmatpush1.msra.mxu0 0.0
    %604 = vmatprep.subr.mxu0 0.0
    %605 = vmatpush1.msra.mxu0 0.0
    %606 = vmatprep.subr.mxu0 0.0
    %607 = vmatpush1.msra.mxu0 0.0
    %608 = vmatprep.subr.mxu0 0.0
    %609 = vmatpush1.msra.mxu0 0.0
    %610 = vmatprep.subr.mxu0 0.0
    %611 = vmatpush1.msra.mxu0 0.0
    %612 = vmatprep.subr.mxu0 0.0
    %613 = vmatpush1.msra.mxu0 0.0
    %614 = vmatprep.subr.mxu0 0.0
    %615 = vmatpush1.msra.mxu0 0.0
    %616 = vmatprep.subr.mxu0 0.0
    %617 = vmatpush1.msra.mxu0 0.0
    %618 = vmatprep.subr.mxu0 0.0
    %619 = vmatpush1.msra.mxu0 0.0
    %620 = vmatprep.subr.mxu0 0.0
    %621 = vmatpush1.msra.mxu0 0.0
    %622 = vmatprep.subr.mxu0 0.0
    %623 = vmatpush1.msra.mxu0 0.0
    %624 = vmatprep.subr.mxu0 0.0
    %625 = vmatpush1.msra.mxu0 0.0
    %626 = vmatprep.subr.mxu0 0.0
    %627 = vmatpush1.msra.mxu0 0.0
    %628 = vmatprep.subr.mxu0 0.0
    %629 = vmatpush1.msra.mxu0 0.0
    %630 = vmatprep.subr.mxu0 0.0
    %631 = vmatpush1.msra.mxu0 0.0
    %632 = vmatprep.mubr.f32.mxu0 0.0
    %633 = vmatmul.mubr.f32.gmra.mrb[0].mxu0 %v486
    %v634 = vpop.f32.mrb[0].mxu0
    %v635 = vadd.f32 0.0, %v634
    %v636 = vpop.f32.mrb[0].mxu0
    %v637 = vadd.f32 0.0, %v636
    %638 = vmatprep.mubr.f32.mxu0 0.0
    %639 = vmatmul.mubr.f32.gmra.mrb[0].mxu0 %v489
    %v640 = vpop.f32.mrb[0].mxu0
    %v641 = vadd.f32 0.0, %v640
    %v642 = vpop.f32.mrb[0].mxu0
    %v643 = vadd.f32 0.0, %v642
    %644 = vdwg.mxu0
    %v645 = vadd.f32 %v365, %v558
    %v646 = vadd.f32 %v367, %v560
    %v647 = vadd.f32 %v442, %v635
    %v648 = vadd.f32 %v444, %v637
    %v649 = vadd.f32 %v371, %v564
    %v650 = vadd.f32 %v373, %v566
    %v651 = vadd.f32 %v448, %v641
    %v652 = vadd.f32 %v450, %v643
    %s653 = scalar_lea.vmem [#allocation2], 768
    %v654 = vld [vmem:[%s653] sm:$0xff]
    %v655 = vld [vmem:[%s653 + $0x8] sm:$0xff]
    %v656 = vld [vmem:[%s653 + $0x10] sm:$0xff]
    %v657 = vld [vmem:[%s653 + $0x18] sm:$0xff]
    %v658 = vld [vmem:[%s653 + $0x20] sm:$0xff]
    %v659 = vld [vmem:[%s653 + $0x28] sm:$0xff]
    %v660 = vld [vmem:[%s653 + $0x30] sm:$0xff]
    %v661 = vld [vmem:[%s653 + $0x38] sm:$0xff]
    %v662 = vld [vmem:[%s653 + $0x40] sm:$0xff]
    %v663 = vld [vmem:[%s653 + $0x48] sm:$0xff]
    %v664 = vld [vmem:[%s653 + $0x50] sm:$0xff]
    %v665 = vld [vmem:[%s653 + $0x58] sm:$0xff]
    %v666 = vld [vmem:[%s653 + $0x60] sm:$0xff]
    %v667 = vld [vmem:[%s653 + $0x68] sm:$0xff]
    %v668 = vld [vmem:[%s653 + $0x70] sm:$0xff]
    %v669 = vld [vmem:[%s653 + $0x78] sm:$0xff]
    %v670 = vld [vmem:[%s653 + $0x80] sm:$0xff]
    %v671 = vld [vmem:[%s653 + $0x88] sm:$0xff]
    %v672 = vld [vmem:[%s653 + $0x90] sm:$0xff]
    %v673 = vld [vmem:[%s653 + $0x98] sm:$0xff]
    %v674 = vld [vmem:[%s653 + $0xa0] sm:$0xff]
    %v675 = vld [vmem:[%s653 + $0xa8] sm:$0xff]
    %v676 = vld [vmem:[%s653 + $0xb0] sm:$0xff]
    %v677 = vld [vmem:[%s653 + $0xb8] sm:$0xff]
    %v678 = vld [vmem:[%s653 + $0xc0] sm:$0xff]
    %v679 = vld [vmem:[%s653 + $0xc8] sm:$0xff]
    %v680 = vld [vmem:[%s653 + $0xd0] sm:$0xff]
    %v681 = vld [vmem:[%s653 + $0xd8] sm:$0xff]
    %v682 = vld [vmem:[%s653 + $0xe0] sm:$0xff]
    %v683 = vld [vmem:[%s653 + $0xe8] sm:$0xff]
    %v684 = vld [vmem:[%s653 + $0xf0] sm:$0xff]
    %v685 = vld [vmem:[%s653 + $0xf8] sm:$0xff]
    %v687 = vsel %vm131, %v64, 0
    %v690 = vsel %vm131, %v65, 0
    %692 = vmatprep.subr.mxu0 %v655
    %693 = vmatpush1.msra.mxu0 %v654
    %694 = vmatprep.subr.mxu0 %v659
    %695 = vmatpush1.msra.mxu0 %v658
    %696 = vmatprep.subr.mxu0 %v663
    %697 = vmatpush1.msra.mxu0 %v662
    %698 = vmatprep.subr.mxu0 %v667
    %699 = vmatpush1.msra.mxu0 %v666
    %700 = vmatprep.subr.mxu0 %v671
    %701 = vmatpush1.msra.mxu0 %v670
    %702 = vmatprep.subr.mxu0 %v675
    %703 = vmatpush1.msra.mxu0 %v674
    %704 = vmatprep.subr.mxu0 %v679
    %705 = vmatpush1.msra.mxu0 %v678
    %706 = vmatprep.subr.mxu0 %v683
    %707 = vmatpush1.msra.mxu0 %v682
    %708 = vmatprep.subr.mxu0 0.0
    %709 = vmatpush1.msra.mxu0 0.0
    %710 = vmatprep.subr.mxu0 0.0
    %711 = vmatpush1.msra.mxu0 0.0
    %712 = vmatprep.subr.mxu0 0.0
    %713 = vmatpush1.msra.mxu0 0.0
    %714 = vmatprep.subr.mxu0 0.0
    %715 = vmatpush1.msra.mxu0 0.0
    %716 = vmatprep.subr.mxu0 0.0
    %717 = vmatpush1.msra.mxu0 0.0
    %718 = vmatprep.subr.mxu0 0.0
    %719 = vmatpush1.msra.mxu0 0.0
    %720 = vmatprep.subr.mxu0 0.0
    %721 = vmatpush1.msra.mxu0 0.0
    %722 = vmatprep.subr.mxu0 0.0
    %723 = vmatpush1.msra.mxu0 0.0
    %724 = vmatprep.subr.mxu0 0.0
    %725 = vmatpush1.msra.mxu0 0.0
    %726 = vmatprep.subr.mxu0 0.0
    %727 = vmatpush1.msra.mxu0 0.0
    %728 = vmatprep.subr.mxu0 0.0
    %729 = vmatpush1.msra.mxu0 0.0
    %730 = vmatprep.subr.mxu0 0.0
    %731 = vmatpush1.msra.mxu0 0.0
    %732 = vmatprep.subr.mxu0 0.0
    %733 = vmatpush1.msra.mxu0 0.0
    %734 = vmatprep.subr.mxu0 0.0
    %735 = vmatpush1.msra.mxu0 0.0
    %736 = vmatprep.subr.mxu0 0.0
    %737 = vmatpush1.msra.mxu0 0.0
    %738 = vmatprep.subr.mxu0 0.0
    %739 = vmatpush1.msra.mxu0 0.0
    %740 = vmatprep.subr.mxu0 0.0
    %741 = vmatpush1.msra.mxu0 0.0
    %742 = vmatprep.subr.mxu0 0.0
    %743 = vmatpush1.msra.mxu0 0.0
    %744 = vmatprep.subr.mxu0 0.0
    %745 = vmatpush1.msra.mxu0 0.0
    %746 = vmatprep.subr.mxu0 0.0
    %747 = vmatpush1.msra.mxu0 0.0
    %748 = vmatprep.subr.mxu0 0.0
    %749 = vmatpush1.msra.mxu0 0.0
    %750 = vmatprep.subr.mxu0 0.0
    %751 = vmatpush1.msra.mxu0 0.0
    %752 = vmatprep.subr.mxu0 0.0
    %753 = vmatpush1.msra.mxu0 0.0
    %754 = vmatprep.subr.mxu0 0.0
    %755 = vmatpush1.msra.mxu0 0.0
    %756 = vmatprep.mubr.f32.mxu0 0.0
    %757 = vmatmul.mubr.f32.gmra.mrb[0].mxu0 %v687
    %v758 = vpop.f32.mrb[0].mxu0
    %v759 = vadd.f32 0.0, %v758
    %v760 = vpop.f32.mrb[0].mxu0
    %v761 = vadd.f32 0.0, %v760
    %762 = vmatprep.mubr.f32.mxu0 0.0
    %763 = vmatmul.mubr.f32.gmra.mrb[0].mxu0 %v690
    %v764 = vpop.f32.mrb[0].mxu0
    %v765 = vadd.f32 0.0, %v764
    %v766 = vpop.f32.mrb[0].mxu0
    %v767 = vadd.f32 0.0, %v766
    %768 = vdwg.mxu0
    %769 = vmatprep.subr.mxu0 %v657
    %770 = vmatpush1.msra.mxu0 %v656
    %771 = vmatprep.subr.mxu0 %v661
    %772 = vmatpush1.msra.mxu0 %v660
    %773 = vmatprep.subr.mxu0 %v665
    %774 = vmatpush1.msra.mxu0 %v664
    %775 = vmatprep.subr.mxu0 %v669
    %776 = vmatpush1.msra.mxu0 %v668
    %777 = vmatprep.subr.mxu0 %v673
    %778 = vmatpush1.msra.mxu0 %v672
    %779 = vmatprep.subr.mxu0 %v677
    %780 = vmatpush1.msra.mxu0 %v676
    %781 = vmatprep.subr.mxu0 %v681
    %782 = vmatpush1.msra.mxu0 %v680
    %783 = vmatprep.subr.mxu0 %v685
    %784 = vmatpush1.msra.mxu0 %v684
    %785 = vmatprep.subr.mxu0 0.0
    %786 = vmatpush1.msra.mxu0 0.0
    %787 = vmatprep.subr.mxu0 0.0
    %788 = vmatpush1.msra.mxu0 0.0
    %789 = vmatprep.subr.mxu0 0.0
    %790 = vmatpush1.msra.mxu0 0.0
    %791 = vmatprep.subr.mxu0 0.0
    %792 = vmatpush1.msra.mxu0 0.0
    %793 = vmatprep.subr.mxu0 0.0
    %794 = vmatpush1.msra.mxu0 0.0
    %795 = vmatprep.subr.mxu0 0.0
    %796 = vmatpush1.msra.mxu0 0.0
    %797 = vmatprep.subr.mxu0 0.0
    %798 = vmatpush1.msra.mxu0 0.0
    %799 = vmatprep.subr.mxu0 0.0
    %800 = vmatpush1.msra.mxu0 0.0
    %801 = vmatprep.subr.mxu0 0.0
    %802 = vmatpush1.msra.mxu0 0.0
    %803 = vmatprep.subr.mxu0 0.0
    %804 = vmatpush1.msra.mxu0 0.0
    %805 = vmatprep.subr.mxu0 0.0
    %806 = vmatpush1.msra.mxu0 0.0
    %807 = vmatprep.subr.mxu0 0.0
    %808 = vmatpush1.msra.mxu0 0.0
    %809 = vmatprep.subr.mxu0 0.0
    %810 = vmatpush1.msra.mxu0 0.0
    %811 = vmatprep.subr.mxu0 0.0
    %812 = vmatpush1.msra.mxu0 0.0
    %813 = vmatprep.subr.mxu0 0.0
    %814 = vmatpush1.msra.mxu0 0.0
    %815 = vmatprep.subr.mxu0 0.0
    %816 = vmatpush1.msra.mxu0 0.0
    %817 = vmatprep.subr.mxu0 0.0
    %818 = vmatpush1.msra.mxu0 0.0
    %819 = vmatprep.subr.mxu0 0.0
    %820 = vmatpush1.msra.mxu0 0.0
    %821 = vmatprep.subr.mxu0 0.0
    %822 = vmatpush1.msra.mxu0 0.0
    %823 = vmatprep.subr.mxu0 0.0
    %824 = vmatpush1.msra.mxu0 0.0
    %825 = vmatprep.subr.mxu0 0.0
    %826 = vmatpush1.msra.mxu0 0.0
    %827 = vmatprep.subr.mxu0 0.0
    %828 = vmatpush1.msra.mxu0 0.0
    %829 = vmatprep.subr.mxu0 0.0
    %830 = vmatpush1.msra.mxu0 0.0
    %831 = vmatprep.subr.mxu0 0.0
    %832 = vmatpush1.msra.mxu0 0.0
    %833 = vmatprep.mubr.f32.mxu0 0.0
    %834 = vmatmul.mubr.f32.gmra.mrb[0].mxu0 %v687
    %v835 = vpop.f32.mrb[0].mxu0
    %v836 = vadd.f32 0.0, %v835
    %v837 = vpop.f32.mrb[0].mxu0
    %v838 = vadd.f32 0.0, %v837
    %839 = vmatprep.mubr.f32.mxu0 0.0
    %840 = vmatmul.mubr.f32.gmra.mrb[0].mxu0 %v690
    %v841 = vpop.f32.mrb[0].mxu0
    %v842 = vadd.f32 0.0, %v841
    %v843 = vpop.f32.mrb[0].mxu0
    %v844 = vadd.f32 0.0, %v843
    %845 = vdwg.mxu0
    %v846 = vadd.f32 %v645, %v759
    %v847 = vadd.f32 %v646, %v761
    %v848 = vadd.f32 %v647, %v836
    %v849 = vadd.f32 %v648, %v838
    %v850 = vadd.f32 %v649, %v765
    %v851 = vadd.f32 %v650, %v767
    %v852 = vadd.f32 %v651, %v842
    %v853 = vadd.f32 %v652, %v844
    %s854 = scalar_lea.vmem [#allocation2], 1024
    %v855 = vld [vmem:[%s854] sm:$0xff]
    %v856 = vld [vmem:[%s854 + $0x8] sm:$0xff]
    %v857 = vld [vmem:[%s854 + $0x10] sm:$0xff]
    %v858 = vld [vmem:[%s854 + $0x18] sm:$0xff]
    %v859 = vld [vmem:[%s854 + $0x20] sm:$0xff]
    %v860 = vld [vmem:[%s854 + $0x28] sm:$0xff]
    %v861 = vld [vmem:[%s854 + $0x30] sm:$0xff]
    %v862 = vld [vmem:[%s854 + $0x38] sm:$0xff]
    %v863 = vld [vmem:[%s854 + $0x40] sm:$0xff]
    %v864 = vld [vmem:[%s854 + $0x48] sm:$0xff]
    %v865 = vld [vmem:[%s854 + $0x50] sm:$0xff]
    %v866 = vld [vmem:[%s854 + $0x58] sm:$0xff]
    %v867 = vld [vmem:[%s854 + $0x60] sm:$0xff]
    %v868 = vld [vmem:[%s854 + $0x68] sm:$0xff]
    %v869 = vld [vmem:[%s854 + $0x70] sm:$0xff]
    %v870 = vld [vmem:[%s854 + $0x78] sm:$0xff]
    %v871 = vld [vmem:[%s854 + $0x80] sm:$0xff]
    %v872 = vld [vmem:[%s854 + $0x88] sm:$0xff]
    %v873 = vld [vmem:[%s854 + $0x90] sm:$0xff]
    %v874 = vld [vmem:[%s854 + $0x98] sm:$0xff]
    %v875 = vld [vmem:[%s854 + $0xa0] sm:$0xff]
    %v876 = vld [vmem:[%s854 + $0xa8] sm:$0xff]
    %v877 = vld [vmem:[%s854 + $0xb0] sm:$0xff]
    %v878 = vld [vmem:[%s854 + $0xb8] sm:$0xff]
    %v879 = vld [vmem:[%s854 + $0xc0] sm:$0xff]
    %v880 = vld [vmem:[%s854 + $0xc8] sm:$0xff]
    %v881 = vld [vmem:[%s854 + $0xd0] sm:$0xff]
    %v882 = vld [vmem:[%s854 + $0xd8] sm:$0xff]
    %v883 = vld [vmem:[%s854 + $0xe0] sm:$0xff]
    %v884 = vld [vmem:[%s854 + $0xe8] sm:$0xff]
    %v885 = vld [vmem:[%s854 + $0xf0] sm:$0xff]
    %v886 = vld [vmem:[%s854 + $0xf8] sm:$0xff]
    %vm887 = vcmask 1045504
    %v888 = vrot.slane %v58, 2
    %v889 = vrot.slane %v59, 2
    %v890 = vsel %vm887, %v888, %v889
    %v891 = vsel %vm131, %v890, 0
    %v893 = vsel %vm131, %v889, 0
    %895 = vmatprep.subr.mxu0 %v856
    %896 = vmatpush1.msra.mxu0 %v855
    %897 = vmatprep.subr.mxu0 %v860
    %898 = vmatpush1.msra.mxu0 %v859
    %899 = vmatprep.subr.mxu0 %v864
    %900 = vmatpush1.msra.mxu0 %v863
    %901 = vmatprep.subr.mxu0 %v868
    %902 = vmatpush1.msra.mxu0 %v867
    %903 = vmatprep.subr.mxu0 %v872
    %904 = vmatpush1.msra.mxu0 %v871
    %905 = vmatprep.subr.mxu0 %v876
    %906 = vmatpush1.msra.mxu0 %v875
    %907 = vmatprep.subr.mxu0 %v880
    %908 = vmatpush1.msra.mxu0 %v879
    %909 = vmatprep.subr.mxu0 %v884
    %910 = vmatpush1.msra.mxu0 %v883
    %911 = vmatprep.subr.mxu0 0.0
    %912 = vmatpush1.msra.mxu0 0.0
    %913 = vmatprep.subr.mxu0 0.0
    %914 = vmatpush1.msra.mxu0 0.0
    %915 = vmatprep.subr.mxu0 0.0
    %916 = vmatpush1.msra.mxu0 0.0
    %917 = vmatprep.subr.mxu0 0.0
    %918 = vmatpush1.msra.mxu0 0.0
    %919 = vmatprep.subr.mxu0 0.0
    %920 = vmatpush1.msra.mxu0 0.0
    %921 = vmatprep.subr.mxu0 0.0
    %922 = vmatpush1.msra.mxu0 0.0
    %923 = vmatprep.subr.mxu0 0.0
    %924 = vmatpush1.msra.mxu0 0.0
    %925 = vmatprep.subr.mxu0 0.0
    %926 = vmatpush1.msra.mxu0 0.0
    %927 = vmatprep.subr.mxu0 0.0
    %928 = vmatpush1.msra.mxu0 0.0
    %929 = vmatprep.subr.mxu0 0.0
    %930 = vmatpush1.msra.mxu0 0.0
    %931 = vmatprep.subr.mxu0 0.0
    %932 = vmatpush1.msra.mxu0 0.0
    %933 = vmatprep.subr.mxu0 0.0
    %934 = vmatpush1.msra.mxu0 0.0
    %935 = vmatprep.subr.mxu0 0.0
    %936 = vmatpush1.msra.mxu0 0.0
    %937 = vmatprep.subr.mxu0 0.0
    %938 = vmatpush1.msra.mxu0 0.0
    %939 = vmatprep.subr.mxu0 0.0
    %940 = vmatpush1.msra.mxu0 0.0
    %941 = vmatprep.subr.mxu0 0.0
    %942 = vmatpush1.msra.mxu0 0.0
    %943 = vmatprep.subr.mxu0 0.0
    %944 = vmatpush1.msra.mxu0 0.0
    %945 = vmatprep.subr.mxu0 0.0
    %946 = vmatpush1.msra.mxu0 0.0
    %947 = vmatprep.subr.mxu0 0.0
    %948 = vmatpush1.msra.mxu0 0.0
    %949 = vmatprep.subr.mxu0 0.0
    %950 = vmatpush1.msra.mxu0 0.0
    %951 = vmatprep.subr.mxu0 0.0
    %952 = vmatpush1.msra.mxu0 0.0
    %953 = vmatprep.subr.mxu0 0.0
    %954 = vmatpush1.msra.mxu0 0.0
    %955 = vmatprep.subr.mxu0 0.0
    %956 = vmatpush1.msra.mxu0 0.0
    %957 = vmatprep.subr.mxu0 0.0
    %958 = vmatpush1.msra.mxu0 0.0
    %959 = vmatprep.mubr.f32.mxu0 0.0
    %960 = vmatmul.mubr.f32.gmra.mrb[0].mxu0 %v891
    %v961 = vpop.f32.mrb[0].mxu0
    %v962 = vadd.f32 0.0, %v961
    %v963 = vpop.f32.mrb[0].mxu0
    %v964 = vadd.f32 0.0, %v963
    %965 = vmatprep.mubr.f32.mxu0 0.0
    %966 = vmatmul.mubr.f32.gmra.mrb[0].mxu0 %v893
    %v967 = vpop.f32.mrb[0].mxu0
    %v968 = vadd.f32 0.0, %v967
    %v969 = vpop.f32.mrb[0].mxu0
    %v970 = vadd.f32 0.0, %v969
    %971 = vdwg.mxu0
    %972 = vmatprep.subr.mxu0 %v858
    %973 = vmatpush1.msra.mxu0 %v857
    %974 = vmatprep.subr.mxu0 %v862
    %975 = vmatpush1.msra.mxu0 %v861
    %976 = vmatprep.subr.mxu0 %v866
    %977 = vmatpush1.msra.mxu0 %v865
    %978 = vmatprep.subr.mxu0 %v870
    %979 = vmatpush1.msra.mxu0 %v869
    %980 = vmatprep.subr.mxu0 %v874
    %981 = vmatpush1.msra.mxu0 %v873
    %982 = vmatprep.subr.mxu0 %v878
    %983 = vmatpush1.msra.mxu0 %v877
    %984 = vmatprep.subr.mxu0 %v882
    %985 = vmatpush1.msra.mxu0 %v881
    %986 = vmatprep.subr.mxu0 %v886
    %987 = vmatpush1.msra.mxu0 %v885
    %988 = vmatprep.subr.mxu0 0.0
    %989 = vmatpush1.msra.mxu0 0.0
    %990 = vmatprep.subr.mxu0 0.0
    %991 = vmatpush1.msra.mxu0 0.0
    %992 = vmatprep.subr.mxu0 0.0
    %993 = vmatpush1.msra.mxu0 0.0
    %994 = vmatprep.subr.mxu0 0.0
    %995 = vmatpush1.msra.mxu0 0.0
    %996 = vmatprep.subr.mxu0 0.0
    %997 = vmatpush1.msra.mxu0 0.0
    %998 = vmatprep.subr.mxu0 0.0
    %999 = vmatpush1.msra.mxu0 0.0
    %1000 = vmatprep.subr.mxu0 0.0
    %1001 = vmatpush1.msra.mxu0 0.0
    %1002 = vmatprep.subr.mxu0 0.0
    %1003 = vmatpush1.msra.mxu0 0.0
    %1004 = vmatprep.subr.mxu0 0.0
    %1005 = vmatpush1.msra.mxu0 0.0
    %1006 = vmatprep.subr.mxu0 0.0
    %1007 = vmatpush1.msra.mxu0 0.0
    %1008 = vmatprep.subr.mxu0 0.0
    %1009 = vmatpush1.msra.mxu0 0.0
    %1010 = vmatprep.subr.mxu0 0.0
    %1011 = vmatpush1.msra.mxu0 0.0
    %1012 = vmatprep.subr.mxu0 0.0
    %1013 = vmatpush1.msra.mxu0 0.0
    %1014 = vmatprep.subr.mxu0 0.0
    %1015 = vmatpush1.msra.mxu0 0.0
    %1016 = vmatprep.subr.mxu0 0.0
    %1017 = vmatpush1.msra.mxu0 0.0
    %1018 = vmatprep.subr.mxu0 0.0
    %1019 = vmatpush1.msra.mxu0 0.0
    %1020 = vmatprep.subr.mxu0 0.0
    %1021 = vmatpush1.msra.mxu0 0.0
    %1022 = vmatprep.subr.mxu0 0.0
    %1023 = vmatpush1.msra.mxu0 0.0
    %1024 = vmatprep.subr.mxu0 0.0
    %1025 = vmatpush1.msra.mxu0 0.0
    %1026 = vmatprep.subr.mxu0 0.0
    %1027 = vmatpush1.msra.mxu0 0.0
    %1028 = vmatprep.subr.mxu0 0.0
    %1029 = vmatpush1.msra.mxu0 0.0
    %1030 = vmatprep.subr.mxu0 0.0
    %1031 = vmatpush1.msra.mxu0 0.0
    %1032 = vmatprep.subr.mxu0 0.0
    %1033 = vmatpush1.msra.mxu0 0.0
    %1034 = vmatprep.subr.mxu0 0.0
    %1035 = vmatpush1.msra.mxu0 0.0
    %1036 = vmatprep.mubr.f32.mxu0 0.0
    %1037 = vmatmul.mubr.f32.gmra.mrb[0].mxu0 %v891
    %v1038 = vpop.f32.mrb[0].mxu0
    %v1039 = vadd.f32 0.0, %v1038
    %v1040 = vpop.f32.mrb[0].mxu0
    %v1041 = vadd.f32 0.0, %v1040
    %1042 = vmatprep.mubr.f32.mxu0 0.0
    %1043 = vmatmul.mubr.f32.gmra.mrb[0].mxu0 %v893
    %v1044 = vpop.f32.mrb[0].mxu0
    %v1045 = vadd.f32 0.0, %v1044
    %v1046 = vpop.f32.mrb[0].mxu0
    %v1047 = vadd.f32 0.0, %v1046
    %1048 = vdwg.mxu0
    %v1049 = vadd.f32 %v846, %v962
    %v1050 = vadd.f32 %v847, %v964
    %v1051 = vadd.f32 %v848, %v1039
    %v1052 = vadd.f32 %v849, %v1041
    %v1053 = vadd.f32 %v850, %v968
    %v1054 = vadd.f32 %v851, %v970
    %v1055 = vadd.f32 %v852, %v1045
    %v1056 = vadd.f32 %v853, %v1047
    %s1057 = scalar_lea.vmem [#allocation2], 1280
    %v1058 = vld [vmem:[%s1057] sm:$0xff]
    %v1059 = vld [vmem:[%s1057 + $0x8] sm:$0xff]
    %v1060 = vld [vmem:[%s1057 + $0x10] sm:$0xff]
    %v1061 = vld [vmem:[%s1057 + $0x18] sm:$0xff]
    %v1062 = vld [vmem:[%s1057 + $0x20] sm:$0xff]
    %v1063 = vld [vmem:[%s1057 + $0x28] sm:$0xff]
    %v1064 = vld [vmem:[%s1057 + $0x30] sm:$0xff]
    %v1065 = vld [vmem:[%s1057 + $0x38] sm:$0xff]
    %v1066 = vld [vmem:[%s1057 + $0x40] sm:$0xff]
    %v1067 = vld [vmem:[%s1057 + $0x48] sm:$0xff]
    %v1068 = vld [vmem:[%s1057 + $0x50] sm:$0xff]
    %v1069 = vld [vmem:[%s1057 + $0x58] sm:$0xff]
    %v1070 = vld [vmem:[%s1057 + $0x60] sm:$0xff]
    %v1071 = vld [vmem:[%s1057 + $0x68] sm:$0xff]
    %v1072 = vld [vmem:[%s1057 + $0x70] sm:$0xff]
    %v1073 = vld [vmem:[%s1057 + $0x78] sm:$0xff]
    %v1074 = vld [vmem:[%s1057 + $0x80] sm:$0xff]
    %v1075 = vld [vmem:[%s1057 + $0x88] sm:$0xff]
    %v1076 = vld [vmem:[%s1057 + $0x90] sm:$0xff]
    %v1077 = vld [vmem:[%s1057 + $0x98] sm:$0xff]
    %v1078 = vld [vmem:[%s1057 + $0xa0] sm:$0xff]
    %v1079 = vld [vmem:[%s1057 + $0xa8] sm:$0xff]
    %v1080 = vld [vmem:[%s1057 + $0xb0] sm:$0xff]
    %v1081 = vld [vmem:[%s1057 + $0xb8] sm:$0xff]
    %v1082 = vld [vmem:[%s1057 + $0xc0] sm:$0xff]
    %v1083 = vld [vmem:[%s1057 + $0xc8] sm:$0xff]
    %v1084 = vld [vmem:[%s1057 + $0xd0] sm:$0xff]
    %v1085 = vld [vmem:[%s1057 + $0xd8] sm:$0xff]
    %v1086 = vld [vmem:[%s1057 + $0xe0] sm:$0xff]
    %v1087 = vld [vmem:[%s1057 + $0xe8] sm:$0xff]
    %v1088 = vld [vmem:[%s1057 + $0xf0] sm:$0xff]
    %v1089 = vld [vmem:[%s1057 + $0xf8] sm:$0xff]
    %v1090 = vrot.slane %v60, 2
    %v1091 = vrot.slane %v61, 2
    %v1092 = vsel %vm887, %v1090, %v1091
    %v1093 = vsel %vm131, %v1092, 0
    %v1095 = vsel %vm131, %v1091, 0
    %1097 = vmatprep.subr.mxu0 %v1059
    %1098 = vmatpush1.msra.mxu0 %v1058
    %1099 = vmatprep.subr.mxu0 %v1063
    %1100 = vmatpush1.msra.mxu0 %v1062
    %1101 = vmatprep.subr.mxu0 %v1067
    %1102 = vmatpush1.msra.mxu0 %v1066
    %1103 = vmatprep.subr.mxu0 %v1071
    %1104 = vmatpush1.msra.mxu0 %v1070
    %1105 = vmatprep.subr.mxu0 %v1075
    %1106 = vmatpush1.msra.mxu0 %v1074
    %1107 = vmatprep.subr.mxu0 %v1079
    %1108 = vmatpush1.msra.mxu0 %v1078
    %1109 = vmatprep.subr.mxu0 %v1083
    %1110 = vmatpush1.msra.mxu0 %v1082
    %1111 = vmatprep.subr.mxu0 %v1087
    %1112 = vmatpush1.msra.mxu0 %v1086
    %1113 = vmatprep.subr.mxu0 0.0
    %1114 = vmatpush1.msra.mxu0 0.0
    %1115 = vmatprep.subr.mxu0 0.0
    %1116 = vmatpush1.msra.mxu0 0.0
    %1117 = vmatprep.subr.mxu0 0.0
    %1118 = vmatpush1.msra.mxu0 0.0
    %1119 = vmatprep.subr.mxu0 0.0
    %1120 = vmatpush1.msra.mxu0 0.0
    %1121 = vmatprep.subr.mxu0 0.0
    %1122 = vmatpush1.msra.mxu0 0.0
    %1123 = vmatprep.subr.mxu0 0.0
    %1124 = vmatpush1.msra.mxu0 0.0
    %1125 = vmatprep.subr.mxu0 0.0
    %1126 = vmatpush1.msra.mxu0 0.0
    %1127 = vmatprep.subr.mxu0 0.0
    %1128 = vmatpush1.msra.mxu0 0.0
    %1129 = vmatprep.subr.mxu0 0.0
    %1130 = vmatpush1.msra.mxu0 0.0
    %1131 = vmatprep.subr.mxu0 0.0
    %1132 = vmatpush1.msra.mxu0 0.0
    %1133 = vmatprep.subr.mxu0 0.0
    %1134 = vmatpush1.msra.mxu0 0.0
    %1135 = vmatprep.subr.mxu0 0.0
    %1136 = vmatpush1.msra.mxu0 0.0
    %1137 = vmatprep.subr.mxu0 0.0
    %1138 = vmatpush1.msra.mxu0 0.0
    %1139 = vmatprep.subr.mxu0 0.0
    %1140 = vmatpush1.msra.mxu0 0.0
    %1141 = vmatprep.subr.mxu0 0.0
    %1142 = vmatpush1.msra.mxu0 0.0
    %1143 = vmatprep.subr.mxu0 0.0
    %1144 = vmatpush1.msra.mxu0 0.0
    %1145 = vmatprep.subr.mxu0 0.0
    %1146 = vmatpush1.msra.mxu0 0.0
    %1147 = vmatprep.subr.mxu0 0.0
    %1148 = vmatpush1.msra.mxu0 0.0
    %1149 = vmatprep.subr.mxu0 0.0
    %1150 = vmatpush1.msra.mxu0 0.0
    %1151 = vmatprep.subr.mxu0 0.0
    %1152 = vmatpush1.msra.mxu0 0.0
    %1153 = vmatprep.subr.mxu0 0.0
    %1154 = vmatpush1.msra.mxu0 0.0
    %1155 = vmatprep.subr.mxu0 0.0
    %1156 = vmatpush1.msra.mxu0 0.0
    %1157 = vmatprep.subr.mxu0 0.0
    %1158 = vmatpush1.msra.mxu0 0.0
    %1159 = vmatprep.subr.mxu0 0.0
    %1160 = vmatpush1.msra.mxu0 0.0
    %1161 = vmatprep.mubr.f32.mxu0 0.0
    %1162 = vmatmul.mubr.f32.gmra.mrb[0].mxu0 %v1093
    %v1163 = vpop.f32.mrb[0].mxu0
    %v1164 = vadd.f32 0.0, %v1163
    %v1165 = vpop.f32.mrb[0].mxu0
    %v1166 = vadd.f32 0.0, %v1165
    %1167 = vmatprep.mubr.f32.mxu0 0.0
    %1168 = vmatmul.mubr.f32.gmra.mrb[0].mxu0 %v1095
    %v1169 = vpop.f32.mrb[0].mxu0
    %v1170 = vadd.f32 0.0, %v1169
    %v1171 = vpop.f32.mrb[0].mxu0
    %v1172 = vadd.f32 0.0, %v1171
    %1173 = vdwg.mxu0
    %1174 = vmatprep.subr.mxu0 %v1061
    %1175 = vmatpush1.msra.mxu0 %v1060
    %1176 = vmatprep.subr.mxu0 %v1065
    %1177 = vmatpush1.msra.mxu0 %v1064
    %1178 = vmatprep.subr.mxu0 %v1069
    %1179 = vmatpush1.msra.mxu0 %v1068
    %1180 = vmatprep.subr.mxu0 %v1073
    %1181 = vmatpush1.msra.mxu0 %v1072
    %1182 = vmatprep.subr.mxu0 %v1077
    %1183 = vmatpush1.msra.mxu0 %v1076
    %1184 = vmatprep.subr.mxu0 %v1081
    %1185 = vmatpush1.msra.mxu0 %v1080
    %1186 = vmatprep.subr.mxu0 %v1085
    %1187 = vmatpush1.msra.mxu0 %v1084
    %1188 = vmatprep.subr.mxu0 %v1089
    %1189 = vmatpush1.msra.mxu0 %v1088
    %1190 = vmatprep.subr.mxu0 0.0
    %1191 = vmatpush1.msra.mxu0 0.0
    %1192 = vmatprep.subr.mxu0 0.0
    %1193 = vmatpush1.msra.mxu0 0.0
    %1194 = vmatprep.subr.mxu0 0.0
    %1195 = vmatpush1.msra.mxu0 0.0
    %1196 = vmatprep.subr.mxu0 0.0
    %1197 = vmatpush1.msra.mxu0 0.0
    %1198 = vmatprep.subr.mxu0 0.0
    %1199 = vmatpush1.msra.mxu0 0.0
    %1200 = vmatprep.subr.mxu0 0.0
    %1201 = vmatpush1.msra.mxu0 0.0
    %1202 = vmatprep.subr.mxu0 0.0
    %1203 = vmatpush1.msra.mxu0 0.0
    %1204 = vmatprep.subr.mxu0 0.0
    %1205 = vmatpush1.msra.mxu0 0.0
    %1206 = vmatprep.subr.mxu0 0.0
    %1207 = vmatpush1.msra.mxu0 0.0
    %1208 = vmatprep.subr.mxu0 0.0
    %1209 = vmatpush1.msra.mxu0 0.0
    %1210 = vmatprep.subr.mxu0 0.0
    %1211 = vmatpush1.msra.mxu0 0.0
    %1212 = vmatprep.subr.mxu0 0.0
    %1213 = vmatpush1.msra.mxu0 0.0
    %1214 = vmatprep.subr.mxu0 0.0
    %1215 = vmatpush1.msra.mxu0 0.0
    %1216 = vmatprep.subr.mxu0 0.0
    %1217 = vmatpush1.msra.mxu0 0.0
    %1218 = vmatprep.subr.mxu0 0.0
    %1219 = vmatpush1.msra.mxu0 0.0
    %1220 = vmatprep.subr.mxu0 0.0
    %1221 = vmatpush1.msra.mxu0 0.0
    %1222 = vmatprep.subr.mxu0 0.0
    %1223 = vmatpush1.msra.mxu0 0.0
    %1224 = vmatprep.subr.mxu0 0.0
    %1225 = vmatpush1.msra.mxu0 0.0
    %1226 = vmatprep.subr.mxu0 0.0
    %1227 = vmatpush1.msra.mxu0 0.0
    %1228 = vmatprep.subr.mxu0 0.0
    %1229 = vmatpush1.msra.mxu0 0.0
    %1230 = vmatprep.subr.mxu0 0.0
    %1231 = vmatpush1.msra.mxu0 0.0
    %1232 = vmatprep.subr.mxu0 0.0
    %1233 = vmatpush1.msra.mxu0 0.0
    %1234 = vmatprep.subr.mxu0 0.0
    %1235 = vmatpush1.msra.mxu0 0.0
    %1236 = vmatprep.subr.mxu0 0.0
    %1237 = vmatpush1.msra.mxu0 0.0
    %1238 = vmatprep.mubr.f32.mxu0 0.0
    %1239 = vmatmul.mubr.f32.gmra.mrb[0].mxu0 %v1093
    %v1240 = vpop.f32.mrb[0].mxu0
    %v1241 = vadd.f32 0.0, %v1240
    %v1242 = vpop.f32.mrb[0].mxu0
    %v1243 = vadd.f32 0.0, %v1242
    %1244 = vmatprep.mubr.f32.mxu0 0.0
    %1245 = vmatmul.mubr.f32.gmra.mrb[0].mxu0 %v1095
    %v1246 = vpop.f32.mrb[0].mxu0
    %v1247 = vadd.f32 0.0, %v1246
    %v1248 = vpop.f32.mrb[0].mxu0
    %v1249 = vadd.f32 0.0, %v1248
    %1250 = vdwg.mxu0
    %v1251 = vadd.f32 %v1049, %v1164
    %v1252 = vadd.f32 %v1050, %v1166
    %v1253 = vadd.f32 %v1051, %v1241
    %v1254 = vadd.f32 %v1052, %v1243
    %v1255 = vadd.f32 %v1053, %v1170
    %v1256 = vadd.f32 %v1054, %v1172
    %v1257 = vadd.f32 %v1055, %v1247
    %v1258 = vadd.f32 %v1056, %v1249
    %s1259 = scalar_lea.vmem [#allocation2], 1536
    %v1260 = vld [vmem:[%s1259] sm:$0xff]
    %v1261 = vld [vmem:[%s1259 + $0x8] sm:$0xff]
    %v1262 = vld [vmem:[%s1259 + $0x10] sm:$0xff]
    %v1263 = vld [vmem:[%s1259 + $0x18] sm:$0xff]
    %v1264 = vld [vmem:[%s1259 + $0x20] sm:$0xff]
    %v1265 = vld [vmem:[%s1259 + $0x28] sm:$0xff]
    %v1266 = vld [vmem:[%s1259 + $0x30] sm:$0xff]
    %v1267 = vld [vmem:[%s1259 + $0x38] sm:$0xff]
    %v1268 = vld [vmem:[%s1259 + $0x40] sm:$0xff]
    %v1269 = vld [vmem:[%s1259 + $0x48] sm:$0xff]
    %v1270 = vld [vmem:[%s1259 + $0x50] sm:$0xff]
    %v1271 = vld [vmem:[%s1259 + $0x58] sm:$0xff]
    %v1272 = vld [vmem:[%s1259 + $0x60] sm:$0xff]
    %v1273 = vld [vmem:[%s1259 + $0x68] sm:$0xff]
    %v1274 = vld [vmem:[%s1259 + $0x70] sm:$0xff]
    %v1275 = vld [vmem:[%s1259 + $0x78] sm:$0xff]
    %v1276 = vld [vmem:[%s1259 + $0x80] sm:$0xff]
    %v1277 = vld [vmem:[%s1259 + $0x88] sm:$0xff]
    %v1278 = vld [vmem:[%s1259 + $0x90] sm:$0xff]
    %v1279 = vld [vmem:[%s1259 + $0x98] sm:$0xff]
    %v1280 = vld [vmem:[%s1259 + $0xa0] sm:$0xff]
    %v1281 = vld [vmem:[%s1259 + $0xa8] sm:$0xff]
    %v1282 = vld [vmem:[%s1259 + $0xb0] sm:$0xff]
    %v1283 = vld [vmem:[%s1259 + $0xb8] sm:$0xff]
    %v1284 = vld [vmem:[%s1259 + $0xc0] sm:$0xff]
    %v1285 = vld [vmem:[%s1259 + $0xc8] sm:$0xff]
    %v1286 = vld [vmem:[%s1259 + $0xd0] sm:$0xff]
    %v1287 = vld [vmem:[%s1259 + $0xd8] sm:$0xff]
    %v1288 = vld [vmem:[%s1259 + $0xe0] sm:$0xff]
    %v1289 = vld [vmem:[%s1259 + $0xe8] sm:$0xff]
    %v1290 = vld [vmem:[%s1259 + $0xf0] sm:$0xff]
    %v1291 = vld [vmem:[%s1259 + $0xf8] sm:$0xff]
    %v1292 = vrot.slane %v62, 2
    %v1293 = vrot.slane %v63, 2
    %v1294 = vsel %vm887, %v1292, %v1293
    %v1295 = vsel %vm131, %v1294, 0
    %v1297 = vsel %vm131, %v1293, 0
    %1299 = vmatprep.subr.mxu0 %v1261
    %1300 = vmatpush1.msra.mxu0 %v1260
    %1301 = vmatprep.subr.mxu0 %v1265
    %1302 = vmatpush1.msra.mxu0 %v1264
    %1303 = vmatprep.subr.mxu0 %v1269
    %1304 = vmatpush1.msra.mxu0 %v1268
    %1305 = vmatprep.subr.mxu0 %v1273
    %1306 = vmatpush1.msra.mxu0 %v1272
    %1307 = vmatprep.subr.mxu0 %v1277
    %1308 = vmatpush1.msra.mxu0 %v1276
    %1309 = vmatprep.subr.mxu0 %v1281
    %1310 = vmatpush1.msra.mxu0 %v1280
    %1311 = vmatprep.subr.mxu0 %v1285
    %1312 = vmatpush1.msra.mxu0 %v1284
    %1313 = vmatprep.subr.mxu0 %v1289
    %1314 = vmatpush1.msra.mxu0 %v1288
    %1315 = vmatprep.subr.mxu0 0.0
    %1316 = vmatpush1.msra.mxu0 0.0
    %1317 = vmatprep.subr.mxu0 0.0
    %1318 = vmatpush1.msra.mxu0 0.0
    %1319 = vmatprep.subr.mxu0 0.0
    %1320 = vmatpush1.msra.mxu0 0.0
    %1321 = vmatprep.subr.mxu0 0.0
    %1322 = vmatpush1.msra.mxu0 0.0
    %1323 = vmatprep.subr.mxu0 0.0
    %1324 = vmatpush1.msra.mxu0 0.0
    %1325 = vmatprep.subr.mxu0 0.0
    %1326 = vmatpush1.msra.mxu0 0.0
    %1327 = vmatprep.subr.mxu0 0.0
    %1328 = vmatpush1.msra.mxu0 0.0
    %1329 = vmatprep.subr.mxu0 0.0
    %1330 = vmatpush1.msra.mxu0 0.0
    %1331 = vmatprep.subr.mxu0 0.0
    %1332 = vmatpush1.msra.mxu0 0.0
    %1333 = vmatprep.subr.mxu0 0.0
    %1334 = vmatpush1.msra.mxu0 0.0
    %1335 = vmatprep.subr.mxu0 0.0
    %1336 = vmatpush1.msra.mxu0 0.0
    %1337 = vmatprep.subr.mxu0 0.0
    %1338 = vmatpush1.msra.mxu0 0.0
    %1339 = vmatprep.subr.mxu0 0.0
    %1340 = vmatpush1.msra.mxu0 0.0
    %1341 = vmatprep.subr.mxu0 0.0
    %1342 = vmatpush1.msra.mxu0 0.0
    %1343 = vmatprep.subr.mxu0 0.0
    %1344 = vmatpush1.msra.mxu0 0.0
    %1345 = vmatprep.subr.mxu0 0.0
    %1346 = vmatpush1.msra.mxu0 0.0
    %1347 = vmatprep.subr.mxu0 0.0
    %1348 = vmatpush1.msra.mxu0 0.0
    %1349 = vmatprep.subr.mxu0 0.0
    %1350 = vmatpush1.msra.mxu0 0.0
    %1351 = vmatprep.subr.mxu0 0.0
    %1352 = vmatpush1.msra.mxu0 0.0
    %1353 = vmatprep.subr.mxu0 0.0
    %1354 = vmatpush1.msra.mxu0 0.0
    %1355 = vmatprep.subr.mxu0 0.0
    %1356 = vmatpush1.msra.mxu0 0.0
    %1357 = vmatprep.subr.mxu0 0.0
    %1358 = vmatpush1.msra.mxu0 0.0
    %1359 = vmatprep.subr.mxu0 0.0
    %1360 = vmatpush1.msra.mxu0 0.0
    %1361 = vmatprep.subr.mxu0 0.0
    %1362 = vmatpush1.msra.mxu0 0.0
    %1363 = vmatprep.mubr.f32.mxu0 0.0
    %1364 = vmatmul.mubr.f32.gmra.mrb[0].mxu0 %v1295
    %v1365 = vpop.f32.mrb[0].mxu0
    %v1366 = vadd.f32 0.0, %v1365
    %v1367 = vpop.f32.mrb[0].mxu0
    %v1368 = vadd.f32 0.0, %v1367
    %1369 = vmatprep.mubr.f32.mxu0 0.0
    %1370 = vmatmul.mubr.f32.gmra.mrb[0].mxu0 %v1297
    %v1371 = vpop.f32.mrb[0].mxu0
    %v1372 = vadd.f32 0.0, %v1371
    %v1373 = vpop.f32.mrb[0].mxu0
    %v1374 = vadd.f32 0.0, %v1373
    %1375 = vdwg.mxu0
    %1376 = vmatprep.subr.mxu0 %v1263
    %1377 = vmatpush1.msra.mxu0 %v1262
    %1378 = vmatprep.subr.mxu0 %v1267
    %1379 = vmatpush1.msra.mxu0 %v1266
    %1380 = vmatprep.subr.mxu0 %v1271
    %1381 = vmatpush1.msra.mxu0 %v1270
    %1382 = vmatprep.subr.mxu0 %v1275
    %1383 = vmatpush1.msra.mxu0 %v1274
    %1384 = vmatprep.subr.mxu0 %v1279
    %1385 = vmatpush1.msra.mxu0 %v1278
    %1386 = vmatprep.subr.mxu0 %v1283
    %1387 = vmatpush1.msra.mxu0 %v1282
    %1388 = vmatprep.subr.mxu0 %v1287
    %1389 = vmatpush1.msra.mxu0 %v1286
    %1390 = vmatprep.subr.mxu0 %v1291
    %1391 = vmatpush1.msra.mxu0 %v1290
    %1392 = vmatprep.subr.mxu0 0.0
    %1393 = vmatpush1.msra.mxu0 0.0
    %1394 = vmatprep.subr.mxu0 0.0
    %1395 = vmatpush1.msra.mxu0 0.0
    %1396 = vmatprep.subr.mxu0 0.0
    %1397 = vmatpush1.msra.mxu0 0.0
    %1398 = vmatprep.subr.mxu0 0.0
    %1399 = vmatpush1.msra.mxu0 0.0
    %1400 = vmatprep.subr.mxu0 0.0
    %1401 = vmatpush1.msra.mxu0 0.0
    %1402 = vmatprep.subr.mxu0 0.0
    %1403 = vmatpush1.msra.mxu0 0.0
    %1404 = vmatprep.subr.mxu0 0.0
    %1405 = vmatpush1.msra.mxu0 0.0
    %1406 = vmatprep.subr.mxu0 0.0
    %1407 = vmatpush1.msra.mxu0 0.0
    %1408 = vmatprep.subr.mxu0 0.0
    %1409 = vmatpush1.msra.mxu0 0.0
    %1410 = vmatprep.subr.mxu0 0.0
    %1411 = vmatpush1.msra.mxu0 0.0
    %1412 = vmatprep.subr.mxu0 0.0
    %1413 = vmatpush1.msra.mxu0 0.0
    %1414 = vmatprep.subr.mxu0 0.0
    %1415 = vmatpush1.msra.mxu0 0.0
    %1416 = vmatprep.subr.mxu0 0.0
    %1417 = vmatpush1.msra.mxu0 0.0
    %1418 = vmatprep.subr.mxu0 0.0
    %1419 = vmatpush1.msra.mxu0 0.0
    %1420 = vmatprep.subr.mxu0 0.0
    %1421 = vmatpush1.msra.mxu0 0.0
    %1422 = vmatprep.subr.mxu0 0.0
    %1423 = vmatpush1.msra.mxu0 0.0
    %1424 = vmatprep.subr.mxu0 0.0
    %1425 = vmatpush1.msra.mxu0 0.0
    %1426 = vmatprep.subr.mxu0 0.0
    %1427 = vmatpush1.msra.mxu0 0.0
    %1428 = vmatprep.subr.mxu0 0.0
    %1429 = vmatpush1.msra.mxu0 0.0
    %1430 = vmatprep.subr.mxu0 0.0
    %1431 = vmatpush1.msra.mxu0 0.0
    %1432 = vmatprep.subr.mxu0 0.0
    %1433 = vmatpush1.msra.mxu0 0.0
    %1434 = vmatprep.subr.mxu0 0.0
    %1435 = vmatpush1.msra.mxu0 0.0
    %1436 = vmatprep.subr.mxu0 0.0
    %1437 = vmatpush1.msra.mxu0 0.0
    %1438 = vmatprep.subr.mxu0 0.0
    %1439 = vmatpush1.msra.mxu0 0.0
    %1440 = vmatprep.mubr.f32.mxu0 0.0
    %1441 = vmatmul.mubr.f32.gmra.mrb[0].mxu0 %v1295
    %v1442 = vpop.f32.mrb[0].mxu0
    %v1443 = vadd.f32 0.0, %v1442
    %v1444 = vpop.f32.mrb[0].mxu0
    %v1445 = vadd.f32 0.0, %v1444
    %1446 = vmatprep.mubr.f32.mxu0 0.0
    %1447 = vmatmul.mubr.f32.gmra.mrb[0].mxu0 %v1297
    %v1448 = vpop.f32.mrb[0].mxu0
    %v1449 = vadd.f32 0.0, %v1448
    %v1450 = vpop.f32.mrb[0].mxu0
    %v1451 = vadd.f32 0.0, %v1450
    %1452 = vdwg.mxu0
    %v1453 = vadd.f32 %v1251, %v1366
    %v1454 = vadd.f32 %v1252, %v1368
    %v1455 = vadd.f32 %v1253, %v1443
    %v1456 = vadd.f32 %v1254, %v1445
    %v1457 = vadd.f32 %v1255, %v1372
    %v1458 = vadd.f32 %v1256, %v1374
    %v1459 = vadd.f32 %v1257, %v1449
    %v1460 = vadd.f32 %v1258, %v1451
    %s1461 = scalar_lea.vmem [#allocation2], 1792
    %v1462 = vld [vmem:[%s1461] sm:$0xff]
    %v1463 = vld [vmem:[%s1461 + $0x8] sm:$0xff]
    %v1464 = vld [vmem:[%s1461 + $0x10] sm:$0xff]
    %v1465 = vld [vmem:[%s1461 + $0x18] sm:$0xff]
    %v1466 = vld [vmem:[%s1461 + $0x20] sm:$0xff]
    %v1467 = vld [vmem:[%s1461 + $0x28] sm:$0xff]
    %v1468 = vld [vmem:[%s1461 + $0x30] sm:$0xff]
    %v1469 = vld [vmem:[%s1461 + $0x38] sm:$0xff]
    %v1470 = vld [vmem:[%s1461 + $0x40] sm:$0xff]
    %v1471 = vld [vmem:[%s1461 + $0x48] sm:$0xff]
    %v1472 = vld [vmem:[%s1461 + $0x50] sm:$0xff]
    %v1473 = vld [vmem:[%s1461 + $0x58] sm:$0xff]
    %v1474 = vld [vmem:[%s1461 + $0x60] sm:$0xff]
    %v1475 = vld [vmem:[%s1461 + $0x68] sm:$0xff]
    %v1476 = vld [vmem:[%s1461 + $0x70] sm:$0xff]
    %v1477 = vld [vmem:[%s1461 + $0x78] sm:$0xff]
    %v1478 = vld [vmem:[%s1461 + $0x80] sm:$0xff]
    %v1479 = vld [vmem:[%s1461 + $0x88] sm:$0xff]
    %v1480 = vld [vmem:[%s1461 + $0x90] sm:$0xff]
    %v1481 = vld [vmem:[%s1461 + $0x98] sm:$0xff]
    %v1482 = vld [vmem:[%s1461 + $0xa0] sm:$0xff]
    %v1483 = vld [vmem:[%s1461 + $0xa8] sm:$0xff]
    %v1484 = vld [vmem:[%s1461 + $0xb0] sm:$0xff]
    %v1485 = vld [vmem:[%s1461 + $0xb8] sm:$0xff]
    %v1486 = vld [vmem:[%s1461 + $0xc0] sm:$0xff]
    %v1487 = vld [vmem:[%s1461 + $0xc8] sm:$0xff]
    %v1488 = vld [vmem:[%s1461 + $0xd0] sm:$0xff]
    %v1489 = vld [vmem:[%s1461 + $0xd8] sm:$0xff]
    %v1490 = vld [vmem:[%s1461 + $0xe0] sm:$0xff]
    %v1491 = vld [vmem:[%s1461 + $0xe8] sm:$0xff]
    %v1492 = vld [vmem:[%s1461 + $0xf0] sm:$0xff]
    %v1493 = vld [vmem:[%s1461 + $0xf8] sm:$0xff]
    %v1494 = vrot.slane %v64, 2
    %v1495 = vrot.slane %v65, 2
    %v1496 = vsel %vm887, %v1494, %v1495
    %v1497 = vsel %vm131, %v1496, 0
    %v1499 = vsel %vm131, %v1495, 0
    %1501 = vmatprep.subr.mxu0 %v1463
    %1502 = vmatpush1.msra.mxu0 %v1462
    %1503 = vmatprep.subr.mxu0 %v1467
    %1504 = vmatpush1.msra.mxu0 %v1466
    %1505 = vmatprep.subr.mxu0 %v1471
    %1506 = vmatpush1.msra.mxu0 %v1470
    %1507 = vmatprep.subr.mxu0 %v1475
    %1508 = vmatpush1.msra.mxu0 %v1474
    %1509 = vmatprep.subr.mxu0 %v1479
    %1510 = vmatpush1.msra.mxu0 %v1478
    %1511 = vmatprep.subr.mxu0 %v1483
    %1512 = vmatpush1.msra.mxu0 %v1482
    %1513 = vmatprep.subr.mxu0 %v1487
    %1514 = vmatpush1.msra.mxu0 %v1486
    %1515 = vmatprep.subr.mxu0 %v1491
    %1516 = vmatpush1.msra.mxu0 %v1490
    %1517 = vmatprep.subr.mxu0 0.0
    %1518 = vmatpush1.msra.mxu0 0.0
    %1519 = vmatprep.subr.mxu0 0.0
    %1520 = vmatpush1.msra.mxu0 0.0
    %1521 = vmatprep.subr.mxu0 0.0
    %1522 = vmatpush1.msra.mxu0 0.0
    %1523 = vmatprep.subr.mxu0 0.0
    %1524 = vmatpush1.msra.mxu0 0.0
    %1525 = vmatprep.subr.mxu0 0.0
    %1526 = vmatpush1.msra.mxu0 0.0
    %1527 = vmatprep.subr.mxu0 0.0
    %1528 = vmatpush1.msra.mxu0 0.0
    %1529 = vmatprep.subr.mxu0 0.0
    %1530 = vmatpush1.msra.mxu0 0.0
    %1531 = vmatprep.subr.mxu0 0.0
    %1532 = vmatpush1.msra.mxu0 0.0
    %1533 = vmatprep.subr.mxu0 0.0
    %1534 = vmatpush1.msra.mxu0 0.0
    %1535 = vmatprep.subr.mxu0 0.0
    %1536 = vmatpush1.msra.mxu0 0.0
    %1537 = vmatprep.subr.mxu0 0.0
    %1538 = vmatpush1.msra.mxu0 0.0
    %1539 = vmatprep.subr.mxu0 0.0
    %1540 = vmatpush1.msra.mxu0 0.0
    %1541 = vmatprep.subr.mxu0 0.0
    %1542 = vmatpush1.msra.mxu0 0.0
    %1543 = vmatprep.subr.mxu0 0.0
    %1544 = vmatpush1.msra.mxu0 0.0
    %1545 = vmatprep.subr.mxu0 0.0
    %1546 = vmatpush1.msra.mxu0 0.0
    %1547 = vmatprep.subr.mxu0 0.0
    %1548 = vmatpush1.msra.mxu0 0.0
    %1549 = vmatprep.subr.mxu0 0.0
    %1550 = vmatpush1.msra.mxu0 0.0
    %1551 = vmatprep.subr.mxu0 0.0
    %1552 = vmatpush1.msra.mxu0 0.0
    %1553 = vmatprep.subr.mxu0 0.0
    %1554 = vmatpush1.msra.mxu0 0.0
    %1555 = vmatprep.subr.mxu0 0.0
    %1556 = vmatpush1.msra.mxu0 0.0
    %1557 = vmatprep.subr.mxu0 0.0
    %1558 = vmatpush1.msra.mxu0 0.0
    %1559 = vmatprep.subr.mxu0 0.0
    %1560 = vmatpush1.msra.mxu0 0.0
    %1561 = vmatprep.subr.mxu0 0.0
    %1562 = vmatpush1.msra.mxu0 0.0
    %1563 = vmatprep.subr.mxu0 0.0
    %1564 = vmatpush1.msra.mxu0 0.0
    %1565 = vmatprep.mubr.f32.mxu0 0.0
    %1566 = vmatmul.mubr.f32.gmra.mrb[0].mxu0 %v1497
    %v1567 = vpop.f32.mrb[0].mxu0
    %v1568 = vadd.f32 0.0, %v1567
    %v1569 = vpop.f32.mrb[0].mxu0
    %v1570 = vadd.f32 0.0, %v1569
    %1571 = vmatprep.mubr.f32.mxu0 0.0
    %1572 = vmatmul.mubr.f32.gmra.mrb[0].mxu0 %v1499
    %v1573 = vpop.f32.mrb[0].mxu0
    %v1574 = vadd.f32 0.0, %v1573
    %v1575 = vpop.f32.mrb[0].mxu0
    %v1576 = vadd.f32 0.0, %v1575
    %1577 = vdwg.mxu0
    %1578 = vmatprep.subr.mxu0 %v1465
    %1579 = vmatpush1.msra.mxu0 %v1464
    %1580 = vmatprep.subr.mxu0 %v1469
    %1581 = vmatpush1.msra.mxu0 %v1468
    %1582 = vmatprep.subr.mxu0 %v1473
    %1583 = vmatpush1.msra.mxu0 %v1472
    %1584 = vmatprep.subr.mxu0 %v1477
    %1585 = vmatpush1.msra.mxu0 %v1476
    %1586 = vmatprep.subr.mxu0 %v1481
    %1587 = vmatpush1.msra.mxu0 %v1480
    %1588 = vmatprep.subr.mxu0 %v1485
    %1589 = vmatpush1.msra.mxu0 %v1484
    %1590 = vmatprep.subr.mxu0 %v1489
    %1591 = vmatpush1.msra.mxu0 %v1488
    %1592 = vmatprep.subr.mxu0 %v1493
    %1593 = vmatpush1.msra.mxu0 %v1492
    %1594 = vmatprep.subr.mxu0 0.0
    %1595 = vmatpush1.msra.mxu0 0.0
    %1596 = vmatprep.subr.mxu0 0.0
    %1597 = vmatpush1.msra.mxu0 0.0
    %1598 = vmatprep.subr.mxu0 0.0
    %1599 = vmatpush1.msra.mxu0 0.0
    %1600 = vmatprep.subr.mxu0 0.0
    %1601 = vmatpush1.msra.mxu0 0.0
    %1602 = vmatprep.subr.mxu0 0.0
    %1603 = vmatpush1.msra.mxu0 0.0
    %1604 = vmatprep.subr.mxu0 0.0
    %1605 = vmatpush1.msra.mxu0 0.0
    %1606 = vmatprep.subr.mxu0 0.0
    %1607 = vmatpush1.msra.mxu0 0.0
    %1608 = vmatprep.subr.mxu0 0.0
    %1609 = vmatpush1.msra.mxu0 0.0
    %1610 = vmatprep.subr.mxu0 0.0
    %1611 = vmatpush1.msra.mxu0 0.0
    %1612 = vmatprep.subr.mxu0 0.0
    %1613 = vmatpush1.msra.mxu0 0.0
    %1614 = vmatprep.subr.mxu0 0.0
    %1615 = vmatpush1.msra.mxu0 0.0
    %1616 = vmatprep.subr.mxu0 0.0
    %1617 = vmatpush1.msra.mxu0 0.0
    %1618 = vmatprep.subr.mxu0 0.0
    %1619 = vmatpush1.msra.mxu0 0.0
    %1620 = vmatprep.subr.mxu0 0.0
    %1621 = vmatpush1.msra.mxu0 0.0
    %1622 = vmatprep.subr.mxu0 0.0
    %1623 = vmatpush1.msra.mxu0 0.0
    %1624 = vmatprep.subr.mxu0 0.0
    %1625 = vmatpush1.msra.mxu0 0.0
    %1626 = vmatprep.subr.mxu0 0.0
    %1627 = vmatpush1.msra.mxu0 0.0
    %1628 = vmatprep.subr.mxu0 0.0
    %1629 = vmatpush1.msra.mxu0 0.0
    %1630 = vmatprep.subr.mxu0 0.0
    %1631 = vmatpush1.msra.mxu0 0.0
    %1632 = vmatprep.subr.mxu0 0.0
    %1633 = vmatpush1.msra.mxu0 0.0
    %1634 = vmatprep.subr.mxu0 0.0
    %1635 = vmatpush1.msra.mxu0 0.0
    %1636 = vmatprep.subr.mxu0 0.0
    %1637 = vmatpush1.msra.mxu0 0.0
    %1638 = vmatprep.subr.mxu0 0.0
    %1639 = vmatpush1.msra.mxu0 0.0
    %1640 = vmatprep.subr.mxu0 0.0
    %1641 = vmatpush1.msra.mxu0 0.0
    %1642 = vmatprep.mubr.f32.mxu0 0.0
    %1643 = vmatmul.mubr.f32.gmra.mrb[0].mxu0 %v1497
    %v1644 = vpop.f32.mrb[0].mxu0
    %v1645 = vadd.f32 0.0, %v1644
    %v1646 = vpop.f32.mrb[0].mxu0
    %v1647 = vadd.f32 0.0, %v1646
    %1648 = vmatprep.mubr.f32.mxu0 0.0
    %1649 = vmatmul.mubr.f32.gmra.mrb[0].mxu0 %v1499
    %v1650 = vpop.f32.mrb[0].mxu0
    %v1651 = vadd.f32 0.0, %v1650
    %v1652 = vpop.f32.mrb[0].mxu0
    %v1653 = vadd.f32 0.0, %v1652
    %1654 = vdwg.mxu0
    %v1655 = vadd.f32 %v1453, %v1568
    %v1656 = vadd.f32 %v1454, %v1570
    %v1657 = vadd.f32 %v1455, %v1645
    %v1658 = vadd.f32 %v1456, %v1647
    %v1659 = vadd.f32 %v1457, %v1574
    %v1660 = vadd.f32 %v1458, %v1576
    %v1661 = vadd.f32 %v1459, %v1651
    %v1662 = vadd.f32 %v1460, %v1653
    %v1663 = vld [vmem:[%s3] sm:$0xf]
    %v1665 = vlaneseq
    %v1666 = vshrl.u32 %v1665, 7
    %v1667 = vsub.s32 0, %v1666
    %v1668 = vrot.slane %v1663, %v1667
    %v1669 = vlaneseq
    %v1670 = vshrl.u32 %v1669, 7
    %v1671 = vsub.s32 1, %v1670
    %v1672 = vrot.slane %v1663, %v1671
    %v1673 = vlaneseq
    %v1674 = vshrl.u32 %v1673, 7
    %v1675 = vsub.s32 2, %v1674
    %v1676 = vrot.slane %v1663, %v1675
    %v1677 = vlaneseq
    %v1678 = vshrl.u32 %v1677, 7
    %v1679 = vsub.s32 3, %v1678
    %v1680 = vrot.slane %v1663, %v1679
    %v1685 = vadd.f32 %v1655, %v1668
    %v1686 = vadd.f32 %v1656, %v1672
    %v1687 = vadd.f32 %v1657, %v1676
    %v1688 = vadd.f32 %v1658, %v1680
    %v1689 = vadd.f32 %v1659, %v1668
    %v1690 = vadd.f32 %v1660, %v1672
    %v1691 = vadd.f32 %v1661, %v1676
    %v1692 = vadd.f32 %v1662, %v1680
    %v1693 = vmax.f32 %v1685, 0.0
    %v1694 = vmax.f32 %v1686, 0.0
    %v1695 = vmax.f32 %v1687, 0.0
    %v1696 = vmax.f32 %v1688, 0.0
    %v1697 = vmax.f32 %v1689, 0.0
    %v1698 = vmax.f32 %v1690, 0.0
    %v1699 = vmax.f32 %v1691, 0.0
    %v1700 = vmax.f32 %v1692, 0.0
    %1701 = vmatprep.subr.mxu0 %v100
    %1702 = vmatpush1.msra.mxu0 %v99
    %1703 = vmatprep.subr.mxu0 %v104
    %1704 = vmatpush1.msra.mxu0 %v103
    %1705 = vmatprep.subr.mxu0 %v108
    %1706 = vmatpush1.msra.mxu0 %v107
    %1707 = vmatprep.subr.mxu0 %v112
    %1708 = vmatpush1.msra.mxu0 %v111
    %1709 = vmatprep.subr.mxu0 %v116
    %1710 = vmatpush1.msra.mxu0 %v115
    %1711 = vmatprep.subr.mxu0 %v120
    %1712 = vmatpush1.msra.mxu0 %v119
    %1713 = vmatprep.subr.mxu0 %v124
    %1714 = vmatpush1.msra.mxu0 %v123
    %1715 = vmatprep.subr.mxu0 %v128
    %1716 = vmatpush1.msra.mxu0 %v127
    %1717 = vmatprep.subr.mxu0 0.0
    %1718 = vmatpush1.msra.mxu0 0.0
    %1719 = vmatprep.subr.mxu0 0.0
    %1720 = vmatpush1.msra.mxu0 0.0
    %1721 = vmatprep.subr.mxu0 0.0
    %1722 = vmatpush1.msra.mxu0 0.0
    %1723 = vmatprep.subr.mxu0 0.0
    %1724 = vmatpush1.msra.mxu0 0.0
    %1725 = vmatprep.subr.mxu0 0.0
    %1726 = vmatpush1.msra.mxu0 0.0
    %1727 = vmatprep.subr.mxu0 0.0
    %1728 = vmatpush1.msra.mxu0 0.0
    %1729 = vmatprep.subr.mxu0 0.0
    %1730 = vmatpush1.msra.mxu0 0.0
    %1731 = vmatprep.subr.mxu0 0.0
    %1732 = vmatpush1.msra.mxu0 0.0
    %1733 = vmatprep.subr.mxu0 0.0
    %1734 = vmatpush1.msra.mxu0 0.0
    %1735 = vmatprep.subr.mxu0 0.0
    %1736 = vmatpush1.msra.mxu0 0.0
    %1737 = vmatprep.subr.mxu0 0.0
    %1738 = vmatpush1.msra.mxu0 0.0
    %1739 = vmatprep.subr.mxu0 0.0
    %1740 = vmatpush1.msra.mxu0 0.0
    %1741 = vmatprep.subr.mxu0 0.0
    %1742 = vmatpush1.msra.mxu0 0.0
    %1743 = vmatprep.subr.mxu0 0.0
    %1744 = vmatpush1.msra.mxu0 0.0
    %1745 = vmatprep.subr.mxu0 0.0
    %1746 = vmatpush1.msra.mxu0 0.0
    %1747 = vmatprep.subr.mxu0 0.0
    %1748 = vmatpush1.msra.mxu0 0.0
    %1749 = vmatprep.subr.mxu0 0.0
    %1750 = vmatpush1.msra.mxu0 0.0
    %1751 = vmatprep.subr.mxu0 0.0
    %1752 = vmatpush1.msra.mxu0 0.0
    %1753 = vmatprep.subr.mxu0 0.0
    %1754 = vmatpush1.msra.mxu0 0.0
    %1755 = vmatprep.subr.mxu0 0.0
    %1756 = vmatpush1.msra.mxu0 0.0
    %1757 = vmatprep.subr.mxu0 0.0
    %1758 = vmatpush1.msra.mxu0 0.0
    %1759 = vmatprep.subr.mxu0 0.0
    %1760 = vmatpush1.msra.mxu0 0.0
    %1761 = vmatprep.subr.mxu0 0.0
    %1762 = vmatpush1.msra.mxu0 0.0
    %1763 = vmatprep.subr.mxu0 0.0
    %1764 = vmatpush1.msra.mxu0 0.0
    %1765 = vmatprep.mubr.f32.mxu0 0.0
    %1766 = vmatmul.mubr.f32.gmra.mrb[0].mxu0 %v687
    %v1767 = vpop.f32.mrb[0].mxu0
    %v1768 = vadd.f32 0.0, %v1767
    %v1769 = vpop.f32.mrb[0].mxu0
    %v1770 = vadd.f32 0.0, %v1769
    %1771 = vmatprep.mubr.f32.mxu0 0.0
    %1772 = vmatmul.mubr.f32.gmra.mrb[0].mxu0 %v690
    %v1773 = vpop.f32.mrb[0].mxu0
    %v1774 = vadd.f32 0.0, %v1773
    %v1775 = vpop.f32.mrb[0].mxu0
    %v1776 = vadd.f32 0.0, %v1775
    %1777 = vdwg.mxu0
    %1778 = vmatprep.subr.mxu0 %v102
    %1779 = vmatpush1.msra.mxu0 %v101
    %1780 = vmatprep.subr.mxu0 %v106
    %1781 = vmatpush1.msra.mxu0 %v105
    %1782 = vmatprep.subr.mxu0 %v110
    %1783 = vmatpush1.msra.mxu0 %v109
    %1784 = vmatprep.subr.mxu0 %v114
    %1785 = vmatpush1.msra.mxu0 %v113
    %1786 = vmatprep.subr.mxu0 %v118
    %1787 = vmatpush1.msra.mxu0 %v117
    %1788 = vmatprep.subr.mxu0 %v122
    %1789 = vmatpush1.msra.mxu0 %v121
    %1790 = vmatprep.subr.mxu0 %v126
    %1791 = vmatpush1.msra.mxu0 %v125
    %1792 = vmatprep.subr.mxu0 %v130
    %1793 = vmatpush1.msra.mxu0 %v129
    %1794 = vmatprep.subr.mxu0 0.0
    %1795 = vmatpush1.msra.mxu0 0.0
    %1796 = vmatprep.subr.mxu0 0.0
    %1797 = vmatpush1.msra.mxu0 0.0
    %1798 = vmatprep.subr.mxu0 0.0
    %1799 = vmatpush1.msra.mxu0 0.0
    %1800 = vmatprep.subr.mxu0 0.0
    %1801 = vmatpush1.msra.mxu0 0.0
    %1802 = vmatprep.subr.mxu0 0.0
    %1803 = vmatpush1.msra.mxu0 0.0
    %1804 = vmatprep.subr.mxu0 0.0
    %1805 = vmatpush1.msra.mxu0 0.0
    %1806 = vmatprep.subr.mxu0 0.0
    %1807 = vmatpush1.msra.mxu0 0.0
    %1808 = vmatprep.subr.mxu0 0.0
    %1809 = vmatpush1.msra.mxu0 0.0
    %1810 = vmatprep.subr.mxu0 0.0
    %1811 = vmatpush1.msra.mxu0 0.0
    %1812 = vmatprep.subr.mxu0 0.0
    %1813 = vmatpush1.msra.mxu0 0.0
    %1814 = vmatprep.subr.mxu0 0.0
    %1815 = vmatpush1.msra.mxu0 0.0
    %1816 = vmatprep.subr.mxu0 0.0
    %1817 = vmatpush1.msra.mxu0 0.0
    %1818 = vmatprep.subr.mxu0 0.0
    %1819 = vmatpush1.msra.mxu0 0.0
    %1820 = vmatprep.subr.mxu0 0.0
    %1821 = vmatpush1.msra.mxu0 0.0
    %1822 = vmatprep.subr.mxu0 0.0
    %1823 = vmatpush1.msra.mxu0 0.0
    %1824 = vmatprep.subr.mxu0 0.0
    %1825 = vmatpush1.msra.mxu0 0.0
    %1826 = vmatprep.subr.mxu0 0.0
    %1827 = vmatpush1.msra.mxu0 0.0
    %1828 = vmatprep.subr.mxu0 0.0
    %1829 = vmatpush1.msra.mxu0 0.0
    %1830 = vmatprep.subr.mxu0 0.0
    %1831 = vmatpush1.msra.mxu0 0.0
    %1832 = vmatprep.subr.mxu0 0.0
    %1833 = vmatpush1.msra.mxu0 0.0
    %1834 = vmatprep.subr.mxu0 0.0
    %1835 = vmatpush1.msra.mxu0 0.0
    %1836 = vmatprep.subr.mxu0 0.0
    %1837 = vmatpush1.msra.mxu0 0.0
    %1838 = vmatprep.subr.mxu0 0.0
    %1839 = vmatpush1.msra.mxu0 0.0
    %1840 = vmatprep.subr.mxu0 0.0
    %1841 = vmatpush1.msra.mxu0 0.0
    %1842 = vmatprep.mubr.f32.mxu0 0.0
    %1843 = vmatmul.mubr.f32.gmra.mrb[0].mxu0 %v687
    %v1844 = vpop.f32.mrb[0].mxu0
    %v1845 = vadd.f32 0.0, %v1844
    %v1846 = vpop.f32.mrb[0].mxu0
    %v1847 = vadd.f32 0.0, %v1846
    %1848 = vmatprep.mubr.f32.mxu0 0.0
    %1849 = vmatmul.mubr.f32.gmra.mrb[0].mxu0 %v690
    %v1850 = vpop.f32.mrb[0].mxu0
    %v1851 = vadd.f32 0.0, %v1850
    %v1852 = vpop.f32.mrb[0].mxu0
    %v1853 = vadd.f32 0.0, %v1852
    %1854 = vdwg.mxu0
    %1855 = vmatprep.subr.mxu0 %v67
    %1856 = vmatpush1.msra.mxu0 %v66
    %1857 = vmatprep.subr.mxu0 %v71
    %1858 = vmatpush1.msra.mxu0 %v70
    %1859 = vmatprep.subr.mxu0 %v75
    %1860 = vmatpush1.msra.mxu0 %v74
    %1861 = vmatprep.subr.mxu0 %v79
    %1862 = vmatpush1.msra.mxu0 %v78
    %1863 = vmatprep.subr.mxu0 %v83
    %1864 = vmatpush1.msra.mxu0 %v82
    %1865 = vmatprep.subr.mxu0 %v87
    %1866 = vmatpush1.msra.mxu0 %v86
    %1867 = vmatprep.subr.mxu0 %v91
    %1868 = vmatpush1.msra.mxu0 %v90
    %1869 = vmatprep.subr.mxu0 %v95
    %1870 = vmatpush1.msra.mxu0 %v94
    %1871 = vmatprep.subr.mxu0 0.0
    %1872 = vmatpush1.msra.mxu0 0.0
    %1873 = vmatprep.subr.mxu0 0.0
    %1874 = vmatpush1.msra.mxu0 0.0
    %1875 = vmatprep.subr.mxu0 0.0
    %1876 = vmatpush1.msra.mxu0 0.0
    %1877 = vmatprep.subr.mxu0 0.0
    %1878 = vmatpush1.msra.mxu0 0.0
    %1879 = vmatprep.subr.mxu0 0.0
    %1880 = vmatpush1.msra.mxu0 0.0
    %1881 = vmatprep.subr.mxu0 0.0
    %1882 = vmatpush1.msra.mxu0 0.0
    %1883 = vmatprep.subr.mxu0 0.0
    %1884 = vmatpush1.msra.mxu0 0.0
    %1885 = vmatprep.subr.mxu0 0.0
    %1886 = vmatpush1.msra.mxu0 0.0
    %1887 = vmatprep.subr.mxu0 0.0
    %1888 = vmatpush1.msra.mxu0 0.0
    %1889 = vmatprep.subr.mxu0 0.0
    %1890 = vmatpush1.msra.mxu0 0.0
    %1891 = vmatprep.subr.mxu0 0.0
    %1892 = vmatpush1.msra.mxu0 0.0
    %1893 = vmatprep.subr.mxu0 0.0
    %1894 = vmatpush1.msra.mxu0 0.0
    %1895 = vmatprep.subr.mxu0 0.0
    %1896 = vmatpush1.msra.mxu0 0.0
    %1897 = vmatprep.subr.mxu0 0.0
    %1898 = vmatpush1.msra.mxu0 0.0
    %1899 = vmatprep.subr.mxu0 0.0
    %1900 = vmatpush1.msra.mxu0 0.0
    %1901 = vmatprep.subr.mxu0 0.0
    %1902 = vmatpush1.msra.mxu0 0.0
    %1903 = vmatprep.subr.mxu0 0.0
    %1904 = vmatpush1.msra.mxu0 0.0
    %1905 = vmatprep.subr.mxu0 0.0
    %1906 = vmatpush1.msra.mxu0 0.0
    %1907 = vmatprep.subr.mxu0 0.0
    %1908 = vmatpush1.msra.mxu0 0.0
    %1909 = vmatprep.subr.mxu0 0.0
    %1910 = vmatpush1.msra.mxu0 0.0
    %1911 = vmatprep.subr.mxu0 0.0
    %1912 = vmatpush1.msra.mxu0 0.0
    %1913 = vmatprep.subr.mxu0 0.0
    %1914 = vmatpush1.msra.mxu0 0.0
    %1915 = vmatprep.subr.mxu0 0.0
    %1916 = vmatpush1.msra.mxu0 0.0
    %1917 = vmatprep.subr.mxu0 0.0
    %1918 = vmatpush1.msra.mxu0 0.0
    %1919 = vmatprep.mubr.f32.mxu0 0.0
    %1920 = vmatmul.mubr.f32.gmra.mrb[0].mxu0 %v486
    %v1921 = vpop.f32.mrb[0].mxu0
    %v1922 = vadd.f32 %v1768, %v1921
    %v1923 = vpop.f32.mrb[0].mxu0
    %v1924 = vadd.f32 %v1770, %v1923
    %1925 = vmatprep.mubr.f32.mxu0 0.0
    %1926 = vmatmul.mubr.f32.gmra.mrb[0].mxu0 %v489
    %v1927 = vpop.f32.mrb[0].mxu0
    %v1928 = vadd.f32 %v1774, %v1927
    %v1929 = vpop.f32.mrb[0].mxu0
    %v1930 = vadd.f32 %v1776, %v1929
    %1931 = vdwg.mxu0
    %1932 = vmatprep.subr.mxu0 %v69
    %1933 = vmatpush1.msra.mxu0 %v68
    %1934 = vmatprep.subr.mxu0 %v73
    %1935 = vmatpush1.msra.mxu0 %v72
    %1936 = vmatprep.subr.mxu0 %v77
    %1937 = vmatpush1.msra.mxu0 %v76
    %1938 = vmatprep.subr.mxu0 %v81
    %1939 = vmatpush1.msra.mxu0 %v80
    %1940 = vmatprep.subr.mxu0 %v85
    %1941 = vmatpush1.msra.mxu0 %v84
    %1942 = vmatprep.subr.mxu0 %v89
    %1943 = vmatpush1.msra.mxu0 %v88
    %1944 = vmatprep.subr.mxu0 %v93
    %1945 = vmatpush1.msra.mxu0 %v92
    %1946 = vmatprep.subr.mxu0 %v97
    %1947 = vmatpush1.msra.mxu0 %v96
    %1948 = vmatprep.subr.mxu0 0.0
    %1949 = vmatpush1.msra.mxu0 0.0
    %1950 = vmatprep.subr.mxu0 0.0
    %1951 = vmatpush1.msra.mxu0 0.0
    %1952 = vmatprep.subr.mxu0 0.0
    %1953 = vmatpush1.msra.mxu0 0.0
    %1954 = vmatprep.subr.mxu0 0.0
    %1955 = vmatpush1.msra.mxu0 0.0
    %1956 = vmatprep.subr.mxu0 0.0
    %1957 = vmatpush1.msra.mxu0 0.0
    %1958 = vmatprep.subr.mxu0 0.0
    %1959 = vmatpush1.msra.mxu0 0.0
    %1960 = vmatprep.subr.mxu0 0.0
    %1961 = vmatpush1.msra.mxu0 0.0
    %1962 = vmatprep.subr.mxu0 0.0
    %1963 = vmatpush1.msra.mxu0 0.0
    %1964 = vmatprep.subr.mxu0 0.0
    %1965 = vmatpush1.msra.mxu0 0.0
    %1966 = vmatprep.subr.mxu0 0.0
    %1967 = vmatpush1.msra.mxu0 0.0
    %1968 = vmatprep.subr.mxu0 0.0
    %1969 = vmatpush1.msra.mxu0 0.0
    %1970 = vmatprep.subr.mxu0 0.0
    %1971 = vmatpush1.msra.mxu0 0.0
    %1972 = vmatprep.subr.mxu0 0.0
    %1973 = vmatpush1.msra.mxu0 0.0
    %1974 = vmatprep.subr.mxu0 0.0
    %1975 = vmatpush1.msra.mxu0 0.0
    %1976 = vmatprep.subr.mxu0 0.0
    %1977 = vmatpush1.msra.mxu0 0.0
    %1978 = vmatprep.subr.mxu0 0.0
    %1979 = vmatpush1.msra.mxu0 0.0
    %1980 = vmatprep.subr.mxu0 0.0
    %1981 = vmatpush1.msra.mxu0 0.0
    %1982 = vmatprep.subr.mxu0 0.0
    %1983 = vmatpush1.msra.mxu0 0.0
    %1984 = vmatprep.subr.mxu0 0.0
    %1985 = vmatpush1.msra.mxu0 0.0
    %1986 = vmatprep.subr.mxu0 0.0
    %1987 = vmatpush1.msra.mxu0 0.0
    %1988 = vmatprep.subr.mxu0 0.0
    %1989 = vmatpush1.msra.mxu0 0.0
    %1990 = vmatprep.subr.mxu0 0.0
    %1991 = vmatpush1.msra.mxu0 0.0
    %1992 = vmatprep.subr.mxu0 0.0
    %1993 = vmatpush1.msra.mxu0 0.0
    %1994 = vmatprep.subr.mxu0 0.0
    %1995 = vmatpush1.msra.mxu0 0.0
    %1996 = vmatprep.mubr.f32.mxu0 0.0
    %1997 = vmatmul.mubr.f32.gmra.mrb[0].mxu0 %v486
    %v1998 = vpop.f32.mrb[0].mxu0
    %v1999 = vadd.f32 %v1845, %v1998
    %v2000 = vpop.f32.mrb[0].mxu0
    %v2001 = vadd.f32 %v1847, %v2000
    %2002 = vmatprep.mubr.f32.mxu0 0.0
    %2003 = vmatmul.mubr.f32.gmra.mrb[0].mxu0 %v489
    %v2004 = vpop.f32.mrb[0].mxu0
    %v2005 = vadd.f32 %v1851, %v2004
    %v2006 = vpop.f32.mrb[0].mxu0
    %v2007 = vadd.f32 %v1853, %v2006
    %2008 = vdwg.mxu0
    %2009 = vmatprep.subr.mxu0 %v454
    %2010 = vmatpush1.msra.mxu0 %v453
    %2011 = vmatprep.subr.mxu0 %v458
    %2012 = vmatpush1.msra.mxu0 %v457
    %2013 = vmatprep.subr.mxu0 %v462
    %2014 = vmatpush1.msra.mxu0 %v461
    %2015 = vmatprep.subr.mxu0 %v466
    %2016 = vmatpush1.msra.mxu0 %v465
    %2017 = vmatprep.subr.mxu0 %v470
    %2018 = vmatpush1.msra.mxu0 %v469
    %2019 = vmatprep.subr.mxu0 %v474
    %2020 = vmatpush1.msra.mxu0 %v473
    %2021 = vmatprep.subr.mxu0 %v478
    %2022 = vmatpush1.msra.mxu0 %v477
    %2023 = vmatprep.subr.mxu0 %v482
    %2024 = vmatpush1.msra.mxu0 %v481
    %2025 = vmatprep.subr.mxu0 0.0
    %2026 = vmatpush1.msra.mxu0 0.0
    %2027 = vmatprep.subr.mxu0 0.0
    %2028 = vmatpush1.msra.mxu0 0.0
    %2029 = vmatprep.subr.mxu0 0.0
    %2030 = vmatpush1.msra.mxu0 0.0
    %2031 = vmatprep.subr.mxu0 0.0
    %2032 = vmatpush1.msra.mxu0 0.0
    %2033 = vmatprep.subr.mxu0 0.0
    %2034 = vmatpush1.msra.mxu0 0.0
    %2035 = vmatprep.subr.mxu0 0.0
    %2036 = vmatpush1.msra.mxu0 0.0
    %2037 = vmatprep.subr.mxu0 0.0
    %2038 = vmatpush1.msra.mxu0 0.0
    %2039 = vmatprep.subr.mxu0 0.0
    %2040 = vmatpush1.msra.mxu0 0.0
    %2041 = vmatprep.subr.mxu0 0.0
    %2042 = vmatpush1.msra.mxu0 0.0
    %2043 = vmatprep.subr.mxu0 0.0
    %2044 = vmatpush1.msra.mxu0 0.0
    %2045 = vmatprep.subr.mxu0 0.0
    %2046 = vmatpush1.msra.mxu0 0.0
    %2047 = vmatprep.subr.mxu0 0.0
    %2048 = vmatpush1.msra.mxu0 0.0
    %2049 = vmatprep.subr.mxu0 0.0
    %2050 = vmatpush1.msra.mxu0 0.0
    %2051 = vmatprep.subr.mxu0 0.0
    %2052 = vmatpush1.msra.mxu0 0.0
    %2053 = vmatprep.subr.mxu0 0.0
    %2054 = vmatpush1.msra.mxu0 0.0
    %2055 = vmatprep.subr.mxu0 0.0
    %2056 = vmatpush1.msra.mxu0 0.0
    %2057 = vmatprep.subr.mxu0 0.0
    %2058 = vmatpush1.msra.mxu0 0.0
    %2059 = vmatprep.subr.mxu0 0.0
    %2060 = vmatpush1.msra.mxu0 0.0
    %2061 = vmatprep.subr.mxu0 0.0
    %2062 = vmatpush1.msra.mxu0 0.0
    %2063 = vmatprep.subr.mxu0 0.0
    %2064 = vmatpush1.msra.mxu0 0.0
    %2065 = vmatprep.subr.mxu0 0.0
    %2066 = vmatpush1.msra.mxu0 0.0
    %2067 = vmatprep.subr.mxu0 0.0
    %2068 = vmatpush1.msra.mxu0 0.0
    %2069 = vmatprep.subr.mxu0 0.0
    %2070 = vmatpush1.msra.mxu0 0.0
    %2071 = vmatprep.subr.mxu0 0.0
    %2072 = vmatpush1.msra.mxu0 0.0
    %2073 = vmatprep.mubr.f32.mxu0 0.0
    %2074 = vmatmul.mubr.f32.gmra.mrb[0].mxu0 %v891
    %v2075 = vpop.f32.mrb[0].mxu0
    %v2076 = vadd.f32 0.0, %v2075
    %v2077 = vpop.f32.mrb[0].mxu0
    %v2078 = vadd.f32 0.0, %v2077
    %2079 = vmatprep.mubr.f32.mxu0 0.0
    %2080 = vmatmul.mubr.f32.gmra.mrb[0].mxu0 %v893
    %v2081 = vpop.f32.mrb[0].mxu0
    %v2082 = vadd.f32 0.0, %v2081
    %v2083 = vpop.f32.mrb[0].mxu0
    %v2084 = vadd.f32 0.0, %v2083
    %2085 = vdwg.mxu0
    %2086 = vmatprep.subr.mxu0 %v456
    %2087 = vmatpush1.msra.mxu0 %v455
    %2088 = vmatprep.subr.mxu0 %v460
    %2089 = vmatpush1.msra.mxu0 %v459
    %2090 = vmatprep.subr.mxu0 %v464
    %2091 = vmatpush1.msra.mxu0 %v463
    %2092 = vmatprep.subr.mxu0 %v468
    %2093 = vmatpush1.msra.mxu0 %v467
    %2094 = vmatprep.subr.mxu0 %v472
    %2095 = vmatpush1.msra.mxu0 %v471
    %2096 = vmatprep.subr.mxu0 %v476
    %2097 = vmatpush1.msra.mxu0 %v475
    %2098 = vmatprep.subr.mxu0 %v480
    %2099 = vmatpush1.msra.mxu0 %v479
    %2100 = vmatprep.subr.mxu0 %v484
    %2101 = vmatpush1.msra.mxu0 %v483
    %2102 = vmatprep.subr.mxu0 0.0
    %2103 = vmatpush1.msra.mxu0 0.0
    %2104 = vmatprep.subr.mxu0 0.0
    %2105 = vmatpush1.msra.mxu0 0.0
    %2106 = vmatprep.subr.mxu0 0.0
    %2107 = vmatpush1.msra.mxu0 0.0
    %2108 = vmatprep.subr.mxu0 0.0
    %2109 = vmatpush1.msra.mxu0 0.0
    %2110 = vmatprep.subr.mxu0 0.0
    %2111 = vmatpush1.msra.mxu0 0.0
    %2112 = vmatprep.subr.mxu0 0.0
    %2113 = vmatpush1.msra.mxu0 0.0
    %2114 = vmatprep.subr.mxu0 0.0
    %2115 = vmatpush1.msra.mxu0 0.0
    %2116 = vmatprep.subr.mxu0 0.0
    %2117 = vmatpush1.msra.mxu0 0.0
    %2118 = vmatprep.subr.mxu0 0.0
    %2119 = vmatpush1.msra.mxu0 0.0
    %2120 = vmatprep.subr.mxu0 0.0
    %2121 = vmatpush1.msra.mxu0 0.0
    %2122 = vmatprep.subr.mxu0 0.0
    %2123 = vmatpush1.msra.mxu0 0.0
    %2124 = vmatprep.subr.mxu0 0.0
    %2125 = vmatpush1.msra.mxu0 0.0
    %2126 = vmatprep.subr.mxu0 0.0
    %2127 = vmatpush1.msra.mxu0 0.0
    %2128 = vmatprep.subr.mxu0 0.0
    %2129 = vmatpush1.msra.mxu0 0.0
    %2130 = vmatprep.subr.mxu0 0.0
    %2131 = vmatpush1.msra.mxu0 0.0
    %2132 = vmatprep.subr.mxu0 0.0
    %2133 = vmatpush1.msra.mxu0 0.0
    %2134 = vmatprep.subr.mxu0 0.0
    %2135 = vmatpush1.msra.mxu0 0.0
    %2136 = vmatprep.subr.mxu0 0.0
    %2137 = vmatpush1.msra.mxu0 0.0
    %2138 = vmatprep.subr.mxu0 0.0
    %2139 = vmatpush1.msra.mxu0 0.0
    %2140 = vmatprep.subr.mxu0 0.0
    %2141 = vmatpush1.msra.mxu0 0.0
    %2142 = vmatprep.subr.mxu0 0.0
    %2143 = vmatpush1.msra.mxu0 0.0
    %2144 = vmatprep.subr.mxu0 0.0
    %2145 = vmatpush1.msra.mxu0 0.0
    %2146 = vmatprep.subr.mxu0 0.0
    %2147 = vmatpush1.msra.mxu0 0.0
    %2148 = vmatprep.subr.mxu0 0.0
    %2149 = vmatpush1.msra.mxu0 0.0
    %2150 = vmatprep.mubr.f32.mxu0 0.0
    %2151 = vmatmul.mubr.f32.gmra.mrb[0].mxu0 %v891
    %v2152 = vpop.f32.mrb[0].mxu0
    %v2153 = vadd.f32 0.0, %v2152
    %v2154 = vpop.f32.mrb[0].mxu0
    %v2155 = vadd.f32 0.0, %v2154
    %2156 = vmatprep.mubr.f32.mxu0 0.0
    %2157 = vmatmul.mubr.f32.gmra.mrb[0].mxu0 %v893
    %v2158 = vpop.f32.mrb[0].mxu0
    %v2159 = vadd.f32 0.0, %v2158
    %v2160 = vpop.f32.mrb[0].mxu0
    %v2161 = vadd.f32 0.0, %v2160
    %2162 = vdwg.mxu0
    %v2163 = vadd.f32 %v1922, %v2076
    %v2164 = vadd.f32 %v1924, %v2078
    %v2165 = vadd.f32 %v1999, %v2153
    %v2166 = vadd.f32 %v2001, %v2155
    %v2167 = vadd.f32 %v1928, %v2082
    %v2168 = vadd.f32 %v1930, %v2084
    %v2169 = vadd.f32 %v2005, %v2159
    %v2170 = vadd.f32 %v2007, %v2161
    %2171 = vmatprep.subr.mxu0 %v655
    %2172 = vmatpush1.msra.mxu0 %v654
    %2173 = vmatprep.subr.mxu0 %v659
    %2174 = vmatpush1.msra.mxu0 %v658
    %2175 = vmatprep.subr.mxu0 %v663
    %2176 = vmatpush1.msra.mxu0 %v662
    %2177 = vmatprep.subr.mxu0 %v667
    %2178 = vmatpush1.msra.mxu0 %v666
    %2179 = vmatprep.subr.mxu0 %v671
    %2180 = vmatpush1.msra.mxu0 %v670
    %2181 = vmatprep.subr.mxu0 %v675
    %2182 = vmatpush1.msra.mxu0 %v674
    %2183 = vmatprep.subr.mxu0 %v679
    %2184 = vmatpush1.msra.mxu0 %v678
    %2185 = vmatprep.subr.mxu0 %v683
    %2186 = vmatpush1.msra.mxu0 %v682
    %2187 = vmatprep.subr.mxu0 0.0
    %2188 = vmatpush1.msra.mxu0 0.0
    %2189 = vmatprep.subr.mxu0 0.0
    %2190 = vmatpush1.msra.mxu0 0.0
    %2191 = vmatprep.subr.mxu0 0.0
    %2192 = vmatpush1.msra.mxu0 0.0
    %2193 = vmatprep.subr.mxu0 0.0
    %2194 = vmatpush1.msra.mxu0 0.0
    %2195 = vmatprep.subr.mxu0 0.0
    %2196 = vmatpush1.msra.mxu0 0.0
    %2197 = vmatprep.subr.mxu0 0.0
    %2198 = vmatpush1.msra.mxu0 0.0
    %2199 = vmatprep.subr.mxu0 0.0
    %2200 = vmatpush1.msra.mxu0 0.0
    %2201 = vmatprep.subr.mxu0 0.0
    %2202 = vmatpush1.msra.mxu0 0.0
    %2203 = vmatprep.subr.mxu0 0.0
    %2204 = vmatpush1.msra.mxu0 0.0
    %2205 = vmatprep.subr.mxu0 0.0
    %2206 = vmatpush1.msra.mxu0 0.0
    %2207 = vmatprep.subr.mxu0 0.0
    %2208 = vmatpush1.msra.mxu0 0.0
    %2209 = vmatprep.subr.mxu0 0.0
    %2210 = vmatpush1.msra.mxu0 0.0
    %2211 = vmatprep.subr.mxu0 0.0
    %2212 = vmatpush1.msra.mxu0 0.0
    %2213 = vmatprep.subr.mxu0 0.0
    %2214 = vmatpush1.msra.mxu0 0.0
    %2215 = vmatprep.subr.mxu0 0.0
    %2216 = vmatpush1.msra.mxu0 0.0
    %2217 = vmatprep.subr.mxu0 0.0
    %2218 = vmatpush1.msra.mxu0 0.0
    %2219 = vmatprep.subr.mxu0 0.0
    %2220 = vmatpush1.msra.mxu0 0.0
    %2221 = vmatprep.subr.mxu0 0.0
    %2222 = vmatpush1.msra.mxu0 0.0
    %2223 = vmatprep.subr.mxu0 0.0
    %2224 = vmatpush1.msra.mxu0 0.0
    %2225 = vmatprep.subr.mxu0 0.0
    %2226 = vmatpush1.msra.mxu0 0.0
    %2227 = vmatprep.subr.mxu0 0.0
    %2228 = vmatpush1.msra.mxu0 0.0
    %2229 = vmatprep.subr.mxu0 0.0
    %2230 = vmatpush1.msra.mxu0 0.0
    %2231 = vmatprep.subr.mxu0 0.0
    %2232 = vmatpush1.msra.mxu0 0.0
    %2233 = vmatprep.subr.mxu0 0.0
    %2234 = vmatpush1.msra.mxu0 0.0
    %2235 = vmatprep.mubr.f32.mxu0 0.0
    %2236 = vmatmul.mubr.f32.gmra.mrb[0].mxu0 %v1093
    %v2237 = vpop.f32.mrb[0].mxu0
    %v2238 = vadd.f32 0.0, %v2237
    %v2239 = vpop.f32.mrb[0].mxu0
    %v2240 = vadd.f32 0.0, %v2239
    %2241 = vmatprep.mubr.f32.mxu0 0.0
    %2242 = vmatmul.mubr.f32.gmra.mrb[0].mxu0 %v1095
    %v2243 = vpop.f32.mrb[0].mxu0
    %v2244 = vadd.f32 0.0, %v2243
    %v2245 = vpop.f32.mrb[0].mxu0
    %v2246 = vadd.f32 0.0, %v2245
    %2247 = vdwg.mxu0
    %2248 = vmatprep.subr.mxu0 %v657
    %2249 = vmatpush1.msra.mxu0 %v656
    %2250 = vmatprep.subr.mxu0 %v661
    %2251 = vmatpush1.msra.mxu0 %v660
    %2252 = vmatprep.subr.mxu0 %v665
    %2253 = vmatpush1.msra.mxu0 %v664
    %2254 = vmatprep.subr.mxu0 %v669
    %2255 = vmatpush1.msra.mxu0 %v668
    %2256 = vmatprep.subr.mxu0 %v673
    %2257 = vmatpush1.msra.mxu0 %v672
    %2258 = vmatprep.subr.mxu0 %v677
    %2259 = vmatpush1.msra.mxu0 %v676
    %2260 = vmatprep.subr.mxu0 %v681
    %2261 = vmatpush1.msra.mxu0 %v680
    %2262 = vmatprep.subr.mxu0 %v685
    %2263 = vmatpush1.msra.mxu0 %v684
    %2264 = vmatprep.subr.mxu0 0.0
    %2265 = vmatpush1.msra.mxu0 0.0
    %2266 = vmatprep.subr.mxu0 0.0
    %2267 = vmatpush1.msra.mxu0 0.0
    %2268 = vmatprep.subr.mxu0 0.0
    %2269 = vmatpush1.msra.mxu0 0.0
    %2270 = vmatprep.subr.mxu0 0.0
    %2271 = vmatpush1.msra.mxu0 0.0
    %2272 = vmatprep.subr.mxu0 0.0
    %2273 = vmatpush1.msra.mxu0 0.0
    %2274 = vmatprep.subr.mxu0 0.0
    %2275 = vmatpush1.msra.mxu0 0.0
    %2276 = vmatprep.subr.mxu0 0.0
    %2277 = vmatpush1.msra.mxu0 0.0
    %2278 = vmatprep.subr.mxu0 0.0
    %2279 = vmatpush1.msra.mxu0 0.0
    %2280 = vmatprep.subr.mxu0 0.0
    %2281 = vmatpush1.msra.mxu0 0.0
    %2282 = vmatprep.subr.mxu0 0.0
    %2283 = vmatpush1.msra.mxu0 0.0
    %2284 = vmatprep.subr.mxu0 0.0
    %2285 = vmatpush1.msra.mxu0 0.0
    %2286 = vmatprep.subr.mxu0 0.0
    %2287 = vmatpush1.msra.mxu0 0.0
    %2288 = vmatprep.subr.mxu0 0.0
    %2289 = vmatpush1.msra.mxu0 0.0
    %2290 = vmatprep.subr.mxu0 0.0
    %2291 = vmatpush1.msra.mxu0 0.0
    %2292 = vmatprep.subr.mxu0 0.0
    %2293 = vmatpush1.msra.mxu0 0.0
    %2294 = vmatprep.subr.mxu0 0.0
    %2295 = vmatpush1.msra.mxu0 0.0
    %2296 = vmatprep.subr.mxu0 0.0
    %2297 = vmatpush1.msra.mxu0 0.0
    %2298 = vmatprep.subr.mxu0 0.0
    %2299 = vmatpush1.msra.mxu0 0.0
    %2300 = vmatprep.subr.mxu0 0.0
    %2301 = vmatpush1.msra.mxu0 0.0
    %2302 = vmatprep.subr.mxu0 0.0
    %2303 = vmatpush1.msra.mxu0 0.0
    %2304 = vmatprep.subr.mxu0 0.0
    %2305 = vmatpush1.msra.mxu0 0.0
    %2306 = vmatprep.subr.mxu0 0.0
    %2307 = vmatpush1.msra.mxu0 0.0
    %2308 = vmatprep.subr.mxu0 0.0
    %2309 = vmatpush1.msra.mxu0 0.0
    %2310 = vmatprep.subr.mxu0 0.0
    %2311 = vmatpush1.msra.mxu0 0.0
    %2312 = vmatprep.mubr.f32.mxu0 0.0
    %2313 = vmatmul.mubr.f32.gmra.mrb[0].mxu0 %v1093
    %v2314 = vpop.f32.mrb[0].mxu0
    %v2315 = vadd.f32 0.0, %v2314
    %v2316 = vpop.f32.mrb[0].mxu0
    %v2317 = vadd.f32 0.0, %v2316
    %2318 = vmatprep.mubr.f32.mxu0 0.0
    %2319 = vmatmul.mubr.f32.gmra.mrb[0].mxu0 %v1095
    %v2320 = vpop.f32.mrb[0].mxu0
    %v2321 = vadd.f32 0.0, %v2320
    %v2322 = vpop.f32.mrb[0].mxu0
    %v2323 = vadd.f32 0.0, %v2322
    %2324 = vdwg.mxu0
    %v2325 = vadd.f32 %v2163, %v2238
    %v2326 = vadd.f32 %v2164, %v2240
    %v2327 = vadd.f32 %v2165, %v2315
    %v2328 = vadd.f32 %v2166, %v2317
    %v2329 = vadd.f32 %v2167, %v2244
    %v2330 = vadd.f32 %v2168, %v2246
    %v2331 = vadd.f32 %v2169, %v2321
    %v2332 = vadd.f32 %v2170, %v2323
    %2333 = vmatprep.subr.mxu0 %v856
    %2334 = vmatpush1.msra.mxu0 %v855
    %2335 = vmatprep.subr.mxu0 %v860
    %2336 = vmatpush1.msra.mxu0 %v859
    %2337 = vmatprep.subr.mxu0 %v864
    %2338 = vmatpush1.msra.mxu0 %v863
    %2339 = vmatprep.subr.mxu0 %v868
    %2340 = vmatpush1.msra.mxu0 %v867
    %2341 = vmatprep.subr.mxu0 %v872
    %2342 = vmatpush1.msra.mxu0 %v871
    %2343 = vmatprep.subr.mxu0 %v876
    %2344 = vmatpush1.msra.mxu0 %v875
    %2345 = vmatprep.subr.mxu0 %v880
    %2346 = vmatpush1.msra.mxu0 %v879
    %2347 = vmatprep.subr.mxu0 %v884
    %2348 = vmatpush1.msra.mxu0 %v883
    %2349 = vmatprep.subr.mxu0 0.0
    %2350 = vmatpush1.msra.mxu0 0.0
    %2351 = vmatprep.subr.mxu0 0.0
    %2352 = vmatpush1.msra.mxu0 0.0
    %2353 = vmatprep.subr.mxu0 0.0
    %2354 = vmatpush1.msra.mxu0 0.0
    %2355 = vmatprep.subr.mxu0 0.0
    %2356 = vmatpush1.msra.mxu0 0.0
    %2357 = vmatprep.subr.mxu0 0.0
    %2358 = vmatpush1.msra.mxu0 0.0
    %2359 = vmatprep.subr.mxu0 0.0
    %2360 = vmatpush1.msra.mxu0 0.0
    %2361 = vmatprep.subr.mxu0 0.0
    %2362 = vmatpush1.msra.mxu0 0.0
    %2363 = vmatprep.subr.mxu0 0.0
    %2364 = vmatpush1.msra.mxu0 0.0
    %2365 = vmatprep.subr.mxu0 0.0
    %2366 = vmatpush1.msra.mxu0 0.0
    %2367 = vmatprep.subr.mxu0 0.0
    %2368 = vmatpush1.msra.mxu0 0.0
    %2369 = vmatprep.subr.mxu0 0.0
    %2370 = vmatpush1.msra.mxu0 0.0
    %2371 = vmatprep.subr.mxu0 0.0
    %2372 = vmatpush1.msra.mxu0 0.0
    %2373 = vmatprep.subr.mxu0 0.0
    %2374 = vmatpush1.msra.mxu0 0.0
    %2375 = vmatprep.subr.mxu0 0.0
    %2376 = vmatpush1.msra.mxu0 0.0
    %2377 = vmatprep.subr.mxu0 0.0
    %2378 = vmatpush1.msra.mxu0 0.0
    %2379 = vmatprep.subr.mxu0 0.0
    %2380 = vmatpush1.msra.mxu0 0.0
    %2381 = vmatprep.subr.mxu0 0.0
    %2382 = vmatpush1.msra.mxu0 0.0
    %2383 = vmatprep.subr.mxu0 0.0
    %2384 = vmatpush1.msra.mxu0 0.0
    %2385 = vmatprep.subr.mxu0 0.0
    %2386 = vmatpush1.msra.mxu0 0.0
    %2387 = vmatprep.subr.mxu0 0.0
    %2388 = vmatpush1.msra.mxu0 0.0
    %2389 = vmatprep.subr.mxu0 0.0
    %2390 = vmatpush1.msra.mxu0 0.0
    %2391 = vmatprep.subr.mxu0 0.0
    %2392 = vmatpush1.msra.mxu0 0.0
    %2393 = vmatprep.subr.mxu0 0.0
    %2394 = vmatpush1.msra.mxu0 0.0
    %2395 = vmatprep.subr.mxu0 0.0
    %2396 = vmatpush1.msra.mxu0 0.0
    %2397 = vmatprep.mubr.f32.mxu0 0.0
    %2398 = vmatmul.mubr.f32.gmra.mrb[0].mxu0 %v1295
    %v2399 = vpop.f32.mrb[0].mxu0
    %v2400 = vadd.f32 0.0, %v2399
    %v2401 = vpop.f32.mrb[0].mxu0
    %v2402 = vadd.f32 0.0, %v2401
    %2403 = vmatprep.mubr.f32.mxu0 0.0
    %2404 = vmatmul.mubr.f32.gmra.mrb[0].mxu0 %v1297
    %v2405 = vpop.f32.mrb[0].mxu0
    %v2406 = vadd.f32 0.0, %v2405
    %v2407 = vpop.f32.mrb[0].mxu0
    %v2408 = vadd.f32 0.0, %v2407
    %2409 = vdwg.mxu0
    %2410 = vmatprep.subr.mxu0 %v858
    %2411 = vmatpush1.msra.mxu0 %v857
    %2412 = vmatprep.subr.mxu0 %v862
    %2413 = vmatpush1.msra.mxu0 %v861
    %2414 = vmatprep.subr.mxu0 %v866
    %2415 = vmatpush1.msra.mxu0 %v865
    %2416 = vmatprep.subr.mxu0 %v870
    %2417 = vmatpush1.msra.mxu0 %v869
    %2418 = vmatprep.subr.mxu0 %v874
    %2419 = vmatpush1.msra.mxu0 %v873
    %2420 = vmatprep.subr.mxu0 %v878
    %2421 = vmatpush1.msra.mxu0 %v877
    %2422 = vmatprep.subr.mxu0 %v882
    %2423 = vmatpush1.msra.mxu0 %v881
    %2424 = vmatprep.subr.mxu0 %v886
    %2425 = vmatpush1.msra.mxu0 %v885
    %2426 = vmatprep.subr.mxu0 0.0
    %2427 = vmatpush1.msra.mxu0 0.0
    %2428 = vmatprep.subr.mxu0 0.0
    %2429 = vmatpush1.msra.mxu0 0.0
    %2430 = vmatprep.subr.mxu0 0.0
    %2431 = vmatpush1.msra.mxu0 0.0
    %2432 = vmatprep.subr.mxu0 0.0
    %2433 = vmatpush1.msra.mxu0 0.0
    %2434 = vmatprep.subr.mxu0 0.0
    %2435 = vmatpush1.msra.mxu0 0.0
    %2436 = vmatprep.subr.mxu0 0.0
    %2437 = vmatpush1.msra.mxu0 0.0
    %2438 = vmatprep.subr.mxu0 0.0
    %2439 = vmatpush1.msra.mxu0 0.0
    %2440 = vmatprep.subr.mxu0 0.0
    %2441 = vmatpush1.msra.mxu0 0.0
    %2442 = vmatprep.subr.mxu0 0.0
    %2443 = vmatpush1.msra.mxu0 0.0
    %2444 = vmatprep.subr.mxu0 0.0
    %2445 = vmatpush1.msra.mxu0 0.0
    %2446 = vmatprep.subr.mxu0 0.0
    %2447 = vmatpush1.msra.mxu0 0.0
    %2448 = vmatprep.subr.mxu0 0.0
    %2449 = vmatpush1.msra.mxu0 0.0
    %2450 = vmatprep.subr.mxu0 0.0
    %2451 = vmatpush1.msra.mxu0 0.0
    %2452 = vmatprep.subr.mxu0 0.0
    %2453 = vmatpush1.msra.mxu0 0.0
    %2454 = vmatprep.subr.mxu0 0.0
    %2455 = vmatpush1.msra.mxu0 0.0
    %2456 = vmatprep.subr.mxu0 0.0
    %2457 = vmatpush1.msra.mxu0 0.0
    %2458 = vmatprep.subr.mxu0 0.0
    %2459 = vmatpush1.msra.mxu0 0.0
    %2460 = vmatprep.subr.mxu0 0.0
    %2461 = vmatpush1.msra.mxu0 0.0
    %2462 = vmatprep.subr.mxu0 0.0
    %2463 = vmatpush1.msra.mxu0 0.0
    %2464 = vmatprep.subr.mxu0 0.0
    %2465 = vmatpush1.msra.mxu0 0.0
    %2466 = vmatprep.subr.mxu0 0.0
    %2467 = vmatpush1.msra.mxu0 0.0
    %2468 = vmatprep.subr.mxu0 0.0
    %2469 = vmatpush1.msra.mxu0 0.0
    %2470 = vmatprep.subr.mxu0 0.0
    %2471 = vmatpush1.msra.mxu0 0.0
    %2472 = vmatprep.subr.mxu0 0.0
    %2473 = vmatpush1.msra.mxu0 0.0
    %2474 = vmatprep.mubr.f32.mxu0 0.0
    %2475 = vmatmul.mubr.f32.gmra.mrb[0].mxu0 %v1295
    %v2476 = vpop.f32.mrb[0].mxu0
    %v2477 = vadd.f32 0.0, %v2476
    %v2478 = vpop.f32.mrb[0].mxu0
    %v2479 = vadd.f32 0.0, %v2478
    %2480 = vmatprep.mubr.f32.mxu0 0.0
    %2481 = vmatmul.mubr.f32.gmra.mrb[0].mxu0 %v1297
    %v2482 = vpop.f32.mrb[0].mxu0
    %v2483 = vadd.f32 0.0, %v2482
    %v2484 = vpop.f32.mrb[0].mxu0
    %v2485 = vadd.f32 0.0, %v2484
    %2486 = vdwg.mxu0
    %v2487 = vadd.f32 %v2325, %v2400
    %v2488 = vadd.f32 %v2326, %v2402
    %v2489 = vadd.f32 %v2327, %v2477
    %v2490 = vadd.f32 %v2328, %v2479
    %v2491 = vadd.f32 %v2329, %v2406
    %v2492 = vadd.f32 %v2330, %v2408
    %v2493 = vadd.f32 %v2331, %v2483
    %v2494 = vadd.f32 %v2332, %v2485
    %2495 = vmatprep.subr.mxu0 %v1059
    %2496 = vmatpush1.msra.mxu0 %v1058
    %2497 = vmatprep.subr.mxu0 %v1063
    %2498 = vmatpush1.msra.mxu0 %v1062
    %2499 = vmatprep.subr.mxu0 %v1067
    %2500 = vmatpush1.msra.mxu0 %v1066
    %2501 = vmatprep.subr.mxu0 %v1071
    %2502 = vmatpush1.msra.mxu0 %v1070
    %2503 = vmatprep.subr.mxu0 %v1075
    %2504 = vmatpush1.msra.mxu0 %v1074
    %2505 = vmatprep.subr.mxu0 %v1079
    %2506 = vmatpush1.msra.mxu0 %v1078
    %2507 = vmatprep.subr.mxu0 %v1083
    %2508 = vmatpush1.msra.mxu0 %v1082
    %2509 = vmatprep.subr.mxu0 %v1087
    %2510 = vmatpush1.msra.mxu0 %v1086
    %2511 = vmatprep.subr.mxu0 0.0
    %2512 = vmatpush1.msra.mxu0 0.0
    %2513 = vmatprep.subr.mxu0 0.0
    %2514 = vmatpush1.msra.mxu0 0.0
    %2515 = vmatprep.subr.mxu0 0.0
    %2516 = vmatpush1.msra.mxu0 0.0
    %2517 = vmatprep.subr.mxu0 0.0
    %2518 = vmatpush1.msra.mxu0 0.0
    %2519 = vmatprep.subr.mxu0 0.0
    %2520 = vmatpush1.msra.mxu0 0.0
    %2521 = vmatprep.subr.mxu0 0.0
    %2522 = vmatpush1.msra.mxu0 0.0
    %2523 = vmatprep.subr.mxu0 0.0
    %2524 = vmatpush1.msra.mxu0 0.0
    %2525 = vmatprep.subr.mxu0 0.0
    %2526 = vmatpush1.msra.mxu0 0.0
    %2527 = vmatprep.subr.mxu0 0.0
    %2528 = vmatpush1.msra.mxu0 0.0
    %2529 = vmatprep.subr.mxu0 0.0
    %2530 = vmatpush1.msra.mxu0 0.0
    %2531 = vmatprep.subr.mxu0 0.0
    %2532 = vmatpush1.msra.mxu0 0.0
    %2533 = vmatprep.subr.mxu0 0.0
    %2534 = vmatpush1.msra.mxu0 0.0
    %2535 = vmatprep.subr.mxu0 0.0
    %2536 = vmatpush1.msra.mxu0 0.0
    %2537 = vmatprep.subr.mxu0 0.0
    %2538 = vmatpush1.msra.mxu0 0.0
    %2539 = vmatprep.subr.mxu0 0.0
    %2540 = vmatpush1.msra.mxu0 0.0
    %2541 = vmatprep.subr.mxu0 0.0
    %2542 = vmatpush1.msra.mxu0 0.0
    %2543 = vmatprep.subr.mxu0 0.0
    %2544 = vmatpush1.msra.mxu0 0.0
    %2545 = vmatprep.subr.mxu0 0.0
    %2546 = vmatpush1.msra.mxu0 0.0
    %2547 = vmatprep.subr.mxu0 0.0
    %2548 = vmatpush1.msra.mxu0 0.0
    %2549 = vmatprep.subr.mxu0 0.0
    %2550 = vmatpush1.msra.mxu0 0.0
    %2551 = vmatprep.subr.mxu0 0.0
    %2552 = vmatpush1.msra.mxu0 0.0
    %2553 = vmatprep.subr.mxu0 0.0
    %2554 = vmatpush1.msra.mxu0 0.0
    %2555 = vmatprep.subr.mxu0 0.0
    %2556 = vmatpush1.msra.mxu0 0.0
    %2557 = vmatprep.subr.mxu0 0.0
    %2558 = vmatpush1.msra.mxu0 0.0
    %2559 = vmatprep.mubr.f32.mxu0 0.0
    %2560 = vmatmul.mubr.f32.gmra.mrb[0].mxu0 %v1497
    %v2561 = vpop.f32.mrb[0].mxu0
    %v2562 = vadd.f32 0.0, %v2561
    %v2563 = vpop.f32.mrb[0].mxu0
    %v2564 = vadd.f32 0.0, %v2563
    %2565 = vmatprep.mubr.f32.mxu0 0.0
    %2566 = vmatmul.mubr.f32.gmra.mrb[0].mxu0 %v1499
    %v2567 = vpop.f32.mrb[0].mxu0
    %v2568 = vadd.f32 0.0, %v2567
    %v2569 = vpop.f32.mrb[0].mxu0
    %v2570 = vadd.f32 0.0, %v2569
    %2571 = vdwg.mxu0
    %2572 = vmatprep.subr.mxu0 %v1061
    %2573 = vmatpush1.msra.mxu0 %v1060
    %2574 = vmatprep.subr.mxu0 %v1065
    %2575 = vmatpush1.msra.mxu0 %v1064
    %2576 = vmatprep.subr.mxu0 %v1069
    %2577 = vmatpush1.msra.mxu0 %v1068
    %2578 = vmatprep.subr.mxu0 %v1073
    %2579 = vmatpush1.msra.mxu0 %v1072
    %2580 = vmatprep.subr.mxu0 %v1077
    %2581 = vmatpush1.msra.mxu0 %v1076
    %2582 = vmatprep.subr.mxu0 %v1081
    %2583 = vmatpush1.msra.mxu0 %v1080
    %2584 = vmatprep.subr.mxu0 %v1085
    %2585 = vmatpush1.msra.mxu0 %v1084
    %2586 = vmatprep.subr.mxu0 %v1089
    %2587 = vmatpush1.msra.mxu0 %v1088
    %2588 = vmatprep.subr.mxu0 0.0
    %2589 = vmatpush1.msra.mxu0 0.0
    %2590 = vmatprep.subr.mxu0 0.0
    %2591 = vmatpush1.msra.mxu0 0.0
    %2592 = vmatprep.subr.mxu0 0.0
    %2593 = vmatpush1.msra.mxu0 0.0
    %2594 = vmatprep.subr.mxu0 0.0
    %2595 = vmatpush1.msra.mxu0 0.0
    %2596 = vmatprep.subr.mxu0 0.0
    %2597 = vmatpush1.msra.mxu0 0.0
    %2598 = vmatprep.subr.mxu0 0.0
    %2599 = vmatpush1.msra.mxu0 0.0
    %2600 = vmatprep.subr.mxu0 0.0
    %2601 = vmatpush1.msra.mxu0 0.0
    %2602 = vmatprep.subr.mxu0 0.0
    %2603 = vmatpush1.msra.mxu0 0.0
    %2604 = vmatprep.subr.mxu0 0.0
    %2605 = vmatpush1.msra.mxu0 0.0
    %2606 = vmatprep.subr.mxu0 0.0
    %2607 = vmatpush1.msra.mxu0 0.0
    %2608 = vmatprep.subr.mxu0 0.0
    %2609 = vmatpush1.msra.mxu0 0.0
    %2610 = vmatprep.subr.mxu0 0.0
    %2611 = vmatpush1.msra.mxu0 0.0
    %2612 = vmatprep.subr.mxu0 0.0
    %2613 = vmatpush1.msra.mxu0 0.0
    %2614 = vmatprep.subr.mxu0 0.0
    %2615 = vmatpush1.msra.mxu0 0.0
    %2616 = vmatprep.subr.mxu0 0.0
    %2617 = vmatpush1.msra.mxu0 0.0
    %2618 = vmatprep.subr.mxu0 0.0
    %2619 = vmatpush1.msra.mxu0 0.0
    %2620 = vmatprep.subr.mxu0 0.0
    %2621 = vmatpush1.msra.mxu0 0.0
    %2622 = vmatprep.subr.mxu0 0.0
    %2623 = vmatpush1.msra.mxu0 0.0
    %2624 = vmatprep.subr.mxu0 0.0
    %2625 = vmatpush1.msra.mxu0 0.0
    %2626 = vmatprep.subr.mxu0 0.0
    %2627 = vmatpush1.msra.mxu0 0.0
    %2628 = vmatprep.subr.mxu0 0.0
    %2629 = vmatpush1.msra.mxu0 0.0
    %2630 = vmatprep.subr.mxu0 0.0
    %2631 = vmatpush1.msra.mxu0 0.0
    %2632 = vmatprep.subr.mxu0 0.0
    %2633 = vmatpush1.msra.mxu0 0.0
    %2634 = vmatprep.subr.mxu0 0.0
    %2635 = vmatpush1.msra.mxu0 0.0
    %2636 = vmatprep.mubr.f32.mxu0 0.0
    %2637 = vmatmul.mubr.f32.gmra.mrb[0].mxu0 %v1497
    %v2638 = vpop.f32.mrb[0].mxu0
    %v2639 = vadd.f32 0.0, %v2638
    %v2640 = vpop.f32.mrb[0].mxu0
    %v2641 = vadd.f32 0.0, %v2640
    %2642 = vmatprep.mubr.f32.mxu0 0.0
    %2643 = vmatmul.mubr.f32.gmra.mrb[0].mxu0 %v1499
    %v2644 = vpop.f32.mrb[0].mxu0
    %v2645 = vadd.f32 0.0, %v2644
    %v2646 = vpop.f32.mrb[0].mxu0
    %v2647 = vadd.f32 0.0, %v2646
    %2648 = vdwg.mxu0
    %v2649 = vadd.f32 %v2487, %v2562
    %v2650 = vadd.f32 %v2488, %v2564
    %v2651 = vadd.f32 %v2489, %v2639
    %v2652 = vadd.f32 %v2490, %v2641
    %v2653 = vadd.f32 %v2491, %v2568
    %v2654 = vadd.f32 %v2492, %v2570
    %v2655 = vadd.f32 %v2493, %v2645
    %v2656 = vadd.f32 %v2494, %v2647
    %vm2657 = vcmask 1043456
    %v2658 = vrot.slane %v58, 4
    %v2659 = vrot.slane %v59, 4
    %v2660 = vsel %vm2657, %v2658, %v2659
    %v2661 = vsel %vm131, %v2660, 0
    %v2663 = vsel %vm131, %v2659, 0
    %2665 = vmatprep.subr.mxu0 %v1261
    %2666 = vmatpush1.msra.mxu0 %v1260
    %2667 = vmatprep.subr.mxu0 %v1265
    %2668 = vmatpush1.msra.mxu0 %v1264
    %2669 = vmatprep.subr.mxu0 %v1269
    %2670 = vmatpush1.msra.mxu0 %v1268
    %2671 = vmatprep.subr.mxu0 %v1273
    %2672 = vmatpush1.msra.mxu0 %v1272
    %2673 = vmatprep.subr.mxu0 %v1277
    %2674 = vmatpush1.msra.mxu0 %v1276
    %2675 = vmatprep.subr.mxu0 %v1281
    %2676 = vmatpush1.msra.mxu0 %v1280
    %2677 = vmatprep.subr.mxu0 %v1285
    %2678 = vmatpush1.msra.mxu0 %v1284
    %2679 = vmatprep.subr.mxu0 %v1289
    %2680 = vmatpush1.msra.mxu0 %v1288
    %2681 = vmatprep.subr.mxu0 0.0
    %2682 = vmatpush1.msra.mxu0 0.0
    %2683 = vmatprep.subr.mxu0 0.0
    %2684 = vmatpush1.msra.mxu0 0.0
    %2685 = vmatprep.subr.mxu0 0.0
    %2686 = vmatpush1.msra.mxu0 0.0
    %2687 = vmatprep.subr.mxu0 0.0
    %2688 = vmatpush1.msra.mxu0 0.0
    %2689 = vmatprep.subr.mxu0 0.0
    %2690 = vmatpush1.msra.mxu0 0.0
    %2691 = vmatprep.subr.mxu0 0.0
    %2692 = vmatpush1.msra.mxu0 0.0
    %2693 = vmatprep.subr.mxu0 0.0
    %2694 = vmatpush1.msra.mxu0 0.0
    %2695 = vmatprep.subr.mxu0 0.0
    %2696 = vmatpush1.msra.mxu0 0.0
    %2697 = vmatprep.subr.mxu0 0.0
    %2698 = vmatpush1.msra.mxu0 0.0
    %2699 = vmatprep.subr.mxu0 0.0
    %2700 = vmatpush1.msra.mxu0 0.0
    %2701 = vmatprep.subr.mxu0 0.0
    %2702 = vmatpush1.msra.mxu0 0.0
    %2703 = vmatprep.subr.mxu0 0.0
    %2704 = vmatpush1.msra.mxu0 0.0
    %2705 = vmatprep.subr.mxu0 0.0
    %2706 = vmatpush1.msra.mxu0 0.0
    %2707 = vmatprep.subr.mxu0 0.0
    %2708 = vmatpush1.msra.mxu0 0.0
    %2709 = vmatprep.subr.mxu0 0.0
    %2710 = vmatpush1.msra.mxu0 0.0
    %2711 = vmatprep.subr.mxu0 0.0
    %2712 = vmatpush1.msra.mxu0 0.0
    %2713 = vmatprep.subr.mxu0 0.0
    %2714 = vmatpush1.msra.mxu0 0.0
    %2715 = vmatprep.subr.mxu0 0.0
    %2716 = vmatpush1.msra.mxu0 0.0
    %2717 = vmatprep.subr.mxu0 0.0
    %2718 = vmatpush1.msra.mxu0 0.0
    %2719 = vmatprep.subr.mxu0 0.0
    %2720 = vmatpush1.msra.mxu0 0.0
    %2721 = vmatprep.subr.mxu0 0.0
    %2722 = vmatpush1.msra.mxu0 0.0
    %2723 = vmatprep.subr.mxu0 0.0
    %2724 = vmatpush1.msra.mxu0 0.0
    %2725 = vmatprep.subr.mxu0 0.0
    %2726 = vmatpush1.msra.mxu0 0.0
    %2727 = vmatprep.subr.mxu0 0.0
    %2728 = vmatpush1.msra.mxu0 0.0
    %2729 = vmatprep.mubr.f32.mxu0 0.0
    %2730 = vmatmul.mubr.f32.gmra.mrb[0].mxu0 %v2661
    %v2731 = vpop.f32.mrb[0].mxu0
    %v2732 = vadd.f32 0.0, %v2731
    %v2733 = vpop.f32.mrb[0].mxu0
    %v2734 = vadd.f32 0.0, %v2733
    %2735 = vmatprep.mubr.f32.mxu0 0.0
    %2736 = vmatmul.mubr.f32.gmra.mrb[0].mxu0 %v2663
    %v2737 = vpop.f32.mrb[0].mxu0
    %v2738 = vadd.f32 0.0, %v2737
    %v2739 = vpop.f32.mrb[0].mxu0
    %v2740 = vadd.f32 0.0, %v2739
    %2741 = vdwg.mxu0
    %2742 = vmatprep.subr.mxu0 %v1263
    %2743 = vmatpush1.msra.mxu0 %v1262
    %2744 = vmatprep.subr.mxu0 %v1267
    %2745 = vmatpush1.msra.mxu0 %v1266
    %2746 = vmatprep.subr.mxu0 %v1271
    %2747 = vmatpush1.msra.mxu0 %v1270
    %2748 = vmatprep.subr.mxu0 %v1275
    %2749 = vmatpush1.msra.mxu0 %v1274
    %2750 = vmatprep.subr.mxu0 %v1279
    %2751 = vmatpush1.msra.mxu0 %v1278
    %2752 = vmatprep.subr.mxu0 %v1283
    %2753 = vmatpush1.msra.mxu0 %v1282
    %2754 = vmatprep.subr.mxu0 %v1287
    %2755 = vmatpush1.msra.mxu0 %v1286
    %2756 = vmatprep.subr.mxu0 %v1291
    %2757 = vmatpush1.msra.mxu0 %v1290
    %2758 = vmatprep.subr.mxu0 0.0
    %2759 = vmatpush1.msra.mxu0 0.0
    %2760 = vmatprep.subr.mxu0 0.0
    %2761 = vmatpush1.msra.mxu0 0.0
    %2762 = vmatprep.subr.mxu0 0.0
    %2763 = vmatpush1.msra.mxu0 0.0
    %2764 = vmatprep.subr.mxu0 0.0
    %2765 = vmatpush1.msra.mxu0 0.0
    %2766 = vmatprep.subr.mxu0 0.0
    %2767 = vmatpush1.msra.mxu0 0.0
    %2768 = vmatprep.subr.mxu0 0.0
    %2769 = vmatpush1.msra.mxu0 0.0
    %2770 = vmatprep.subr.mxu0 0.0
    %2771 = vmatpush1.msra.mxu0 0.0
    %2772 = vmatprep.subr.mxu0 0.0
    %2773 = vmatpush1.msra.mxu0 0.0
    %2774 = vmatprep.subr.mxu0 0.0
    %2775 = vmatpush1.msra.mxu0 0.0
    %2776 = vmatprep.subr.mxu0 0.0
    %2777 = vmatpush1.msra.mxu0 0.0
    %2778 = vmatprep.subr.mxu0 0.0
    %2779 = vmatpush1.msra.mxu0 0.0
    %2780 = vmatprep.subr.mxu0 0.0
    %2781 = vmatpush1.msra.mxu0 0.0
    %2782 = vmatprep.subr.mxu0 0.0
    %2783 = vmatpush1.msra.mxu0 0.0
    %2784 = vmatprep.subr.mxu0 0.0
    %2785 = vmatpush1.msra.mxu0 0.0
    %2786 = vmatprep.subr.mxu0 0.0
    %2787 = vmatpush1.msra.mxu0 0.0
    %2788 = vmatprep.subr.mxu0 0.0
    %2789 = vmatpush1.msra.mxu0 0.0
    %2790 = vmatprep.subr.mxu0 0.0
    %2791 = vmatpush1.msra.mxu0 0.0
    %2792 = vmatprep.subr.mxu0 0.0
    %2793 = vmatpush1.msra.mxu0 0.0
    %2794 = vmatprep.subr.mxu0 0.0
    %2795 = vmatpush1.msra.mxu0 0.0
    %2796 = vmatprep.subr.mxu0 0.0
    %2797 = vmatpush1.msra.mxu0 0.0
    %2798 = vmatprep.subr.mxu0 0.0
    %2799 = vmatpush1.msra.mxu0 0.0
    %2800 = vmatprep.subr.mxu0 0.0
    %2801 = vmatpush1.msra.mxu0 0.0
    %2802 = vmatprep.subr.mxu0 0.0
    %2803 = vmatpush1.msra.mxu0 0.0
    %2804 = vmatprep.subr.mxu0 0.0
    %2805 = vmatpush1.msra.mxu0 0.0
    %2806 = vmatprep.mubr.f32.mxu0 0.0
    %2807 = vmatmul.mubr.f32.gmra.mrb[0].mxu0 %v2661
    %v2808 = vpop.f32.mrb[0].mxu0
    %v2809 = vadd.f32 0.0, %v2808
    %v2810 = vpop.f32.mrb[0].mxu0
    %v2811 = vadd.f32 0.0, %v2810
    %2812 = vmatprep.mubr.f32.mxu0 0.0
    %2813 = vmatmul.mubr.f32.gmra.mrb[0].mxu0 %v2663
    %v2814 = vpop.f32.mrb[0].mxu0
    %v2815 = vadd.f32 0.0, %v2814
    %v2816 = vpop.f32.mrb[0].mxu0
    %v2817 = vadd.f32 0.0, %v2816
    %2818 = vdwg.mxu0
    %v2819 = vadd.f32 %v2649, %v2732
    %v2820 = vadd.f32 %v2650, %v2734
    %v2821 = vadd.f32 %v2651, %v2809
    %v2822 = vadd.f32 %v2652, %v2811
    %v2823 = vadd.f32 %v2653, %v2738
    %v2824 = vadd.f32 %v2654, %v2740
    %v2825 = vadd.f32 %v2655, %v2815
    %v2826 = vadd.f32 %v2656, %v2817
    %v2827 = vrot.slane %v60, 4
    %v2828 = vrot.slane %v61, 4
    %v2829 = vsel %vm2657, %v2827, %v2828
    %v2830 = vsel %vm131, %v2829, 0
    %v2832 = vsel %vm131, %v2828, 0
    %2834 = vmatprep.subr.mxu0 %v1463
    %2835 = vmatpush1.msra.mxu0 %v1462
    %2836 = vmatprep.subr.mxu0 %v1467
    %2837 = vmatpush1.msra.mxu0 %v1466
    %2838 = vmatprep.subr.mxu0 %v1471
    %2839 = vmatpush1.msra.mxu0 %v1470
    %2840 = vmatprep.subr.mxu0 %v1475
    %2841 = vmatpush1.msra.mxu0 %v1474
    %2842 = vmatprep.subr.mxu0 %v1479
    %2843 = vmatpush1.msra.mxu0 %v1478
    %2844 = vmatprep.subr.mxu0 %v1483
    %2845 = vmatpush1.msra.mxu0 %v1482
    %2846 = vmatprep.subr.mxu0 %v1487
    %2847 = vmatpush1.msra.mxu0 %v1486
    %2848 = vmatprep.subr.mxu0 %v1491
    %2849 = vmatpush1.msra.mxu0 %v1490
    %2850 = vmatprep.subr.mxu0 0.0
    %2851 = vmatpush1.msra.mxu0 0.0
    %2852 = vmatprep.subr.mxu0 0.0
    %2853 = vmatpush1.msra.mxu0 0.0
    %2854 = vmatprep.subr.mxu0 0.0
    %2855 = vmatpush1.msra.mxu0 0.0
    %2856 = vmatprep.subr.mxu0 0.0
    %2857 = vmatpush1.msra.mxu0 0.0
    %2858 = vmatprep.subr.mxu0 0.0
    %2859 = vmatpush1.msra.mxu0 0.0
    %2860 = vmatprep.subr.mxu0 0.0
    %2861 = vmatpush1.msra.mxu0 0.0
    %2862 = vmatprep.subr.mxu0 0.0
    %2863 = vmatpush1.msra.mxu0 0.0
    %2864 = vmatprep.subr.mxu0 0.0
    %2865 = vmatpush1.msra.mxu0 0.0
    %2866 = vmatprep.subr.mxu0 0.0
    %2867 = vmatpush1.msra.mxu0 0.0
    %2868 = vmatprep.subr.mxu0 0.0
    %2869 = vmatpush1.msra.mxu0 0.0
    %2870 = vmatprep.subr.mxu0 0.0
    %2871 = vmatpush1.msra.mxu0 0.0
    %2872 = vmatprep.subr.mxu0 0.0
    %2873 = vmatpush1.msra.mxu0 0.0
    %2874 = vmatprep.subr.mxu0 0.0
    %2875 = vmatpush1.msra.mxu0 0.0
    %2876 = vmatprep.subr.mxu0 0.0
    %2877 = vmatpush1.msra.mxu0 0.0
    %2878 = vmatprep.subr.mxu0 0.0
    %2879 = vmatpush1.msra.mxu0 0.0
    %2880 = vmatprep.subr.mxu0 0.0
    %2881 = vmatpush1.msra.mxu0 0.0
    %2882 = vmatprep.subr.mxu0 0.0
    %2883 = vmatpush1.msra.mxu0 0.0
    %2884 = vmatprep.subr.mxu0 0.0
    %2885 = vmatpush1.msra.mxu0 0.0
    %2886 = vmatprep.subr.mxu0 0.0
    %2887 = vmatpush1.msra.mxu0 0.0
    %2888 = vmatprep.subr.mxu0 0.0
    %2889 = vmatpush1.msra.mxu0 0.0
    %2890 = vmatprep.subr.mxu0 0.0
    %2891 = vmatpush1.msra.mxu0 0.0
    %2892 = vmatprep.subr.mxu0 0.0
    %2893 = vmatpush1.msra.mxu0 0.0
    %2894 = vmatprep.subr.mxu0 0.0
    %2895 = vmatpush1.msra.mxu0 0.0
    %2896 = vmatprep.subr.mxu0 0.0
    %2897 = vmatpush1.msra.mxu0 0.0
    %2898 = vmatprep.mubr.f32.mxu0 0.0
    %2899 = vmatmul.mubr.f32.gmra.mrb[0].mxu0 %v2830
    %v2900 = vpop.f32.mrb[0].mxu0
    %v2901 = vadd.f32 0.0, %v2900
    %v2902 = vpop.f32.mrb[0].mxu0
    %v2903 = vadd.f32 0.0, %v2902
    %2904 = vmatprep.mubr.f32.mxu0 0.0
    %2905 = vmatmul.mubr.f32.gmra.mrb[0].mxu0 %v2832
    %v2906 = vpop.f32.mrb[0].mxu0
    %v2907 = vadd.f32 0.0, %v2906
    %v2908 = vpop.f32.mrb[0].mxu0
    %v2909 = vadd.f32 0.0, %v2908
    %2910 = vdwg.mxu0
    %2911 = vmatprep.subr.mxu0 %v1465
    %2912 = vmatpush1.msra.mxu0 %v1464
    %2913 = vmatprep.subr.mxu0 %v1469
    %2914 = vmatpush1.msra.mxu0 %v1468
    %2915 = vmatprep.subr.mxu0 %v1473
    %2916 = vmatpush1.msra.mxu0 %v1472
    %2917 = vmatprep.subr.mxu0 %v1477
    %2918 = vmatpush1.msra.mxu0 %v1476
    %2919 = vmatprep.subr.mxu0 %v1481
    %2920 = vmatpush1.msra.mxu0 %v1480
    %2921 = vmatprep.subr.mxu0 %v1485
    %2922 = vmatpush1.msra.mxu0 %v1484
    %2923 = vmatprep.subr.mxu0 %v1489
    %2924 = vmatpush1.msra.mxu0 %v1488
    %2925 = vmatprep.subr.mxu0 %v1493
    %2926 = vmatpush1.msra.mxu0 %v1492
    %2927 = vmatprep.subr.mxu0 0.0
    %2928 = vmatpush1.msra.mxu0 0.0
    %2929 = vmatprep.subr.mxu0 0.0
    %2930 = vmatpush1.msra.mxu0 0.0
    %2931 = vmatprep.subr.mxu0 0.0
    %2932 = vmatpush1.msra.mxu0 0.0
    %2933 = vmatprep.subr.mxu0 0.0
    %2934 = vmatpush1.msra.mxu0 0.0
    %2935 = vmatprep.subr.mxu0 0.0
    %2936 = vmatpush1.msra.mxu0 0.0
    %2937 = vmatprep.subr.mxu0 0.0
    %2938 = vmatpush1.msra.mxu0 0.0
    %2939 = vmatprep.subr.mxu0 0.0
    %2940 = vmatpush1.msra.mxu0 0.0
    %2941 = vmatprep.subr.mxu0 0.0
    %2942 = vmatpush1.msra.mxu0 0.0
    %2943 = vmatprep.subr.mxu0 0.0
    %2944 = vmatpush1.msra.mxu0 0.0
    %2945 = vmatprep.subr.mxu0 0.0
    %2946 = vmatpush1.msra.mxu0 0.0
    %2947 = vmatprep.subr.mxu0 0.0
    %2948 = vmatpush1.msra.mxu0 0.0
    %2949 = vmatprep.subr.mxu0 0.0
    %2950 = vmatpush1.msra.mxu0 0.0
    %2951 = vmatprep.subr.mxu0 0.0
    %2952 = vmatpush1.msra.mxu0 0.0
    %2953 = vmatprep.subr.mxu0 0.0
    %2954 = vmatpush1.msra.mxu0 0.0
    %2955 = vmatprep.subr.mxu0 0.0
    %2956 = vmatpush1.msra.mxu0 0.0
    %2957 = vmatprep.subr.mxu0 0.0
    %2958 = vmatpush1.msra.mxu0 0.0
    %2959 = vmatprep.subr.mxu0 0.0
    %2960 = vmatpush1.msra.mxu0 0.0
    %2961 = vmatprep.subr.mxu0 0.0
    %2962 = vmatpush1.msra.mxu0 0.0
    %2963 = vmatprep.subr.mxu0 0.0
    %2964 = vmatpush1.msra.mxu0 0.0
    %2965 = vmatprep.subr.mxu0 0.0
    %2966 = vmatpush1.msra.mxu0 0.0
    %2967 = vmatprep.subr.mxu0 0.0
    %2968 = vmatpush1.msra.mxu0 0.0
    %2969 = vmatprep.subr.mxu0 0.0
    %2970 = vmatpush1.msra.mxu0 0.0
    %2971 = vmatprep.subr.mxu0 0.0
    %2972 = vmatpush1.msra.mxu0 0.0
    %2973 = vmatprep.subr.mxu0 0.0
    %2974 = vmatpush1.msra.mxu0 0.0
    %2975 = vmatprep.mubr.f32.mxu0 0.0
    %2976 = vmatmul.mubr.f32.gmra.mrb[0].mxu0 %v2830
    %v2977 = vpop.f32.mrb[0].mxu0
    %v2978 = vadd.f32 0.0, %v2977
    %v2979 = vpop.f32.mrb[0].mxu0
    %v2980 = vadd.f32 0.0, %v2979
    %2981 = vmatprep.mubr.f32.mxu0 0.0
    %2982 = vmatmul.mubr.f32.gmra.mrb[0].mxu0 %v2832
    %v2983 = vpop.f32.mrb[0].mxu0
    %v2984 = vadd.f32 0.0, %v2983
    %v2985 = vpop.f32.mrb[0].mxu0
    %v2986 = vadd.f32 0.0, %v2985
    %2987 = vdwg.mxu0
    %v2988 = vadd.f32 %v2819, %v2901
    %v2989 = vadd.f32 %v2820, %v2903
    %v2990 = vadd.f32 %v2821, %v2978
    %v2991 = vadd.f32 %v2822, %v2980
    %v2992 = vadd.f32 %v2823, %v2907
    %v2993 = vadd.f32 %v2824, %v2909
    %v2994 = vadd.f32 %v2825, %v2984
    %v2995 = vadd.f32 %v2826, %v2986
    %v2996 = vadd.f32 %v2988, %v1668
    %v2997 = vadd.f32 %v2989, %v1672
    %v2998 = vadd.f32 %v2990, %v1676
    %v2999 = vadd.f32 %v2991, %v1680
    %v3000 = vadd.f32 %v2992, %v1668
    %v3001 = vadd.f32 %v2993, %v1672
    %v3002 = vadd.f32 %v2994, %v1676
    %v3003 = vadd.f32 %v2995, %v1680
    %v3004 = vmax.f32 %v2996, 0.0
    %v3005 = vmax.f32 %v2997, 0.0
    %v3006 = vmax.f32 %v2998, 0.0
    %v3007 = vmax.f32 %v2999, 0.0
    %v3008 = vmax.f32 %v3000, 0.0
    %v3009 = vmax.f32 %v3001, 0.0
    %v3010 = vmax.f32 %v3002, 0.0
    %v3011 = vmax.f32 %v3003, 0.0
    %v3012 = vld [vmem:[%s4] sm:$0xff]
    %v3013 = vld [vmem:[%s4 + $0x8] sm:$0xff]
    %v3014 = vld [vmem:[%s4 + $0x10] sm:$0xff]
    %v3015 = vld [vmem:[%s4 + $0x18] sm:$0xff]
    %v3016 = vld [vmem:[%s4 + $0x20] sm:$0xff]
    %v3017 = vld [vmem:[%s4 + $0x28] sm:$0xff]
    %v3018 = vld [vmem:[%s4 + $0x30] sm:$0xff]
    %v3019 = vld [vmem:[%s4 + $0x38] sm:$0xff]
    %v3020 = vld [vmem:[%s4 + $0x40] sm:$0xff]
    %v3021 = vld [vmem:[%s4 + $0x48] sm:$0xff]
    %v3022 = vld [vmem:[%s4 + $0x50] sm:$0xff]
    %v3023 = vld [vmem:[%s4 + $0x58] sm:$0xff]
    %v3024 = vld [vmem:[%s4 + $0x60] sm:$0xff]
    %v3025 = vld [vmem:[%s4 + $0x68] sm:$0xff]
    %v3026 = vld [vmem:[%s4 + $0x70] sm:$0xff]
    %v3027 = vld [vmem:[%s4 + $0x78] sm:$0xff]
    %v3028 = vld [vmem:[%s4 + $0x80] sm:$0xff]
    %v3029 = vld [vmem:[%s4 + $0x88] sm:$0xff]
    %v3030 = vld [vmem:[%s4 + $0x90] sm:$0xff]
    %v3031 = vld [vmem:[%s4 + $0x98] sm:$0xff]
    %v3032 = vld [vmem:[%s4 + $0xa0] sm:$0xff]
    %v3033 = vld [vmem:[%s4 + $0xa8] sm:$0xff]
    %v3034 = vld [vmem:[%s4 + $0xb0] sm:$0xff]
    %v3035 = vld [vmem:[%s4 + $0xb8] sm:$0xff]
    %v3036 = vld [vmem:[%s4 + $0xc0] sm:$0xff]
    %v3037 = vld [vmem:[%s4 + $0xc8] sm:$0xff]
    %v3038 = vld [vmem:[%s4 + $0xd0] sm:$0xff]
    %v3039 = vld [vmem:[%s4 + $0xd8] sm:$0xff]
    %v3040 = vld [vmem:[%s4 + $0xe0] sm:$0xff]
    %v3041 = vld [vmem:[%s4 + $0xe8] sm:$0xff]
    %v3042 = vld [vmem:[%s4 + $0xf0] sm:$0xff]
    %v3043 = vld [vmem:[%s4 + $0xf8] sm:$0xff]
    %v3044 = vld [vmem:[%s4 + $0x100] sm:$0xff]
    %v3045 = vld [vmem:[%s4 + $0x108] sm:$0xff]
    %v3046 = vld [vmem:[%s4 + $0x110] sm:$0xff]
    %v3047 = vld [vmem:[%s4 + $0x118] sm:$0xff]
    %v3048 = vld [vmem:[%s4 + $0x120] sm:$0xff]
    %v3049 = vld [vmem:[%s4 + $0x128] sm:$0xff]
    %v3050 = vld [vmem:[%s4 + $0x130] sm:$0xff]
    %v3051 = vld [vmem:[%s4 + $0x138] sm:$0xff]
    %v3052 = vld [vmem:[%s4 + $0x140] sm:$0xff]
    %v3053 = vld [vmem:[%s4 + $0x148] sm:$0xff]
    %v3054 = vld [vmem:[%s4 + $0x150] sm:$0xff]
    %v3055 = vld [vmem:[%s4 + $0x158] sm:$0xff]
    %v3056 = vld [vmem:[%s4 + $0x160] sm:$0xff]
    %v3057 = vld [vmem:[%s4 + $0x168] sm:$0xff]
    %v3058 = vld [vmem:[%s4 + $0x170] sm:$0xff]
    %v3059 = vld [vmem:[%s4 + $0x178] sm:$0xff]
    %v3060 = vld [vmem:[%s4 + $0x180] sm:$0xff]
    %v3061 = vld [vmem:[%s4 + $0x188] sm:$0xff]
    %v3062 = vld [vmem:[%s4 + $0x190] sm:$0xff]
    %v3063 = vld [vmem:[%s4 + $0x198] sm:$0xff]
    %v3064 = vld [vmem:[%s4 + $0x1a0] sm:$0xff]
    %v3065 = vld [vmem:[%s4 + $0x1a8] sm:$0xff]
    %v3066 = vld [vmem:[%s4 + $0x1b0] sm:$0xff]
    %v3067 = vld [vmem:[%s4 + $0x1b8] sm:$0xff]
    %v3068 = vld [vmem:[%s4 + $0x1c0] sm:$0xff]
    %v3069 = vld [vmem:[%s4 + $0x1c8] sm:$0xff]
    %v3070 = vld [vmem:[%s4 + $0x1d0] sm:$0xff]
    %v3071 = vld [vmem:[%s4 + $0x1d8] sm:$0xff]
    %v3072 = vld [vmem:[%s4 + $0x1e0] sm:$0xff]
    %v3073 = vld [vmem:[%s4 + $0x1e8] sm:$0xff]
    %v3074 = vld [vmem:[%s4 + $0x1f0] sm:$0xff]
    %v3075 = vld [vmem:[%s4 + $0x1f8] sm:$0xff]
    %v3076 = vld [vmem:[%s4 + $0x200] sm:$0xff]
    %v3077 = vld [vmem:[%s4 + $0x208] sm:$0xff]
    %v3078 = vld [vmem:[%s4 + $0x210] sm:$0xff]
    %v3079 = vld [vmem:[%s4 + $0x218] sm:$0xff]
    %v3080 = vld [vmem:[%s4 + $0x220] sm:$0xff]
    %v3081 = vld [vmem:[%s4 + $0x228] sm:$0xff]
    %v3082 = vld [vmem:[%s4 + $0x230] sm:$0xff]
    %v3083 = vld [vmem:[%s4 + $0x238] sm:$0xff]
    %v3084 = vld [vmem:[%s4 + $0x240] sm:$0xff]
    %v3085 = vld [vmem:[%s4 + $0x248] sm:$0xff]
    %v3086 = vld [vmem:[%s4 + $0x250] sm:$0xff]
    %v3087 = vld [vmem:[%s4 + $0x258] sm:$0xff]
    %v3088 = vld [vmem:[%s4 + $0x260] sm:$0xff]
    %v3089 = vld [vmem:[%s4 + $0x268] sm:$0xff]
    %v3090 = vld [vmem:[%s4 + $0x270] sm:$0xff]
    %v3091 = vld [vmem:[%s4 + $0x278] sm:$0xff]
    %v3092 = vld [vmem:[%s4 + $0x280] sm:$0xff]
    %v3093 = vld [vmem:[%s4 + $0x288] sm:$0xff]
    %v3094 = vld [vmem:[%s4 + $0x290] sm:$0xff]
    %v3095 = vld [vmem:[%s4 + $0x298] sm:$0xff]
    %v3096 = vld [vmem:[%s4 + $0x2a0] sm:$0xff]
    %v3097 = vld [vmem:[%s4 + $0x2a8] sm:$0xff]
    %v3098 = vld [vmem:[%s4 + $0x2b0] sm:$0xff]
    %v3099 = vld [vmem:[%s4 + $0x2b8] sm:$0xff]
    %v3100 = vld [vmem:[%s4 + $0x2c0] sm:$0xff]
    %v3101 = vld [vmem:[%s4 + $0x2c8] sm:$0xff]
    %v3102 = vld [vmem:[%s4 + $0x2d0] sm:$0xff]
    %v3103 = vld [vmem:[%s4 + $0x2d8] sm:$0xff]
    %v3104 = vld [vmem:[%s4 + $0x2e0] sm:$0xff]
    %v3105 = vld [vmem:[%s4 + $0x2e8] sm:$0xff]
    %v3106 = vld [vmem:[%s4 + $0x2f0] sm:$0xff]
    %v3107 = vld [vmem:[%s4 + $0x2f8] sm:$0xff]
    %v3108 = vld [vmem:[%s4 + $0x300] sm:$0xff]
    %v3109 = vld [vmem:[%s4 + $0x308] sm:$0xff]
    %v3110 = vld [vmem:[%s4 + $0x310] sm:$0xff]
    %v3111 = vld [vmem:[%s4 + $0x318] sm:$0xff]
    %v3112 = vld [vmem:[%s4 + $0x320] sm:$0xff]
    %v3113 = vld [vmem:[%s4 + $0x328] sm:$0xff]
    %v3114 = vld [vmem:[%s4 + $0x330] sm:$0xff]
    %v3115 = vld [vmem:[%s4 + $0x338] sm:$0xff]
    %v3116 = vld [vmem:[%s4 + $0x340] sm:$0xff]
    %v3117 = vld [vmem:[%s4 + $0x348] sm:$0xff]
    %v3118 = vld [vmem:[%s4 + $0x350] sm:$0xff]
    %v3119 = vld [vmem:[%s4 + $0x358] sm:$0xff]
    %v3120 = vld [vmem:[%s4 + $0x360] sm:$0xff]
    %v3121 = vld [vmem:[%s4 + $0x368] sm:$0xff]
    %v3122 = vld [vmem:[%s4 + $0x370] sm:$0xff]
    %v3123 = vld [vmem:[%s4 + $0x378] sm:$0xff]
    %v3124 = vld [vmem:[%s4 + $0x380] sm:$0xff]
    %v3125 = vld [vmem:[%s4 + $0x388] sm:$0xff]
    %v3126 = vld [vmem:[%s4 + $0x390] sm:$0xff]
    %v3127 = vld [vmem:[%s4 + $0x398] sm:$0xff]
    %v3128 = vld [vmem:[%s4 + $0x3a0] sm:$0xff]
    %v3129 = vld [vmem:[%s4 + $0x3a8] sm:$0xff]
    %v3130 = vld [vmem:[%s4 + $0x3b0] sm:$0xff]
    %v3131 = vld [vmem:[%s4 + $0x3b8] sm:$0xff]
    %v3132 = vld [vmem:[%s4 + $0x3c0] sm:$0xff]
    %v3133 = vld [vmem:[%s4 + $0x3c8] sm:$0xff]
    %v3134 = vld [vmem:[%s4 + $0x3d0] sm:$0xff]
    %v3135 = vld [vmem:[%s4 + $0x3d8] sm:$0xff]
    %v3136 = vld [vmem:[%s4 + $0x3e0] sm:$0xff]
    %v3137 = vld [vmem:[%s4 + $0x3e8] sm:$0xff]
    %v3138 = vld [vmem:[%s4 + $0x3f0] sm:$0xff]
    %v3139 = vld [vmem:[%s4 + $0x3f8] sm:$0xff]
    %v3140 = vld [vmem:[%s4 + $0x400] sm:$0xff]
    %v3141 = vld [vmem:[%s4 + $0x408] sm:$0xff]
    %v3142 = vld [vmem:[%s4 + $0x410] sm:$0xff]
    %v3143 = vld [vmem:[%s4 + $0x418] sm:$0xff]
    %v3144 = vld [vmem:[%s4 + $0x420] sm:$0xff]
    %v3145 = vld [vmem:[%s4 + $0x428] sm:$0xff]
    %v3146 = vld [vmem:[%s4 + $0x430] sm:$0xff]
    %v3147 = vld [vmem:[%s4 + $0x438] sm:$0xff]
    %v3148 = vld [vmem:[%s4 + $0x440] sm:$0xff]
    %v3149 = vld [vmem:[%s4 + $0x448] sm:$0xff]
    %v3150 = vld [vmem:[%s4 + $0x450] sm:$0xff]
    %v3151 = vld [vmem:[%s4 + $0x458] sm:$0xff]
    %v3152 = vld [vmem:[%s4 + $0x460] sm:$0xff]
    %v3153 = vld [vmem:[%s4 + $0x468] sm:$0xff]
    %v3154 = vld [vmem:[%s4 + $0x470] sm:$0xff]
    %v3155 = vld [vmem:[%s4 + $0x478] sm:$0xff]
    %v3156 = vld [vmem:[%s4 + $0x480] sm:$0xff]
    %v3157 = vld [vmem:[%s4 + $0x488] sm:$0xff]
    %v3158 = vld [vmem:[%s4 + $0x490] sm:$0xff]
    %v3159 = vld [vmem:[%s4 + $0x498] sm:$0xff]
    %v3160 = vld [vmem:[%s4 + $0x4a0] sm:$0xff]
    %v3161 = vld [vmem:[%s4 + $0x4a8] sm:$0xff]
    %v3162 = vld [vmem:[%s4 + $0x4b0] sm:$0xff]
    %v3163 = vld [vmem:[%s4 + $0x4b8] sm:$0xff]
    %v3164 = vld [vmem:[%s4 + $0x4c0] sm:$0xff]
    %v3165 = vld [vmem:[%s4 + $0x4c8] sm:$0xff]
    %v3166 = vld [vmem:[%s4 + $0x4d0] sm:$0xff]
    %v3167 = vld [vmem:[%s4 + $0x4d8] sm:$0xff]
    %s3168 = scalar_lea.vmem %s4, 1248
    %v3169 = vld [vmem:[%s3168] sm:$0xff]
    %v3170 = vld [vmem:[%s3168 + $0x8] sm:$0xff]
    %v3171 = vld [vmem:[%s3168 + $0x10] sm:$0xff]
    %v3172 = vld [vmem:[%s3168 + $0x18] sm:$0xff]
    %v3173 = vld [vmem:[%s3168 + $0x20] sm:$0xff]
    %v3174 = vld [vmem:[%s3168 + $0x28] sm:$0xff]
    %v3175 = vld [vmem:[%s3168 + $0x30] sm:$0xff]
    %v3176 = vld [vmem:[%s3168 + $0x38] sm:$0xff]
    %v3177 = vld [vmem:[%s3168 + $0x40] sm:$0xff]
    %v3178 = vld [vmem:[%s3168 + $0x48] sm:$0xff]
    %v3179 = vld [vmem:[%s3168 + $0x50] sm:$0xff]
    %v3180 = vld [vmem:[%s3168 + $0x58] sm:$0xff]
    %v3181 = vld [vmem:[%s3168 + $0x60] sm:$0xff]
    %v3182 = vld [vmem:[%s3168 + $0x68] sm:$0xff]
    %v3183 = vld [vmem:[%s3168 + $0x70] sm:$0xff]
    %v3184 = vld [vmem:[%s3168 + $0x78] sm:$0xff]
    %v3185 = vld [vmem:[%s3168 + $0x80] sm:$0xff]
    %v3186 = vld [vmem:[%s3168 + $0x88] sm:$0xff]
    %v3187 = vld [vmem:[%s3168 + $0x90] sm:$0xff]
    %v3188 = vld [vmem:[%s3168 + $0x98] sm:$0xff]
    %v3189 = vld [vmem:[%s3168 + $0xa0] sm:$0xff]
    %v3190 = vld [vmem:[%s3168 + $0xa8] sm:$0xff]
    %v3191 = vld [vmem:[%s3168 + $0xb0] sm:$0xff]
    %v3192 = vld [vmem:[%s3168 + $0xb8] sm:$0xff]
    %v3193 = vld [vmem:[%s3168 + $0xc0] sm:$0xff]
    %v3194 = vld [vmem:[%s3168 + $0xc8] sm:$0xff]
    %v3195 = vld [vmem:[%s3168 + $0xd0] sm:$0xff]
    %v3196 = vld [vmem:[%s3168 + $0xd8] sm:$0xff]
    %v3197 = vld [vmem:[%s3168 + $0xe0] sm:$0xff]
    %v3198 = vld [vmem:[%s3168 + $0xe8] sm:$0xff]
    %v3199 = vld [vmem:[%s3168 + $0xf0] sm:$0xff]
    %v3200 = vld [vmem:[%s3168 + $0xf8] sm:$0xff]
    %v3201 = vld [vmem:[%s3168 + $0x100] sm:$0xff]
    %v3202 = vld [vmem:[%s3168 + $0x108] sm:$0xff]
    %v3203 = vld [vmem:[%s3168 + $0x110] sm:$0xff]
    %v3204 = vld [vmem:[%s3168 + $0x118] sm:$0xff]
    %v3205 = vld [vmem:[%s3168 + $0x120] sm:$0xff]
    %v3206 = vld [vmem:[%s3168 + $0x128] sm:$0xff]
    %v3207 = vld [vmem:[%s3168 + $0x130] sm:$0xff]
    %v3208 = vld [vmem:[%s3168 + $0x138] sm:$0xff]
    %v3209 = vld [vmem:[%s3168 + $0x140] sm:$0xff]
    %v3210 = vld [vmem:[%s3168 + $0x148] sm:$0xff]
    %v3211 = vld [vmem:[%s3168 + $0x150] sm:$0xff]
    %v3212 = vld [vmem:[%s3168 + $0x158] sm:$0xff]
    %v3213 = vld [vmem:[%s3168 + $0x160] sm:$0xff]
    %v3214 = vld [vmem:[%s3168 + $0x168] sm:$0xff]
    %v3215 = vld [vmem:[%s3168 + $0x170] sm:$0xff]
    %v3216 = vld [vmem:[%s3168 + $0x178] sm:$0xff]
    %v3217 = vld [vmem:[%s3168 + $0x180] sm:$0xff]
    %v3218 = vld [vmem:[%s3168 + $0x188] sm:$0xff]
    %v3219 = vld [vmem:[%s3168 + $0x190] sm:$0xff]
    %v3220 = vld [vmem:[%s3168 + $0x198] sm:$0xff]
    %v3221 = vld [vmem:[%s3168 + $0x1a0] sm:$0xff]
    %v3222 = vld [vmem:[%s3168 + $0x1a8] sm:$0xff]
    %v3223 = vld [vmem:[%s3168 + $0x1b0] sm:$0xff]
    %v3224 = vld [vmem:[%s3168 + $0x1b8] sm:$0xff]
    %v3225 = vld [vmem:[%s3168 + $0x1c0] sm:$0xff]
    %v3226 = vld [vmem:[%s3168 + $0x1c8] sm:$0xff]
    %v3227 = vld [vmem:[%s3168 + $0x1d0] sm:$0xff]
    %v3228 = vld [vmem:[%s3168 + $0x1d8] sm:$0xff]
    %v3229 = vld [vmem:[%s3168 + $0x1e0] sm:$0xff]
    %v3230 = vld [vmem:[%s3168 + $0x1e8] sm:$0xff]
    %v3231 = vld [vmem:[%s3168 + $0x1f0] sm:$0xff]
    %v3232 = vld [vmem:[%s3168 + $0x1f8] sm:$0xff]
    %v3233 = vld [vmem:[%s3168 + $0x200] sm:$0xff]
    %v3234 = vld [vmem:[%s3168 + $0x208] sm:$0xff]
    %v3235 = vld [vmem:[%s3168 + $0x210] sm:$0xff]
    %v3236 = vld [vmem:[%s3168 + $0x218] sm:$0xff]
    %v3237 = vld [vmem:[%s3168 + $0x220] sm:$0xff]
    %v3238 = vld [vmem:[%s3168 + $0x228] sm:$0xff]
    %v3239 = vld [vmem:[%s3168 + $0x230] sm:$0xff]
    %v3240 = vld [vmem:[%s3168 + $0x238] sm:$0xff]
    %v3241 = vld [vmem:[%s3168 + $0x240] sm:$0xff]
    %v3242 = vld [vmem:[%s3168 + $0x248] sm:$0xff]
    %v3243 = vld [vmem:[%s3168 + $0x250] sm:$0xff]
    %v3244 = vld [vmem:[%s3168 + $0x258] sm:$0xff]
    %v3245 = vld [vmem:[%s3168 + $0x260] sm:$0xff]
    %v3246 = vld [vmem:[%s3168 + $0x268] sm:$0xff]
    %v3247 = vld [vmem:[%s3168 + $0x270] sm:$0xff]
    %v3248 = vld [vmem:[%s3168 + $0x278] sm:$0xff]
    %v3249 = vld [vmem:[%s3168 + $0x280] sm:$0xff]
    %v3250 = vld [vmem:[%s3168 + $0x288] sm:$0xff]
    %v3251 = vld [vmem:[%s3168 + $0x290] sm:$0xff]
    %v3252 = vld [vmem:[%s3168 + $0x298] sm:$0xff]
    %v3253 = vld [vmem:[%s3168 + $0x2a0] sm:$0xff]
    %v3254 = vld [vmem:[%s3168 + $0x2a8] sm:$0xff]
    %v3255 = vld [vmem:[%s3168 + $0x2b0] sm:$0xff]
    %v3256 = vld [vmem:[%s3168 + $0x2b8] sm:$0xff]
    %v3257 = vld [vmem:[%s3168 + $0x2c0] sm:$0xff]
    %v3258 = vld [vmem:[%s3168 + $0x2c8] sm:$0xff]
    %v3259 = vld [vmem:[%s3168 + $0x2d0] sm:$0xff]
    %v3260 = vld [vmem:[%s3168 + $0x2d8] sm:$0xff]
    %v3261 = vld [vmem:[%s3168 + $0x2e0] sm:$0xff]
    %v3262 = vld [vmem:[%s3168 + $0x2e8] sm:$0xff]
    %v3263 = vld [vmem:[%s3168 + $0x2f0] sm:$0xff]
    %v3264 = vld [vmem:[%s3168 + $0x2f8] sm:$0xff]
    %v3265 = vld [vmem:[%s3168 + $0x300] sm:$0xff]
    %v3266 = vld [vmem:[%s3168 + $0x308] sm:$0xff]
    %v3267 = vld [vmem:[%s3168 + $0x310] sm:$0xff]
    %v3268 = vld [vmem:[%s3168 + $0x318] sm:$0xff]
    %v3269 = vld [vmem:[%s3168 + $0x320] sm:$0xff]
    %v3270 = vld [vmem:[%s3168 + $0x328] sm:$0xff]
    %v3271 = vld [vmem:[%s3168 + $0x330] sm:$0xff]
    %v3272 = vld [vmem:[%s3168 + $0x338] sm:$0xff]
    %v3273 = vld [vmem:[%s3168 + $0x340] sm:$0xff]
    %v3274 = vld [vmem:[%s3168 + $0x348] sm:$0xff]
    %v3275 = vld [vmem:[%s3168 + $0x350] sm:$0xff]
    %v3276 = vld [vmem:[%s3168 + $0x358] sm:$0xff]
    %v3277 = vld [vmem:[%s3168 + $0x360] sm:$0xff]
    %v3278 = vld [vmem:[%s3168 + $0x368] sm:$0xff]
    %v3279 = vld [vmem:[%s3168 + $0x370] sm:$0xff]
    %v3280 = vld [vmem:[%s3168 + $0x378] sm:$0xff]
    %v3281 = vld [vmem:[%s3168 + $0x380] sm:$0xff]
    %v3282 = vld [vmem:[%s3168 + $0x388] sm:$0xff]
    %v3283 = vld [vmem:[%s3168 + $0x390] sm:$0xff]
    %v3284 = vld [vmem:[%s3168 + $0x398] sm:$0xff]
    %v3285 = vld [vmem:[%s3168 + $0x3a0] sm:$0xff]
    %v3286 = vld [vmem:[%s3168 + $0x3a8] sm:$0xff]
    %v3287 = vld [vmem:[%s3168 + $0x3b0] sm:$0xff]
    %v3288 = vld [vmem:[%s3168 + $0x3b8] sm:$0xff]
    %v3289 = vld [vmem:[%s3168 + $0x3c0] sm:$0xff]
    %v3290 = vld [vmem:[%s3168 + $0x3c8] sm:$0xff]
    %v3291 = vld [vmem:[%s3168 + $0x3d0] sm:$0xff]
    %v3292 = vld [vmem:[%s3168 + $0x3d8] sm:$0xff]
    %v3293 = vld [vmem:[%s3168 + $0x3e0] sm:$0xff]
    %v3294 = vld [vmem:[%s3168 + $0x3e8] sm:$0xff]
    %v3295 = vld [vmem:[%s3168 + $0x3f0] sm:$0xff]
    %v3296 = vld [vmem:[%s3168 + $0x3f8] sm:$0xff]
    %v3297 = vld [vmem:[%s3168 + $0x400] sm:$0xff]
    %v3298 = vld [vmem:[%s3168 + $0x408] sm:$0xff]
    %v3299 = vld [vmem:[%s3168 + $0x410] sm:$0xff]
    %v3300 = vld [vmem:[%s3168 + $0x418] sm:$0xff]
    %v3301 = vld [vmem:[%s3168 + $0x420] sm:$0xff]
    %v3302 = vld [vmem:[%s3168 + $0x428] sm:$0xff]
    %v3303 = vld [vmem:[%s3168 + $0x430] sm:$0xff]
    %v3304 = vld [vmem:[%s3168 + $0x438] sm:$0xff]
    %v3305 = vld [vmem:[%s3168 + $0x440] sm:$0xff]
    %v3306 = vld [vmem:[%s3168 + $0x448] sm:$0xff]
    %v3307 = vld [vmem:[%s3168 + $0x450] sm:$0xff]
    %v3308 = vld [vmem:[%s3168 + $0x458] sm:$0xff]
    %v3309 = vld [vmem:[%s3168 + $0x460] sm:$0xff]
    %v3310 = vld [vmem:[%s3168 + $0x468] sm:$0xff]
    %v3311 = vld [vmem:[%s3168 + $0x470] sm:$0xff]
    %v3312 = vld [vmem:[%s3168 + $0x478] sm:$0xff]
    %v3313 = vld [vmem:[%s3168 + $0x480] sm:$0xff]
    %v3314 = vld [vmem:[%s3168 + $0x488] sm:$0xff]
    %v3315 = vld [vmem:[%s3168 + $0x490] sm:$0xff]
    %v3316 = vld [vmem:[%s3168 + $0x498] sm:$0xff]
    %v3317 = vld [vmem:[%s3168 + $0x4a0] sm:$0xff]
    %v3318 = vld [vmem:[%s3168 + $0x4a8] sm:$0xff]
    %v3319 = vld [vmem:[%s3168 + $0x4b0] sm:$0xff]
    %v3320 = vld [vmem:[%s3168 + $0x4b8] sm:$0xff]
    %v3321 = vld [vmem:[%s3168 + $0x4c0] sm:$0xff]
    %v3322 = vld [vmem:[%s3168 + $0x4c8] sm:$0xff]
    %v3323 = vld [vmem:[%s3168 + $0x4d0] sm:$0xff]
    %v3324 = vld [vmem:[%s3168 + $0x4d8] sm:$0xff]
    %vm3325 = vcmask 261120
    %v3327 = vsel %vm3325, %v3007, 0
    %v3330 = vsel %vm3325, %v3011, 0
    %3332 = vmatprep.subr.mxu0 %v3170
    %3333 = vmatpush1.msra.mxu0 %v3169
    %3334 = vmatprep.subr.mxu0 %v3173
    %3335 = vmatpush1.msra.mxu0 %v3172
    %3336 = vmatprep.subr.mxu0 %v3176
    %3337 = vmatpush1.msra.mxu0 %v3175
    %3338 = vmatprep.subr.mxu0 %v3179
    %3339 = vmatpush1.msra.mxu0 %v3178
    %3340 = vmatprep.subr.mxu0 %v3182
    %3341 = vmatpush1.msra.mxu0 %v3181
    %3342 = vmatprep.subr.mxu0 %v3185
    %3343 = vmatpush1.msra.mxu0 %v3184
    %3344 = vmatprep.subr.mxu0 %v3188
    %3345 = vmatpush1.msra.mxu0 %v3187
    %3346 = vmatprep.subr.mxu0 %v3191
    %3347 = vmatpush1.msra.mxu0 %v3190
    %3348 = vmatprep.subr.mxu0 %v3194
    %3349 = vmatpush1.msra.mxu0 %v3193
    %3350 = vmatprep.subr.mxu0 %v3197
    %3351 = vmatpush1.msra.mxu0 %v3196
    %3352 = vmatprep.subr.mxu0 %v3200
    %3353 = vmatpush1.msra.mxu0 %v3199
    %3354 = vmatprep.subr.mxu0 %v3203
    %3355 = vmatpush1.msra.mxu0 %v3202
    %3356 = vmatprep.subr.mxu0 %v3206
    %3357 = vmatpush1.msra.mxu0 %v3205
    %3358 = vmatprep.subr.mxu0 %v3209
    %3359 = vmatpush1.msra.mxu0 %v3208
    %3360 = vmatprep.subr.mxu0 %v3212
    %3361 = vmatpush1.msra.mxu0 %v3211
    %3362 = vmatprep.subr.mxu0 %v3215
    %3363 = vmatpush1.msra.mxu0 %v3214
    %3364 = vmatprep.subr.mxu0 %v3218
    %3365 = vmatpush1.msra.mxu0 %v3217
    %3366 = vmatprep.subr.mxu0 %v3221
    %3367 = vmatpush1.msra.mxu0 %v3220
    %3368 = vmatprep.subr.mxu0 %v3224
    %3369 = vmatpush1.msra.mxu0 %v3223
    %3370 = vmatprep.subr.mxu0 %v3227
    %3371 = vmatpush1.msra.mxu0 %v3226
    %3372 = vmatprep.subr.mxu0 %v3230
    %3373 = vmatpush1.msra.mxu0 %v3229
    %3374 = vmatprep.subr.mxu0 %v3233
    %3375 = vmatpush1.msra.mxu0 %v3232
    %3376 = vmatprep.subr.mxu0 %v3236
    %3377 = vmatpush1.msra.mxu0 %v3235
    %3378 = vmatprep.subr.mxu0 %v3239
    %3379 = vmatpush1.msra.mxu0 %v3238
    %3380 = vmatprep.subr.mxu0 %v3242
    %3381 = vmatpush1.msra.mxu0 %v3241
    %3382 = vmatprep.subr.mxu0 %v3245
    %3383 = vmatpush1.msra.mxu0 %v3244
    %3384 = vmatprep.subr.mxu0 %v3248
    %3385 = vmatpush1.msra.mxu0 %v3247
    %3386 = vmatprep.subr.mxu0 %v3251
    %3387 = vmatpush1.msra.mxu0 %v3250
    %3388 = vmatprep.subr.mxu0 %v3254
    %3389 = vmatpush1.msra.mxu0 %v3253
    %3390 = vmatprep.subr.mxu0 %v3257
    %3391 = vmatpush1.msra.mxu0 %v3256
    %3392 = vmatprep.subr.mxu0 %v3260
    %3393 = vmatpush1.msra.mxu0 %v3259
    %3394 = vmatprep.subr.mxu0 %v3263
    %3395 = vmatpush1.msra.mxu0 %v3262
    %3396 = vmatprep.mubr.f32.mxu0 %v3005
    %3397 = vmatmul.mubr.f32.gmra.mrb[0].mxu0 %v3004
    %v3398 = vpop.f32.mrb[0].mxu0
    %v3399 = vadd.f32 0.0, %v3398
    %v3400 = vpop.f32.mrb[0].mxu0
    %v3401 = vadd.f32 0.0, %v3400
    %3402 = vmatprep.mubr.f32.mxu0 %v3009
    %3403 = vmatmul.mubr.f32.gmra.mrb[0].mxu0 %v3008
    %v3404 = vpop.f32.mrb[0].mxu0
    %v3405 = vadd.f32 0.0, %v3404
    %v3406 = vpop.f32.mrb[0].mxu0
    %v3407 = vadd.f32 0.0, %v3406
    %3408 = vdwg.mxu0
    %3409 = vmatprep.subr.mxu0 %v3266
    %3410 = vmatpush1.msra.mxu0 %v3265
    %3411 = vmatprep.subr.mxu0 %v3269
    %3412 = vmatpush1.msra.mxu0 %v3268
    %3413 = vmatprep.subr.mxu0 %v3272
    %3414 = vmatpush1.msra.mxu0 %v3271
    %3415 = vmatprep.subr.mxu0 %v3275
    %3416 = vmatpush1.msra.mxu0 %v3274
    %3417 = vmatprep.subr.mxu0 %v3278
    %3418 = vmatpush1.msra.mxu0 %v3277
    %3419 = vmatprep.subr.mxu0 %v3281
    %3420 = vmatpush1.msra.mxu0 %v3280
    %3421 = vmatprep.subr.mxu0 %v3284
    %3422 = vmatpush1.msra.mxu0 %v3283
    %3423 = vmatprep.subr.mxu0 %v3287
    %3424 = vmatpush1.msra.mxu0 %v3286
    %3425 = vmatprep.subr.mxu0 %v3290
    %3426 = vmatpush1.msra.mxu0 %v3289
    %3427 = vmatprep.subr.mxu0 %v3293
    %3428 = vmatpush1.msra.mxu0 %v3292
    %3429 = vmatprep.subr.mxu0 %v3296
    %3430 = vmatpush1.msra.mxu0 %v3295
    %3431 = vmatprep.subr.mxu0 %v3299
    %3432 = vmatpush1.msra.mxu0 %v3298
    %3433 = vmatprep.subr.mxu0 %v3302
    %3434 = vmatpush1.msra.mxu0 %v3301
    %3435 = vmatprep.subr.mxu0 %v3305
    %3436 = vmatpush1.msra.mxu0 %v3304
    %3437 = vmatprep.subr.mxu0 %v3308
    %3438 = vmatpush1.msra.mxu0 %v3307
    %3439 = vmatprep.subr.mxu0 %v3311
    %3440 = vmatpush1.msra.mxu0 %v3310
    %3441 = vmatprep.subr.mxu0 %v3314
    %3442 = vmatpush1.msra.mxu0 %v3313
    %3443 = vmatprep.subr.mxu0 %v3317
    %3444 = vmatpush1.msra.mxu0 %v3316
    %3445 = vmatprep.subr.mxu0 %v3320
    %3446 = vmatpush1.msra.mxu0 %v3319
    %3447 = vmatprep.subr.mxu0 %v3323
    %3448 = vmatpush1.msra.mxu0 %v3322
    %3449 = vmatprep.subr.mxu0 0.0
    %3450 = vmatpush1.msra.mxu0 0.0
    %3451 = vmatprep.subr.mxu0 0.0
    %3452 = vmatpush1.msra.mxu0 0.0
    %3453 = vmatprep.subr.mxu0 0.0
    %3454 = vmatpush1.msra.mxu0 0.0
    %3455 = vmatprep.subr.mxu0 0.0
    %3456 = vmatpush1.msra.mxu0 0.0
    %3457 = vmatprep.subr.mxu0 0.0
    %3458 = vmatpush1.msra.mxu0 0.0
    %3459 = vmatprep.subr.mxu0 0.0
    %3460 = vmatpush1.msra.mxu0 0.0
    %3461 = vmatprep.subr.mxu0 0.0
    %3462 = vmatpush1.msra.mxu0 0.0
    %3463 = vmatprep.subr.mxu0 0.0
    %3464 = vmatpush1.msra.mxu0 0.0
    %3465 = vmatprep.subr.mxu0 0.0
    %3466 = vmatpush1.msra.mxu0 0.0
    %3467 = vmatprep.subr.mxu0 0.0
    %3468 = vmatpush1.msra.mxu0 0.0
    %3469 = vmatprep.subr.mxu0 0.0
    %3470 = vmatpush1.msra.mxu0 0.0
    %3471 = vmatprep.subr.mxu0 0.0
    %3472 = vmatpush1.msra.mxu0 0.0
    %3473 = vmatprep.mubr.f32.mxu0 %v3327
    %3474 = vmatmul.mubr.f32.gmra.mrb[0].mxu0 %v3006
    %v3475 = vpop.f32.mrb[0].mxu0
    %v3476 = vadd.f32 %v3399, %v3475
    %v3477 = vpop.f32.mrb[0].mxu0
    %v3478 = vadd.f32 %v3401, %v3477
    %3479 = vmatprep.mubr.f32.mxu0 %v3330
    %3480 = vmatmul.mubr.f32.gmra.mrb[0].mxu0 %v3010
    %v3481 = vpop.f32.mrb[0].mxu0
    %v3482 = vadd.f32 %v3405, %v3481
    %v3483 = vpop.f32.mrb[0].mxu0
    %v3484 = vadd.f32 %v3407, %v3483
    %3485 = vdwg.mxu0
    %3486 = vmatprep.subr.mxu0 0.0
    %3487 = vmatpush1.msra.mxu0 %v3171
    %3488 = vmatprep.subr.mxu0 0.0
    %3489 = vmatpush1.msra.mxu0 %v3174
    %3490 = vmatprep.subr.mxu0 0.0
    %3491 = vmatpush1.msra.mxu0 %v3177
    %3492 = vmatprep.subr.mxu0 0.0
    %3493 = vmatpush1.msra.mxu0 %v3180
    %3494 = vmatprep.subr.mxu0 0.0
    %3495 = vmatpush1.msra.mxu0 %v3183
    %3496 = vmatprep.subr.mxu0 0.0
    %3497 = vmatpush1.msra.mxu0 %v3186
    %3498 = vmatprep.subr.mxu0 0.0
    %3499 = vmatpush1.msra.mxu0 %v3189
    %3500 = vmatprep.subr.mxu0 0.0
    %3501 = vmatpush1.msra.mxu0 %v3192
    %3502 = vmatprep.subr.mxu0 0.0
    %3503 = vmatpush1.msra.mxu0 %v3195
    %3504 = vmatprep.subr.mxu0 0.0
    %3505 = vmatpush1.msra.mxu0 %v3198
    %3506 = vmatprep.subr.mxu0 0.0
    %3507 = vmatpush1.msra.mxu0 %v3201
    %3508 = vmatprep.subr.mxu0 0.0
    %3509 = vmatpush1.msra.mxu0 %v3204
    %3510 = vmatprep.subr.mxu0 0.0
    %3511 = vmatpush1.msra.mxu0 %v3207
    %3512 = vmatprep.subr.mxu0 0.0
    %3513 = vmatpush1.msra.mxu0 %v3210
    %3514 = vmatprep.subr.mxu0 0.0
    %3515 = vmatpush1.msra.mxu0 %v3213
    %3516 = vmatprep.subr.mxu0 0.0
    %3517 = vmatpush1.msra.mxu0 %v3216
    %3518 = vmatprep.subr.mxu0 0.0
    %3519 = vmatpush1.msra.mxu0 %v3219
    %3520 = vmatprep.subr.mxu0 0.0
    %3521 = vmatpush1.msra.mxu0 %v3222
    %3522 = vmatprep.subr.mxu0 0.0
    %3523 = vmatpush1.msra.mxu0 %v3225
    %3524 = vmatprep.subr.mxu0 0.0
    %3525 = vmatpush1.msra.mxu0 %v3228
    %3526 = vmatprep.subr.mxu0 0.0
    %3527 = vmatpush1.msra.mxu0 %v3231
    %3528 = vmatprep.subr.mxu0 0.0
    %3529 = vmatpush1.msra.mxu0 %v3234
    %3530 = vmatprep.subr.mxu0 0.0
    %3531 = vmatpush1.msra.mxu0 %v3237
    %3532 = vmatprep.subr.mxu0 0.0
    %3533 = vmatpush1.msra.mxu0 %v3240
    %3534 = vmatprep.subr.mxu0 0.0
    %3535 = vmatpush1.msra.mxu0 %v3243
    %3536 = vmatprep.subr.mxu0 0.0
    %3537 = vmatpush1.msra.mxu0 %v3246
    %3538 = vmatprep.subr.mxu0 0.0
    %3539 = vmatpush1.msra.mxu0 %v3249
    %3540 = vmatprep.subr.mxu0 0.0
    %3541 = vmatpush1.msra.mxu0 %v3252
    %3542 = vmatprep.subr.mxu0 0.0
    %3543 = vmatpush1.msra.mxu0 %v3255
    %3544 = vmatprep.subr.mxu0 0.0
    %3545 = vmatpush1.msra.mxu0 %v3258
    %3546 = vmatprep.subr.mxu0 0.0
    %3547 = vmatpush1.msra.mxu0 %v3261
    %3548 = vmatprep.subr.mxu0 0.0
    %3549 = vmatpush1.msra.mxu0 %v3264
    %3550 = vmatprep.mubr.f32.mxu0 %v3005
    %3551 = vmatmul.mubr.f32.gmra.mrb[0].mxu0 %v3004
    %v3552 = vpop.f32.mrb[0].mxu0
    %v3553 = vadd.f32 0.0, %v3552
    %v3554 = vpop.f32.mrb[0].mxu0
    %3555 = vmatprep.mubr.f32.mxu0 %v3009
    %3556 = vmatmul.mubr.f32.gmra.mrb[0].mxu0 %v3008
    %v3557 = vpop.f32.mrb[0].mxu0
    %v3558 = vadd.f32 0.0, %v3557
    %v3559 = vpop.f32.mrb[0].mxu0
    %3560 = vdwg.mxu0
    %3561 = vmatprep.subr.mxu0 0.0
    %3562 = vmatpush1.msra.mxu0 %v3267
    %3563 = vmatprep.subr.mxu0 0.0
    %3564 = vmatpush1.msra.mxu0 %v3270
    %3565 = vmatprep.subr.mxu0 0.0
    %3566 = vmatpush1.msra.mxu0 %v3273
    %3567 = vmatprep.subr.mxu0 0.0
    %3568 = vmatpush1.msra.mxu0 %v3276
    %3569 = vmatprep.subr.mxu0 0.0
    %3570 = vmatpush1.msra.mxu0 %v3279
    %3571 = vmatprep.subr.mxu0 0.0
    %3572 = vmatpush1.msra.mxu0 %v3282
    %3573 = vmatprep.subr.mxu0 0.0
    %3574 = vmatpush1.msra.mxu0 %v3285
    %3575 = vmatprep.subr.mxu0 0.0
    %3576 = vmatpush1.msra.mxu0 %v3288
    %3577 = vmatprep.subr.mxu0 0.0
    %3578 = vmatpush1.msra.mxu0 %v3291
    %3579 = vmatprep.subr.mxu0 0.0
    %3580 = vmatpush1.msra.mxu0 %v3294
    %3581 = vmatprep.subr.mxu0 0.0
    %3582 = vmatpush1.msra.mxu0 %v3297
    %3583 = vmatprep.subr.mxu0 0.0
    %3584 = vmatpush1.msra.mxu0 %v3300
    %3585 = vmatprep.subr.mxu0 0.0
    %3586 = vmatpush1.msra.mxu0 %v3303
    %3587 = vmatprep.subr.mxu0 0.0
    %3588 = vmatpush1.msra.mxu0 %v3306
    %3589 = vmatprep.subr.mxu0 0.0
    %3590 = vmatpush1.msra.mxu0 %v3309
    %3591 = vmatprep.subr.mxu0 0.0
    %3592 = vmatpush1.msra.mxu0 %v3312
    %3593 = vmatprep.subr.mxu0 0.0
    %3594 = vmatpush1.msra.mxu0 %v3315
    %3595 = vmatprep.subr.mxu0 0.0
    %3596 = vmatpush1.msra.mxu0 %v3318
    %3597 = vmatprep.subr.mxu0 0.0
    %3598 = vmatpush1.msra.mxu0 %v3321
    %3599 = vmatprep.subr.mxu0 0.0
    %3600 = vmatpush1.msra.mxu0 %v3324
    %3601 = vmatprep.subr.mxu0 0.0
    %3602 = vmatpush1.msra.mxu0 0.0
    %3603 = vmatprep.subr.mxu0 0.0
    %3604 = vmatpush1.msra.mxu0 0.0
    %3605 = vmatprep.subr.mxu0 0.0
    %3606 = vmatpush1.msra.mxu0 0.0
    %3607 = vmatprep.subr.mxu0 0.0
    %3608 = vmatpush1.msra.mxu0 0.0
    %3609 = vmatprep.subr.mxu0 0.0
    %3610 = vmatpush1.msra.mxu0 0.0
    %3611 = vmatprep.subr.mxu0 0.0
    %3612 = vmatpush1.msra.mxu0 0.0
    %3613 = vmatprep.subr.mxu0 0.0
    %3614 = vmatpush1.msra.mxu0 0.0
    %3615 = vmatprep.subr.mxu0 0.0
    %3616 = vmatpush1.msra.mxu0 0.0
    %3617 = vmatprep.subr.mxu0 0.0
    %3618 = vmatpush1.msra.mxu0 0.0
    %3619 = vmatprep.subr.mxu0 0.0
    %3620 = vmatpush1.msra.mxu0 0.0
    %3621 = vmatprep.subr.mxu0 0.0
    %3622 = vmatpush1.msra.mxu0 0.0
    %3623 = vmatprep.subr.mxu0 0.0
    %3624 = vmatpush1.msra.mxu0 0.0
    %3625 = vmatprep.mubr.f32.mxu0 %v3327
    %3626 = vmatmul.mubr.f32.gmra.mrb[0].mxu0 %v3006
    %v3627 = vpop.f32.mrb[0].mxu0
    %v3628 = vadd.f32 %v3553, %v3627
    %v3629 = vpop.f32.mrb[0].mxu0
    %3630 = vmatprep.mubr.f32.mxu0 %v3330
    %3631 = vmatmul.mubr.f32.gmra.mrb[0].mxu0 %v3010
    %v3632 = vpop.f32.mrb[0].mxu0
    %v3633 = vadd.f32 %v3558, %v3632
    %v3634 = vpop.f32.mrb[0].mxu0
    %3635 = vdwg.mxu0
    %v3637 = vsel %vm3325, %v1696, 0
    %v3640 = vsel %vm3325, %v1700, 0
    %3642 = vmatprep.subr.mxu0 %v3013
    %3643 = vmatpush1.msra.mxu0 %v3012
    %3644 = vmatprep.subr.mxu0 %v3016
    %3645 = vmatpush1.msra.mxu0 %v3015
    %3646 = vmatprep.subr.mxu0 %v3019
    %3647 = vmatpush1.msra.mxu0 %v3018
    %3648 = vmatprep.subr.mxu0 %v3022
    %3649 = vmatpush1.msra.mxu0 %v3021
    %3650 = vmatprep.subr.mxu0 %v3025
    %3651 = vmatpush1.msra.mxu0 %v3024
    %3652 = vmatprep.subr.mxu0 %v3028
    %3653 = vmatpush1.msra.mxu0 %v3027
    %3654 = vmatprep.subr.mxu0 %v3031
    %3655 = vmatpush1.msra.mxu0 %v3030
    %3656 = vmatprep.subr.mxu0 %v3034
    %3657 = vmatpush1.msra.mxu0 %v3033
    %3658 = vmatprep.subr.mxu0 %v3037
    %3659 = vmatpush1.msra.mxu0 %v3036
    %3660 = vmatprep.subr.mxu0 %v3040
    %3661 = vmatpush1.msra.mxu0 %v3039
    %3662 = vmatprep.subr.mxu0 %v3043
    %3663 = vmatpush1.msra.mxu0 %v3042
    %3664 = vmatprep.subr.mxu0 %v3046
    %3665 = vmatpush1.msra.mxu0 %v3045
    %3666 = vmatprep.subr.mxu0 %v3049
    %3667 = vmatpush1.msra.mxu0 %v3048
    %3668 = vmatprep.subr.mxu0 %v3052
    %3669 = vmatpush1.msra.mxu0 %v3051
    %3670 = vmatprep.subr.mxu0 %v3055
    %3671 = vmatpush1.msra.mxu0 %v3054
    %3672 = vmatprep.subr.mxu0 %v3058
    %3673 = vmatpush1.msra.mxu0 %v3057
    %3674 = vmatprep.subr.mxu0 %v3061
    %3675 = vmatpush1.msra.mxu0 %v3060
    %3676 = vmatprep.subr.mxu0 %v3064
    %3677 = vmatpush1.msra.mxu0 %v3063
    %3678 = vmatprep.subr.mxu0 %v3067
    %3679 = vmatpush1.msra.mxu0 %v3066
    %3680 = vmatprep.subr.mxu0 %v3070
    %3681 = vmatpush1.msra.mxu0 %v3069
    %3682 = vmatprep.subr.mxu0 %v3073
    %3683 = vmatpush1.msra.mxu0 %v3072
    %3684 = vmatprep.subr.mxu0 %v3076
    %3685 = vmatpush1.msra.mxu0 %v3075
    %3686 = vmatprep.subr.mxu0 %v3079
    %3687 = vmatpush1.msra.mxu0 %v3078
    %3688 = vmatprep.subr.mxu0 %v3082
    %3689 = vmatpush1.msra.mxu0 %v3081
    %3690 = vmatprep.subr.mxu0 %v3085
    %3691 = vmatpush1.msra.mxu0 %v3084
    %3692 = vmatprep.subr.mxu0 %v3088
    %3693 = vmatpush1.msra.mxu0 %v3087
    %3694 = vmatprep.subr.mxu0 %v3091
    %3695 = vmatpush1.msra.mxu0 %v3090
    %3696 = vmatprep.subr.mxu0 %v3094
    %3697 = vmatpush1.msra.mxu0 %v3093
    %3698 = vmatprep.subr.mxu0 %v3097
    %3699 = vmatpush1.msra.mxu0 %v3096
    %3700 = vmatprep.subr.mxu0 %v3100
    %3701 = vmatpush1.msra.mxu0 %v3099
    %3702 = vmatprep.subr.mxu0 %v3103
    %3703 = vmatpush1.msra.mxu0 %v3102
    %3704 = vmatprep.subr.mxu0 %v3106
    %3705 = vmatpush1.msra.mxu0 %v3105
    %3706 = vmatprep.mubr.f32.mxu0 %v1694
    %3707 = vmatmul.mubr.f32.gmra.mrb[0].mxu0 %v1693
    %v3708 = vpop.f32.mrb[0].mxu0
    %v3709 = vadd.f32 %v3476, %v3708
    %v3710 = vpop.f32.mrb[0].mxu0
    %v3711 = vadd.f32 %v3478, %v3710
    %3712 = vmatprep.mubr.f32.mxu0 %v1698
    %3713 = vmatmul.mubr.f32.gmra.mrb[0].mxu0 %v1697
    %v3714 = vpop.f32.mrb[0].mxu0
    %v3715 = vadd.f32 %v3482, %v3714
    %v3716 = vpop.f32.mrb[0].mxu0
    %v3717 = vadd.f32 %v3484, %v3716
    %3718 = vdwg.mxu0
    %3719 = vmatprep.subr.mxu0 %v3109
    %3720 = vmatpush1.msra.mxu0 %v3108
    %3721 = vmatprep.subr.mxu0 %v3112
    %3722 = vmatpush1.msra.mxu0 %v3111
    %3723 = vmatprep.subr.mxu0 %v3115
    %3724 = vmatpush1.msra.mxu0 %v3114
    %3725 = vmatprep.subr.mxu0 %v3118
    %3726 = vmatpush1.msra.mxu0 %v3117
    %3727 = vmatprep.subr.mxu0 %v3121
    %3728 = vmatpush1.msra.mxu0 %v3120
    %3729 = vmatprep.subr.mxu0 %v3124
    %3730 = vmatpush1.msra.mxu0 %v3123
    %3731 = vmatprep.subr.mxu0 %v3127
    %3732 = vmatpush1.msra.mxu0 %v3126
    %3733 = vmatprep.subr.mxu0 %v3130
    %3734 = vmatpush1.msra.mxu0 %v3129
    %3735 = vmatprep.subr.mxu0 %v3133
    %3736 = vmatpush1.msra.mxu0 %v3132
    %3737 = vmatprep.subr.mxu0 %v3136
    %3738 = vmatpush1.msra.mxu0 %v3135
    %3739 = vmatprep.subr.mxu0 %v3139
    %3740 = vmatpush1.msra.mxu0 %v3138
    %3741 = vmatprep.subr.mxu0 %v3142
    %3742 = vmatpush1.msra.mxu0 %v3141
    %3743 = vmatprep.subr.mxu0 %v3145
    %3744 = vmatpush1.msra.mxu0 %v3144
    %3745 = vmatprep.subr.mxu0 %v3148
    %3746 = vmatpush1.msra.mxu0 %v3147
    %3747 = vmatprep.subr.mxu0 %v3151
    %3748 = vmatpush1.msra.mxu0 %v3150
    %3749 = vmatprep.subr.mxu0 %v3154
    %3750 = vmatpush1.msra.mxu0 %v3153
    %3751 = vmatprep.subr.mxu0 %v3157
    %3752 = vmatpush1.msra.mxu0 %v3156
    %3753 = vmatprep.subr.mxu0 %v3160
    %3754 = vmatpush1.msra.mxu0 %v3159
    %3755 = vmatprep.subr.mxu0 %v3163
    %3756 = vmatpush1.msra.mxu0 %v3162
    %3757 = vmatprep.subr.mxu0 %v3166
    %3758 = vmatpush1.msra.mxu0 %v3165
    %3759 = vmatprep.subr.mxu0 0.0
    %3760 = vmatpush1.msra.mxu0 0.0
    %3761 = vmatprep.subr.mxu0 0.0
    %3762 = vmatpush1.msra.mxu0 0.0
    %3763 = vmatprep.subr.mxu0 0.0
    %3764 = vmatpush1.msra.mxu0 0.0
    %3765 = vmatprep.subr.mxu0 0.0
    %3766 = vmatpush1.msra.mxu0 0.0
    %3767 = vmatprep.subr.mxu0 0.0
    %3768 = vmatpush1.msra.mxu0 0.0
    %3769 = vmatprep.subr.mxu0 0.0
    %3770 = vmatpush1.msra.mxu0 0.0
    %3771 = vmatprep.subr.mxu0 0.0
    %3772 = vmatpush1.msra.mxu0 0.0
    %3773 = vmatprep.subr.mxu0 0.0
    %3774 = vmatpush1.msra.mxu0 0.0
    %3775 = vmatprep.subr.mxu0 0.0
    %3776 = vmatpush1.msra.mxu0 0.0
    %3777 = vmatprep.subr.mxu0 0.0
    %3778 = vmatpush1.msra.mxu0 0.0
    %3779 = vmatprep.subr.mxu0 0.0
    %3780 = vmatpush1.msra.mxu0 0.0
    %3781 = vmatprep.subr.mxu0 0.0
    %3782 = vmatpush1.msra.mxu0 0.0
    %3783 = vmatprep.mubr.f32.mxu0 %v3637
    %3784 = vmatmul.mubr.f32.gmra.mrb[0].mxu0 %v1695
    %v3785 = vpop.f32.mrb[0].mxu0
    %v3786 = vadd.f32 %v3709, %v3785
    %v3787 = vpop.f32.mrb[0].mxu0
    %v3788 = vadd.f32 %v3711, %v3787
    %3789 = vmatprep.mubr.f32.mxu0 %v3640
    %3790 = vmatmul.mubr.f32.gmra.mrb[0].mxu0 %v1699
    %v3791 = vpop.f32.mrb[0].mxu0
    %v3792 = vadd.f32 %v3715, %v3791
    %v3793 = vpop.f32.mrb[0].mxu0
    %v3794 = vadd.f32 %v3717, %v3793
    %3795 = vdwg.mxu0
    %3796 = vmatprep.subr.mxu0 0.0
    %3797 = vmatpush1.msra.mxu0 %v3014
    %3798 = vmatprep.subr.mxu0 0.0
    %3799 = vmatpush1.msra.mxu0 %v3017
    %3800 = vmatprep.subr.mxu0 0.0
    %3801 = vmatpush1.msra.mxu0 %v3020
    %3802 = vmatprep.subr.mxu0 0.0
    %3803 = vmatpush1.msra.mxu0 %v3023
    %3804 = vmatprep.subr.mxu0 0.0
    %3805 = vmatpush1.msra.mxu0 %v3026
    %3806 = vmatprep.subr.mxu0 0.0
    %3807 = vmatpush1.msra.mxu0 %v3029
    %3808 = vmatprep.subr.mxu0 0.0
    %3809 = vmatpush1.msra.mxu0 %v3032
    %3810 = vmatprep.subr.mxu0 0.0
    %3811 = vmatpush1.msra.mxu0 %v3035
    %3812 = vmatprep.subr.mxu0 0.0
    %3813 = vmatpush1.msra.mxu0 %v3038
    %3814 = vmatprep.subr.mxu0 0.0
    %3815 = vmatpush1.msra.mxu0 %v3041
    %3816 = vmatprep.subr.mxu0 0.0
    %3817 = vmatpush1.msra.mxu0 %v3044
    %3818 = vmatprep.subr.mxu0 0.0
    %3819 = vmatpush1.msra.mxu0 %v3047
    %3820 = vmatprep.subr.mxu0 0.0
    %3821 = vmatpush1.msra.mxu0 %v3050
    %3822 = vmatprep.subr.mxu0 0.0
    %3823 = vmatpush1.msra.mxu0 %v3053
    %3824 = vmatprep.subr.mxu0 0.0
    %3825 = vmatpush1.msra.mxu0 %v3056
    %3826 = vmatprep.subr.mxu0 0.0
    %3827 = vmatpush1.msra.mxu0 %v3059
    %3828 = vmatprep.subr.mxu0 0.0
    %3829 = vmatpush1.msra.mxu0 %v3062
    %3830 = vmatprep.subr.mxu0 0.0
    %3831 = vmatpush1.msra.mxu0 %v3065
    %3832 = vmatprep.subr.mxu0 0.0
    %3833 = vmatpush1.msra.mxu0 %v3068
    %3834 = vmatprep.subr.mxu0 0.0
    %3835 = vmatpush1.msra.mxu0 %v3071
    %3836 = vmatprep.subr.mxu0 0.0
    %3837 = vmatpush1.msra.mxu0 %v3074
    %3838 = vmatprep.subr.mxu0 0.0
    %3839 = vmatpush1.msra.mxu0 %v3077
    %3840 = vmatprep.subr.mxu0 0.0
    %3841 = vmatpush1.msra.mxu0 %v3080
    %3842 = vmatprep.subr.mxu0 0.0
    %3843 = vmatpush1.msra.mxu0 %v3083
    %3844 = vmatprep.subr.mxu0 0.0
    %3845 = vmatpush1.msra.mxu0 %v3086
    %3846 = vmatprep.subr.mxu0 0.0
    %3847 = vmatpush1.msra.mxu0 %v3089
    %3848 = vmatprep.subr.mxu0 0.0
    %3849 = vmatpush1.msra.mxu0 %v3092
    %3850 = vmatprep.subr.mxu0 0.0
    %3851 = vmatpush1.msra.mxu0 %v3095
    %3852 = vmatprep.subr.mxu0 0.0
    %3853 = vmatpush1.msra.mxu0 %v3098
    %3854 = vmatprep.subr.mxu0 0.0
    %3855 = vmatpush1.msra.mxu0 %v3101
    %3856 = vmatprep.subr.mxu0 0.0
    %3857 = vmatpush1.msra.mxu0 %v3104
    %3858 = vmatprep.subr.mxu0 0.0
    %3859 = vmatpush1.msra.mxu0 %v3107
    %3860 = vmatprep.mubr.f32.mxu0 %v1694
    %3861 = vmatmul.mubr.f32.gmra.mrb[0].mxu0 %v1693
    %v3862 = vpop.f32.mrb[0].mxu0
    %v3863 = vadd.f32 %v3628, %v3862
    %v3864 = vpop.f32.mrb[0].mxu0
    %3865 = vmatprep.mubr.f32.mxu0 %v1698
    %3866 = vmatmul.mubr.f32.gmra.mrb[0].mxu0 %v1697
    %v3867 = vpop.f32.mrb[0].mxu0
    %v3868 = vadd.f32 %v3633, %v3867
    %v3869 = vpop.f32.mrb[0].mxu0
    %3870 = vdwg.mxu0
    %3871 = vmatprep.subr.mxu0 0.0
    %3872 = vmatpush1.msra.mxu0 %v3110
    %3873 = vmatprep.subr.mxu0 0.0
    %3874 = vmatpush1.msra.mxu0 %v3113
    %3875 = vmatprep.subr.mxu0 0.0
    %3876 = vmatpush1.msra.mxu0 %v3116
    %3877 = vmatprep.subr.mxu0 0.0
    %3878 = vmatpush1.msra.mxu0 %v3119
    %3879 = vmatprep.subr.mxu0 0.0
    %3880 = vmatpush1.msra.mxu0 %v3122
    %3881 = vmatprep.subr.mxu0 0.0
    %3882 = vmatpush1.msra.mxu0 %v3125
    %3883 = vmatprep.subr.mxu0 0.0
    %3884 = vmatpush1.msra.mxu0 %v3128
    %3885 = vmatprep.subr.mxu0 0.0
    %3886 = vmatpush1.msra.mxu0 %v3131
    %3887 = vmatprep.subr.mxu0 0.0
    %3888 = vmatpush1.msra.mxu0 %v3134
    %3889 = vmatprep.subr.mxu0 0.0
    %3890 = vmatpush1.msra.mxu0 %v3137
    %3891 = vmatprep.subr.mxu0 0.0
    %3892 = vmatpush1.msra.mxu0 %v3140
    %3893 = vmatprep.subr.mxu0 0.0
    %3894 = vmatpush1.msra.mxu0 %v3143
    %3895 = vmatprep.subr.mxu0 0.0
    %3896 = vmatpush1.msra.mxu0 %v3146
    %3897 = vmatprep.subr.mxu0 0.0
    %3898 = vmatpush1.msra.mxu0 %v3149
    %3899 = vmatprep.subr.mxu0 0.0
    %3900 = vmatpush1.msra.mxu0 %v3152
    %3901 = vmatprep.subr.mxu0 0.0
    %3902 = vmatpush1.msra.mxu0 %v3155
    %3903 = vmatprep.subr.mxu0 0.0
    %3904 = vmatpush1.msra.mxu0 %v3158
    %3905 = vmatprep.subr.mxu0 0.0
    %3906 = vmatpush1.msra.mxu0 %v3161
    %3907 = vmatprep.subr.mxu0 0.0
    %3908 = vmatpush1.msra.mxu0 %v3164
    %3909 = vmatprep.subr.mxu0 0.0
    %3910 = vmatpush1.msra.mxu0 %v3167
    %3911 = vmatprep.subr.mxu0 0.0
    %3912 = vmatpush1.msra.mxu0 0.0
    %3913 = vmatprep.subr.mxu0 0.0
    %3914 = vmatpush1.msra.mxu0 0.0
    %3915 = vmatprep.subr.mxu0 0.0
    %3916 = vmatpush1.msra.mxu0 0.0
    %3917 = vmatprep.subr.mxu0 0.0
    %3918 = vmatpush1.msra.mxu0 0.0
    %3919 = vmatprep.subr.mxu0 0.0
    %3920 = vmatpush1.msra.mxu0 0.0
    %3921 = vmatprep.subr.mxu0 0.0
    %3922 = vmatpush1.msra.mxu0 0.0
    %3923 = vmatprep.subr.mxu0 0.0
    %3924 = vmatpush1.msra.mxu0 0.0
    %3925 = vmatprep.subr.mxu0 0.0
    %3926 = vmatpush1.msra.mxu0 0.0
    %3927 = vmatprep.subr.mxu0 0.0
    %3928 = vmatpush1.msra.mxu0 0.0
    %3929 = vmatprep.subr.mxu0 0.0
    %3930 = vmatpush1.msra.mxu0 0.0
    %3931 = vmatprep.subr.mxu0 0.0
    %3932 = vmatpush1.msra.mxu0 0.0
    %3933 = vmatprep.subr.mxu0 0.0
    %3934 = vmatpush1.msra.mxu0 0.0
    %3935 = vmatprep.mubr.f32.mxu0 %v3637
    %3936 = vmatmul.mubr.f32.gmra.mrb[0].mxu0 %v1695
    %v3937 = vpop.f32.mrb[0].mxu0
    %v3938 = vadd.f32 %v3863, %v3937
    %v3939 = vpop.f32.mrb[0].mxu0
    %3940 = vmatprep.mubr.f32.mxu0 %v3640
    %3941 = vmatmul.mubr.f32.gmra.mrb[0].mxu0 %v1699
    %v3942 = vpop.f32.mrb[0].mxu0
    %v3943 = vadd.f32 %v3868, %v3942
    %v3944 = vpop.f32.mrb[0].mxu0
    %3945 = vdwg.mxu0
    %s3946 = scalar_lea.vmem %s4, 2496
    %v3947 = vld [vmem:[%s3946] sm:$0xff]
    %v3948 = vld [vmem:[%s3946 + $0x8] sm:$0xff]
    %v3949 = vld [vmem:[%s3946 + $0x10] sm:$0xff]
    %v3950 = vld [vmem:[%s3946 + $0x18] sm:$0xff]
    %v3951 = vld [vmem:[%s3946 + $0x20] sm:$0xff]
    %v3952 = vld [vmem:[%s3946 + $0x28] sm:$0xff]
    %v3953 = vld [vmem:[%s3946 + $0x30] sm:$0xff]
    %v3954 = vld [vmem:[%s3946 + $0x38] sm:$0xff]
    %v3955 = vld [vmem:[%s3946 + $0x40] sm:$0xff]
    %v3956 = vld [vmem:[%s3946 + $0x48] sm:$0xff]
    %v3957 = vld [vmem:[%s3946 + $0x50] sm:$0xff]
    %v3958 = vld [vmem:[%s3946 + $0x58] sm:$0xff]
    %v3959 = vld [vmem:[%s3946 + $0x60] sm:$0xff]
    %v3960 = vld [vmem:[%s3946 + $0x68] sm:$0xff]
    %v3961 = vld [vmem:[%s3946 + $0x70] sm:$0xff]
    %v3962 = vld [vmem:[%s3946 + $0x78] sm:$0xff]
    %v3963 = vld [vmem:[%s3946 + $0x80] sm:$0xff]
    %v3964 = vld [vmem:[%s3946 + $0x88] sm:$0xff]
    %v3965 = vld [vmem:[%s3946 + $0x90] sm:$0xff]
    %v3966 = vld [vmem:[%s3946 + $0x98] sm:$0xff]
    %v3967 = vld [vmem:[%s3946 + $0xa0] sm:$0xff]
    %v3968 = vld [vmem:[%s3946 + $0xa8] sm:$0xff]
    %v3969 = vld [vmem:[%s3946 + $0xb0] sm:$0xff]
    %v3970 = vld [vmem:[%s3946 + $0xb8] sm:$0xff]
    %v3971 = vld [vmem:[%s3946 + $0xc0] sm:$0xff]
    %v3972 = vld [vmem:[%s3946 + $0xc8] sm:$0xff]
    %v3973 = vld [vmem:[%s3946 + $0xd0] sm:$0xff]
    %v3974 = vld [vmem:[%s3946 + $0xd8] sm:$0xff]
    %v3975 = vld [vmem:[%s3946 + $0xe0] sm:$0xff]
    %v3976 = vld [vmem:[%s3946 + $0xe8] sm:$0xff]
    %v3977 = vld [vmem:[%s3946 + $0xf0] sm:$0xff]
    %v3978 = vld [vmem:[%s3946 + $0xf8] sm:$0xff]
    %v3979 = vld [vmem:[%s3946 + $0x100] sm:$0xff]
    %v3980 = vld [vmem:[%s3946 + $0x108] sm:$0xff]
    %v3981 = vld [vmem:[%s3946 + $0x110] sm:$0xff]
    %v3982 = vld [vmem:[%s3946 + $0x118] sm:$0xff]
    %v3983 = vld [vmem:[%s3946 + $0x120] sm:$0xff]
    %v3984 = vld [vmem:[%s3946 + $0x128] sm:$0xff]
    %v3985 = vld [vmem:[%s3946 + $0x130] sm:$0xff]
    %v3986 = vld [vmem:[%s3946 + $0x138] sm:$0xff]
    %v3987 = vld [vmem:[%s3946 + $0x140] sm:$0xff]
    %v3988 = vld [vmem:[%s3946 + $0x148] sm:$0xff]
    %v3989 = vld [vmem:[%s3946 + $0x150] sm:$0xff]
    %v3990 = vld [vmem:[%s3946 + $0x158] sm:$0xff]
    %v3991 = vld [vmem:[%s3946 + $0x160] sm:$0xff]
    %v3992 = vld [vmem:[%s3946 + $0x168] sm:$0xff]
    %v3993 = vld [vmem:[%s3946 + $0x170] sm:$0xff]
    %v3994 = vld [vmem:[%s3946 + $0x178] sm:$0xff]
    %v3995 = vld [vmem:[%s3946 + $0x180] sm:$0xff]
    %v3996 = vld [vmem:[%s3946 + $0x188] sm:$0xff]
    %v3997 = vld [vmem:[%s3946 + $0x190] sm:$0xff]
    %v3998 = vld [vmem:[%s3946 + $0x198] sm:$0xff]
    %v3999 = vld [vmem:[%s3946 + $0x1a0] sm:$0xff]
    %v4000 = vld [vmem:[%s3946 + $0x1a8] sm:$0xff]
    %v4001 = vld [vmem:[%s3946 + $0x1b0] sm:$0xff]
    %v4002 = vld [vmem:[%s3946 + $0x1b8] sm:$0xff]
    %v4003 = vld [vmem:[%s3946 + $0x1c0] sm:$0xff]
    %v4004 = vld [vmem:[%s3946 + $0x1c8] sm:$0xff]
    %v4005 = vld [vmem:[%s3946 + $0x1d0] sm:$0xff]
    %v4006 = vld [vmem:[%s3946 + $0x1d8] sm:$0xff]
    %v4007 = vld [vmem:[%s3946 + $0x1e0] sm:$0xff]
    %v4008 = vld [vmem:[%s3946 + $0x1e8] sm:$0xff]
    %v4009 = vld [vmem:[%s3946 + $0x1f0] sm:$0xff]
    %v4010 = vld [vmem:[%s3946 + $0x1f8] sm:$0xff]
    %v4011 = vld [vmem:[%s3946 + $0x200] sm:$0xff]
    %v4012 = vld [vmem:[%s3946 + $0x208] sm:$0xff]
    %v4013 = vld [vmem:[%s3946 + $0x210] sm:$0xff]
    %v4014 = vld [vmem:[%s3946 + $0x218] sm:$0xff]
    %v4015 = vld [vmem:[%s3946 + $0x220] sm:$0xff]
    %v4016 = vld [vmem:[%s3946 + $0x228] sm:$0xff]
    %v4017 = vld [vmem:[%s3946 + $0x230] sm:$0xff]
    %v4018 = vld [vmem:[%s3946 + $0x238] sm:$0xff]
    %v4019 = vld [vmem:[%s3946 + $0x240] sm:$0xff]
    %v4020 = vld [vmem:[%s3946 + $0x248] sm:$0xff]
    %v4021 = vld [vmem:[%s3946 + $0x250] sm:$0xff]
    %v4022 = vld [vmem:[%s3946 + $0x258] sm:$0xff]
    %v4023 = vld [vmem:[%s3946 + $0x260] sm:$0xff]
    %v4024 = vld [vmem:[%s3946 + $0x268] sm:$0xff]
    %v4025 = vld [vmem:[%s3946 + $0x270] sm:$0xff]
    %v4026 = vld [vmem:[%s3946 + $0x278] sm:$0xff]
    %v4027 = vld [vmem:[%s3946 + $0x280] sm:$0xff]
    %v4028 = vld [vmem:[%s3946 + $0x288] sm:$0xff]
    %v4029 = vld [vmem:[%s3946 + $0x290] sm:$0xff]
    %v4030 = vld [vmem:[%s3946 + $0x298] sm:$0xff]
    %v4031 = vld [vmem:[%s3946 + $0x2a0] sm:$0xff]
    %v4032 = vld [vmem:[%s3946 + $0x2a8] sm:$0xff]
    %v4033 = vld [vmem:[%s3946 + $0x2b0] sm:$0xff]
    %v4034 = vld [vmem:[%s3946 + $0x2b8] sm:$0xff]
    %v4035 = vld [vmem:[%s3946 + $0x2c0] sm:$0xff]
    %v4036 = vld [vmem:[%s3946 + $0x2c8] sm:$0xff]
    %v4037 = vld [vmem:[%s3946 + $0x2d0] sm:$0xff]
    %v4038 = vld [vmem:[%s3946 + $0x2d8] sm:$0xff]
    %v4039 = vld [vmem:[%s3946 + $0x2e0] sm:$0xff]
    %v4040 = vld [vmem:[%s3946 + $0x2e8] sm:$0xff]
    %v4041 = vld [vmem:[%s3946 + $0x2f0] sm:$0xff]
    %v4042 = vld [vmem:[%s3946 + $0x2f8] sm:$0xff]
    %v4043 = vld [vmem:[%s3946 + $0x300] sm:$0xff]
    %v4044 = vld [vmem:[%s3946 + $0x308] sm:$0xff]
    %v4045 = vld [vmem:[%s3946 + $0x310] sm:$0xff]
    %v4046 = vld [vmem:[%s3946 + $0x318] sm:$0xff]
    %v4047 = vld [vmem:[%s3946 + $0x320] sm:$0xff]
    %v4048 = vld [vmem:[%s3946 + $0x328] sm:$0xff]
    %v4049 = vld [vmem:[%s3946 + $0x330] sm:$0xff]
    %v4050 = vld [vmem:[%s3946 + $0x338] sm:$0xff]
    %v4051 = vld [vmem:[%s3946 + $0x340] sm:$0xff]
    %v4052 = vld [vmem:[%s3946 + $0x348] sm:$0xff]
    %v4053 = vld [vmem:[%s3946 + $0x350] sm:$0xff]
    %v4054 = vld [vmem:[%s3946 + $0x358] sm:$0xff]
    %v4055 = vld [vmem:[%s3946 + $0x360] sm:$0xff]
    %v4056 = vld [vmem:[%s3946 + $0x368] sm:$0xff]
    %v4057 = vld [vmem:[%s3946 + $0x370] sm:$0xff]
    %v4058 = vld [vmem:[%s3946 + $0x378] sm:$0xff]
    %v4059 = vld [vmem:[%s3946 + $0x380] sm:$0xff]
    %v4060 = vld [vmem:[%s3946 + $0x388] sm:$0xff]
    %v4061 = vld [vmem:[%s3946 + $0x390] sm:$0xff]
    %v4062 = vld [vmem:[%s3946 + $0x398] sm:$0xff]
    %v4063 = vld [vmem:[%s3946 + $0x3a0] sm:$0xff]
    %v4064 = vld [vmem:[%s3946 + $0x3a8] sm:$0xff]
    %v4065 = vld [vmem:[%s3946 + $0x3b0] sm:$0xff]
    %v4066 = vld [vmem:[%s3946 + $0x3b8] sm:$0xff]
    %v4067 = vld [vmem:[%s3946 + $0x3c0] sm:$0xff]
    %v4068 = vld [vmem:[%s3946 + $0x3c8] sm:$0xff]
    %v4069 = vld [vmem:[%s3946 + $0x3d0] sm:$0xff]
    %v4070 = vld [vmem:[%s3946 + $0x3d8] sm:$0xff]
    %v4071 = vld [vmem:[%s3946 + $0x3e0] sm:$0xff]
    %v4072 = vld [vmem:[%s3946 + $0x3e8] sm:$0xff]
    %v4073 = vld [vmem:[%s3946 + $0x3f0] sm:$0xff]
    %v4074 = vld [vmem:[%s3946 + $0x3f8] sm:$0xff]
    %v4075 = vld [vmem:[%s3946 + $0x400] sm:$0xff]
    %v4076 = vld [vmem:[%s3946 + $0x408] sm:$0xff]
    %v4077 = vld [vmem:[%s3946 + $0x410] sm:$0xff]
    %v4078 = vld [vmem:[%s3946 + $0x418] sm:$0xff]
    %v4079 = vld [vmem:[%s3946 + $0x420] sm:$0xff]
    %v4080 = vld [vmem:[%s3946 + $0x428] sm:$0xff]
    %v4081 = vld [vmem:[%s3946 + $0x430] sm:$0xff]
    %v4082 = vld [vmem:[%s3946 + $0x438] sm:$0xff]
    %v4083 = vld [vmem:[%s3946 + $0x440] sm:$0xff]
    %v4084 = vld [vmem:[%s3946 + $0x448] sm:$0xff]
    %v4085 = vld [vmem:[%s3946 + $0x450] sm:$0xff]
    %v4086 = vld [vmem:[%s3946 + $0x458] sm:$0xff]
    %v4087 = vld [vmem:[%s3946 + $0x460] sm:$0xff]
    %v4088 = vld [vmem:[%s3946 + $0x468] sm:$0xff]
    %v4089 = vld [vmem:[%s3946 + $0x470] sm:$0xff]
    %v4090 = vld [vmem:[%s3946 + $0x478] sm:$0xff]
    %v4091 = vld [vmem:[%s3946 + $0x480] sm:$0xff]
    %v4092 = vld [vmem:[%s3946 + $0x488] sm:$0xff]
    %v4093 = vld [vmem:[%s3946 + $0x490] sm:$0xff]
    %v4094 = vld [vmem:[%s3946 + $0x498] sm:$0xff]
    %v4095 = vld [vmem:[%s3946 + $0x4a0] sm:$0xff]
    %v4096 = vld [vmem:[%s3946 + $0x4a8] sm:$0xff]
    %v4097 = vld [vmem:[%s3946 + $0x4b0] sm:$0xff]
    %v4098 = vld [vmem:[%s3946 + $0x4b8] sm:$0xff]
    %v4099 = vld [vmem:[%s3946 + $0x4c0] sm:$0xff]
    %v4100 = vld [vmem:[%s3946 + $0x4c8] sm:$0xff]
    %v4101 = vld [vmem:[%s3946 + $0x4d0] sm:$0xff]
    %v4102 = vld [vmem:[%s3946 + $0x4d8] sm:$0xff]
    %v4109 = vrot.slane %v1693, 2
    %v4110 = vrot.slane %v1697, 2
    %v4111 = vsel %vm887, %v4109, %v4110
    %v4112 = vrot.slane %v1694, 2
    %v4113 = vrot.slane %v1698, 2
    %v4114 = vsel %vm887, %v4112, %v4113
    %v4115 = vrot.slane %v1695, 2
    %v4116 = vrot.slane %v1699, 2
    %v4117 = vsel %vm887, %v4115, %v4116
    %v4118 = vrot.slane %v1696, 2
    %v4119 = vrot.slane %v1700, 2
    %v4120 = vsel %vm887, %v4118, %v4119
    %v4127 = vsel %vm3325, %v4120, 0
    %v4129 = vsel %vm3325, %v4119, 0
    %4131 = vmatprep.subr.mxu0 %v3948
    %4132 = vmatpush1.msra.mxu0 %v3947
    %4133 = vmatprep.subr.mxu0 %v3951
    %4134 = vmatpush1.msra.mxu0 %v3950
    %4135 = vmatprep.subr.mxu0 %v3954
    %4136 = vmatpush1.msra.mxu0 %v3953
    %4137 = vmatprep.subr.mxu0 %v3957
    %4138 = vmatpush1.msra.mxu0 %v3956
    %4139 = vmatprep.subr.mxu0 %v3960
    %4140 = vmatpush1.msra.mxu0 %v3959
    %4141 = vmatprep.subr.mxu0 %v3963
    %4142 = vmatpush1.msra.mxu0 %v3962
    %4143 = vmatprep.subr.mxu0 %v3966
    %4144 = vmatpush1.msra.mxu0 %v3965
    %4145 = vmatprep.subr.mxu0 %v3969
    %4146 = vmatpush1.msra.mxu0 %v3968
    %4147 = vmatprep.subr.mxu0 %v3972
    %4148 = vmatpush1.msra.mxu0 %v3971
    %4149 = vmatprep.subr.mxu0 %v3975
    %4150 = vmatpush1.msra.mxu0 %v3974
    %4151 = vmatprep.subr.mxu0 %v3978
    %4152 = vmatpush1.msra.mxu0 %v3977
    %4153 = vmatprep.subr.mxu0 %v3981
    %4154 = vmatpush1.msra.mxu0 %v3980
    %4155 = vmatprep.subr.mxu0 %v3984
    %4156 = vmatpush1.msra.mxu0 %v3983
    %4157 = vmatprep.subr.mxu0 %v3987
    %4158 = vmatpush1.msra.mxu0 %v3986
    %4159 = vmatprep.subr.mxu0 %v3990
    %4160 = vmatpush1.msra.mxu0 %v3989
    %4161 = vmatprep.subr.mxu0 %v3993
    %4162 = vmatpush1.msra.mxu0 %v3992
    %4163 = vmatprep.subr.mxu0 %v3996
    %4164 = vmatpush1.msra.mxu0 %v3995
    %4165 = vmatprep.subr.mxu0 %v3999
    %4166 = vmatpush1.msra.mxu0 %v3998
    %4167 = vmatprep.subr.mxu0 %v4002
    %4168 = vmatpush1.msra.mxu0 %v4001
    %4169 = vmatprep.subr.mxu0 %v4005
    %4170 = vmatpush1.msra.mxu0 %v4004
    %4171 = vmatprep.subr.mxu0 %v4008
    %4172 = vmatpush1.msra.mxu0 %v4007
    %4173 = vmatprep.subr.mxu0 %v4011
    %4174 = vmatpush1.msra.mxu0 %v4010
    %4175 = vmatprep.subr.mxu0 %v4014
    %4176 = vmatpush1.msra.mxu0 %v4013
    %4177 = vmatprep.subr.mxu0 %v4017
    %4178 = vmatpush1.msra.mxu0 %v4016
    %4179 = vmatprep.subr.mxu0 %v4020
    %4180 = vmatpush1.msra.mxu0 %v4019
    %4181 = vmatprep.subr.mxu0 %v4023
    %4182 = vmatpush1.msra.mxu0 %v4022
    %4183 = vmatprep.subr.mxu0 %v4026
    %4184 = vmatpush1.msra.mxu0 %v4025
    %4185 = vmatprep.subr.mxu0 %v4029
    %4186 = vmatpush1.msra.mxu0 %v4028
    %4187 = vmatprep.subr.mxu0 %v4032
    %4188 = vmatpush1.msra.mxu0 %v4031
    %4189 = vmatprep.subr.mxu0 %v4035
    %4190 = vmatpush1.msra.mxu0 %v4034
    %4191 = vmatprep.subr.mxu0 %v4038
    %4192 = vmatpush1.msra.mxu0 %v4037
    %4193 = vmatprep.subr.mxu0 %v4041
    %4194 = vmatpush1.msra.mxu0 %v4040
    %4195 = vmatprep.mubr.f32.mxu0 %v4114
    %4196 = vmatmul.mubr.f32.gmra.mrb[0].mxu0 %v4111
    %v4197 = vpop.f32.mrb[0].mxu0
    %v4198 = vadd.f32 0.0, %v4197
    %v4199 = vpop.f32.mrb[0].mxu0
    %v4200 = vadd.f32 0.0, %v4199
    %4201 = vmatprep.mubr.f32.mxu0 %v4113
    %4202 = vmatmul.mubr.f32.gmra.mrb[0].mxu0 %v4110
    %v4203 = vpop.f32.mrb[0].mxu0
    %v4204 = vadd.f32 0.0, %v4203
    %v4205 = vpop.f32.mrb[0].mxu0
    %v4206 = vadd.f32 0.0, %v4205
    %4207 = vdwg.mxu0
    %4208 = vmatprep.subr.mxu0 %v4044
    %4209 = vmatpush1.msra.mxu0 %v4043
    %4210 = vmatprep.subr.mxu0 %v4047
    %4211 = vmatpush1.msra.mxu0 %v4046
    %4212 = vmatprep.subr.mxu0 %v4050
    %4213 = vmatpush1.msra.mxu0 %v4049
    %4214 = vmatprep.subr.mxu0 %v4053
    %4215 = vmatpush1.msra.mxu0 %v4052
    %4216 = vmatprep.subr.mxu0 %v4056
    %4217 = vmatpush1.msra.mxu0 %v4055
    %4218 = vmatprep.subr.mxu0 %v4059
    %4219 = vmatpush1.msra.mxu0 %v4058
    %4220 = vmatprep.subr.mxu0 %v4062
    %4221 = vmatpush1.msra.mxu0 %v4061
    %4222 = vmatprep.subr.mxu0 %v4065
    %4223 = vmatpush1.msra.mxu0 %v4064
    %4224 = vmatprep.subr.mxu0 %v4068
    %4225 = vmatpush1.msra.mxu0 %v4067
    %4226 = vmatprep.subr.mxu0 %v4071
    %4227 = vmatpush1.msra.mxu0 %v4070
    %4228 = vmatprep.subr.mxu0 %v4074
    %4229 = vmatpush1.msra.mxu0 %v4073
    %4230 = vmatprep.subr.mxu0 %v4077
    %4231 = vmatpush1.msra.mxu0 %v4076
    %4232 = vmatprep.subr.mxu0 %v4080
    %4233 = vmatpush1.msra.mxu0 %v4079
    %4234 = vmatprep.subr.mxu0 %v4083
    %4235 = vmatpush1.msra.mxu0 %v4082
    %4236 = vmatprep.subr.mxu0 %v4086
    %4237 = vmatpush1.msra.mxu0 %v4085
    %4238 = vmatprep.subr.mxu0 %v4089
    %4239 = vmatpush1.msra.mxu0 %v4088
    %4240 = vmatprep.subr.mxu0 %v4092
    %4241 = vmatpush1.msra.mxu0 %v4091
    %4242 = vmatprep.subr.mxu0 %v4095
    %4243 = vmatpush1.msra.mxu0 %v4094
    %4244 = vmatprep.subr.mxu0 %v4098
    %4245 = vmatpush1.msra.mxu0 %v4097
    %4246 = vmatprep.subr.mxu0 %v4101
    %4247 = vmatpush1.msra.mxu0 %v4100
    %4248 = vmatprep.subr.mxu0 0.0
    %4249 = vmatpush1.msra.mxu0 0.0
    %4250 = vmatprep.subr.mxu0 0.0
    %4251 = vmatpush1.msra.mxu0 0.0
    %4252 = vmatprep.subr.mxu0 0.0
    %4253 = vmatpush1.msra.mxu0 0.0
    %4254 = vmatprep.subr.mxu0 0.0
    %4255 = vmatpush1.msra.mxu0 0.0
    %4256 = vmatprep.subr.mxu0 0.0
    %4257 = vmatpush1.msra.mxu0 0.0
    %4258 = vmatprep.subr.mxu0 0.0
    %4259 = vmatpush1.msra.mxu0 0.0
    %4260 = vmatprep.subr.mxu0 0.0
    %4261 = vmatpush1.msra.mxu0 0.0
    %4262 = vmatprep.subr.mxu0 0.0
    %4263 = vmatpush1.msra.mxu0 0.0
    %4264 = vmatprep.subr.mxu0 0.0
    %4265 = vmatpush1.msra.mxu0 0.0
    %4266 = vmatprep.subr.mxu0 0.0
    %4267 = vmatpush1.msra.mxu0 0.0
    %4268 = vmatprep.subr.mxu0 0.0
    %4269 = vmatpush1.msra.mxu0 0.0
    %4270 = vmatprep.subr.mxu0 0.0
    %4271 = vmatpush1.msra.mxu0 0.0
    %4272 = vmatprep.mubr.f32.mxu0 %v4127
    %4273 = vmatmul.mubr.f32.gmra.mrb[0].mxu0 %v4117
    %v4274 = vpop.f32.mrb[0].mxu0
    %v4275 = vadd.f32 %v4198, %v4274
    %v4276 = vpop.f32.mrb[0].mxu0
    %v4277 = vadd.f32 %v4200, %v4276
    %4278 = vmatprep.mubr.f32.mxu0 %v4129
    %4279 = vmatmul.mubr.f32.gmra.mrb[0].mxu0 %v4116
    %v4280 = vpop.f32.mrb[0].mxu0
    %v4281 = vadd.f32 %v4204, %v4280
    %v4282 = vpop.f32.mrb[0].mxu0
    %v4283 = vadd.f32 %v4206, %v4282
    %4284 = vdwg.mxu0
    %4285 = vmatprep.subr.mxu0 0.0
    %4286 = vmatpush1.msra.mxu0 %v3949
    %4287 = vmatprep.subr.mxu0 0.0
    %4288 = vmatpush1.msra.mxu0 %v3952
    %4289 = vmatprep.subr.mxu0 0.0
    %4290 = vmatpush1.msra.mxu0 %v3955
    %4291 = vmatprep.subr.mxu0 0.0
    %4292 = vmatpush1.msra.mxu0 %v3958
    %4293 = vmatprep.subr.mxu0 0.0
    %4294 = vmatpush1.msra.mxu0 %v3961
    %4295 = vmatprep.subr.mxu0 0.0
    %4296 = vmatpush1.msra.mxu0 %v3964
    %4297 = vmatprep.subr.mxu0 0.0
    %4298 = vmatpush1.msra.mxu0 %v3967
    %4299 = vmatprep.subr.mxu0 0.0
    %4300 = vmatpush1.msra.mxu0 %v3970
    %4301 = vmatprep.subr.mxu0 0.0
    %4302 = vmatpush1.msra.mxu0 %v3973
    %4303 = vmatprep.subr.mxu0 0.0
    %4304 = vmatpush1.msra.mxu0 %v3976
    %4305 = vmatprep.subr.mxu0 0.0
    %4306 = vmatpush1.msra.mxu0 %v3979
    %4307 = vmatprep.subr.mxu0 0.0
    %4308 = vmatpush1.msra.mxu0 %v3982
    %4309 = vmatprep.subr.mxu0 0.0
    %4310 = vmatpush1.msra.mxu0 %v3985
    %4311 = vmatprep.subr.mxu0 0.0
    %4312 = vmatpush1.msra.mxu0 %v3988
    %4313 = vmatprep.subr.mxu0 0.0
    %4314 = vmatpush1.msra.mxu0 %v3991
    %4315 = vmatprep.subr.mxu0 0.0
    %4316 = vmatpush1.msra.mxu0 %v3994
    %4317 = vmatprep.subr.mxu0 0.0
    %4318 = vmatpush1.msra.mxu0 %v3997
    %4319 = vmatprep.subr.mxu0 0.0
    %4320 = vmatpush1.msra.mxu0 %v4000
    %4321 = vmatprep.subr.mxu0 0.0
    %4322 = vmatpush1.msra.mxu0 %v4003
    %4323 = vmatprep.subr.mxu0 0.0
    %4324 = vmatpush1.msra.mxu0 %v4006
    %4325 = vmatprep.subr.mxu0 0.0
    %4326 = vmatpush1.msra.mxu0 %v4009
    %4327 = vmatprep.subr.mxu0 0.0
    %4328 = vmatpush1.msra.mxu0 %v4012
    %4329 = vmatprep.subr.mxu0 0.0
    %4330 = vmatpush1.msra.mxu0 %v4015
    %4331 = vmatprep.subr.mxu0 0.0
    %4332 = vmatpush1.msra.mxu0 %v4018
    %4333 = vmatprep.subr.mxu0 0.0
    %4334 = vmatpush1.msra.mxu0 %v4021
    %4335 = vmatprep.subr.mxu0 0.0
    %4336 = vmatpush1.msra.mxu0 %v4024
    %4337 = vmatprep.subr.mxu0 0.0
    %4338 = vmatpush1.msra.mxu0 %v4027
    %4339 = vmatprep.subr.mxu0 0.0
    %4340 = vmatpush1.msra.mxu0 %v4030
    %4341 = vmatprep.subr.mxu0 0.0
    %4342 = vmatpush1.msra.mxu0 %v4033
    %4343 = vmatprep.subr.mxu0 0.0
    %4344 = vmatpush1.msra.mxu0 %v4036
    %4345 = vmatprep.subr.mxu0 0.0
    %4346 = vmatpush1.msra.mxu0 %v4039
    %4347 = vmatprep.subr.mxu0 0.0
    %4348 = vmatpush1.msra.mxu0 %v4042
    %4349 = vmatprep.mubr.f32.mxu0 %v4114
    %4350 = vmatmul.mubr.f32.gmra.mrb[0].mxu0 %v4111
    %v4351 = vpop.f32.mrb[0].mxu0
    %v4352 = vadd.f32 0.0, %v4351
    %v4353 = vpop.f32.mrb[0].mxu0
    %4354 = vmatprep.mubr.f32.mxu0 %v4113
    %4355 = vmatmul.mubr.f32.gmra.mrb[0].mxu0 %v4110
    %v4356 = vpop.f32.mrb[0].mxu0
    %v4357 = vadd.f32 0.0, %v4356
    %v4358 = vpop.f32.mrb[0].mxu0
    %4359 = vdwg.mxu0
    %4360 = vmatprep.subr.mxu0 0.0
    %4361 = vmatpush1.msra.mxu0 %v4045
    %4362 = vmatprep.subr.mxu0 0.0
    %4363 = vmatpush1.msra.mxu0 %v4048
    %4364 = vmatprep.subr.mxu0 0.0
    %4365 = vmatpush1.msra.mxu0 %v4051
    %4366 = vmatprep.subr.mxu0 0.0
    %4367 = vmatpush1.msra.mxu0 %v4054
    %4368 = vmatprep.subr.mxu0 0.0
    %4369 = vmatpush1.msra.mxu0 %v4057
    %4370 = vmatprep.subr.mxu0 0.0
    %4371 = vmatpush1.msra.mxu0 %v4060
    %4372 = vmatprep.subr.mxu0 0.0
    %4373 = vmatpush1.msra.mxu0 %v4063
    %4374 = vmatprep.subr.mxu0 0.0
    %4375 = vmatpush1.msra.mxu0 %v4066
    %4376 = vmatprep.subr.mxu0 0.0
    %4377 = vmatpush1.msra.mxu0 %v4069
    %4378 = vmatprep.subr.mxu0 0.0
    %4379 = vmatpush1.msra.mxu0 %v4072
    %4380 = vmatprep.subr.mxu0 0.0
    %4381 = vmatpush1.msra.mxu0 %v4075
    %4382 = vmatprep.subr.mxu0 0.0
    %4383 = vmatpush1.msra.mxu0 %v4078
    %4384 = vmatprep.subr.mxu0 0.0
    %4385 = vmatpush1.msra.mxu0 %v4081
    %4386 = vmatprep.subr.mxu0 0.0
    %4387 = vmatpush1.msra.mxu0 %v4084
    %4388 = vmatprep.subr.mxu0 0.0
    %4389 = vmatpush1.msra.mxu0 %v4087
    %4390 = vmatprep.subr.mxu0 0.0
    %4391 = vmatpush1.msra.mxu0 %v4090
    %4392 = vmatprep.subr.mxu0 0.0
    %4393 = vmatpush1.msra.mxu0 %v4093
    %4394 = vmatprep.subr.mxu0 0.0
    %4395 = vmatpush1.msra.mxu0 %v4096
    %4396 = vmatprep.subr.mxu0 0.0
    %4397 = vmatpush1.msra.mxu0 %v4099
    %4398 = vmatprep.subr.mxu0 0.0
    %4399 = vmatpush1.msra.mxu0 %v4102
    %4400 = vmatprep.subr.mxu0 0.0
    %4401 = vmatpush1.msra.mxu0 0.0
    %4402 = vmatprep.subr.mxu0 0.0
    %4403 = vmatpush1.msra.mxu0 0.0
    %4404 = vmatprep.subr.mxu0 0.0
    %4405 = vmatpush1.msra.mxu0 0.0
    %4406 = vmatprep.subr.mxu0 0.0
    %4407 = vmatpush1.msra.mxu0 0.0
    %4408 = vmatprep.subr.mxu0 0.0
    %4409 = vmatpush1.msra.mxu0 0.0
    %4410 = vmatprep.subr.mxu0 0.0
    %4411 = vmatpush1.msra.mxu0 0.0
    %4412 = vmatprep.subr.mxu0 0.0
    %4413 = vmatpush1.msra.mxu0 0.0
    %4414 = vmatprep.subr.mxu0 0.0
    %4415 = vmatpush1.msra.mxu0 0.0
    %4416 = vmatprep.subr.mxu0 0.0
    %4417 = vmatpush1.msra.mxu0 0.0
    %4418 = vmatprep.subr.mxu0 0.0
    %4419 = vmatpush1.msra.mxu0 0.0
    %4420 = vmatprep.subr.mxu0 0.0
    %4421 = vmatpush1.msra.mxu0 0.0
    %4422 = vmatprep.subr.mxu0 0.0
    %4423 = vmatpush1.msra.mxu0 0.0
    %4424 = vmatprep.mubr.f32.mxu0 %v4127
    %4425 = vmatmul.mubr.f32.gmra.mrb[0].mxu0 %v4117
    %v4426 = vpop.f32.mrb[0].mxu0
    %v4427 = vadd.f32 %v4352, %v4426
    %v4428 = vpop.f32.mrb[0].mxu0
    %4429 = vmatprep.mubr.f32.mxu0 %v4129
    %4430 = vmatmul.mubr.f32.gmra.mrb[0].mxu0 %v4116
    %v4431 = vpop.f32.mrb[0].mxu0
    %v4432 = vadd.f32 %v4357, %v4431
    %v4433 = vpop.f32.mrb[0].mxu0
    %4434 = vdwg.mxu0
    %v4435 = vadd.f32 %v3786, %v4275
    %v4436 = vadd.f32 %v3788, %v4277
    %v4437 = vadd.f32 %v3938, %v4427
    %v4438 = vadd.f32 %v3792, %v4281
    %v4439 = vadd.f32 %v3794, %v4283
    %v4440 = vadd.f32 %v3943, %v4432
    %s4441 = scalar_lea.vmem %s4, 3744
    %v4442 = vld [vmem:[%s4441] sm:$0xff]
    %v4443 = vld [vmem:[%s4441 + $0x8] sm:$0xff]
    %v4444 = vld [vmem:[%s4441 + $0x10] sm:$0xff]
    %v4445 = vld [vmem:[%s4441 + $0x18] sm:$0xff]
    %v4446 = vld [vmem:[%s4441 + $0x20] sm:$0xff]
    %v4447 = vld [vmem:[%s4441 + $0x28] sm:$0xff]
    %v4448 = vld [vmem:[%s4441 + $0x30] sm:$0xff]
    %v4449 = vld [vmem:[%s4441 + $0x38] sm:$0xff]
    %v4450 = vld [vmem:[%s4441 + $0x40] sm:$0xff]
    %v4451 = vld [vmem:[%s4441 + $0x48] sm:$0xff]
    %v4452 = vld [vmem:[%s4441 + $0x50] sm:$0xff]
    %v4453 = vld [vmem:[%s4441 + $0x58] sm:$0xff]
    %v4454 = vld [vmem:[%s4441 + $0x60] sm:$0xff]
    %v4455 = vld [vmem:[%s4441 + $0x68] sm:$0xff]
    %v4456 = vld [vmem:[%s4441 + $0x70] sm:$0xff]
    %v4457 = vld [vmem:[%s4441 + $0x78] sm:$0xff]
    %v4458 = vld [vmem:[%s4441 + $0x80] sm:$0xff]
    %v4459 = vld [vmem:[%s4441 + $0x88] sm:$0xff]
    %v4460 = vld [vmem:[%s4441 + $0x90] sm:$0xff]
    %v4461 = vld [vmem:[%s4441 + $0x98] sm:$0xff]
    %v4462 = vld [vmem:[%s4441 + $0xa0] sm:$0xff]
    %v4463 = vld [vmem:[%s4441 + $0xa8] sm:$0xff]
    %v4464 = vld [vmem:[%s4441 + $0xb0] sm:$0xff]
    %v4465 = vld [vmem:[%s4441 + $0xb8] sm:$0xff]
    %v4466 = vld [vmem:[%s4441 + $0xc0] sm:$0xff]
    %v4467 = vld [vmem:[%s4441 + $0xc8] sm:$0xff]
    %v4468 = vld [vmem:[%s4441 + $0xd0] sm:$0xff]
    %v4469 = vld [vmem:[%s4441 + $0xd8] sm:$0xff]
    %v4470 = vld [vmem:[%s4441 + $0xe0] sm:$0xff]
    %v4471 = vld [vmem:[%s4441 + $0xe8] sm:$0xff]
    %v4472 = vld [vmem:[%s4441 + $0xf0] sm:$0xff]
    %v4473 = vld [vmem:[%s4441 + $0xf8] sm:$0xff]
    %v4474 = vld [vmem:[%s4441 + $0x100] sm:$0xff]
    %v4475 = vld [vmem:[%s4441 + $0x108] sm:$0xff]
    %v4476 = vld [vmem:[%s4441 + $0x110] sm:$0xff]
    %v4477 = vld [vmem:[%s4441 + $0x118] sm:$0xff]
    %v4478 = vld [vmem:[%s4441 + $0x120] sm:$0xff]
    %v4479 = vld [vmem:[%s4441 + $0x128] sm:$0xff]
    %v4480 = vld [vmem:[%s4441 + $0x130] sm:$0xff]
    %v4481 = vld [vmem:[%s4441 + $0x138] sm:$0xff]
    %v4482 = vld [vmem:[%s4441 + $0x140] sm:$0xff]
    %v4483 = vld [vmem:[%s4441 + $0x148] sm:$0xff]
    %v4484 = vld [vmem:[%s4441 + $0x150] sm:$0xff]
    %v4485 = vld [vmem:[%s4441 + $0x158] sm:$0xff]
    %v4486 = vld [vmem:[%s4441 + $0x160] sm:$0xff]
    %v4487 = vld [vmem:[%s4441 + $0x168] sm:$0xff]
    %v4488 = vld [vmem:[%s4441 + $0x170] sm:$0xff]
    %v4489 = vld [vmem:[%s4441 + $0x178] sm:$0xff]
    %v4490 = vld [vmem:[%s4441 + $0x180] sm:$0xff]
    %v4491 = vld [vmem:[%s4441 + $0x188] sm:$0xff]
    %v4492 = vld [vmem:[%s4441 + $0x190] sm:$0xff]
    %v4493 = vld [vmem:[%s4441 + $0x198] sm:$0xff]
    %v4494 = vld [vmem:[%s4441 + $0x1a0] sm:$0xff]
    %v4495 = vld [vmem:[%s4441 + $0x1a8] sm:$0xff]
    %v4496 = vld [vmem:[%s4441 + $0x1b0] sm:$0xff]
    %v4497 = vld [vmem:[%s4441 + $0x1b8] sm:$0xff]
    %v4498 = vld [vmem:[%s4441 + $0x1c0] sm:$0xff]
    %v4499 = vld [vmem:[%s4441 + $0x1c8] sm:$0xff]
    %v4500 = vld [vmem:[%s4441 + $0x1d0] sm:$0xff]
    %v4501 = vld [vmem:[%s4441 + $0x1d8] sm:$0xff]
    %v4502 = vld [vmem:[%s4441 + $0x1e0] sm:$0xff]
    %v4503 = vld [vmem:[%s4441 + $0x1e8] sm:$0xff]
    %v4504 = vld [vmem:[%s4441 + $0x1f0] sm:$0xff]
    %v4505 = vld [vmem:[%s4441 + $0x1f8] sm:$0xff]
    %v4506 = vld [vmem:[%s4441 + $0x200] sm:$0xff]
    %v4507 = vld [vmem:[%s4441 + $0x208] sm:$0xff]
    %v4508 = vld [vmem:[%s4441 + $0x210] sm:$0xff]
    %v4509 = vld [vmem:[%s4441 + $0x218] sm:$0xff]
    %v4510 = vld [vmem:[%s4441 + $0x220] sm:$0xff]
    %v4511 = vld [vmem:[%s4441 + $0x228] sm:$0xff]
    %v4512 = vld [vmem:[%s4441 + $0x230] sm:$0xff]
    %v4513 = vld [vmem:[%s4441 + $0x238] sm:$0xff]
    %v4514 = vld [vmem:[%s4441 + $0x240] sm:$0xff]
    %v4515 = vld [vmem:[%s4441 + $0x248] sm:$0xff]
    %v4516 = vld [vmem:[%s4441 + $0x250] sm:$0xff]
    %v4517 = vld [vmem:[%s4441 + $0x258] sm:$0xff]
    %v4518 = vld [vmem:[%s4441 + $0x260] sm:$0xff]
    %v4519 = vld [vmem:[%s4441 + $0x268] sm:$0xff]
    %v4520 = vld [vmem:[%s4441 + $0x270] sm:$0xff]
    %v4521 = vld [vmem:[%s4441 + $0x278] sm:$0xff]
    %v4522 = vld [vmem:[%s4441 + $0x280] sm:$0xff]
    %v4523 = vld [vmem:[%s4441 + $0x288] sm:$0xff]
    %v4524 = vld [vmem:[%s4441 + $0x290] sm:$0xff]
    %v4525 = vld [vmem:[%s4441 + $0x298] sm:$0xff]
    %v4526 = vld [vmem:[%s4441 + $0x2a0] sm:$0xff]
    %v4527 = vld [vmem:[%s4441 + $0x2a8] sm:$0xff]
    %v4528 = vld [vmem:[%s4441 + $0x2b0] sm:$0xff]
    %v4529 = vld [vmem:[%s4441 + $0x2b8] sm:$0xff]
    %v4530 = vld [vmem:[%s4441 + $0x2c0] sm:$0xff]
    %v4531 = vld [vmem:[%s4441 + $0x2c8] sm:$0xff]
    %v4532 = vld [vmem:[%s4441 + $0x2d0] sm:$0xff]
    %v4533 = vld [vmem:[%s4441 + $0x2d8] sm:$0xff]
    %v4534 = vld [vmem:[%s4441 + $0x2e0] sm:$0xff]
    %v4535 = vld [vmem:[%s4441 + $0x2e8] sm:$0xff]
    %v4536 = vld [vmem:[%s4441 + $0x2f0] sm:$0xff]
    %v4537 = vld [vmem:[%s4441 + $0x2f8] sm:$0xff]
    %v4538 = vld [vmem:[%s4441 + $0x300] sm:$0xff]
    %v4539 = vld [vmem:[%s4441 + $0x308] sm:$0xff]
    %v4540 = vld [vmem:[%s4441 + $0x310] sm:$0xff]
    %v4541 = vld [vmem:[%s4441 + $0x318] sm:$0xff]
    %v4542 = vld [vmem:[%s4441 + $0x320] sm:$0xff]
    %v4543 = vld [vmem:[%s4441 + $0x328] sm:$0xff]
    %v4544 = vld [vmem:[%s4441 + $0x330] sm:$0xff]
    %v4545 = vld [vmem:[%s4441 + $0x338] sm:$0xff]
    %v4546 = vld [vmem:[%s4441 + $0x340] sm:$0xff]
    %v4547 = vld [vmem:[%s4441 + $0x348] sm:$0xff]
    %v4548 = vld [vmem:[%s4441 + $0x350] sm:$0xff]
    %v4549 = vld [vmem:[%s4441 + $0x358] sm:$0xff]
    %v4550 = vld [vmem:[%s4441 + $0x360] sm:$0xff]
    %v4551 = vld [vmem:[%s4441 + $0x368] sm:$0xff]
    %v4552 = vld [vmem:[%s4441 + $0x370] sm:$0xff]
    %v4553 = vld [vmem:[%s4441 + $0x378] sm:$0xff]
    %v4554 = vld [vmem:[%s4441 + $0x380] sm:$0xff]
    %v4555 = vld [vmem:[%s4441 + $0x388] sm:$0xff]
    %v4556 = vld [vmem:[%s4441 + $0x390] sm:$0xff]
    %v4557 = vld [vmem:[%s4441 + $0x398] sm:$0xff]
    %v4558 = vld [vmem:[%s4441 + $0x3a0] sm:$0xff]
    %v4559 = vld [vmem:[%s4441 + $0x3a8] sm:$0xff]
    %v4560 = vld [vmem:[%s4441 + $0x3b0] sm:$0xff]
    %v4561 = vld [vmem:[%s4441 + $0x3b8] sm:$0xff]
    %v4562 = vld [vmem:[%s4441 + $0x3c0] sm:$0xff]
    %v4563 = vld [vmem:[%s4441 + $0x3c8] sm:$0xff]
    %v4564 = vld [vmem:[%s4441 + $0x3d0] sm:$0xff]
    %v4565 = vld [vmem:[%s4441 + $0x3d8] sm:$0xff]
    %v4566 = vld [vmem:[%s4441 + $0x3e0] sm:$0xff]
    %v4567 = vld [vmem:[%s4441 + $0x3e8] sm:$0xff]
    %v4568 = vld [vmem:[%s4441 + $0x3f0] sm:$0xff]
    %v4569 = vld [vmem:[%s4441 + $0x3f8] sm:$0xff]
    %v4570 = vld [vmem:[%s4441 + $0x400] sm:$0xff]
    %v4571 = vld [vmem:[%s4441 + $0x408] sm:$0xff]
    %v4572 = vld [vmem:[%s4441 + $0x410] sm:$0xff]
    %v4573 = vld [vmem:[%s4441 + $0x418] sm:$0xff]
    %v4574 = vld [vmem:[%s4441 + $0x420] sm:$0xff]
    %v4575 = vld [vmem:[%s4441 + $0x428] sm:$0xff]
    %v4576 = vld [vmem:[%s4441 + $0x430] sm:$0xff]
    %v4577 = vld [vmem:[%s4441 + $0x438] sm:$0xff]
    %v4578 = vld [vmem:[%s4441 + $0x440] sm:$0xff]
    %v4579 = vld [vmem:[%s4441 + $0x448] sm:$0xff]
    %v4580 = vld [vmem:[%s4441 + $0x450] sm:$0xff]
    %v4581 = vld [vmem:[%s4441 + $0x458] sm:$0xff]
    %v4582 = vld [vmem:[%s4441 + $0x460] sm:$0xff]
    %v4583 = vld [vmem:[%s4441 + $0x468] sm:$0xff]
    %v4584 = vld [vmem:[%s4441 + $0x470] sm:$0xff]
    %v4585 = vld [vmem:[%s4441 + $0x478] sm:$0xff]
    %v4586 = vld [vmem:[%s4441 + $0x480] sm:$0xff]
    %v4587 = vld [vmem:[%s4441 + $0x488] sm:$0xff]
    %v4588 = vld [vmem:[%s4441 + $0x490] sm:$0xff]
    %v4589 = vld [vmem:[%s4441 + $0x498] sm:$0xff]
    %v4590 = vld [vmem:[%s4441 + $0x4a0] sm:$0xff]
    %v4591 = vld [vmem:[%s4441 + $0x4a8] sm:$0xff]
    %v4592 = vld [vmem:[%s4441 + $0x4b0] sm:$0xff]
    %v4593 = vld [vmem:[%s4441 + $0x4b8] sm:$0xff]
    %v4594 = vld [vmem:[%s4441 + $0x4c0] sm:$0xff]
    %v4595 = vld [vmem:[%s4441 + $0x4c8] sm:$0xff]
    %v4596 = vld [vmem:[%s4441 + $0x4d0] sm:$0xff]
    %v4597 = vld [vmem:[%s4441 + $0x4d8] sm:$0xff]
    %v4604 = vrot.slane %v3004, 2
    %v4605 = vrot.slane %v3008, 2
    %v4606 = vsel %vm887, %v4604, %v4605
    %v4607 = vrot.slane %v3005, 2
    %v4608 = vrot.slane %v3009, 2
    %v4609 = vsel %vm887, %v4607, %v4608
    %v4610 = vrot.slane %v3006, 2
    %v4611 = vrot.slane %v3010, 2
    %v4612 = vsel %vm887, %v4610, %v4611
    %v4613 = vrot.slane %v3007, 2
    %v4614 = vrot.slane %v3011, 2
    %v4615 = vsel %vm887, %v4613, %v4614
    %v4622 = vsel %vm3325, %v4615, 0
    %v4624 = vsel %vm3325, %v4614, 0
    %4626 = vmatprep.subr.mxu0 %v4443
    %4627 = vmatpush1.msra.mxu0 %v4442
    %4628 = vmatprep.subr.mxu0 %v4446
    %4629 = vmatpush1.msra.mxu0 %v4445
    %4630 = vmatprep.subr.mxu0 %v4449
    %4631 = vmatpush1.msra.mxu0 %v4448
    %4632 = vmatprep.subr.mxu0 %v4452
    %4633 = vmatpush1.msra.mxu0 %v4451
    %4634 = vmatprep.subr.mxu0 %v4455
    %4635 = vmatpush1.msra.mxu0 %v4454
    %4636 = vmatprep.subr.mxu0 %v4458
    %4637 = vmatpush1.msra.mxu0 %v4457
    %4638 = vmatprep.subr.mxu0 %v4461
    %4639 = vmatpush1.msra.mxu0 %v4460
    %4640 = vmatprep.subr.mxu0 %v4464
    %4641 = vmatpush1.msra.mxu0 %v4463
    %4642 = vmatprep.subr.mxu0 %v4467
    %4643 = vmatpush1.msra.mxu0 %v4466
    %4644 = vmatprep.subr.mxu0 %v4470
    %4645 = vmatpush1.msra.mxu0 %v4469
    %4646 = vmatprep.subr.mxu0 %v4473
    %4647 = vmatpush1.msra.mxu0 %v4472
    %4648 = vmatprep.subr.mxu0 %v4476
    %4649 = vmatpush1.msra.mxu0 %v4475
    %4650 = vmatprep.subr.mxu0 %v4479
    %4651 = vmatpush1.msra.mxu0 %v4478
    %4652 = vmatprep.subr.mxu0 %v4482
    %4653 = vmatpush1.msra.mxu0 %v4481
    %4654 = vmatprep.subr.mxu0 %v4485
    %4655 = vmatpush1.msra.mxu0 %v4484
    %4656 = vmatprep.subr.mxu0 %v4488
    %4657 = vmatpush1.msra.mxu0 %v4487
    %4658 = vmatprep.subr.mxu0 %v4491
    %4659 = vmatpush1.msra.mxu0 %v4490
    %4660 = vmatprep.subr.mxu0 %v4494
    %4661 = vmatpush1.msra.mxu0 %v4493
    %4662 = vmatprep.subr.mxu0 %v4497
    %4663 = vmatpush1.msra.mxu0 %v4496
    %4664 = vmatprep.subr.mxu0 %v4500
    %4665 = vmatpush1.msra.mxu0 %v4499
    %4666 = vmatprep.subr.mxu0 %v4503
    %4667 = vmatpush1.msra.mxu0 %v4502
    %4668 = vmatprep.subr.mxu0 %v4506
    %4669 = vmatpush1.msra.mxu0 %v4505
    %4670 = vmatprep.subr.mxu0 %v4509
    %4671 = vmatpush1.msra.mxu0 %v4508
    %4672 = vmatprep.subr.mxu0 %v4512
    %4673 = vmatpush1.msra.mxu0 %v4511
    %4674 = vmatprep.subr.mxu0 %v4515
    %4675 = vmatpush1.msra.mxu0 %v4514
    %4676 = vmatprep.subr.mxu0 %v4518
    %4677 = vmatpush1.msra.mxu0 %v4517
    %4678 = vmatprep.subr.mxu0 %v4521
    %4679 = vmatpush1.msra.mxu0 %v4520
    %4680 = vmatprep.subr.mxu0 %v4524
    %4681 = vmatpush1.msra.mxu0 %v4523
    %4682 = vmatprep.subr.mxu0 %v4527
    %4683 = vmatpush1.msra.mxu0 %v4526
    %4684 = vmatprep.subr.mxu0 %v4530
    %4685 = vmatpush1.msra.mxu0 %v4529
    %4686 = vmatprep.subr.mxu0 %v4533
    %4687 = vmatpush1.msra.mxu0 %v4532
    %4688 = vmatprep.subr.mxu0 %v4536
    %4689 = vmatpush1.msra.mxu0 %v4535
    %4690 = vmatprep.mubr.f32.mxu0 %v4609
    %4691 = vmatmul.mubr.f32.gmra.mrb[0].mxu0 %v4606
    %v4692 = vpop.f32.mrb[0].mxu0
    %v4693 = vadd.f32 0.0, %v4692
    %v4694 = vpop.f32.mrb[0].mxu0
    %v4695 = vadd.f32 0.0, %v4694
    %4696 = vmatprep.mubr.f32.mxu0 %v4608
    %4697 = vmatmul.mubr.f32.gmra.mrb[0].mxu0 %v4605
    %v4698 = vpop.f32.mrb[0].mxu0
    %v4699 = vadd.f32 0.0, %v4698
    %v4700 = vpop.f32.mrb[0].mxu0
    %v4701 = vadd.f32 0.0, %v4700
    %4702 = vdwg.mxu0
    %4703 = vmatprep.subr.mxu0 %v4539
    %4704 = vmatpush1.msra.mxu0 %v4538
    %4705 = vmatprep.subr.mxu0 %v4542
    %4706 = vmatpush1.msra.mxu0 %v4541
    %4707 = vmatprep.subr.mxu0 %v4545
    %4708 = vmatpush1.msra.mxu0 %v4544
    %4709 = vmatprep.subr.mxu0 %v4548
    %4710 = vmatpush1.msra.mxu0 %v4547
    %4711 = vmatprep.subr.mxu0 %v4551
    %4712 = vmatpush1.msra.mxu0 %v4550
    %4713 = vmatprep.subr.mxu0 %v4554
    %4714 = vmatpush1.msra.mxu0 %v4553
    %4715 = vmatprep.subr.mxu0 %v4557
    %4716 = vmatpush1.msra.mxu0 %v4556
    %4717 = vmatprep.subr.mxu0 %v4560
    %4718 = vmatpush1.msra.mxu0 %v4559
    %4719 = vmatprep.subr.mxu0 %v4563
    %4720 = vmatpush1.msra.mxu0 %v4562
    %4721 = vmatprep.subr.mxu0 %v4566
    %4722 = vmatpush1.msra.mxu0 %v4565
    %4723 = vmatprep.subr.mxu0 %v4569
    %4724 = vmatpush1.msra.mxu0 %v4568
    %4725 = vmatprep.subr.mxu0 %v4572
    %4726 = vmatpush1.msra.mxu0 %v4571
    %4727 = vmatprep.subr.mxu0 %v4575
    %4728 = vmatpush1.msra.mxu0 %v4574
    %4729 = vmatprep.subr.mxu0 %v4578
    %4730 = vmatpush1.msra.mxu0 %v4577
    %4731 = vmatprep.subr.mxu0 %v4581
    %4732 = vmatpush1.msra.mxu0 %v4580
    %4733 = vmatprep.subr.mxu0 %v4584
    %4734 = vmatpush1.msra.mxu0 %v4583
    %4735 = vmatprep.subr.mxu0 %v4587
    %4736 = vmatpush1.msra.mxu0 %v4586
    %4737 = vmatprep.subr.mxu0 %v4590
    %4738 = vmatpush1.msra.mxu0 %v4589
    %4739 = vmatprep.subr.mxu0 %v4593
    %4740 = vmatpush1.msra.mxu0 %v4592
    %4741 = vmatprep.subr.mxu0 %v4596
    %4742 = vmatpush1.msra.mxu0 %v4595
    %4743 = vmatprep.subr.mxu0 0.0
    %4744 = vmatpush1.msra.mxu0 0.0
    %4745 = vmatprep.subr.mxu0 0.0
    %4746 = vmatpush1.msra.mxu0 0.0
    %4747 = vmatprep.subr.mxu0 0.0
    %4748 = vmatpush1.msra.mxu0 0.0
    %4749 = vmatprep.subr.mxu0 0.0
    %4750 = vmatpush1.msra.mxu0 0.0
    %4751 = vmatprep.subr.mxu0 0.0
    %4752 = vmatpush1.msra.mxu0 0.0
    %4753 = vmatprep.subr.mxu0 0.0
    %4754 = vmatpush1.msra.mxu0 0.0
    %4755 = vmatprep.subr.mxu0 0.0
    %4756 = vmatpush1.msra.mxu0 0.0
    %4757 = vmatprep.subr.mxu0 0.0
    %4758 = vmatpush1.msra.mxu0 0.0
    %4759 = vmatprep.subr.mxu0 0.0
    %4760 = vmatpush1.msra.mxu0 0.0
    %4761 = vmatprep.subr.mxu0 0.0
    %4762 = vmatpush1.msra.mxu0 0.0
    %4763 = vmatprep.subr.mxu0 0.0
    %4764 = vmatpush1.msra.mxu0 0.0
    %4765 = vmatprep.subr.mxu0 0.0
    %4766 = vmatpush1.msra.mxu0 0.0
    %4767 = vmatprep.mubr.f32.mxu0 %v4622
    %4768 = vmatmul.mubr.f32.gmra.mrb[0].mxu0 %v4612
    %v4769 = vpop.f32.mrb[0].mxu0
    %v4770 = vadd.f32 %v4693, %v4769
    %v4771 = vpop.f32.mrb[0].mxu0
    %v4772 = vadd.f32 %v4695, %v4771
    %4773 = vmatprep.mubr.f32.mxu0 %v4624
    %4774 = vmatmul.mubr.f32.gmra.mrb[0].mxu0 %v4611
    %v4775 = vpop.f32.mrb[0].mxu0
    %v4776 = vadd.f32 %v4699, %v4775
    %v4777 = vpop.f32.mrb[0].mxu0
    %v4778 = vadd.f32 %v4701, %v4777
    %4779 = vdwg.mxu0
    %4780 = vmatprep.subr.mxu0 0.0
    %4781 = vmatpush1.msra.mxu0 %v4444
    %4782 = vmatprep.subr.mxu0 0.0
    %4783 = vmatpush1.msra.mxu0 %v4447
    %4784 = vmatprep.subr.mxu0 0.0
    %4785 = vmatpush1.msra.mxu0 %v4450
    %4786 = vmatprep.subr.mxu0 0.0
    %4787 = vmatpush1.msra.mxu0 %v4453
    %4788 = vmatprep.subr.mxu0 0.0
    %4789 = vmatpush1.msra.mxu0 %v4456
    %4790 = vmatprep.subr.mxu0 0.0
    %4791 = vmatpush1.msra.mxu0 %v4459
    %4792 = vmatprep.subr.mxu0 0.0
    %4793 = vmatpush1.msra.mxu0 %v4462
    %4794 = vmatprep.subr.mxu0 0.0
    %4795 = vmatpush1.msra.mxu0 %v4465
    %4796 = vmatprep.subr.mxu0 0.0
    %4797 = vmatpush1.msra.mxu0 %v4468
    %4798 = vmatprep.subr.mxu0 0.0
    %4799 = vmatpush1.msra.mxu0 %v4471
    %4800 = vmatprep.subr.mxu0 0.0
    %4801 = vmatpush1.msra.mxu0 %v4474
    %4802 = vmatprep.subr.mxu0 0.0
    %4803 = vmatpush1.msra.mxu0 %v4477
    %4804 = vmatprep.subr.mxu0 0.0
    %4805 = vmatpush1.msra.mxu0 %v4480
    %4806 = vmatprep.subr.mxu0 0.0
    %4807 = vmatpush1.msra.mxu0 %v4483
    %4808 = vmatprep.subr.mxu0 0.0
    %4809 = vmatpush1.msra.mxu0 %v4486
    %4810 = vmatprep.subr.mxu0 0.0
    %4811 = vmatpush1.msra.mxu0 %v4489
    %4812 = vmatprep.subr.mxu0 0.0
    %4813 = vmatpush1.msra.mxu0 %v4492
    %4814 = vmatprep.subr.mxu0 0.0
    %4815 = vmatpush1.msra.mxu0 %v4495
    %4816 = vmatprep.subr.mxu0 0.0
    %4817 = vmatpush1.msra.mxu0 %v4498
    %4818 = vmatprep.subr.mxu0 0.0
    %4819 = vmatpush1.msra.mxu0 %v4501
    %4820 = vmatprep.subr.mxu0 0.0
    %4821 = vmatpush1.msra.mxu0 %v4504
    %4822 = vmatprep.subr.mxu0 0.0
    %4823 = vmatpush1.msra.mxu0 %v4507
    %4824 = vmatprep.subr.mxu0 0.0
    %4825 = vmatpush1.msra.mxu0 %v4510
    %4826 = vmatprep.subr.mxu0 0.0
    %4827 = vmatpush1.msra.mxu0 %v4513
    %4828 = vmatprep.subr.mxu0 0.0
    %4829 = vmatpush1.msra.mxu0 %v4516
    %4830 = vmatprep.subr.mxu0 0.0
    %4831 = vmatpush1.msra.mxu0 %v4519
    %4832 = vmatprep.subr.mxu0 0.0
    %4833 = vmatpush1.msra.mxu0 %v4522
    %4834 = vmatprep.subr.mxu0 0.0
    %4835 = vmatpush1.msra.mxu0 %v4525
    %4836 = vmatprep.subr.mxu0 0.0
    %4837 = vmatpush1.msra.mxu0 %v4528
    %4838 = vmatprep.subr.mxu0 0.0
    %4839 = vmatpush1.msra.mxu0 %v4531
    %4840 = vmatprep.subr.mxu0 0.0
    %4841 = vmatpush1.msra.mxu0 %v4534
    %4842 = vmatprep.subr.mxu0 0.0
    %4843 = vmatpush1.msra.mxu0 %v4537
    %4844 = vmatprep.mubr.f32.mxu0 %v4609
    %4845 = vmatmul.mubr.f32.gmra.mrb[0].mxu0 %v4606
    %v4846 = vpop.f32.mrb[0].mxu0
    %v4847 = vadd.f32 0.0, %v4846
    %v4848 = vpop.f32.mrb[0].mxu0
    %4849 = vmatprep.mubr.f32.mxu0 %v4608
    %4850 = vmatmul.mubr.f32.gmra.mrb[0].mxu0 %v4605
    %v4851 = vpop.f32.mrb[0].mxu0
    %v4852 = vadd.f32 0.0, %v4851
    %v4853 = vpop.f32.mrb[0].mxu0
    %4854 = vdwg.mxu0
    %4855 = vmatprep.subr.mxu0 0.0
    %4856 = vmatpush1.msra.mxu0 %v4540
    %4857 = vmatprep.subr.mxu0 0.0
    %4858 = vmatpush1.msra.mxu0 %v4543
    %4859 = vmatprep.subr.mxu0 0.0
    %4860 = vmatpush1.msra.mxu0 %v4546
    %4861 = vmatprep.subr.mxu0 0.0
    %4862 = vmatpush1.msra.mxu0 %v4549
    %4863 = vmatprep.subr.mxu0 0.0
    %4864 = vmatpush1.msra.mxu0 %v4552
    %4865 = vmatprep.subr.mxu0 0.0
    %4866 = vmatpush1.msra.mxu0 %v4555
    %4867 = vmatprep.subr.mxu0 0.0
    %4868 = vmatpush1.msra.mxu0 %v4558
    %4869 = vmatprep.subr.mxu0 0.0
    %4870 = vmatpush1.msra.mxu0 %v4561
    %4871 = vmatprep.subr.mxu0 0.0
    %4872 = vmatpush1.msra.mxu0 %v4564
    %4873 = vmatprep.subr.mxu0 0.0
    %4874 = vmatpush1.msra.mxu0 %v4567
    %4875 = vmatprep.subr.mxu0 0.0
    %4876 = vmatpush1.msra.mxu0 %v4570
    %4877 = vmatprep.subr.mxu0 0.0
    %4878 = vmatpush1.msra.mxu0 %v4573
    %4879 = vmatprep.subr.mxu0 0.0
    %4880 = vmatpush1.msra.mxu0 %v4576
    %4881 = vmatprep.subr.mxu0 0.0
    %4882 = vmatpush1.msra.mxu0 %v4579
    %4883 = vmatprep.subr.mxu0 0.0
    %4884 = vmatpush1.msra.mxu0 %v4582
    %4885 = vmatprep.subr.mxu0 0.0
    %4886 = vmatpush1.msra.mxu0 %v4585
    %4887 = vmatprep.subr.mxu0 0.0
    %4888 = vmatpush1.msra.mxu0 %v4588
    %4889 = vmatprep.subr.mxu0 0.0
    %4890 = vmatpush1.msra.mxu0 %v4591
    %4891 = vmatprep.subr.mxu0 0.0
    %4892 = vmatpush1.msra.mxu0 %v4594
    %4893 = vmatprep.subr.mxu0 0.0
    %4894 = vmatpush1.msra.mxu0 %v4597
    %4895 = vmatprep.subr.mxu0 0.0
    %4896 = vmatpush1.msra.mxu0 0.0
    %4897 = vmatprep.subr.mxu0 0.0
    %4898 = vmatpush1.msra.mxu0 0.0
    %4899 = vmatprep.subr.mxu0 0.0
    %4900 = vmatpush1.msra.mxu0 0.0
    %4901 = vmatprep.subr.mxu0 0.0
    %4902 = vmatpush1.msra.mxu0 0.0
    %4903 = vmatprep.subr.mxu0 0.0
    %4904 = vmatpush1.msra.mxu0 0.0
    %4905 = vmatprep.subr.mxu0 0.0
    %4906 = vmatpush1.msra.mxu0 0.0
    %4907 = vmatprep.subr.mxu0 0.0
    %4908 = vmatpush1.msra.mxu0 0.0
    %4909 = vmatprep.subr.mxu0 0.0
    %4910 = vmatpush1.msra.mxu0 0.0
    %4911 = vmatprep.subr.mxu0 0.0
    %4912 = vmatpush1.msra.mxu0 0.0
    %4913 = vmatprep.subr.mxu0 0.0
    %4914 = vmatpush1.msra.mxu0 0.0
    %4915 = vmatprep.subr.mxu0 0.0
    %4916 = vmatpush1.msra.mxu0 0.0
    %4917 = vmatprep.subr.mxu0 0.0
    %4918 = vmatpush1.msra.mxu0 0.0
    %4919 = vmatprep.mubr.f32.mxu0 %v4622
    %4920 = vmatmul.mubr.f32.gmra.mrb[0].mxu0 %v4612
    %v4921 = vpop.f32.mrb[0].mxu0
    %v4922 = vadd.f32 %v4847, %v4921
    %v4923 = vpop.f32.mrb[0].mxu0
    %4924 = vmatprep.mubr.f32.mxu0 %v4624
    %4925 = vmatmul.mubr.f32.gmra.mrb[0].mxu0 %v4611
    %v4926 = vpop.f32.mrb[0].mxu0
    %v4927 = vadd.f32 %v4852, %v4926
    %v4928 = vpop.f32.mrb[0].mxu0
    %4929 = vdwg.mxu0
    %v4930 = vadd.f32 %v4435, %v4770
    %v4931 = vadd.f32 %v4436, %v4772
    %v4932 = vadd.f32 %v4437, %v4922
    %v4933 = vadd.f32 %v4438, %v4776
    %v4934 = vadd.f32 %v4439, %v4778
    %v4935 = vadd.f32 %v4440, %v4927
    %v4936 = vld [vmem:[%s5] sm:$0x7]
    %v4938 = vlaneseq
    %v4939 = vshrl.u32 %v4938, 7
    %v4940 = vsub.s32 0, %v4939
    %v4941 = vrot.slane %v4936, %v4940
    %v4942 = vlaneseq
    %v4943 = vshrl.u32 %v4942, 7
    %v4944 = vsub.s32 1, %v4943
    %v4945 = vrot.slane %v4936, %v4944
    %v4946 = vlaneseq
    %v4947 = vshrl.u32 %v4946, 7
    %v4948 = vsub.s32 2, %v4947
    %v4949 = vrot.slane %v4936, %v4948
    %v4953 = vadd.f32 %v4930, %v4941
    %v4954 = vadd.f32 %v4931, %v4945
    %v4955 = vadd.f32 %v4932, %v4949
    %v4956 = vadd.f32 %v4933, %v4941
    %v4957 = vadd.f32 %v4934, %v4945
    %v4958 = vadd.f32 %v4935, %v4949
    %v4959 = vmax.f32 %v4953, 0.0
    %v4960 = vmax.f32 %v4954, 0.0
    %v4961 = vmax.f32 %v4955, 0.0
    %v4962 = vmax.f32 %v4956, 0.0
    %v4963 = vmax.f32 %v4957, 0.0
    %v4964 = vmax.f32 %v4958, 0.0
    %v4965 = vld [vmem:[%s6] sm:$0xff]
    %v4966 = vld [vmem:[%s6 + $0x8] sm:$0xff]
    %v4967 = vld [vmem:[%s6 + $0x10] sm:$0xff]
    %v4968 = vld [vmem:[%s6 + $0x18] sm:$0xff]
    %v4969 = vld [vmem:[%s6 + $0x20] sm:$0xff]
    %v4970 = vld [vmem:[%s6 + $0x28] sm:$0xff]
    %v4971 = vld [vmem:[%s6 + $0x30] sm:$0xff]
    %v4972 = vld [vmem:[%s6 + $0x38] sm:$0xff]
    %v4973 = vld [vmem:[%s6 + $0x40] sm:$0xff]
    %v4974 = vld [vmem:[%s6 + $0x48] sm:$0xff]
    %v4975 = vld [vmem:[%s6 + $0x50] sm:$0xff]
    %v4976 = vld [vmem:[%s6 + $0x58] sm:$0xff]
    %v4977 = vld [vmem:[%s6 + $0x60] sm:$0xff]
    %v4978 = vld [vmem:[%s6 + $0x68] sm:$0xff]
    %v4979 = vld [vmem:[%s6 + $0x70] sm:$0xff]
    %v4980 = vld [vmem:[%s6 + $0x78] sm:$0xff]
    %v4981 = vld [vmem:[%s6 + $0x80] sm:$0xff]
    %v4982 = vld [vmem:[%s6 + $0x88] sm:$0xff]
    %v4983 = vld [vmem:[%s6 + $0x90] sm:$0xff]
    %v4984 = vld [vmem:[%s6 + $0x98] sm:$0xff]
    %v4985 = vld [vmem:[%s6 + $0xa0] sm:$0xff]
    %v4986 = vld [vmem:[%s6 + $0xa8] sm:$0xff]
    %v4987 = vld [vmem:[%s6 + $0xb0] sm:$0xff]
    %v4988 = vld [vmem:[%s6 + $0xb8] sm:$0xff]
    %v4989 = vld [vmem:[%s6 + $0xc0] sm:$0xff]
    %v4990 = vld [vmem:[%s6 + $0xc8] sm:$0xff]
    %v4991 = vld [vmem:[%s6 + $0xd0] sm:$0xff]
    %v4992 = vld [vmem:[%s6 + $0xd8] sm:$0xff]
    %v4993 = vld [vmem:[%s6 + $0xe0] sm:$0xff]
    %v4994 = vld [vmem:[%s6 + $0xe8] sm:$0xff]
    %v4995 = vld [vmem:[%s6 + $0xf0] sm:$0xff]
    %v4996 = vld [vmem:[%s6 + $0xf8] sm:$0xff]
    %v4997 = vld [vmem:[%s6 + $0x100] sm:$0xff]
    %v4998 = vld [vmem:[%s6 + $0x108] sm:$0xff]
    %v4999 = vld [vmem:[%s6 + $0x110] sm:$0xff]
    %v5000 = vld [vmem:[%s6 + $0x118] sm:$0xff]
    %v5001 = vld [vmem:[%s6 + $0x120] sm:$0xff]
    %v5002 = vld [vmem:[%s6 + $0x128] sm:$0xff]
    %v5003 = vld [vmem:[%s6 + $0x130] sm:$0xff]
    %v5004 = vld [vmem:[%s6 + $0x138] sm:$0xff]
    %s5005 = scalar_lea.vmem %s6, 320
    %v5006 = vld [vmem:[%s5005] sm:$0xff]
    %v5007 = vld [vmem:[%s5005 + $0x8] sm:$0xff]
    %v5008 = vld [vmem:[%s5005 + $0x10] sm:$0xff]
    %v5009 = vld [vmem:[%s5005 + $0x18] sm:$0xff]
    %v5010 = vld [vmem:[%s5005 + $0x20] sm:$0xff]
    %v5011 = vld [vmem:[%s5005 + $0x28] sm:$0xff]
    %v5012 = vld [vmem:[%s5005 + $0x30] sm:$0xff]
    %v5013 = vld [vmem:[%s5005 + $0x38] sm:$0xff]
    %v5014 = vld [vmem:[%s5005 + $0x40] sm:$0xff]
    %v5015 = vld [vmem:[%s5005 + $0x48] sm:$0xff]
    %v5016 = vld [vmem:[%s5005 + $0x50] sm:$0xff]
    %v5017 = vld [vmem:[%s5005 + $0x58] sm:$0xff]
    %v5018 = vld [vmem:[%s5005 + $0x60] sm:$0xff]
    %v5019 = vld [vmem:[%s5005 + $0x68] sm:$0xff]
    %v5020 = vld [vmem:[%s5005 + $0x70] sm:$0xff]
    %v5021 = vld [vmem:[%s5005 + $0x78] sm:$0xff]
    %v5022 = vld [vmem:[%s5005 + $0x80] sm:$0xff]
    %v5023 = vld [vmem:[%s5005 + $0x88] sm:$0xff]
    %v5024 = vld [vmem:[%s5005 + $0x90] sm:$0xff]
    %v5025 = vld [vmem:[%s5005 + $0x98] sm:$0xff]
    %v5026 = vld [vmem:[%s5005 + $0xa0] sm:$0xff]
    %v5027 = vld [vmem:[%s5005 + $0xa8] sm:$0xff]
    %v5028 = vld [vmem:[%s5005 + $0xb0] sm:$0xff]
    %v5029 = vld [vmem:[%s5005 + $0xb8] sm:$0xff]
    %v5030 = vld [vmem:[%s5005 + $0xc0] sm:$0xff]
    %v5031 = vld [vmem:[%s5005 + $0xc8] sm:$0xff]
    %v5032 = vld [vmem:[%s5005 + $0xd0] sm:$0xff]
    %v5033 = vld [vmem:[%s5005 + $0xd8] sm:$0xff]
    %v5034 = vld [vmem:[%s5005 + $0xe0] sm:$0xff]
    %v5035 = vld [vmem:[%s5005 + $0xe8] sm:$0xff]
    %v5036 = vld [vmem:[%s5005 + $0xf0] sm:$0xff]
    %v5037 = vld [vmem:[%s5005 + $0xf8] sm:$0xff]
    %v5038 = vld [vmem:[%s5005 + $0x100] sm:$0xff]
    %v5039 = vld [vmem:[%s5005 + $0x108] sm:$0xff]
    %v5040 = vld [vmem:[%s5005 + $0x110] sm:$0xff]
    %v5041 = vld [vmem:[%s5005 + $0x118] sm:$0xff]
    %v5042 = vld [vmem:[%s5005 + $0x120] sm:$0xff]
    %v5043 = vld [vmem:[%s5005 + $0x128] sm:$0xff]
    %v5044 = vld [vmem:[%s5005 + $0x130] sm:$0xff]
    %v5045 = vld [vmem:[%s5005 + $0x138] sm:$0xff]
    %v5049 = vrot.slane %v4959, 2
    %v5050 = vrot.slane %v4960, 2
    %v5051 = vrot.slane %v4961, 2
    %v5054 = vsel %vm131, %v5051, 0
    %5056 = vmatprep.subr.mxu0 0.0
    %5057 = vmatpush1.msra.mxu0 %v5006
    %5058 = vmatprep.subr.mxu0 0.0
    %5059 = vmatpush1.msra.mxu0 %v5007
    %5060 = vmatprep.subr.mxu0 0.0
    %5061 = vmatpush1.msra.mxu0 %v5008
    %5062 = vmatprep.subr.mxu0 0.0
    %5063 = vmatpush1.msra.mxu0 %v5009
    %5064 = vmatprep.subr.mxu0 0.0
    %5065 = vmatpush1.msra.mxu0 %v5010
    %5066 = vmatprep.subr.mxu0 0.0
    %5067 = vmatpush1.msra.mxu0 %v5011
    %5068 = vmatprep.subr.mxu0 0.0
    %5069 = vmatpush1.msra.mxu0 %v5012
    %5070 = vmatprep.subr.mxu0 0.0
    %5071 = vmatpush1.msra.mxu0 %v5013
    %5072 = vmatprep.subr.mxu0 0.0
    %5073 = vmatpush1.msra.mxu0 %v5014
    %5074 = vmatprep.subr.mxu0 0.0
    %5075 = vmatpush1.msra.mxu0 %v5015
    %5076 = vmatprep.subr.mxu0 0.0
    %5077 = vmatpush1.msra.mxu0 %v5016
    %5078 = vmatprep.subr.mxu0 0.0
    %5079 = vmatpush1.msra.mxu0 %v5017
    %5080 = vmatprep.subr.mxu0 0.0
    %5081 = vmatpush1.msra.mxu0 %v5018
    %5082 = vmatprep.subr.mxu0 0.0
    %5083 = vmatpush1.msra.mxu0 %v5019
    %5084 = vmatprep.subr.mxu0 0.0
    %5085 = vmatpush1.msra.mxu0 %v5020
    %5086 = vmatprep.subr.mxu0 0.0
    %5087 = vmatpush1.msra.mxu0 %v5021
    %5088 = vmatprep.subr.mxu0 0.0
    %5089 = vmatpush1.msra.mxu0 %v5022
    %5090 = vmatprep.subr.mxu0 0.0
    %5091 = vmatpush1.msra.mxu0 %v5023
    %5092 = vmatprep.subr.mxu0 0.0
    %5093 = vmatpush1.msra.mxu0 %v5024
    %5094 = vmatprep.subr.mxu0 0.0
    %5095 = vmatpush1.msra.mxu0 %v5025
    %5096 = vmatprep.subr.mxu0 0.0
    %5097 = vmatpush1.msra.mxu0 %v5026
    %5098 = vmatprep.subr.mxu0 0.0
    %5099 = vmatpush1.msra.mxu0 %v5027
    %5100 = vmatprep.subr.mxu0 0.0
    %5101 = vmatpush1.msra.mxu0 %v5028
    %5102 = vmatprep.subr.mxu0 0.0
    %5103 = vmatpush1.msra.mxu0 %v5029
    %5104 = vmatprep.subr.mxu0 0.0
    %5105 = vmatpush1.msra.mxu0 %v5030
    %5106 = vmatprep.subr.mxu0 0.0
    %5107 = vmatpush1.msra.mxu0 %v5031
    %5108 = vmatprep.subr.mxu0 0.0
    %5109 = vmatpush1.msra.mxu0 %v5032
    %5110 = vmatprep.subr.mxu0 0.0
    %5111 = vmatpush1.msra.mxu0 %v5033
    %5112 = vmatprep.subr.mxu0 0.0
    %5113 = vmatpush1.msra.mxu0 %v5034
    %5114 = vmatprep.subr.mxu0 0.0
    %5115 = vmatpush1.msra.mxu0 %v5035
    %5116 = vmatprep.subr.mxu0 0.0
    %5117 = vmatpush1.msra.mxu0 %v5036
    %5118 = vmatprep.subr.mxu0 0.0
    %5119 = vmatpush1.msra.mxu0 %v5037
    %5120 = vmatprep.mubr.f32.mxu0 %v5050
    %5121 = vmatmul.mubr.f32.gmra.mrb[0].mxu0 %v5049
    %v5122 = vpop.f32.mrb[0].mxu0
    %v5123 = vadd.f32 0.0, %v5122
    %v5124 = vpop.f32.mrb[0].mxu0
    %5125 = vdwg.mxu0
    %5126 = vmatprep.subr.mxu0 0.0
    %5127 = vmatpush1.msra.mxu0 %v5038
    %5128 = vmatprep.subr.mxu0 0.0
    %5129 = vmatpush1.msra.mxu0 %v5039
    %5130 = vmatprep.subr.mxu0 0.0
    %5131 = vmatpush1.msra.mxu0 %v5040
    %5132 = vmatprep.subr.mxu0 0.0
    %5133 = vmatpush1.msra.mxu0 %v5041
    %5134 = vmatprep.subr.mxu0 0.0
    %5135 = vmatpush1.msra.mxu0 %v5042
    %5136 = vmatprep.subr.mxu0 0.0
    %5137 = vmatpush1.msra.mxu0 %v5043
    %5138 = vmatprep.subr.mxu0 0.0
    %5139 = vmatpush1.msra.mxu0 %v5044
    %5140 = vmatprep.subr.mxu0 0.0
    %5141 = vmatpush1.msra.mxu0 %v5045
    %5142 = vmatprep.subr.mxu0 0.0
    %5143 = vmatpush1.msra.mxu0 0.0
    %5144 = vmatprep.subr.mxu0 0.0
    %5145 = vmatpush1.msra.mxu0 0.0
    %5146 = vmatprep.subr.mxu0 0.0
    %5147 = vmatpush1.msra.mxu0 0.0
    %5148 = vmatprep.subr.mxu0 0.0
    %5149 = vmatpush1.msra.mxu0 0.0
    %5150 = vmatprep.subr.mxu0 0.0
    %5151 = vmatpush1.msra.mxu0 0.0
    %5152 = vmatprep.subr.mxu0 0.0
    %5153 = vmatpush1.msra.mxu0 0.0
    %5154 = vmatprep.subr.mxu0 0.0
    %5155 = vmatpush1.msra.mxu0 0.0
    %5156 = vmatprep.subr.mxu0 0.0
    %5157 = vmatpush1.msra.mxu0 0.0
    %5158 = vmatprep.subr.mxu0 0.0
    %5159 = vmatpush1.msra.mxu0 0.0
    %5160 = vmatprep.subr.mxu0 0.0
    %5161 = vmatpush1.msra.mxu0 0.0
    %5162 = vmatprep.subr.mxu0 0.0
    %5163 = vmatpush1.msra.mxu0 0.0
    %5164 = vmatprep.subr.mxu0 0.0
    %5165 = vmatpush1.msra.mxu0 0.0
    %5166 = vmatprep.subr.mxu0 0.0
    %5167 = vmatpush1.msra.mxu0 0.0
    %5168 = vmatprep.subr.mxu0 0.0
    %5169 = vmatpush1.msra.mxu0 0.0
    %5170 = vmatprep.subr.mxu0 0.0
    %5171 = vmatpush1.msra.mxu0 0.0
    %5172 = vmatprep.subr.mxu0 0.0
    %5173 = vmatpush1.msra.mxu0 0.0
    %5174 = vmatprep.subr.mxu0 0.0
    %5175 = vmatpush1.msra.mxu0 0.0
    %5176 = vmatprep.subr.mxu0 0.0
    %5177 = vmatpush1.msra.mxu0 0.0
    %5178 = vmatprep.subr.mxu0 0.0
    %5179 = vmatpush1.msra.mxu0 0.0
    %5180 = vmatprep.subr.mxu0 0.0
    %5181 = vmatpush1.msra.mxu0 0.0
    %5182 = vmatprep.subr.mxu0 0.0
    %5183 = vmatpush1.msra.mxu0 0.0
    %5184 = vmatprep.subr.mxu0 0.0
    %5185 = vmatpush1.msra.mxu0 0.0
    %5186 = vmatprep.subr.mxu0 0.0
    %5187 = vmatpush1.msra.mxu0 0.0
    %5188 = vmatprep.subr.mxu0 0.0
    %5189 = vmatpush1.msra.mxu0 0.0
    %5190 = vmatprep.mubr.f32.mxu0 0.0
    %5191 = vmatmul.mubr.f32.gmra.mrb[0].mxu0 %v5054
    %v5192 = vpop.f32.mrb[0].mxu0
    %v5193 = vadd.f32 %v5123, %v5192
    %v5194 = vpop.f32.mrb[0].mxu0
    %5195 = vdwg.mxu0
    %v5196 = vsel %vm131, %v4961, 0
    %5198 = vmatprep.subr.mxu0 0.0
    %5199 = vmatpush1.msra.mxu0 %v4965
    %5200 = vmatprep.subr.mxu0 0.0
    %5201 = vmatpush1.msra.mxu0 %v4966
    %5202 = vmatprep.subr.mxu0 0.0
    %5203 = vmatpush1.msra.mxu0 %v4967
    %5204 = vmatprep.subr.mxu0 0.0
    %5205 = vmatpush1.msra.mxu0 %v4968
    %5206 = vmatprep.subr.mxu0 0.0
    %5207 = vmatpush1.msra.mxu0 %v4969
    %5208 = vmatprep.subr.mxu0 0.0
    %5209 = vmatpush1.msra.mxu0 %v4970
    %5210 = vmatprep.subr.mxu0 0.0
    %5211 = vmatpush1.msra.mxu0 %v4971
    %5212 = vmatprep.subr.mxu0 0.0
    %5213 = vmatpush1.msra.mxu0 %v4972
    %5214 = vmatprep.subr.mxu0 0.0
    %5215 = vmatpush1.msra.mxu0 %v4973
    %5216 = vmatprep.subr.mxu0 0.0
    %5217 = vmatpush1.msra.mxu0 %v4974
    %5218 = vmatprep.subr.mxu0 0.0
    %5219 = vmatpush1.msra.mxu0 %v4975
    %5220 = vmatprep.subr.mxu0 0.0
    %5221 = vmatpush1.msra.mxu0 %v4976
    %5222 = vmatprep.subr.mxu0 0.0
    %5223 = vmatpush1.msra.mxu0 %v4977
    %5224 = vmatprep.subr.mxu0 0.0
    %5225 = vmatpush1.msra.mxu0 %v4978
    %5226 = vmatprep.subr.mxu0 0.0
    %5227 = vmatpush1.msra.mxu0 %v4979
    %5228 = vmatprep.subr.mxu0 0.0
    %5229 = vmatpush1.msra.mxu0 %v4980
    %5230 = vmatprep.subr.mxu0 0.0
    %5231 = vmatpush1.msra.mxu0 %v4981
    %5232 = vmatprep.subr.mxu0 0.0
    %5233 = vmatpush1.msra.mxu0 %v4982
    %5234 = vmatprep.subr.mxu0 0.0
    %5235 = vmatpush1.msra.mxu0 %v4983
    %5236 = vmatprep.subr.mxu0 0.0
    %5237 = vmatpush1.msra.mxu0 %v4984
    %5238 = vmatprep.subr.mxu0 0.0
    %5239 = vmatpush1.msra.mxu0 %v4985
    %5240 = vmatprep.subr.mxu0 0.0
    %5241 = vmatpush1.msra.mxu0 %v4986
    %5242 = vmatprep.subr.mxu0 0.0
    %5243 = vmatpush1.msra.mxu0 %v4987
    %5244 = vmatprep.subr.mxu0 0.0
    %5245 = vmatpush1.msra.mxu0 %v4988
    %5246 = vmatprep.subr.mxu0 0.0
    %5247 = vmatpush1.msra.mxu0 %v4989
    %5248 = vmatprep.subr.mxu0 0.0
    %5249 = vmatpush1.msra.mxu0 %v4990
    %5250 = vmatprep.subr.mxu0 0.0
    %5251 = vmatpush1.msra.mxu0 %v4991
    %5252 = vmatprep.subr.mxu0 0.0
    %5253 = vmatpush1.msra.mxu0 %v4992
    %5254 = vmatprep.subr.mxu0 0.0
    %5255 = vmatpush1.msra.mxu0 %v4993
    %5256 = vmatprep.subr.mxu0 0.0
    %5257 = vmatpush1.msra.mxu0 %v4994
    %5258 = vmatprep.subr.mxu0 0.0
    %5259 = vmatpush1.msra.mxu0 %v4995
    %5260 = vmatprep.subr.mxu0 0.0
    %5261 = vmatpush1.msra.mxu0 %v4996
    %5262 = vmatprep.mubr.f32.mxu0 %v4960
    %5263 = vmatmul.mubr.f32.gmra.mrb[0].mxu0 %v4959
    %v5264 = vpop.f32.mrb[0].mxu0
    %v5265 = vadd.f32 %v5193, %v5264
    %v5266 = vpop.f32.mrb[0].mxu0
    %5267 = vdwg.mxu0
    %5268 = vmatprep.subr.mxu0 0.0
    %5269 = vmatpush1.msra.mxu0 %v4997
    %5270 = vmatprep.subr.mxu0 0.0
    %5271 = vmatpush1.msra.mxu0 %v4998
    %5272 = vmatprep.subr.mxu0 0.0
    %5273 = vmatpush1.msra.mxu0 %v4999
    %5274 = vmatprep.subr.mxu0 0.0
    %5275 = vmatpush1.msra.mxu0 %v5000
    %5276 = vmatprep.subr.mxu0 0.0
    %5277 = vmatpush1.msra.mxu0 %v5001
    %5278 = vmatprep.subr.mxu0 0.0
    %5279 = vmatpush1.msra.mxu0 %v5002
    %5280 = vmatprep.subr.mxu0 0.0
    %5281 = vmatpush1.msra.mxu0 %v5003
    %5282 = vmatprep.subr.mxu0 0.0
    %5283 = vmatpush1.msra.mxu0 %v5004
    %5284 = vmatprep.subr.mxu0 0.0
    %5285 = vmatpush1.msra.mxu0 0.0
    %5286 = vmatprep.subr.mxu0 0.0
    %5287 = vmatpush1.msra.mxu0 0.0
    %5288 = vmatprep.subr.mxu0 0.0
    %5289 = vmatpush1.msra.mxu0 0.0
    %5290 = vmatprep.subr.mxu0 0.0
    %5291 = vmatpush1.msra.mxu0 0.0
    %5292 = vmatprep.subr.mxu0 0.0
    %5293 = vmatpush1.msra.mxu0 0.0
    %5294 = vmatprep.subr.mxu0 0.0
    %5295 = vmatpush1.msra.mxu0 0.0
    %5296 = vmatprep.subr.mxu0 0.0
    %5297 = vmatpush1.msra.mxu0 0.0
    %5298 = vmatprep.subr.mxu0 0.0
    %5299 = vmatpush1.msra.mxu0 0.0
    %5300 = vmatprep.subr.mxu0 0.0
    %5301 = vmatpush1.msra.mxu0 0.0
    %5302 = vmatprep.subr.mxu0 0.0
    %5303 = vmatpush1.msra.mxu0 0.0
    %5304 = vmatprep.subr.mxu0 0.0
    %5305 = vmatpush1.msra.mxu0 0.0
    %5306 = vmatprep.subr.mxu0 0.0
    %5307 = vmatpush1.msra.mxu0 0.0
    %5308 = vmatprep.subr.mxu0 0.0
    %5309 = vmatpush1.msra.mxu0 0.0
    %5310 = vmatprep.subr.mxu0 0.0
    %5311 = vmatpush1.msra.mxu0 0.0
    %5312 = vmatprep.subr.mxu0 0.0
    %5313 = vmatpush1.msra.mxu0 0.0
    %5314 = vmatprep.subr.mxu0 0.0
    %5315 = vmatpush1.msra.mxu0 0.0
    %5316 = vmatprep.subr.mxu0 0.0
    %5317 = vmatpush1.msra.mxu0 0.0
    %5318 = vmatprep.subr.mxu0 0.0
    %5319 = vmatpush1.msra.mxu0 0.0
    %5320 = vmatprep.subr.mxu0 0.0
    %5321 = vmatpush1.msra.mxu0 0.0
    %5322 = vmatprep.subr.mxu0 0.0
    %5323 = vmatpush1.msra.mxu0 0.0
    %5324 = vmatprep.subr.mxu0 0.0
    %5325 = vmatpush1.msra.mxu0 0.0
    %5326 = vmatprep.subr.mxu0 0.0
    %5327 = vmatpush1.msra.mxu0 0.0
    %5328 = vmatprep.subr.mxu0 0.0
    %5329 = vmatpush1.msra.mxu0 0.0
    %5330 = vmatprep.subr.mxu0 0.0
    %5331 = vmatpush1.msra.mxu0 0.0
    %5332 = vmatprep.mubr.f32.mxu0 0.0
    %5333 = vmatmul.mubr.f32.gmra.mrb[0].mxu0 %v5196
    %v5334 = vpop.f32.mrb[0].mxu0
    %v5335 = vadd.f32 %v5265, %v5334
    %v5336 = vpop.f32.mrb[0].mxu0
    %5337 = vdwg.mxu0
    %s5338 = scalar_lea.vmem %s6, 640
    %v5339 = vld [vmem:[%s5338] sm:$0xff]
    %v5340 = vld [vmem:[%s5338 + $0x8] sm:$0xff]
    %v5341 = vld [vmem:[%s5338 + $0x10] sm:$0xff]
    %v5342 = vld [vmem:[%s5338 + $0x18] sm:$0xff]
    %v5343 = vld [vmem:[%s5338 + $0x20] sm:$0xff]
    %v5344 = vld [vmem:[%s5338 + $0x28] sm:$0xff]
    %v5345 = vld [vmem:[%s5338 + $0x30] sm:$0xff]
    %v5346 = vld [vmem:[%s5338 + $0x38] sm:$0xff]
    %v5347 = vld [vmem:[%s5338 + $0x40] sm:$0xff]
    %v5348 = vld [vmem:[%s5338 + $0x48] sm:$0xff]
    %v5349 = vld [vmem:[%s5338 + $0x50] sm:$0xff]
    %v5350 = vld [vmem:[%s5338 + $0x58] sm:$0xff]
    %v5351 = vld [vmem:[%s5338 + $0x60] sm:$0xff]
    %v5352 = vld [vmem:[%s5338 + $0x68] sm:$0xff]
    %v5353 = vld [vmem:[%s5338 + $0x70] sm:$0xff]
    %v5354 = vld [vmem:[%s5338 + $0x78] sm:$0xff]
    %v5355 = vld [vmem:[%s5338 + $0x80] sm:$0xff]
    %v5356 = vld [vmem:[%s5338 + $0x88] sm:$0xff]
    %v5357 = vld [vmem:[%s5338 + $0x90] sm:$0xff]
    %v5358 = vld [vmem:[%s5338 + $0x98] sm:$0xff]
    %v5359 = vld [vmem:[%s5338 + $0xa0] sm:$0xff]
    %v5360 = vld [vmem:[%s5338 + $0xa8] sm:$0xff]
    %v5361 = vld [vmem:[%s5338 + $0xb0] sm:$0xff]
    %v5362 = vld [vmem:[%s5338 + $0xb8] sm:$0xff]
    %v5363 = vld [vmem:[%s5338 + $0xc0] sm:$0xff]
    %v5364 = vld [vmem:[%s5338 + $0xc8] sm:$0xff]
    %v5365 = vld [vmem:[%s5338 + $0xd0] sm:$0xff]
    %v5366 = vld [vmem:[%s5338 + $0xd8] sm:$0xff]
    %v5367 = vld [vmem:[%s5338 + $0xe0] sm:$0xff]
    %v5368 = vld [vmem:[%s5338 + $0xe8] sm:$0xff]
    %v5369 = vld [vmem:[%s5338 + $0xf0] sm:$0xff]
    %v5370 = vld [vmem:[%s5338 + $0xf8] sm:$0xff]
    %v5371 = vld [vmem:[%s5338 + $0x100] sm:$0xff]
    %v5372 = vld [vmem:[%s5338 + $0x108] sm:$0xff]
    %v5373 = vld [vmem:[%s5338 + $0x110] sm:$0xff]
    %v5374 = vld [vmem:[%s5338 + $0x118] sm:$0xff]
    %v5375 = vld [vmem:[%s5338 + $0x120] sm:$0xff]
    %v5376 = vld [vmem:[%s5338 + $0x128] sm:$0xff]
    %v5377 = vld [vmem:[%s5338 + $0x130] sm:$0xff]
    %v5378 = vld [vmem:[%s5338 + $0x138] sm:$0xff]
    %v5382 = vrot.slane %v4959, 4
    %v5383 = vrot.slane %v4962, 4
    %v5384 = vsel %vm2657, %v5382, %v5383
    %v5385 = vrot.slane %v4960, 4
    %v5386 = vrot.slane %v4963, 4
    %v5387 = vsel %vm2657, %v5385, %v5386
    %v5388 = vrot.slane %v4961, 4
    %v5389 = vrot.slane %v4964, 4
    %v5390 = vsel %vm2657, %v5388, %v5389
    %v5393 = vsel %vm131, %v5390, 0
    %5395 = vmatprep.subr.mxu0 0.0
    %5396 = vmatpush1.msra.mxu0 %v5339
    %5397 = vmatprep.subr.mxu0 0.0
    %5398 = vmatpush1.msra.mxu0 %v5340
    %5399 = vmatprep.subr.mxu0 0.0
    %5400 = vmatpush1.msra.mxu0 %v5341
    %5401 = vmatprep.subr.mxu0 0.0
    %5402 = vmatpush1.msra.mxu0 %v5342
    %5403 = vmatprep.subr.mxu0 0.0
    %5404 = vmatpush1.msra.mxu0 %v5343
    %5405 = vmatprep.subr.mxu0 0.0
    %5406 = vmatpush1.msra.mxu0 %v5344
    %5407 = vmatprep.subr.mxu0 0.0
    %5408 = vmatpush1.msra.mxu0 %v5345
    %5409 = vmatprep.subr.mxu0 0.0
    %5410 = vmatpush1.msra.mxu0 %v5346
    %5411 = vmatprep.subr.mxu0 0.0
    %5412 = vmatpush1.msra.mxu0 %v5347
    %5413 = vmatprep.subr.mxu0 0.0
    %5414 = vmatpush1.msra.mxu0 %v5348
    %5415 = vmatprep.subr.mxu0 0.0
    %5416 = vmatpush1.msra.mxu0 %v5349
    %5417 = vmatprep.subr.mxu0 0.0
    %5418 = vmatpush1.msra.mxu0 %v5350
    %5419 = vmatprep.subr.mxu0 0.0
    %5420 = vmatpush1.msra.mxu0 %v5351
    %5421 = vmatprep.subr.mxu0 0.0
    %5422 = vmatpush1.msra.mxu0 %v5352
    %5423 = vmatprep.subr.mxu0 0.0
    %5424 = vmatpush1.msra.mxu0 %v5353
    %5425 = vmatprep.subr.mxu0 0.0
    %5426 = vmatpush1.msra.mxu0 %v5354
    %5427 = vmatprep.subr.mxu0 0.0
    %5428 = vmatpush1.msra.mxu0 %v5355
    %5429 = vmatprep.subr.mxu0 0.0
    %5430 = vmatpush1.msra.mxu0 %v5356
    %5431 = vmatprep.subr.mxu0 0.0
    %5432 = vmatpush1.msra.mxu0 %v5357
    %5433 = vmatprep.subr.mxu0 0.0
    %5434 = vmatpush1.msra.mxu0 %v5358
    %5435 = vmatprep.subr.mxu0 0.0
    %5436 = vmatpush1.msra.mxu0 %v5359
    %5437 = vmatprep.subr.mxu0 0.0
    %5438 = vmatpush1.msra.mxu0 %v5360
    %5439 = vmatprep.subr.mxu0 0.0
    %5440 = vmatpush1.msra.mxu0 %v5361
    %5441 = vmatprep.subr.mxu0 0.0
    %5442 = vmatpush1.msra.mxu0 %v5362
    %5443 = vmatprep.subr.mxu0 0.0
    %5444 = vmatpush1.msra.mxu0 %v5363
    %5445 = vmatprep.subr.mxu0 0.0
    %5446 = vmatpush1.msra.mxu0 %v5364
    %5447 = vmatprep.subr.mxu0 0.0
    %5448 = vmatpush1.msra.mxu0 %v5365
    %5449 = vmatprep.subr.mxu0 0.0
    %5450 = vmatpush1.msra.mxu0 %v5366
    %5451 = vmatprep.subr.mxu0 0.0
    %5452 = vmatpush1.msra.mxu0 %v5367
    %5453 = vmatprep.subr.mxu0 0.0
    %5454 = vmatpush1.msra.mxu0 %v5368
    %5455 = vmatprep.subr.mxu0 0.0
    %5456 = vmatpush1.msra.mxu0 %v5369
    %5457 = vmatprep.subr.mxu0 0.0
    %5458 = vmatpush1.msra.mxu0 %v5370
    %5459 = vmatprep.mubr.f32.mxu0 %v5387
    %5460 = vmatmul.mubr.f32.gmra.mrb[0].mxu0 %v5384
    %v5461 = vpop.f32.mrb[0].mxu0
    %v5462 = vadd.f32 0.0, %v5461
    %v5463 = vpop.f32.mrb[0].mxu0
    %5464 = vdwg.mxu0
    %5465 = vmatprep.subr.mxu0 0.0
    %5466 = vmatpush1.msra.mxu0 %v5371
    %5467 = vmatprep.subr.mxu0 0.0
    %5468 = vmatpush1.msra.mxu0 %v5372
    %5469 = vmatprep.subr.mxu0 0.0
    %5470 = vmatpush1.msra.mxu0 %v5373
    %5471 = vmatprep.subr.mxu0 0.0
    %5472 = vmatpush1.msra.mxu0 %v5374
    %5473 = vmatprep.subr.mxu0 0.0
    %5474 = vmatpush1.msra.mxu0 %v5375
    %5475 = vmatprep.subr.mxu0 0.0
    %5476 = vmatpush1.msra.mxu0 %v5376
    %5477 = vmatprep.subr.mxu0 0.0
    %5478 = vmatpush1.msra.mxu0 %v5377
    %5479 = vmatprep.subr.mxu0 0.0
    %5480 = vmatpush1.msra.mxu0 %v5378
    %5481 = vmatprep.subr.mxu0 0.0
    %5482 = vmatpush1.msra.mxu0 0.0
    %5483 = vmatprep.subr.mxu0 0.0
    %5484 = vmatpush1.msra.mxu0 0.0
    %5485 = vmatprep.subr.mxu0 0.0
    %5486 = vmatpush1.msra.mxu0 0.0
    %5487 = vmatprep.subr.mxu0 0.0
    %5488 = vmatpush1.msra.mxu0 0.0
    %5489 = vmatprep.subr.mxu0 0.0
    %5490 = vmatpush1.msra.mxu0 0.0
    %5491 = vmatprep.subr.mxu0 0.0
    %5492 = vmatpush1.msra.mxu0 0.0
    %5493 = vmatprep.subr.mxu0 0.0
    %5494 = vmatpush1.msra.mxu0 0.0
    %5495 = vmatprep.subr.mxu0 0.0
    %5496 = vmatpush1.msra.mxu0 0.0
    %5497 = vmatprep.subr.mxu0 0.0
    %5498 = vmatpush1.msra.mxu0 0.0
    %5499 = vmatprep.subr.mxu0 0.0
    %5500 = vmatpush1.msra.mxu0 0.0
    %5501 = vmatprep.subr.mxu0 0.0
    %5502 = vmatpush1.msra.mxu0 0.0
    %5503 = vmatprep.subr.mxu0 0.0
    %5504 = vmatpush1.msra.mxu0 0.0
    %5505 = vmatprep.subr.mxu0 0.0
    %5506 = vmatpush1.msra.mxu0 0.0
    %5507 = vmatprep.subr.mxu0 0.0
    %5508 = vmatpush1.msra.mxu0 0.0
    %5509 = vmatprep.subr.mxu0 0.0
    %5510 = vmatpush1.msra.mxu0 0.0
    %5511 = vmatprep.subr.mxu0 0.0
    %5512 = vmatpush1.msra.mxu0 0.0
    %5513 = vmatprep.subr.mxu0 0.0
    %5514 = vmatpush1.msra.mxu0 0.0
    %5515 = vmatprep.subr.mxu0 0.0
    %5516 = vmatpush1.msra.mxu0 0.0
    %5517 = vmatprep.subr.mxu0 0.0
    %5518 = vmatpush1.msra.mxu0 0.0
    %5519 = vmatprep.subr.mxu0 0.0
    %5520 = vmatpush1.msra.mxu0 0.0
    %5521 = vmatprep.subr.mxu0 0.0
    %5522 = vmatpush1.msra.mxu0 0.0
    %5523 = vmatprep.subr.mxu0 0.0
    %5524 = vmatpush1.msra.mxu0 0.0
    %5525 = vmatprep.subr.mxu0 0.0
    %5526 = vmatpush1.msra.mxu0 0.0
    %5527 = vmatprep.subr.mxu0 0.0
    %5528 = vmatpush1.msra.mxu0 0.0
    %5529 = vmatprep.mubr.f32.mxu0 0.0
    %5530 = vmatmul.mubr.f32.gmra.mrb[0].mxu0 %v5393
    %v5531 = vpop.f32.mrb[0].mxu0
    %v5532 = vadd.f32 %v5462, %v5531
    %v5533 = vpop.f32.mrb[0].mxu0
    %5534 = vdwg.mxu0
    %v5535 = vadd.f32 %v5335, %v5532
    %v5536 = vld [vmem:[%s7] sm:$0x1]
    %v5538 = vlaneseq
    %v5539 = vshrl.u32 %v5538, 7
    %v5540 = vsub.s32 0, %v5539
    %v5541 = vrot.slane %v5536, %v5540
    %v5543 = vadd.f32 %v5535, %v5541
    %v5544 = vmax.f32 %v5543, 0.0
    %v5545 = vld [vmem:[%s1] sm:$0x3]
    %v5546 = vld [vmem:[%s9] sm:$0xff]
    %v5547 = vld [vmem:[%s9 + $0x8] sm:$0xff]
    %v5548 = vld [vmem:[%s9 + $0x10] sm:$0xff]
    %v5549 = vld [vmem:[%s9 + $0x18] sm:$0x1]
    %v5550 = vld [vmem:[%s8] sm:$0xff]
    %v5551 = vld [vmem:[%s8 + $0x8] sm:$0xff]
    %v5552 = vld [vmem:[%s8 + $0x10] sm:$0xff]
    %v5553 = vld [vmem:[%s8 + $0x18] sm:$0xff]
    %v5554 = vld [vmem:[%s8 + $0x20] sm:$0xff]
    %v5555 = vld [vmem:[%s8 + $0x28] sm:$0xff]
    %v5556 = vld [vmem:[%s8 + $0x30] sm:$0xff]
    %v5557 = vld [vmem:[%s8 + $0x38] sm:$0xff]
    %v5558 = vld [vmem:[%s8 + $0x40] sm:$0xff]
    %v5559 = vld [vmem:[%s8 + $0x48] sm:$0xff]
    %v5560 = vld [vmem:[%s8 + $0x50] sm:$0xff]
    %v5561 = vld [vmem:[%s8 + $0x58] sm:$0xff]
    %vm5562 = vcmask 785408
    %v5564 = vsel %vm5562, %v5544, 0
    %5566 = vmatprep.subr.mxu0 0.0
    %5567 = vmatpush1.msra.mxu0 %v5550
    %5568 = vmatprep.subr.mxu0 0.0
    %5569 = vmatpush1.msra.mxu0 %v5551
    %5570 = vmatprep.subr.mxu0 0.0
    %5571 = vmatpush1.msra.mxu0 %v5552
    %5572 = vmatprep.subr.mxu0 0.0
    %5573 = vmatpush1.msra.mxu0 %v5553
    %5574 = vmatprep.subr.mxu0 0.0
    %5575 = vmatpush1.msra.mxu0 %v5554
    %5576 = vmatprep.subr.mxu0 0.0
    %5577 = vmatpush1.msra.mxu0 %v5555
    %5578 = vmatprep.subr.mxu0 0.0
    %5579 = vmatpush1.msra.mxu0 %v5556
    %5580 = vmatprep.subr.mxu0 0.0
    %5581 = vmatpush1.msra.mxu0 %v5557
    %5582 = vmatprep.subr.mxu0 0.0
    %5583 = vmatpush1.msra.mxu0 %v5558
    %5584 = vmatprep.subr.mxu0 0.0
    %5585 = vmatpush1.msra.mxu0 %v5559
    %5586 = vmatprep.subr.mxu0 0.0
    %5587 = vmatpush1.msra.mxu0 %v5560
    %5588 = vmatprep.subr.mxu0 0.0
    %5589 = vmatpush1.msra.mxu0 %v5561
    %5590 = vmatprep.subr.mxu0 0.0
    %5591 = vmatpush1.msra.mxu0 0.0
    %5592 = vmatprep.subr.mxu0 0.0
    %5593 = vmatpush1.msra.mxu0 0.0
    %5594 = vmatprep.subr.mxu0 0.0
    %5595 = vmatpush1.msra.mxu0 0.0
    %5596 = vmatprep.subr.mxu0 0.0
    %5597 = vmatpush1.msra.mxu0 0.0
    %5598 = vmatprep.subr.mxu0 0.0
    %5599 = vmatpush1.msra.mxu0 0.0
    %5600 = vmatprep.subr.mxu0 0.0
    %5601 = vmatpush1.msra.mxu0 0.0
    %5602 = vmatprep.subr.mxu0 0.0
    %5603 = vmatpush1.msra.mxu0 0.0
    %5604 = vmatprep.subr.mxu0 0.0
    %5605 = vmatpush1.msra.mxu0 0.0
    %5606 = vmatprep.subr.mxu0 0.0
    %5607 = vmatpush1.msra.mxu0 0.0
    %5608 = vmatprep.subr.mxu0 0.0
    %5609 = vmatpush1.msra.mxu0 0.0
    %5610 = vmatprep.subr.mxu0 0.0
    %5611 = vmatpush1.msra.mxu0 0.0
    %5612 = vmatprep.subr.mxu0 0.0
    %5613 = vmatpush1.msra.mxu0 0.0
    %5614 = vmatprep.subr.mxu0 0.0
    %5615 = vmatpush1.msra.mxu0 0.0
    %5616 = vmatprep.subr.mxu0 0.0
    %5617 = vmatpush1.msra.mxu0 0.0
    %5618 = vmatprep.subr.mxu0 0.0
    %5619 = vmatpush1.msra.mxu0 0.0
    %5620 = vmatprep.subr.mxu0 0.0
    %5621 = vmatpush1.msra.mxu0 0.0
    %5622 = vmatprep.subr.mxu0 0.0
    %5623 = vmatpush1.msra.mxu0 0.0
    %5624 = vmatprep.subr.mxu0 0.0
    %5625 = vmatpush1.msra.mxu0 0.0
    %5626 = vmatprep.subr.mxu0 0.0
    %5627 = vmatpush1.msra.mxu0 0.0
    %5628 = vmatprep.subr.mxu0 0.0
    %5629 = vmatpush1.msra.mxu0 0.0
    %5630 = vmatprep.mubr.f32.mxu0 0.0
    %5631 = vmatmul.mubr.f32.gmra.mrb[0].mxu0 %v5564
    %v5632 = vpop.f32.mrb[0].mxu0
    %v5633 = vadd.f32 0.0, %v5632
    %v5634 = vpop.f32.mrb[0].mxu0
    %5635 = vdwg.mxu0
    %vm5636 = vcmask 203776
    %v5638 = vsel %vm5636, %v5545, 0
    %vm5640 = vcmask 1040384
    %v5642 = vsel %vm5640, %v5549, 0
    %5644 = vmatprep.subr.mxu0 0.0
    %5645 = vmatpush1.msra.mxu0 %v5546
    %5646 = vmatprep.subr.mxu0 0.0
    %5647 = vmatpush1.msra.mxu0 %v5547
    %5648 = vmatprep.subr.mxu0 0.0
    %5649 = vmatpush1.msra.mxu0 %v5548
    %5650 = vmatprep.subr.mxu0 0.0
    %5651 = vmatpush1.msra.mxu0 %v5642
    %5652 = vmatprep.subr.mxu0 0.0
    %5653 = vmatpush1.msra.mxu0 0.0
    %5654 = vmatprep.subr.mxu0 0.0
    %5655 = vmatpush1.msra.mxu0 0.0
    %5656 = vmatprep.subr.mxu0 0.0
    %5657 = vmatpush1.msra.mxu0 0.0
    %5658 = vmatprep.subr.mxu0 0.0
    %5659 = vmatpush1.msra.mxu0 0.0
    %5660 = vmatprep.subr.mxu0 0.0
    %5661 = vmatpush1.msra.mxu0 0.0
    %5662 = vmatprep.subr.mxu0 0.0
    %5663 = vmatpush1.msra.mxu0 0.0
    %5664 = vmatprep.subr.mxu0 0.0
    %5665 = vmatpush1.msra.mxu0 0.0
    %5666 = vmatprep.subr.mxu0 0.0
    %5667 = vmatpush1.msra.mxu0 0.0
    %5668 = vmatprep.subr.mxu0 0.0
    %5669 = vmatpush1.msra.mxu0 0.0
    %5670 = vmatprep.subr.mxu0 0.0
    %5671 = vmatpush1.msra.mxu0 0.0
    %5672 = vmatprep.subr.mxu0 0.0
    %5673 = vmatpush1.msra.mxu0 0.0
    %5674 = vmatprep.subr.mxu0 0.0
    %5675 = vmatpush1.msra.mxu0 0.0
    %5676 = vmatprep.subr.mxu0 0.0
    %5677 = vmatpush1.msra.mxu0 0.0
    %5678 = vmatprep.subr.mxu0 0.0
    %5679 = vmatpush1.msra.mxu0 0.0
    %5680 = vmatprep.subr.mxu0 0.0
    %5681 = vmatpush1.msra.mxu0 0.0
    %5682 = vmatprep.subr.mxu0 0.0
    %5683 = vmatpush1.msra.mxu0 0.0
    %5684 = vmatprep.subr.mxu0 0.0
    %5685 = vmatpush1.msra.mxu0 0.0
    %5686 = vmatprep.subr.mxu0 0.0
    %5687 = vmatpush1.msra.mxu0 0.0
    %5688 = vmatprep.subr.mxu0 0.0
    %5689 = vmatpush1.msra.mxu0 0.0
    %5690 = vmatprep.subr.mxu0 0.0
    %5691 = vmatpush1.msra.mxu0 0.0
    %5692 = vmatprep.subr.mxu0 0.0
    %5693 = vmatpush1.msra.mxu0 0.0
    %5694 = vmatprep.subr.mxu0 0.0
    %5695 = vmatpush1.msra.mxu0 0.0
    %5696 = vmatprep.subr.mxu0 0.0
    %5697 = vmatpush1.msra.mxu0 0.0
    %5698 = vmatprep.subr.mxu0 0.0
    %5699 = vmatpush1.msra.mxu0 0.0
    %5700 = vmatprep.subr.mxu0 0.0
    %5701 = vmatpush1.msra.mxu0 0.0
    %5702 = vmatprep.subr.mxu0 0.0
    %5703 = vmatpush1.msra.mxu0 0.0
    %5704 = vmatprep.subr.mxu0 0.0
    %5705 = vmatpush1.msra.mxu0 0.0
    %5706 = vmatprep.subr.mxu0 0.0
    %5707 = vmatpush1.msra.mxu0 0.0
    %5708 = vmatprep.mubr.f32.mxu0 0.0
    %5709 = vmatmul.mubr.f32.gmra.mrb[0].mxu0 %v5638
    %v5710 = vpop.f32.mrb[0].mxu0
    %v5711 = vadd.f32 %v5633, %v5710
    %v5712 = vpop.f32.mrb[0].mxu0
    %5713 = vdwg.mxu0
    %s5714 = scalar_lea.vmem %s8, 96
    %v5715 = vld [vmem:[%s5714] sm:$0xff]
    %v5716 = vld [vmem:[%s5714 + $0x8] sm:$0xff]
    %v5717 = vld [vmem:[%s5714 + $0x10] sm:$0xff]
    %v5718 = vld [vmem:[%s5714 + $0x18] sm:$0xff]
    %v5719 = vld [vmem:[%s5714 + $0x20] sm:$0xff]
    %v5720 = vld [vmem:[%s5714 + $0x28] sm:$0xff]
    %v5721 = vld [vmem:[%s5714 + $0x30] sm:$0xff]
    %v5722 = vld [vmem:[%s5714 + $0x38] sm:$0xff]
    %v5723 = vld [vmem:[%s5714 + $0x40] sm:$0xff]
    %v5724 = vld [vmem:[%s5714 + $0x48] sm:$0xff]
    %v5725 = vld [vmem:[%s5714 + $0x50] sm:$0xff]
    %v5726 = vld [vmem:[%s5714 + $0x58] sm:$0xff]
    %v5727 = vrot.slane %v5544, 2
    %v5728 = vsel %vm5562, %v5727, 0
    %5730 = vmatprep.subr.mxu0 0.0
    %5731 = vmatpush1.msra.mxu0 %v5715
    %5732 = vmatprep.subr.mxu0 0.0
    %5733 = vmatpush1.msra.mxu0 %v5716
    %5734 = vmatprep.subr.mxu0 0.0
    %5735 = vmatpush1.msra.mxu0 %v5717
    %5736 = vmatprep.subr.mxu0 0.0
    %5737 = vmatpush1.msra.mxu0 %v5718
    %5738 = vmatprep.subr.mxu0 0.0
    %5739 = vmatpush1.msra.mxu0 %v5719
    %5740 = vmatprep.subr.mxu0 0.0
    %5741 = vmatpush1.msra.mxu0 %v5720
    %5742 = vmatprep.subr.mxu0 0.0
    %5743 = vmatpush1.msra.mxu0 %v5721
    %5744 = vmatprep.subr.mxu0 0.0
    %5745 = vmatpush1.msra.mxu0 %v5722
    %5746 = vmatprep.subr.mxu0 0.0
    %5747 = vmatpush1.msra.mxu0 %v5723
    %5748 = vmatprep.subr.mxu0 0.0
    %5749 = vmatpush1.msra.mxu0 %v5724
    %5750 = vmatprep.subr.mxu0 0.0
    %5751 = vmatpush1.msra.mxu0 %v5725
    %5752 = vmatprep.subr.mxu0 0.0
    %5753 = vmatpush1.msra.mxu0 %v5726
    %5754 = vmatprep.subr.mxu0 0.0
    %5755 = vmatpush1.msra.mxu0 0.0
    %5756 = vmatprep.subr.mxu0 0.0
    %5757 = vmatpush1.msra.mxu0 0.0
    %5758 = vmatprep.subr.mxu0 0.0
    %5759 = vmatpush1.msra.mxu0 0.0
    %5760 = vmatprep.subr.mxu0 0.0
    %5761 = vmatpush1.msra.mxu0 0.0
    %5762 = vmatprep.subr.mxu0 0.0
    %5763 = vmatpush1.msra.mxu0 0.0
    %5764 = vmatprep.subr.mxu0 0.0
    %5765 = vmatpush1.msra.mxu0 0.0
    %5766 = vmatprep.subr.mxu0 0.0
    %5767 = vmatpush1.msra.mxu0 0.0
    %5768 = vmatprep.subr.mxu0 0.0
    %5769 = vmatpush1.msra.mxu0 0.0
    %5770 = vmatprep.subr.mxu0 0.0
    %5771 = vmatpush1.msra.mxu0 0.0
    %5772 = vmatprep.subr.mxu0 0.0
    %5773 = vmatpush1.msra.mxu0 0.0
    %5774 = vmatprep.subr.mxu0 0.0
    %5775 = vmatpush1.msra.mxu0 0.0
    %5776 = vmatprep.subr.mxu0 0.0
    %5777 = vmatpush1.msra.mxu0 0.0
    %5778 = vmatprep.subr.mxu0 0.0
    %5779 = vmatpush1.msra.mxu0 0.0
    %5780 = vmatprep.subr.mxu0 0.0
    %5781 = vmatpush1.msra.mxu0 0.0
    %5782 = vmatprep.subr.mxu0 0.0
    %5783 = vmatpush1.msra.mxu0 0.0
    %5784 = vmatprep.subr.mxu0 0.0
    %5785 = vmatpush1.msra.mxu0 0.0
    %5786 = vmatprep.subr.mxu0 0.0
    %5787 = vmatpush1.msra.mxu0 0.0
    %5788 = vmatprep.subr.mxu0 0.0
    %5789 = vmatpush1.msra.mxu0 0.0
    %5790 = vmatprep.subr.mxu0 0.0
    %5791 = vmatpush1.msra.mxu0 0.0
    %5792 = vmatprep.subr.mxu0 0.0
    %5793 = vmatpush1.msra.mxu0 0.0
    %5794 = vmatprep.mubr.f32.mxu0 0.0
    %5795 = vmatmul.mubr.f32.gmra.mrb[0].mxu0 %v5728
    %v5796 = vpop.f32.mrb[0].mxu0
    %v5797 = vadd.f32 0.0, %v5796
    %v5798 = vpop.f32.mrb[0].mxu0
    %5799 = vdwg.mxu0
    %v5800 = vadd.f32 %v5711, %v5797
    %s5801 = scalar_lea.vmem %s8, 192
    %v5802 = vld [vmem:[%s5801] sm:$0xff]
    %v5803 = vld [vmem:[%s5801 + $0x8] sm:$0xff]
    %v5804 = vld [vmem:[%s5801 + $0x10] sm:$0xff]
    %v5805 = vld [vmem:[%s5801 + $0x18] sm:$0xff]
    %v5806 = vld [vmem:[%s5801 + $0x20] sm:$0xff]
    %v5807 = vld [vmem:[%s5801 + $0x28] sm:$0xff]
    %v5808 = vld [vmem:[%s5801 + $0x30] sm:$0xff]
    %v5809 = vld [vmem:[%s5801 + $0x38] sm:$0xff]
    %v5810 = vld [vmem:[%s5801 + $0x40] sm:$0xff]
    %v5811 = vld [vmem:[%s5801 + $0x48] sm:$0xff]
    %v5812 = vld [vmem:[%s5801 + $0x50] sm:$0xff]
    %v5813 = vld [vmem:[%s5801 + $0x58] sm:$0xff]
    %v5814 = vrot.slane %v5544, 4
    %v5815 = vsel %vm5562, %v5814, 0
    %5817 = vmatprep.subr.mxu0 0.0
    %5818 = vmatpush1.msra.mxu0 %v5802
    %5819 = vmatprep.subr.mxu0 0.0
    %5820 = vmatpush1.msra.mxu0 %v5803
    %5821 = vmatprep.subr.mxu0 0.0
    %5822 = vmatpush1.msra.mxu0 %v5804
    %5823 = vmatprep.subr.mxu0 0.0
    %5824 = vmatpush1.msra.mxu0 %v5805
    %5825 = vmatprep.subr.mxu0 0.0
    %5826 = vmatpush1.msra.mxu0 %v5806
    %5827 = vmatprep.subr.mxu0 0.0
    %5828 = vmatpush1.msra.mxu0 %v5807
    %5829 = vmatprep.subr.mxu0 0.0
    %5830 = vmatpush1.msra.mxu0 %v5808
    %5831 = vmatprep.subr.mxu0 0.0
    %5832 = vmatpush1.msra.mxu0 %v5809
    %5833 = vmatprep.subr.mxu0 0.0
    %5834 = vmatpush1.msra.mxu0 %v5810
    %5835 = vmatprep.subr.mxu0 0.0
    %5836 = vmatpush1.msra.mxu0 %v5811
    %5837 = vmatprep.subr.mxu0 0.0
    %5838 = vmatpush1.msra.mxu0 %v5812
    %5839 = vmatprep.subr.mxu0 0.0
    %5840 = vmatpush1.msra.mxu0 %v5813
    %5841 = vmatprep.subr.mxu0 0.0
    %5842 = vmatpush1.msra.mxu0 0.0
    %5843 = vmatprep.subr.mxu0 0.0
    %5844 = vmatpush1.msra.mxu0 0.0
    %5845 = vmatprep.subr.mxu0 0.0
    %5846 = vmatpush1.msra.mxu0 0.0
    %5847 = vmatprep.subr.mxu0 0.0
    %5848 = vmatpush1.msra.mxu0 0.0
    %5849 = vmatprep.subr.mxu0 0.0
    %5850 = vmatpush1.msra.mxu0 0.0
    %5851 = vmatprep.subr.mxu0 0.0
    %5852 = vmatpush1.msra.mxu0 0.0
    %5853 = vmatprep.subr.mxu0 0.0
    %5854 = vmatpush1.msra.mxu0 0.0
    %5855 = vmatprep.subr.mxu0 0.0
    %5856 = vmatpush1.msra.mxu0 0.0
    %5857 = vmatprep.subr.mxu0 0.0
    %5858 = vmatpush1.msra.mxu0 0.0
    %5859 = vmatprep.subr.mxu0 0.0
    %5860 = vmatpush1.msra.mxu0 0.0
    %5861 = vmatprep.subr.mxu0 0.0
    %5862 = vmatpush1.msra.mxu0 0.0
    %5863 = vmatprep.subr.mxu0 0.0
    %5864 = vmatpush1.msra.mxu0 0.0
    %5865 = vmatprep.subr.mxu0 0.0
    %5866 = vmatpush1.msra.mxu0 0.0
    %5867 = vmatprep.subr.mxu0 0.0
    %5868 = vmatpush1.msra.mxu0 0.0
    %5869 = vmatprep.subr.mxu0 0.0
    %5870 = vmatpush1.msra.mxu0 0.0
    %5871 = vmatprep.subr.mxu0 0.0
    %5872 = vmatpush1.msra.mxu0 0.0
    %5873 = vmatprep.subr.mxu0 0.0
    %5874 = vmatpush1.msra.mxu0 0.0
    %5875 = vmatprep.subr.mxu0 0.0
    %5876 = vmatpush1.msra.mxu0 0.0
    %5877 = vmatprep.subr.mxu0 0.0
    %5878 = vmatpush1.msra.mxu0 0.0
    %5879 = vmatprep.subr.mxu0 0.0
    %5880 = vmatpush1.msra.mxu0 0.0
    %5881 = vmatprep.mubr.f32.mxu0 0.0
    %5882 = vmatmul.mubr.f32.gmra.mrb[0].mxu0 %v5815
    %v5883 = vpop.f32.mrb[0].mxu0
    %v5884 = vadd.f32 0.0, %v5883
    %v5885 = vpop.f32.mrb[0].mxu0
    %5886 = vdwg.mxu0
    %v5887 = vadd.f32 %v5800, %v5884
    %v5888 = vld [vmem:[%s10] sm:$0x1]
    %v5890 = vlaneseq
    %v5891 = vshrl.u32 %v5890, 7
    %v5892 = vsub.s32 0, %v5891
    %v5893 = vrot.slane %v5888, %v5892
    %v5895 = vadd.f32 %v5887, %v5893
    %v5896 = vmax.f32 %v5895, 0.0
    %v5897 = vld [vmem:[%s11] sm:$0xff]
    %v5898 = vld [vmem:[%s11 + $0x8] sm:$0xff]
    %v5899 = vld [vmem:[%s11 + $0x10] sm:$0xff]
    %v5900 = vld [vmem:[%s11 + $0x18] sm:$0xff]
    %v5901 = vld [vmem:[%s11 + $0x20] sm:$0xff]
    %v5902 = vld [vmem:[%s11 + $0x28] sm:$0xff]
    %v5903 = vld [vmem:[%s11 + $0x30] sm:$0xff]
    %v5904 = vld [vmem:[%s11 + $0x38] sm:$0xff]
    %v5905 = vld [vmem:[%s12] sm:$0x1]
    %v5907 = vlaneseq
    %v5908 = vshrl.u32 %v5907, 7
    %v5909 = vsub.s32 0, %v5908
    %v5910 = vrot.slane %v5905, %v5909
    %v5913 = vsel %vm131, %v5896, 0
    %5915 = vmatprep.subr.mxu0 0.0
    %5916 = vmatpush1.msra.mxu0 %v5897
    %5917 = vmatprep.subr.mxu0 0.0
    %5918 = vmatpush1.msra.mxu0 %v5898
    %5919 = vmatprep.subr.mxu0 0.0
    %5920 = vmatpush1.msra.mxu0 %v5899
    %5921 = vmatprep.subr.mxu0 0.0
    %5922 = vmatpush1.msra.mxu0 %v5900
    %5923 = vmatprep.subr.mxu0 0.0
    %5924 = vmatpush1.msra.mxu0 %v5901
    %5925 = vmatprep.subr.mxu0 0.0
    %5926 = vmatpush1.msra.mxu0 %v5902
    %5927 = vmatprep.subr.mxu0 0.0
    %5928 = vmatpush1.msra.mxu0 %v5903
    %5929 = vmatprep.subr.mxu0 0.0
    %5930 = vmatpush1.msra.mxu0 %v5904
    %5931 = vmatprep.subr.mxu0 0.0
    %5932 = vmatpush1.msra.mxu0 0.0
    %5933 = vmatprep.subr.mxu0 0.0
    %5934 = vmatpush1.msra.mxu0 0.0
    %5935 = vmatprep.subr.mxu0 0.0
    %5936 = vmatpush1.msra.mxu0 0.0
    %5937 = vmatprep.subr.mxu0 0.0
    %5938 = vmatpush1.msra.mxu0 0.0
    %5939 = vmatprep.subr.mxu0 0.0
    %5940 = vmatpush1.msra.mxu0 0.0
    %5941 = vmatprep.subr.mxu0 0.0
    %5942 = vmatpush1.msra.mxu0 0.0
    %5943 = vmatprep.subr.mxu0 0.0
    %5944 = vmatpush1.msra.mxu0 0.0
    %5945 = vmatprep.subr.mxu0 0.0
    %5946 = vmatpush1.msra.mxu0 0.0
    %5947 = vmatprep.subr.mxu0 0.0
    %5948 = vmatpush1.msra.mxu0 0.0
    %5949 = vmatprep.subr.mxu0 0.0
    %5950 = vmatpush1.msra.mxu0 0.0
    %5951 = vmatprep.subr.mxu0 0.0
    %5952 = vmatpush1.msra.mxu0 0.0
    %5953 = vmatprep.subr.mxu0 0.0
    %5954 = vmatpush1.msra.mxu0 0.0
    %5955 = vmatprep.subr.mxu0 0.0
    %5956 = vmatpush1.msra.mxu0 0.0
    %5957 = vmatprep.subr.mxu0 0.0
    %5958 = vmatpush1.msra.mxu0 0.0
    %5959 = vmatprep.subr.mxu0 0.0
    %5960 = vmatpush1.msra.mxu0 0.0
    %5961 = vmatprep.subr.mxu0 0.0
    %5962 = vmatpush1.msra.mxu0 0.0
    %5963 = vmatprep.subr.mxu0 0.0
    %5964 = vmatpush1.msra.mxu0 0.0
    %5965 = vmatprep.subr.mxu0 0.0
    %5966 = vmatpush1.msra.mxu0 0.0
    %5967 = vmatprep.subr.mxu0 0.0
    %5968 = vmatpush1.msra.mxu0 0.0
    %5969 = vmatprep.subr.mxu0 0.0
    %5970 = vmatpush1.msra.mxu0 0.0
    %5971 = vmatprep.subr.mxu0 0.0
    %5972 = vmatpush1.msra.mxu0 0.0
    %5973 = vmatprep.subr.mxu0 0.0
    %5974 = vmatpush1.msra.mxu0 0.0
    %5975 = vmatprep.subr.mxu0 0.0
    %5976 = vmatpush1.msra.mxu0 0.0
    %5977 = vmatprep.subr.mxu0 0.0
    %5978 = vmatpush1.msra.mxu0 0.0
    %5979 = vmatprep.mubr.f32.mxu0 0.0
    %5980 = vmatmul.mubr.f32.gmra.mrb[0].mxu0 %v5913
    %v5981 = vpop.f32.mrb[0].mxu0
    %v5982 = vadd.f32 %v5910, %v5981
    %v5983 = vpop.f32.mrb[0].mxu0
    %5984 = vdwg.mxu0
    %v5985 = vlaneseq
    %v5986 = vand.u32 %v5985, 127
    %vm5987 = vcmp.lt.s32.totalorder %v5986, 4
    %v5988 = vsel %vm5987, %v5982, -1e+30
    %vm5989 = vcmask 1041408
    %v5990 = vsel %vm5989, %v5988, -inf
    %5991 = vmax.xlane.f32.xlu0 %v5990
    %v5992 = vpop.xlane.xlu0 %5991
    %v5993 = vsub.f32 %v5988, %v5992
    %v5994 = vmul.f32 %v5993, 1.442695
    %v5995 = vpow.pop %v5994
    %v5996 = vsel %vm5989, %v5995, 0.0
    %5997 = vadd.xlane.f32.xlu0 %v5996
    %v5998 = vpop.xlane.xlu0 %5997
    %v5999 = vrcp.pop %v5998
    %v6000 = vmul.f32 %v5995, %v5999
    %vm6001 = vcmp.eq.s32.totalorder %v5986, 4
    %v6002 = vsel %vm6001, %v5982, 0.0
    %v6003 = vadd.f32 %v6000, %v6002
    %6004 = vst [vmem:[%s13] sm:$0x3] %v6003
    // Predicated region
    $region58: #{forward.1} parent=1 // pred_check
      _
    $region59: #{forward.1} parent=1 // pred_check_branch
      %6006 = sbr.rel (0) target = $region61
    $region60: #{forward.1} parent=1 // pred_region
      _
    $region61: #{forward.1} parent=1 // pred_fallthru
      _
    // Predicated region
    $region62: #{forward.1} parent=1 // pred_check
      _
    $region63: #{forward.1} parent=1 // pred_check_branch
      %6008 = sbr.rel (0) target = $region65
    $region64: #{forward.1} parent=1 // pred_region
      _
    $region65: #{forward.1} parent=1 // pred_fallthru
      _
    %6009 = vsyncpa [#allocation3], 1

</llo_original>
